<compile_context>
chip_gen: v7x
topology: tpu7x:2x2x1
jax: 0.10.0
libtpu: 0.0.40
codegen_flags: <defaults>
</compile_context>

<pallas_src>
import numpy as np

import jax
import jax.numpy as jnp
from jax.experimental import pallas as pl
from jax.experimental.pallas import tpu as pltpu

# ----------------------- hyper-parameters (small config) -----------------------
VOCAB = 40
D_MODEL = 32           # encoder_dim = decoder_dim = decoder_output_size
N_LAYERS = 2
N_HEAD = 2
D_K = 16
D_V = 16
D_INNER = 64           # fft conv1d filter size
FFT_K1, FFT_P1 = 9, 4  # first conv in the FFT FFN
FFT_K2, FFT_P2 = 1, 0  # second conv (K=1 -> plain matmul)
NUM_MELS = 16
POSTNET_DIM = 32
POSTNET_K, POSTNET_P = 5, 2
N_POSTNET = 5
MAX_POS = 64
EPS_LN = 1e-5
EPS_BN = 1e-5

B = 2
T_SRC = 8
MEL_MAX = 24

PAD_OFF = 8                       # conv pad scratch offset (pad <= 8)
OUT_LANES = 128                   # lane-dense packed output width
EMB_ROWS = 2 * VOCAB + MAX_POS + 1  # [emb1; emb2; pos_table] = 145 rows
HEAD_SEG = 128                    # per-head lane-aligned segment width

_ATTN_SCALE = 1.0 / float(np.sqrt(D_K))


# ----------------------------- in-kernel helpers -----------------------------
def _mxu(a, b):
    """bf16 MXU matmul with f32 accumulation (no-op cast if already bf16)."""
    return jnp.dot(a.astype(jnp.bfloat16), b.astype(jnp.bfloat16),
                   preferred_element_type=jnp.float32)


def _layer_norm(x, g, b):
    mu = jnp.mean(x, axis=-1, keepdims=True)
    var = jnp.mean(jnp.square(x - mu), axis=-1, keepdims=True)
    return (x - mu) * jax.lax.rsqrt(var + EPS_LN) * g + b


def _softmax_lanes(s):
    s = s - jnp.max(s, axis=-1, keepdims=True)
    p = jnp.exp(s)
    return p * pl.reciprocal(jnp.sum(p, axis=-1, keepdims=True), approx=True)


def _cell(v, dtype):
    """Broadcast one (traced) scalar to a (1, 1) tile."""
    return jnp.full((1, 1), v, dtype)


def _conv1d(pad_ref, x, w, bias, ksize, pad, activation=None):
    """'same' Conv1d as ONE im2col MXU matmul (tap accumulation on the MXU).

    x:    [T, Cin]      f32
    w:    [K*Cin, Cout] bf16, w[k*Cin + ci, co] = conv_w[k, ci, co]
    bias: [1, Cout]     f32
    pad_ref: persistent pre-zeroed VMEM scratch; x is written into rows
             [PAD_OFF, PAD_OFF+T), the zero pad rows are never written.
    """
    assert pad <= PAD_OFF
    t, cin = x.shape
    pad_ref[PAD_OFF:PAD_OFF + t, :cin] = x
    taps = [pad_ref[PAD_OFF - pad + k:PAD_OFF - pad + k + t, :cin]
            for k in range(ksize)]
    xcol = jnp.concatenate(taps, axis=1)                 # [T, K*Cin]
    y = _mxu(xcol, w) + bias
    if activation == "relu":
        y = jnp.maximum(y, 0.0)
    elif activation == "tanh":
        y = jnp.tanh(y)
    return y


def _fft_block(x, nonpad_col, key_bias, li, w_refs, pad_ref):
    """FFT block: lane-aligned multi-head attention + im2col conv FFN."""
    (qkv_w_ref, qkv_b_ref, fc_w_ref, c1_w_ref, c1_b_ref, c2_w_ref, misc_ref) = w_refs
    misc = misc_ref[li]                                  # (6, D_MODEL) f32
    fc_b, ln1_g, ln1_b = misc[0:1], misc[1:2], misc[2:3]
    c2_b, ln2_g, ln2_b = misc[3:4], misc[4:5], misc[5:6]

    # ---- multi-head self-attention (fused QKV, 128-lane head segments) ----
    residual = x
    qkv = _mxu(x, qkv_w_ref[li]) + qkv_b_ref[li]         # (T, 3*H*128)
    heads = []
    for h in range(N_HEAD):
        q = qkv[:, h * HEAD_SEG:(h + 1) * HEAD_SEG]
        k = qkv[:, (N_HEAD + h) * HEAD_SEG:(N_HEAD + h + 1) * HEAD_SEG]
        v = qkv[:, (2 * N_HEAD + h) * HEAD_SEG:(2 * N_HEAD + h + 1) * HEAD_SEG]
        s = _mxu(q, k.T) * _ATTN_SCALE + key_bias        # padded lanes are exact zeros
        p = _softmax_lanes(s)
        heads.append(_mxu(p, v))                         # (T, 128), lanes D_V: are zero
    attn = _mxu(jnp.concatenate(heads, axis=1), fc_w_ref[li]) + fc_b
    x = _layer_norm(attn + residual, ln1_g, ln1_b) * nonpad_col

    # ---- position-wise conv FFN ----
    residual = x
    h1 = _conv1d(pad_ref, x, c1_w_ref[li], c1_b_ref[li], FFT_K1, FFT_P1, "relu")
    h2 = _mxu(h1, c2_w_ref[li]) + c2_b                   # K=1 conv == matmul
    x = _layer_norm(h2 + residual, ln2_g, ln2_b) * nonpad_col
    return x


# ----------------------------- the fused kernel -----------------------------
def _fastspeech_kernel(
    # scalar prefetch (SMEM)
    s1_ref, s2_ref, sp_ref, mp_ref, lt_ref,
    # VMEM-resident weight slabs
    emb_ref, qkv_w_ref, qkv_b_ref, fc_w_ref, c1_w_ref, c1_b_ref, c2_w_ref,
    misc_ref, mel_w_ref, mel_b_ref, pn_w_ref, pn_b_ref,
    # output: [1, MEL_MAX, 128] = [mel | mel_post | zero pad] on lanes
    out_ref,
    # scratch: persistent conv pad buffer
    pad_ref,
):
    b = pl.program_id(0)
    fft_refs = (qkv_w_ref, qkv_b_ref, fc_w_ref, c1_w_ref, c1_b_ref, c2_w_ref, misc_ref)

    # zero the conv pad scratch once per grid step (pad rows then stay zero)
    pad_ref[...] = jnp.zeros((MEL_MAX + 2 * PAD_OFF, D_MODEL), jnp.float32)

    # -------- in-kernel prep: gathers, masks, duration cumsum --------
    s1r, s1c, s2c, spc, dsr, der = [], [], [], [], [], []
    run = jnp.zeros((), jnp.int32)
    for t in range(T_SRC):
        i1 = s1_ref[b, t]
        i2 = s2_ref[b, t]
        ip = sp_ref[b, t]
        lt = lt_ref[b, t]
        s1r.append(_cell(i1, jnp.int32))
        s1c.append(_cell(i1, jnp.int32))
        s2c.append(_cell(i2, jnp.int32))
        spc.append(_cell(ip, jnp.int32))
        dsr.append(_cell(run.astype(jnp.float32), jnp.float32))
        run = run + lt
        der.append(_cell(run.astype(jnp.float32), jnp.float32))
    s1_row = jnp.concatenate(s1r, axis=1)                # (1, T_SRC) i32
    s1_col = jnp.concatenate(s1c, axis=0)                # (T_SRC, 1) i32
    s2_col = jnp.concatenate(s2c, axis=0)
    sp_col = jnp.concatenate(spc, axis=0)
    dur_s = jnp.concatenate(dsr, axis=1)                 # (1, T_SRC) f32
    dur_e = jnp.concatenate(der, axis=1)

    # encoder input embedding: combined one-hot over [emb1; emb2; pos_table] -> ONE matmul
    lane = jax.lax.broadcasted_iota(jnp.int32, (T_SRC, EMB_ROWS), 1)
    hot = ((lane == s1_col) | (lane == s2_col + VOCAB) | (lane == sp_col + 2 * VOCAB))
    x = _mxu(jnp.where(hot, 1.0, 0.0), emb_ref[...])     # (T_SRC, D_MODEL)

    enc_np = jnp.where(s1_col != 0, 1.0, 0.0)            # (T_SRC, 1)
    enc_kb = jnp.where(s1_row == 0, -1e9, 0.0)           # (1, T_SRC) additive key bias

    # -------- encoder --------
    for li in range(N_LAYERS):
        x = _fft_block(x, enc_np, enc_kb, li, fft_refs, pad_ref)

    # -------- length regulator: alignment built in-register --------
    frame = jax.lax.broadcasted_iota(jnp.int32, (MEL_MAX, T_SRC), 0).astype(jnp.float32)
    align = jnp.where((frame >= dur_s) & (frame < dur_e), 1.0, 0.0)
    x = _mxu(align, x)                                   # (MEL_MAX, D_MODEL)

    # -------- decoder prep (mel positional gather + masks) --------
    mpr, mpc = [], []
    for m in range(MEL_MAX):
        im = mp_ref[b, m]
        mpr.append(_cell(im, jnp.int32))
        mpc.append(_cell(im, jnp.int32))
    mp_row = jnp.concatenate(mpr, axis=1)                # (1, MEL_MAX)
    mp_col = jnp.concatenate(mpc, axis=0)                # (MEL_MAX, 1)
    lane_m = jax.lax.broadcasted_iota(jnp.int32, (MEL_MAX, EMB_ROWS), 1)
    hot_m = (lane_m == mp_col + 2 * VOCAB)               # pos_table segment (row 0 is zeros)
    pos_dec = _mxu(jnp.where(hot_m, 1.0, 0.0), emb_ref[...])
    mel_np = jnp.where(mp_col != 0, 1.0, 0.0)            # (MEL_MAX, 1)
    mel_kb = jnp.where(mp_row == 0, -1e9, 0.0)           # (1, MEL_MAX)

    # -------- decoder --------
    x = x + pos_dec
    for li in range(N_LAYERS, 2 * N_LAYERS):
        x = _fft_block(x, mel_np, mel_kb, li, fft_refs, pad_ref)

    # -------- mel linear + PostNet (+ residual) --------
    mel = _mxu(x, mel_w_ref[...]) + mel_b_ref[...]       # (MEL_MAX, NUM_MELS)
    h = mel
    cin = NUM_MELS
    for i in range(N_POSTNET):
        kcin = POSTNET_K * cin
        act = "tanh" if i < N_POSTNET - 1 else None
        h = _conv1d(pad_ref, h, pn_w_ref[i, :kcin, :], pn_b_ref[i],
                    POSTNET_K, POSTNET_P, activation=act)
        cin = POSTNET_DIM
    mel_post = h[:, :NUM_MELS] + mel                     # last layer cout padded -> slice

    # -------- lane-dense packed output store (128 lanes, unmasked vst) --------
    out_ref[0] = jnp.concatenate(
        [mel, mel_post,
         jnp.zeros((MEL_MAX, OUT_LANES - 2 * NUM_MELS), jnp.float32)], axis=1)


# ----------------------------- parameters -----------------------------
def sinusoid_table(n_pos, d):
    pos = np.arange(n_pos)[:, None].astype(np.float64)
    i = np.arange(d)[None, :]
    angle = pos / np.power(10000, 2 * (i // 2) / d)
    tab = np.zeros((n_pos, d))
    tab[:, 0::2] = np.sin(angle[:, 0::2])
    tab[:, 1::2] = np.cos(angle[:, 1::2])
    tab[0] = 0.0  # padding_idx = 0
    return jnp.asarray(tab, jnp.float32)


class KeyGen:
    def __init__(self, seed):
        self.key = jax.random.PRNGKey(seed)

    def __call__(self):
        self.key, sub = jax.random.split(self.key)
        return sub


def _init(key, shape, scale=0.1):
    return scale * jax.random.normal(key, shape, jnp.float32)


def init_params(seed=1):
    kg = KeyGen(seed)

    def fft_params():
        return dict(
            wq=_init(kg(), (D_MODEL, N_HEAD * D_K)), bq=jnp.zeros((N_HEAD * D_K,), jnp.float32),
            wk=_init(kg(), (D_MODEL, N_HEAD * D_K)), bk=jnp.zeros((N_HEAD * D_K,), jnp.float32),
            wv=_init(kg(), (D_MODEL, N_HEAD * D_V)), bv=jnp.zeros((N_HEAD * D_V,), jnp.float32),
            fc_w=_init(kg(), (N_HEAD * D_V, D_MODEL)), fc_b=jnp.zeros((D_MODEL,), jnp.float32),
            ln1_g=jnp.ones((D_MODEL,), jnp.float32), ln1_b=jnp.zeros((D_MODEL,), jnp.float32),
            c1_w=_init(kg(), (FFT_K1, D_MODEL, D_INNER)), c1_b=_init(kg(), (D_INNER,)),
            c2_w=_init(kg(), (FFT_K2, D_INNER, D_MODEL)), c2_b=_init(kg(), (D_MODEL,)),
            ln2_g=jnp.ones((D_MODEL,), jnp.float32), ln2_b=jnp.zeros((D_MODEL,), jnp.float32),
        )

    emb1 = _init(kg(), (VOCAB, D_MODEL)).at[0].set(0.0)
    emb2 = _init(kg(), (VOCAB, D_MODEL)).at[0].set(0.0)

    chans = [NUM_MELS] + [POSTNET_DIM] * (N_POSTNET - 1) + [NUM_MELS]
    postnet_layers = []
    for i in range(N_POSTNET):
        cin, cout = chans[i], chans[i + 1]
        postnet_layers.append(dict(
            w=_init(kg(), (POSTNET_K, cin, cout)), b=jnp.zeros((cout,), jnp.float32),
            bn_g=jnp.ones((cout,), jnp.float32), bn_b=jnp.zeros((cout,), jnp.float32),
            bn_m=jnp.zeros((cout,), jnp.float32), bn_v=jnp.ones((cout,), jnp.float32),
        ))

    return dict(
        emb1=emb1, emb2=emb2,
        pos_table=sinusoid_table(MAX_POS + 1, D_MODEL),
        enc_layers=[fft_params() for _ in range(N_LAYERS)],
        dec_layers=[fft_params() for _ in range(N_LAYERS)],
        mel_w=_init(kg(), (D_MODEL, NUM_MELS)), mel_b=jnp.zeros((NUM_MELS,), jnp.float32),
        postnet=postnet_layers,
    )


def pack_params(params):
    """Pack / stack / pad / fold all weights into 12 kernel-ready slabs (done once)."""
    bf16 = lambda a: a.astype(jnp.bfloat16)

    # fused gather table: [emb1; emb2; pos_table] -> (145, D_MODEL)
    emb = jnp.concatenate([params["emb1"], params["emb2"], params["pos_table"]], axis=0)

    qkv_w, qkv_b, fc_w, c1_w, c1_b, c2_w, misc = [], [], [], [], [], [], []
    for lp in list(params["enc_layers"]) + list(params["dec_layers"]):
        # 128-lane-aligned head segments, order [Q0 Q1 K0 K1 V0 V1]
        w_segs, b_segs = [], []
        for (w, bias, dh) in ((lp["wq"], lp["bq"], D_K),
                              (lp["wk"], lp["bk"], D_K),
                              (lp["wv"], lp["bv"], D_V)):
            for h in range(N_HEAD):
                w_segs.append(jnp.pad(w[:, h * dh:(h + 1) * dh],
                                      ((0, 0), (0, HEAD_SEG - dh))))
                b_segs.append(jnp.pad(bias[h * dh:(h + 1) * dh], (0, HEAD_SEG - dh)))
        qkv_w.append(jnp.concatenate(w_segs, axis=1))            # (D_MODEL, 6*128)
        qkv_b.append(jnp.concatenate(b_segs)[None, :])           # (1, 6*128)

        fcp = jnp.zeros((N_HEAD * HEAD_SEG, D_MODEL), jnp.float32)
        for h in range(N_HEAD):
            fcp = fcp.at[h * HEAD_SEG:h * HEAD_SEG + D_V].set(
                lp["fc_w"][h * D_V:(h + 1) * D_V])
        fc_w.append(fcp)                                         # (H*128, D_MODEL)

        c1_w.append(lp["c1_w"].reshape(FFT_K1 * D_MODEL, D_INNER))   # im2col layout
        c1_b.append(lp["c1_b"][None, :])
        c2_w.append(lp["c2_w"].reshape(D_INNER, D_MODEL))
        misc.append(jnp.stack([lp["fc_b"], lp["ln1_g"], lp["ln1_b"],
                               lp["c2_b"], lp["ln2_g"], lp["ln2_b"]]))   # (6, D_MODEL)

    pn_w, pn_b = [], []
    kcin_max = POSTNET_K * POSTNET_DIM
    for lp in params["postnet"]:
        k, cin, cout = lp["w"].shape
        # eval-mode BatchNorm folded exactly into the conv weight / bias
        scale = lp["bn_g"] / jnp.sqrt(lp["bn_v"] + EPS_BN)
        wf = (lp["w"] * scale[None, None, :]).reshape(k * cin, cout)
        bfold = (lp["b"] - lp["bn_m"]) * scale + lp["bn_b"]
        pn_w.append(jnp.pad(wf, ((0, kcin_max - k * cin), (0, POSTNET_DIM - cout))))
        pn_b.append(jnp.pad(bfold, (0, POSTNET_DIM - cout))[None, :])

    return dict(
        emb=bf16(emb),
        qkv_w=bf16(jnp.stack(qkv_w)), qkv_b=jnp.stack(qkv_b),
        fc_w=bf16(jnp.stack(fc_w)),
        c1_w=bf16(jnp.stack(c1_w)), c1_b=jnp.stack(c1_b),
        c2_w=bf16(jnp.stack(c2_w)),
        fft_misc=jnp.stack(misc),
        mel_w=bf16(params["mel_w"]), mel_b=params["mel_b"][None, :],
        pn_w=bf16(jnp.stack(pn_w)), pn_b=jnp.stack(pn_b),
    )


# ----------------------------- forward (wrapper) -----------------------------
def fastspeech_forward(packed, src_seq1, src_seq2, src_pos, mel_pos, length_target):
    batch = src_seq1.shape[0]

    weight_inputs = [packed["emb"], packed["qkv_w"], packed["qkv_b"], packed["fc_w"],
                     packed["c1_w"], packed["c1_b"], packed["c2_w"], packed["fft_misc"],
                     packed["mel_w"], packed["mel_b"], packed["pn_w"], packed["pn_b"]]

    def weight_spec(a):   # grid-invariant full-array block: DMA'd once, stays VMEM-resident
        nd = a.ndim
        return pl.BlockSpec(a.shape, lambda i, *_args, n=nd: (0,) * n)

    out_spec = pl.BlockSpec((1, MEL_MAX, OUT_LANES), lambda i, *_args: (i, 0, 0))

    grid_spec = pltpu.PrefetchScalarGridSpec(
        num_scalar_prefetch=5,
        grid=(batch,),
        in_specs=[weight_spec(a) for a in weight_inputs],
        out_specs=out_spec,
        scratch_shapes=[pltpu.VMEM((MEL_MAX + 2 * PAD_OFF, D_MODEL), jnp.float32)],
    )

    out = pl.pallas_call(
        _fastspeech_kernel,
        grid_spec=grid_spec,
        out_shape=jax.ShapeDtypeStruct((batch, MEL_MAX, OUT_LANES), jnp.float32),
        compiler_params=pltpu.CompilerParams(
            dimension_semantics=("parallel",)),   # v7x: one batch row per TensorCore
    )(src_seq1.astype(jnp.int32), src_seq2.astype(jnp.int32), src_pos.astype(jnp.int32),
      mel_pos.astype(jnp.int32), length_target.astype(jnp.int32), *weight_inputs)

    mel = out[:, :, :NUM_MELS]
    mel_post = out[:, :, NUM_MELS:2 * NUM_MELS]
    return mel, mel_post


# ----------------------------- driver -----------------------------
if __name__ == "__main__":
    key = jax.random.PRNGKey(0)
    k1, k2, k3 = jax.random.split(key, 3)
    src_seq1 = jax.random.randint(k1, (B, T_SRC), 1, VOCAB).astype(jnp.int32)
    src_seq2 = jax.random.randint(k2, (B, T_SRC), 1, VOCAB).astype(jnp.int32)
    src_pos = jnp.tile(jnp.arange(1, T_SRC + 1, dtype=jnp.int32)[None, :], (B, 1))
    length_target = jax.random.randint(k3, (B, T_SRC), 1, 4).astype(jnp.int32)  # sum <= MEL_MAX
    total = jnp.sum(length_target, axis=-1)                                     # [B]
    mel_pos = (jnp.arange(MEL_MAX, dtype=jnp.int32)[None, :] < total[:, None]).astype(jnp.int32) \
        * jnp.arange(1, MEL_MAX + 1, dtype=jnp.int32)[None, :]

    params = init_params(seed=1)
    packed = pack_params(params)     # one-time weight packing (QKV head-pad, im2col, BN fold)

    fwd = jax.jit(fastspeech_forward)
    mel, mel_post = fwd(packed, src_seq1, src_seq2, src_pos, mel_pos, length_target)
    mel = jax.block_until_ready(mel)
    mel_post = jax.block_until_ready(mel_post)

    assert mel.shape == (B, MEL_MAX, NUM_MELS)
    assert mel_post.shape == (B, MEL_MAX, NUM_MELS)
    assert bool(jnp.all(jnp.isfinite(mel))) and bool(jnp.all(jnp.isfinite(mel_post)))
    print("KERNEL_OK")
</pallas_src>

<mosaic_0001>
module attributes {stable_mosaic.version = 11 : i64} {
  func.func @_fastspeech_kernel(%arg0: i32, %arg1: memref<2x8xi32, #tpu.memory_space<smem>>, %arg2: memref<2x8xi32, #tpu.memory_space<smem>>, %arg3: memref<2x8xi32, #tpu.memory_space<smem>>, %arg4: memref<2x24xi32, #tpu.memory_space<smem>>, %arg5: memref<2x8xi32, #tpu.memory_space<smem>>, %arg6: memref<145x32xbf16, #tpu.memory_space<vmem>>, %arg7: memref<4x32x768xbf16, #tpu.memory_space<vmem>>, %arg8: memref<4x1x768xf32, #tpu.memory_space<vmem>>, %arg9: memref<4x256x32xbf16, #tpu.memory_space<vmem>>, %arg10: memref<4x288x64xbf16, #tpu.memory_space<vmem>>, %arg11: memref<4x1x64xf32, #tpu.memory_space<vmem>>, %arg12: memref<4x64x32xbf16, #tpu.memory_space<vmem>>, %arg13: memref<4x6x32xf32, #tpu.memory_space<vmem>>, %arg14: memref<32x16xbf16, #tpu.memory_space<vmem>>, %arg15: memref<1x16xf32, #tpu.memory_space<vmem>>, %arg16: memref<5x160x32xbf16, #tpu.memory_space<vmem>>, %arg17: memref<5x1x32xf32, #tpu.memory_space<vmem>>, %arg18: memref<1x24x128xf32, #tpu.memory_space<vmem>>, %arg19: memref<40x32xf32, #tpu.memory_space<vmem>>) attributes {dimension_semantics = [#tpu.dimension_semantics<parallel>], iteration_bounds = array<i64: 2>, scalar_prefetch = 5 : i64, scratch_operands = 1 : i64, tpu.core_type = #tpu.core_type<tc>, window_params = [{pipeline_mode = #tpu.pipeline_mode<synchronous>, transform_indices = @transform_0, window_bounds = array<i64: 145, 32>}, {pipeline_mode = #tpu.pipeline_mode<synchronous>, transform_indices = @transform_1, window_bounds = array<i64: 4, 32, 768>}, {pipeline_mode = #tpu.pipeline_mode<synchronous>, transform_indices = @transform_2, window_bounds = array<i64: 4, 1, 768>}, {pipeline_mode = #tpu.pipeline_mode<synchronous>, transform_indices = @transform_3, window_bounds = array<i64: 4, 256, 32>}, {pipeline_mode = #tpu.pipeline_mode<synchronous>, transform_indices = @transform_4, window_bounds = array<i64: 4, 288, 64>}, {pipeline_mode = #tpu.pipeline_mode<synchronous>, transform_indices = @transform_5, window_bounds = array<i64: 4, 1, 64>}, {pipeline_mode = #tpu.pipeline_mode<synchronous>, transform_indices = @transform_6, window_bounds = array<i64: 4, 64, 32>}, {pipeline_mode = #tpu.pipeline_mode<synchronous>, transform_indices = @transform_7, window_bounds = array<i64: 4, 6, 32>}, {pipeline_mode = #tpu.pipeline_mode<synchronous>, transform_indices = @transform_8, window_bounds = array<i64: 32, 16>}, {pipeline_mode = #tpu.pipeline_mode<synchronous>, transform_indices = @transform_9, window_bounds = array<i64: 1, 16>}, {pipeline_mode = #tpu.pipeline_mode<synchronous>, transform_indices = @transform_10, window_bounds = array<i64: 5, 160, 32>}, {pipeline_mode = #tpu.pipeline_mode<synchronous>, transform_indices = @transform_11, window_bounds = array<i64: 5, 1, 32>}, {transform_indices = @transform_12, window_bounds = array<i64: 1, 24, 128>}]} {
    %cst = arith.constant 0.000000e+00 : f32
    %0 = vector.broadcast %cst : f32 to vector<40x32xf32>
    %c0 = arith.constant 0 : index
    %c0_0 = arith.constant 0 : index
    %1 = vector.load %arg19[%c0, %c0_0] : memref<40x32xf32, #tpu.memory_space<vmem>>, vector<40x32xf32>
    tpu.vector_store %arg19[%c0, %c0_0], %0 {strides = array<i32>} : memref<40x32xf32, #tpu.memory_space<vmem>>, vector<40x32xf32>,
    %2 = arith.index_cast %arg0 : i32 to index
    %c0_1 = arith.constant 0 : index
    %3 = memref.load %arg1[%2, %c0_1] : memref<2x8xi32, #tpu.memory_space<smem>>
    %4 = arith.index_cast %arg0 : i32 to index
    %c0_2 = arith.constant 0 : index
    %5 = memref.load %arg2[%4, %c0_2] : memref<2x8xi32, #tpu.memory_space<smem>>
    %6 = arith.index_cast %arg0 : i32 to index
    %c0_3 = arith.constant 0 : index
    %7 = memref.load %arg3[%6, %c0_3] : memref<2x8xi32, #tpu.memory_space<smem>>
    %8 = arith.index_cast %arg0 : i32 to index
    %c0_4 = arith.constant 0 : index
    %9 = memref.load %arg5[%8, %c0_4] : memref<2x8xi32, #tpu.memory_space<smem>>
    %10 = vector.broadcast %3 : i32 to vector<1x1xi32>
    %11 = vector.broadcast %3 : i32 to vector<1x1xi32>
    %12 = vector.broadcast %5 : i32 to vector<1x1xi32>
    %13 = vector.broadcast %7 : i32 to vector<1x1xi32>
    %cst_5 = arith.constant 0.000000e+00 : f32
    %14 = vector.broadcast %cst_5 : f32 to vector<1x1xf32>
    %c0_i32 = arith.constant 0 : i32
    %15 = arith.addi %c0_i32, %9 : i32
    %16 = arith.sitofp %15 : i32 to f32
    %17 = vector.broadcast %16 : f32 to vector<1x1xf32>
    %18 = arith.index_cast %arg0 : i32 to index
    %c1 = arith.constant 1 : index
    %19 = memref.load %arg1[%18, %c1] : memref<2x8xi32, #tpu.memory_space<smem>>
    %20 = arith.index_cast %arg0 : i32 to index
    %c1_6 = arith.constant 1 : index
    %21 = memref.load %arg2[%20, %c1_6] : memref<2x8xi32, #tpu.memory_space<smem>>
    %22 = arith.index_cast %arg0 : i32 to index
    %c1_7 = arith.constant 1 : index
    %23 = memref.load %arg3[%22, %c1_7] : memref<2x8xi32, #tpu.memory_space<smem>>
    %24 = arith.index_cast %arg0 : i32 to index
    %c1_8 = arith.constant 1 : index
    %25 = memref.load %arg5[%24, %c1_8] : memref<2x8xi32, #tpu.memory_space<smem>>
    %26 = vector.broadcast %19 : i32 to vector<1x1xi32>
    %27 = vector.broadcast %19 : i32 to vector<1x1xi32>
    %28 = vector.broadcast %21 : i32 to vector<1x1xi32>
    %29 = vector.broadcast %23 : i32 to vector<1x1xi32>
    %30 = arith.sitofp %15 : i32 to f32
    %31 = vector.broadcast %30 : f32 to vector<1x1xf32>
    %32 = arith.addi %15, %25 : i32
    %33 = arith.sitofp %32 : i32 to f32
    %34 = vector.broadcast %33 : f32 to vector<1x1xf32>
    %35 = arith.index_cast %arg0 : i32 to index
    %c2 = arith.constant 2 : index
    %36 = memref.load %arg1[%35, %c2] : memref<2x8xi32, #tpu.memory_space<smem>>
    %37 = arith.index_cast %arg0 : i32 to index
    %c2_9 = arith.constant 2 : index
    %38 = memref.load %arg2[%37, %c2_9] : memref<2x8xi32, #tpu.memory_space<smem>>
    %39 = arith.index_cast %arg0 : i32 to index
    %c2_10 = arith.constant 2 : index
    %40 = memref.load %arg3[%39, %c2_10] : memref<2x8xi32, #tpu.memory_space<smem>>
    %41 = arith.index_cast %arg0 : i32 to index
    %c2_11 = arith.constant 2 : index
    %42 = memref.load %arg5[%41, %c2_11] : memref<2x8xi32, #tpu.memory_space<smem>>
    %43 = vector.broadcast %36 : i32 to vector<1x1xi32>
    %44 = vector.broadcast %36 : i32 to vector<1x1xi32>
    %45 = vector.broadcast %38 : i32 to vector<1x1xi32>
    %46 = vector.broadcast %40 : i32 to vector<1x1xi32>
    %47 = arith.sitofp %32 : i32 to f32
    %48 = vector.broadcast %47 : f32 to vector<1x1xf32>
    %49 = arith.addi %32, %42 : i32
    %50 = arith.sitofp %49 : i32 to f32
    %51 = vector.broadcast %50 : f32 to vector<1x1xf32>
    %52 = arith.index_cast %arg0 : i32 to index
    %c3 = arith.constant 3 : index
    %53 = memref.load %arg1[%52, %c3] : memref<2x8xi32, #tpu.memory_space<smem>>
    %54 = arith.index_cast %arg0 : i32 to index
    %c3_12 = arith.constant 3 : index
    %55 = memref.load %arg2[%54, %c3_12] : memref<2x8xi32, #tpu.memory_space<smem>>
    %56 = arith.index_cast %arg0 : i32 to index
    %c3_13 = arith.constant 3 : index
    %57 = memref.load %arg3[%56, %c3_13] : memref<2x8xi32, #tpu.memory_space<smem>>
    %58 = arith.index_cast %arg0 : i32 to index
    %c3_14 = arith.constant 3 : index
    %59 = memref.load %arg5[%58, %c3_14] : memref<2x8xi32, #tpu.memory_space<smem>>
    %60 = vector.broadcast %53 : i32 to vector<1x1xi32>
    %61 = vector.broadcast %53 : i32 to vector<1x1xi32>
    %62 = vector.broadcast %55 : i32 to vector<1x1xi32>
    %63 = vector.broadcast %57 : i32 to vector<1x1xi32>
    %64 = arith.sitofp %49 : i32 to f32
    %65 = vector.broadcast %64 : f32 to vector<1x1xf32>
    %66 = arith.addi %49, %59 : i32
    %67 = arith.sitofp %66 : i32 to f32
    %68 = vector.broadcast %67 : f32 to vector<1x1xf32>
    %69 = arith.index_cast %arg0 : i32 to index
    %c4 = arith.constant 4 : index
    %70 = memref.load %arg1[%69, %c4] : memref<2x8xi32, #tpu.memory_space<smem>>
    %71 = arith.index_cast %arg0 : i32 to index
    %c4_15 = arith.constant 4 : index
    %72 = memref.load %arg2[%71, %c4_15] : memref<2x8xi32, #tpu.memory_space<smem>>
    %73 = arith.index_cast %arg0 : i32 to index
    %c4_16 = arith.constant 4 : index
    %74 = memref.load %arg3[%73, %c4_16] : memref<2x8xi32, #tpu.memory_space<smem>>
    %75 = arith.index_cast %arg0 : i32 to index
    %c4_17 = arith.constant 4 : index
    %76 = memref.load %arg5[%75, %c4_17] : memref<2x8xi32, #tpu.memory_space<smem>>
    %77 = vector.broadcast %70 : i32 to vector<1x1xi32>
    %78 = vector.broadcast %70 : i32 to vector<1x1xi32>
    %79 = vector.broadcast %72 : i32 to vector<1x1xi32>
    %80 = vector.broadcast %74 : i32 to vector<1x1xi32>
    %81 = arith.sitofp %66 : i32 to f32
    %82 = vector.broadcast %81 : f32 to vector<1x1xf32>
    %83 = arith.addi %66, %76 : i32
    %84 = arith.sitofp %83 : i32 to f32
    %85 = vector.broadcast %84 : f32 to vector<1x1xf32>
    %86 = arith.index_cast %arg0 : i32 to index
    %c5 = arith.constant 5 : index
    %87 = memref.load %arg1[%86, %c5] : memref<2x8xi32, #tpu.memory_space<smem>>
    %88 = arith.index_cast %arg0 : i32 to index
    %c5_18 = arith.constant 5 : index
    %89 = memref.load %arg2[%88, %c5_18] : memref<2x8xi32, #tpu.memory_space<smem>>
    %90 = arith.index_cast %arg0 : i32 to index
    %c5_19 = arith.constant 5 : index
    %91 = memref.load %arg3[%90, %c5_19] : memref<2x8xi32, #tpu.memory_space<smem>>
    %92 = arith.index_cast %arg0 : i32 to index
    %c5_20 = arith.constant 5 : index
    %93 = memref.load %arg5[%92, %c5_20] : memref<2x8xi32, #tpu.memory_space<smem>>
    %94 = vector.broadcast %87 : i32 to vector<1x1xi32>
    %95 = vector.broadcast %87 : i32 to vector<1x1xi32>
    %96 = vector.broadcast %89 : i32 to vector<1x1xi32>
    %97 = vector.broadcast %91 : i32 to vector<1x1xi32>
    %98 = arith.sitofp %83 : i32 to f32
    %99 = vector.broadcast %98 : f32 to vector<1x1xf32>
    %100 = arith.addi %83, %93 : i32
    %101 = arith.sitofp %100 : i32 to f32
    %102 = vector.broadcast %101 : f32 to vector<1x1xf32>
    %103 = arith.index_cast %arg0 : i32 to index
    %c6 = arith.constant 6 : index
    %104 = memref.load %arg1[%103, %c6] : memref<2x8xi32, #tpu.memory_space<smem>>
    %105 = arith.index_cast %arg0 : i32 to index
    %c6_21 = arith.constant 6 : index
    %106 = memref.load %arg2[%105, %c6_21] : memref<2x8xi32, #tpu.memory_space<smem>>
    %107 = arith.index_cast %arg0 : i32 to index
    %c6_22 = arith.constant 6 : index
    %108 = memref.load %arg3[%107, %c6_22] : memref<2x8xi32, #tpu.memory_space<smem>>
    %109 = arith.index_cast %arg0 : i32 to index
    %c6_23 = arith.constant 6 : index
    %110 = memref.load %arg5[%109, %c6_23] : memref<2x8xi32, #tpu.memory_space<smem>>
    %111 = vector.broadcast %104 : i32 to vector<1x1xi32>
    %112 = vector.broadcast %104 : i32 to vector<1x1xi32>
    %113 = vector.broadcast %106 : i32 to vector<1x1xi32>
    %114 = vector.broadcast %108 : i32 to vector<1x1xi32>
    %115 = arith.sitofp %100 : i32 to f32
    %116 = vector.broadcast %115 : f32 to vector<1x1xf32>
    %117 = arith.addi %100, %110 : i32
    %118 = arith.sitofp %117 : i32 to f32
    %119 = vector.broadcast %118 : f32 to vector<1x1xf32>
    %120 = arith.index_cast %arg0 : i32 to index
    %c7 = arith.constant 7 : index
    %121 = memref.load %arg1[%120, %c7] : memref<2x8xi32, #tpu.memory_space<smem>>
    %122 = arith.index_cast %arg0 : i32 to index
    %c7_24 = arith.constant 7 : index
    %123 = memref.load %arg2[%122, %c7_24] : memref<2x8xi32, #tpu.memory_space<smem>>
    %124 = arith.index_cast %arg0 : i32 to index
    %c7_25 = arith.constant 7 : index
    %125 = memref.load %arg3[%124, %c7_25] : memref<2x8xi32, #tpu.memory_space<smem>>
    %126 = arith.index_cast %arg0 : i32 to index
    %c7_26 = arith.constant 7 : index
    %127 = memref.load %arg5[%126, %c7_26] : memref<2x8xi32, #tpu.memory_space<smem>>
    %128 = vector.broadcast %121 : i32 to vector<1x1xi32>
    %129 = vector.broadcast %121 : i32 to vector<1x1xi32>
    %130 = vector.broadcast %123 : i32 to vector<1x1xi32>
    %131 = vector.broadcast %125 : i32 to vector<1x1xi32>
    %132 = arith.sitofp %117 : i32 to f32
    %133 = vector.broadcast %132 : f32 to vector<1x1xf32>
    %134 = arith.addi %117, %127 : i32
    %135 = arith.sitofp %134 : i32 to f32
    %136 = vector.broadcast %135 : f32 to vector<1x1xf32>
    %137 = tpu.concatenate %10, %26, %43, %60, %77, %94, %111, %128 in 1 : vector<1x1xi32>, vector<1x1xi32>, vector<1x1xi32>, vector<1x1xi32>, vector<1x1xi32>, vector<1x1xi32>, vector<1x1xi32>, vector<1x1xi32> -> vector<1x8xi32>
    %138 = tpu.concatenate %11, %27, %44, %61, %78, %95, %112, %129 in 0 : vector<1x1xi32>, vector<1x1xi32>, vector<1x1xi32>, vector<1x1xi32>, vector<1x1xi32>, vector<1x1xi32>, vector<1x1xi32>, vector<1x1xi32> -> vector<8x1xi32>
    %139 = tpu.concatenate %12, %28, %45, %62, %79, %96, %113, %130 in 0 : vector<1x1xi32>, vector<1x1xi32>, vector<1x1xi32>, vector<1x1xi32>, vector<1x1xi32>, vector<1x1xi32>, vector<1x1xi32>, vector<1x1xi32> -> vector<8x1xi32>
    %140 = tpu.concatenate %13, %29, %46, %63, %80, %97, %114, %131 in 0 : vector<1x1xi32>, vector<1x1xi32>, vector<1x1xi32>, vector<1x1xi32>, vector<1x1xi32>, vector<1x1xi32>, vector<1x1xi32>, vector<1x1xi32> -> vector<8x1xi32>
    %141 = tpu.concatenate %14, %31, %48, %65, %82, %99, %116, %133 in 1 : vector<1x1xf32>, vector<1x1xf32>, vector<1x1xf32>, vector<1x1xf32>, vector<1x1xf32>, vector<1x1xf32>, vector<1x1xf32>, vector<1x1xf32> -> vector<1x8xf32>
    %142 = tpu.concatenate %17, %34, %51, %68, %85, %102, %119, %136 in 1 : vector<1x1xf32>, vector<1x1xf32>, vector<1x1xf32>, vector<1x1xf32>, vector<1x1xf32>, vector<1x1xf32>, vector<1x1xf32>, vector<1x1xf32> -> vector<1x8xf32>
    %143 = tpu.iota {dimensions = array<i32: 1>} : vector<8x145xi32>
    %144 = vector.broadcast %138 : vector<8x1xi32> to vector<8x145xi32>
    %145 = arith.cmpi eq, %143, %144 : vector<8x145xi32>
    %c40_i32 = arith.constant 40 : i32
    %146 = vector.broadcast %c40_i32 : i32 to vector<8x1xi32>
    %147 = arith.addi %139, %146 : vector<8x1xi32>
    %148 = vector.broadcast %147 : vector<8x1xi32> to vector<8x145xi32>
    %149 = arith.cmpi eq, %143, %148 : vector<8x145xi32>
    %150 = arith.ori %145, %149 : vector<8x145xi1>
    %c80_i32 = arith.constant 80 : i32
    %151 = vector.broadcast %c80_i32 : i32 to vector<8x1xi32>
    %152 = arith.addi %140, %151 : vector<8x1xi32>
    %153 = vector.broadcast %152 : vector<8x1xi32> to vector<8x145xi32>
    %154 = arith.cmpi eq, %143, %153 : vector<8x145xi32>
    %155 = arith.ori %150, %154 : vector<8x145xi1>
    %cst_27 = arith.constant 1.000000e+00 : f32
    %cst_28 = arith.constant 0.000000e+00 : f32
    %156 = vector.broadcast %cst_27 : f32 to vector<8x145xf32>
    %157 = vector.broadcast %cst_28 : f32 to vector<8x145xf32>
    %158 = arith.select %155, %156, %157 : vector<8x145xi1>, vector<8x145xf32>
    %c0_29 = arith.constant 0 : index
    %c0_30 = arith.constant 0 : index
    %159 = vector.load %arg6[%c0_29, %c0_30] : memref<145x32xbf16, #tpu.memory_space<vmem>>, vector<145x32xbf16>
    %160 = arith.truncf %158 : vector<8x145xf32> to vector<8x145xbf16>
    %cst_31 = arith.constant dense<0.000000e+00> : vector<8x32xf32>
    %161 = tpu.matmul %160, %159, %cst_31 {dimension_numbers = #tpu.dot_dimension_numbers<[1], [0], [0], [1], [0, 0, 1, 1], [], []>} : vector<8x145xbf16>, vector<145x32xbf16>, vector<8x32xf32> -> vector<8x32xf32>
    %c0_i32_32 = arith.constant 0 : i32
    %162 = vector.broadcast %c0_i32_32 : i32 to vector<8x1xi32>
    %163 = arith.cmpi ne, %138, %162 : vector<8x1xi32>
    %cst_33 = arith.constant 1.000000e+00 : f32
    %cst_34 = arith.constant 0.000000e+00 : f32
    %164 = vector.broadcast %cst_33 : f32 to vector<8x1xf32>
    %165 = vector.broadcast %cst_34 : f32 to vector<8x1xf32>
    %166 = arith.select %163, %164, %165 : vector<8x1xi1>, vector<8x1xf32>
    %c0_i32_35 = arith.constant 0 : i32
    %167 = vector.broadcast %c0_i32_35 : i32 to vector<1x8xi32>
    %168 = arith.cmpi eq, %137, %167 : vector<1x8xi32>
    %cst_36 = arith.constant -1.000000e+09 : f32
    %cst_37 = arith.constant 0.000000e+00 : f32
    %169 = vector.broadcast %cst_36 : f32 to vector<1x8xf32>
    %170 = vector.broadcast %cst_37 : f32 to vector<1x8xf32>
    %171 = arith.select %168, %169, %170 : vector<1x8xi1>, vector<1x8xf32>
    %c0_38 = arith.constant 0 : index
    %c0_39 = arith.constant 0 : index
    %c0_40 = arith.constant 0 : index
    %172 = vector.load %arg13[%c0_38, %c0_39, %c0_40] : memref<4x6x32xf32, #tpu.memory_space<vmem>>, vector<1x6x32xf32>
    %173 = vector.shape_cast %172 : vector<1x6x32xf32> to vector<6x32xf32>
    %174 = vector.extract_strided_slice %173 {offsets = [0, 0], sizes = [1, 32], strides = [1, 1]} : vector<6x32xf32> to vector<1x32xf32>
    %175 = vector.extract_strided_slice %173 {offsets = [1, 0], sizes = [1, 32], strides = [1, 1]} : vector<6x32xf32> to vector<1x32xf32>
    %176 = vector.extract_strided_slice %173 {offsets = [2, 0], sizes = [1, 32], strides = [1, 1]} : vector<6x32xf32> to vector<1x32xf32>
    %177 = vector.extract_strided_slice %173 {offsets = [3, 0], sizes = [1, 32], strides = [1, 1]} : vector<6x32xf32> to vector<1x32xf32>
    %178 = vector.extract_strided_slice %173 {offsets = [4, 0], sizes = [1, 32], strides = [1, 1]} : vector<6x32xf32> to vector<1x32xf32>
    %179 = vector.extract_strided_slice %173 {offsets = [5, 0], sizes = [1, 32], strides = [1, 1]} : vector<6x32xf32> to vector<1x32xf32>
    %c0_41 = arith.constant 0 : index
    %c0_42 = arith.constant 0 : index
    %c0_43 = arith.constant 0 : index
    %180 = vector.load %arg7[%c0_41, %c0_42, %c0_43] : memref<4x32x768xbf16, #tpu.memory_space<vmem>>, vector<1x32x768xbf16>
    %181 = vector.shape_cast %180 : vector<1x32x768xbf16> to vector<32x768xbf16>
    %182 = arith.truncf %161 : vector<8x32xf32> to vector<8x32xbf16>
    %cst_44 = arith.constant dense<0.000000e+00> : vector<8x768xf32>
    %183 = tpu.matmul %182, %181, %cst_44 {dimension_numbers = #tpu.dot_dimension_numbers<[1], [0], [0], [1], [0, 0, 1, 1], [], []>} : vector<8x32xbf16>, vector<32x768xbf16>, vector<8x768xf32> -> vector<8x768xf32>
    %c0_45 = arith.constant 0 : index
    %c0_46 = arith.constant 0 : index
    %c0_47 = arith.constant 0 : index
    %184 = vector.load %arg8[%c0_45, %c0_46, %c0_47] : memref<4x1x768xf32, #tpu.memory_space<vmem>>, vector<1x1x768xf32>
    %185 = vector.shape_cast %184 : vector<1x1x768xf32> to vector<1x768xf32>
    %186 = vector.broadcast %185 : vector<1x768xf32> to vector<8x768xf32>
    %187 = arith.addf %183, %186 : vector<8x768xf32>
    %188 = vector.extract_strided_slice %187 {offsets = [0, 0], sizes = [8, 128], strides = [1, 1]} : vector<8x768xf32> to vector<8x128xf32>
    %189 = vector.extract_strided_slice %187 {offsets = [0, 256], sizes = [8, 128], strides = [1, 1]} : vector<8x768xf32> to vector<8x128xf32>
    %190 = vector.extract_strided_slice %187 {offsets = [0, 512], sizes = [8, 128], strides = [1, 1]} : vector<8x768xf32> to vector<8x128xf32>
    %191 = tpu.transpose %189, [1, 0] : vector<8x128xf32> -> vector<128x8xf32>
    %192 = arith.truncf %188 : vector<8x128xf32> to vector<8x128xbf16>
    %193 = arith.truncf %191 : vector<128x8xf32> to vector<128x8xbf16>
    %cst_48 = arith.constant dense<0.000000e+00> : vector<8x8xf32>
    %194 = tpu.matmul %192, %193, %cst_48 {dimension_numbers = #tpu.dot_dimension_numbers<[1], [0], [0], [1], [0, 0, 1, 1], [], []>} : vector<8x128xbf16>, vector<128x8xbf16>, vector<8x8xf32> -> vector<8x8xf32>
    %cst_49 = arith.constant 2.500000e-01 : f32
    %195 = vector.broadcast %cst_49 : f32 to vector<8x8xf32>
    %196 = arith.mulf %194, %195 : vector<8x8xf32>
    %197 = vector.broadcast %171 : vector<1x8xf32> to vector<8x8xf32>
    %198 = arith.addf %196, %197 : vector<8x8xf32>
    %cst_50 = arith.constant dense<0xFF800000> : vector<8xf32>
    %199 = vector.multi_reduction <maximumf>, %198, %cst_50 [1] : vector<8x8xf32> to vector<8xf32>
    %200 = vector.shape_cast %199 : vector<8xf32> to vector<8x1xf32>
    %201 = vector.broadcast %200 : vector<8x1xf32> to vector<8x8xf32>
    %202 = arith.subf %198, %201 : vector<8x8xf32>
    %203 = math.exp %202 : vector<8x8xf32>
    %cst_51 = arith.constant dense<0.000000e+00> : vector<8xf32>
    %204 = vector.multi_reduction <add>, %203, %cst_51 [1] : vector<8x8xf32> to vector<8xf32>
    %205 = vector.shape_cast %204 : vector<8xf32> to vector<8x1xf32>
    %206 = tpu.reciprocal %205 {approx = true} : vector<8x1xf32> -> vector<8x1xf32>
    %207 = vector.broadcast %206 : vector<8x1xf32> to vector<8x8xf32>
    %208 = arith.mulf %203, %207 : vector<8x8xf32>
    %209 = arith.truncf %208 : vector<8x8xf32> to vector<8x8xbf16>
    %210 = arith.truncf %190 : vector<8x128xf32> to vector<8x128xbf16>
    %cst_52 = arith.constant dense<0.000000e+00> : vector<8x128xf32>
    %211 = tpu.matmul %209, %210, %cst_52 {dimension_numbers = #tpu.dot_dimension_numbers<[1], [0], [0], [1], [0, 0, 1, 1], [], []>} : vector<8x8xbf16>, vector<8x128xbf16>, vector<8x128xf32> -> vector<8x128xf32>
    %212 = vector.extract_strided_slice %187 {offsets = [0, 128], sizes = [8, 128], strides = [1, 1]} : vector<8x768xf32> to vector<8x128xf32>
    %213 = vector.extract_strided_slice %187 {offsets = [0, 384], sizes = [8, 128], strides = [1, 1]} : vector<8x768xf32> to vector<8x128xf32>
    %214 = vector.extract_strided_slice %187 {offsets = [0, 640], sizes = [8, 128], strides = [1, 1]} : vector<8x768xf32> to vector<8x128xf32>
    %215 = tpu.transpose %213, [1, 0] : vector<8x128xf32> -> vector<128x8xf32>
    %216 = arith.truncf %212 : vector<8x128xf32> to vector<8x128xbf16>
    %217 = arith.truncf %215 : vector<128x8xf32> to vector<128x8xbf16>
    %cst_53 = arith.constant dense<0.000000e+00> : vector<8x8xf32>
    %218 = tpu.matmul %216, %217, %cst_53 {dimension_numbers = #tpu.dot_dimension_numbers<[1], [0], [0], [1], [0, 0, 1, 1], [], []>} : vector<8x128xbf16>, vector<128x8xbf16>, vector<8x8xf32> -> vector<8x8xf32>
    %cst_54 = arith.constant 2.500000e-01 : f32
    %219 = vector.broadcast %cst_54 : f32 to vector<8x8xf32>
    %220 = arith.mulf %218, %219 : vector<8x8xf32>
    %221 = vector.broadcast %171 : vector<1x8xf32> to vector<8x8xf32>
    %222 = arith.addf %220, %221 : vector<8x8xf32>
    %cst_55 = arith.constant dense<0xFF800000> : vector<8xf32>
    %223 = vector.multi_reduction <maximumf>, %222, %cst_55 [1] : vector<8x8xf32> to vector<8xf32>
    %224 = vector.shape_cast %223 : vector<8xf32> to vector<8x1xf32>
    %225 = vector.broadcast %224 : vector<8x1xf32> to vector<8x8xf32>
    %226 = arith.subf %222, %225 : vector<8x8xf32>
    %227 = math.exp %226 : vector<8x8xf32>
    %cst_56 = arith.constant dense<0.000000e+00> : vector<8xf32>
    %228 = vector.multi_reduction <add>, %227, %cst_56 [1] : vector<8x8xf32> to vector<8xf32>
    %229 = vector.shape_cast %228 : vector<8xf32> to vector<8x1xf32>
    %230 = tpu.reciprocal %229 {approx = true} : vector<8x1xf32> -> vector<8x1xf32>
    %231 = vector.broadcast %230 : vector<8x1xf32> to vector<8x8xf32>
    %232 = arith.mulf %227, %231 : vector<8x8xf32>
    %233 = arith.truncf %232 : vector<8x8xf32> to vector<8x8xbf16>
    %234 = arith.truncf %214 : vector<8x128xf32> to vector<8x128xbf16>
    %cst_57 = arith.constant dense<0.000000e+00> : vector<8x128xf32>
    %235 = tpu.matmul %233, %234, %cst_57 {dimension_numbers = #tpu.dot_dimension_numbers<[1], [0], [0], [1], [0, 0, 1, 1], [], []>} : vector<8x8xbf16>, vector<8x128xbf16>, vector<8x128xf32> -> vector<8x128xf32>
    %236 = tpu.concatenate %211, %235 in 1 : vector<8x128xf32>, vector<8x128xf32> -> vector<8x256xf32>
    %c0_58 = arith.constant 0 : index
    %c0_59 = arith.constant 0 : index
    %c0_60 = arith.constant 0 : index
    %237 = vector.load %arg9[%c0_58, %c0_59, %c0_60] : memref<4x256x32xbf16, #tpu.memory_space<vmem>>, vector<1x256x32xbf16>
    %238 = vector.shape_cast %237 : vector<1x256x32xbf16> to vector<256x32xbf16>
    %239 = arith.truncf %236 : vector<8x256xf32> to vector<8x256xbf16>
    %cst_61 = arith.constant dense<0.000000e+00> : vector<8x32xf32>
    %240 = tpu.matmul %239, %238, %cst_61 {dimension_numbers = #tpu.dot_dimension_numbers<[1], [0], [0], [1], [0, 0, 1, 1], [], []>} : vector<8x256xbf16>, vector<256x32xbf16>, vector<8x32xf32> -> vector<8x32xf32>
    %241 = vector.broadcast %174 : vector<1x32xf32> to vector<8x32xf32>
    %242 = arith.addf %240, %241 : vector<8x32xf32>
    %243 = arith.addf %242, %161 : vector<8x32xf32>
    %cst_62 = arith.constant dense<0.000000e+00> : vector<8xf32>
    %244 = vector.multi_reduction <add>, %243, %cst_62 [1] : vector<8x32xf32> to vector<8xf32>
    %245 = vector.shape_cast %244 : vector<8xf32> to vector<8x1xf32>
    %cst_63 = arith.constant 3.200000e+01 : f32
    %246 = vector.broadcast %cst_63 : f32 to vector<8x1xf32>
    %247 = arith.divf %245, %246 : vector<8x1xf32>
    %248 = vector.broadcast %247 : vector<8x1xf32> to vector<8x32xf32>
    %249 = arith.subf %243, %248 : vector<8x32xf32>
    %250 = arith.mulf %249, %249 : vector<8x32xf32>
    %cst_64 = arith.constant dense<0.000000e+00> : vector<8xf32>
    %251 = vector.multi_reduction <add>, %250, %cst_64 [1] : vector<8x32xf32> to vector<8xf32>
    %252 = vector.shape_cast %251 : vector<8xf32> to vector<8x1xf32>
    %cst_65 = arith.constant 3.200000e+01 : f32
    %253 = vector.broadcast %cst_65 : f32 to vector<8x1xf32>
    %254 = arith.divf %252, %253 : vector<8x1xf32>
    %255 = vector.broadcast %247 : vector<8x1xf32> to vector<8x32xf32>
    %256 = arith.subf %243, %255 : vector<8x32xf32>
    %cst_66 = arith.constant 9.99999974E-6 : f32
    %257 = vector.broadcast %cst_66 : f32 to vector<8x1xf32>
    %258 = arith.addf %254, %257 : vector<8x1xf32>
    %259 = math.rsqrt %258 : vector<8x1xf32>
    %260 = vector.broadcast %259 : vector<8x1xf32> to vector<8x32xf32>
    %261 = arith.mulf %256, %260 : vector<8x32xf32>
    %262 = vector.broadcast %175 : vector<1x32xf32> to vector<8x32xf32>
    %263 = arith.mulf %261, %262 : vector<8x32xf32>
    %264 = vector.broadcast %176 : vector<1x32xf32> to vector<8x32xf32>
    %265 = arith.addf %263, %264 : vector<8x32xf32>
    %266 = vector.broadcast %166 : vector<8x1xf32> to vector<8x32xf32>
    %267 = arith.mulf %265, %266 : vector<8x32xf32>
    %c0_67 = arith.constant 0 : index
    %c0_68 = arith.constant 0 : index
    %c0_69 = arith.constant 0 : index
    %268 = vector.load %arg10[%c0_67, %c0_68, %c0_69] : memref<4x288x64xbf16, #tpu.memory_space<vmem>>, vector<1x288x64xbf16>
    %269 = vector.shape_cast %268 : vector<1x288x64xbf16> to vector<288x64xbf16>
    %c0_70 = arith.constant 0 : index
    %c0_71 = arith.constant 0 : index
    %c0_72 = arith.constant 0 : index
    %270 = vector.load %arg11[%c0_70, %c0_71, %c0_72] : memref<4x1x64xf32, #tpu.memory_space<vmem>>, vector<1x1x64xf32>
    %271 = vector.shape_cast %270 : vector<1x1x64xf32> to vector<1x64xf32>
    %c8 = arith.constant 8 : index
    %c0_73 = arith.constant 0 : index
    %272 = vector.load %arg19[%c8, %c0_73] : memref<40x32xf32, #tpu.memory_space<vmem>>, vector<8x32xf32>
    tpu.vector_store %arg19[%c8, %c0_73], %267 {strides = array<i32>} : memref<40x32xf32, #tpu.memory_space<vmem>>, vector<8x32xf32>,
    %c4_74 = arith.constant 4 : index
    %c0_75 = arith.constant 0 : index
    %273 = vector.load %arg19[%c4_74, %c0_75] : memref<40x32xf32, #tpu.memory_space<vmem>>, vector<8x32xf32>
    %c5_76 = arith.constant 5 : index
    %c0_77 = arith.constant 0 : index
    %274 = vector.load %arg19[%c5_76, %c0_77] : memref<40x32xf32, #tpu.memory_space<vmem>>, vector<8x32xf32>
    %c6_78 = arith.constant 6 : index
    %c0_79 = arith.constant 0 : index
    %275 = vector.load %arg19[%c6_78, %c0_79] : memref<40x32xf32, #tpu.memory_space<vmem>>, vector<8x32xf32>
    %c7_80 = arith.constant 7 : index
    %c0_81 = arith.constant 0 : index
    %276 = vector.load %arg19[%c7_80, %c0_81] : memref<40x32xf32, #tpu.memory_space<vmem>>, vector<8x32xf32>
    %c8_82 = arith.constant 8 : index
    %c0_83 = arith.constant 0 : index
    %277 = vector.load %arg19[%c8_82, %c0_83] : memref<40x32xf32, #tpu.memory_space<vmem>>, vector<8x32xf32>
    %c9 = arith.constant 9 : index
    %c0_84 = arith.constant 0 : index
    %278 = vector.load %arg19[%c9, %c0_84] : memref<40x32xf32, #tpu.memory_space<vmem>>, vector<8x32xf32>
    %c10 = arith.constant 10 : index
    %c0_85 = arith.constant 0 : index
    %279 = vector.load %arg19[%c10, %c0_85] : memref<40x32xf32, #tpu.memory_space<vmem>>, vector<8x32xf32>
    %c11 = arith.constant 11 : index
    %c0_86 = arith.constant 0 : index
    %280 = vector.load %arg19[%c11, %c0_86] : memref<40x32xf32, #tpu.memory_space<vmem>>, vector<8x32xf32>
    %c12 = arith.constant 12 : index
    %c0_87 = arith.constant 0 : index
    %281 = vector.load %arg19[%c12, %c0_87] : memref<40x32xf32, #tpu.memory_space<vmem>>, vector<8x32xf32>
    %282 = tpu.concatenate %273, %274, %275, %276, %277, %278, %279, %280, %281 in 1 : vector<8x32xf32>, vector<8x32xf32>, vector<8x32xf32>, vector<8x32xf32>, vector<8x32xf32>, vector<8x32xf32>, vector<8x32xf32>, vector<8x32xf32>, vector<8x32xf32> -> vector<8x288xf32>
    %283 = arith.truncf %282 : vector<8x288xf32> to vector<8x288xbf16>
    %cst_88 = arith.constant dense<0.000000e+00> : vector<8x64xf32>
    %284 = tpu.matmul %283, %269, %cst_88 {dimension_numbers = #tpu.dot_dimension_numbers<[1], [0], [0], [1], [0, 0, 1, 1], [], []>} : vector<8x288xbf16>, vector<288x64xbf16>, vector<8x64xf32> -> vector<8x64xf32>
    %285 = vector.broadcast %271 : vector<1x64xf32> to vector<8x64xf32>
    %286 = arith.addf %284, %285 : vector<8x64xf32>
    %cst_89 = arith.constant 0.000000e+00 : f32
    %287 = vector.broadcast %cst_89 : f32 to vector<8x64xf32>
    %288 = arith.maximumf %286, %287 : vector<8x64xf32>
    %c0_90 = arith.constant 0 : index
    %c0_91 = arith.constant 0 : index
    %c0_92 = arith.constant 0 : index
    %289 = vector.load %arg12[%c0_90, %c0_91, %c0_92] : memref<4x64x32xbf16, #tpu.memory_space<vmem>>, vector<1x64x32xbf16>
    %290 = vector.shape_cast %289 : vector<1x64x32xbf16> to vector<64x32xbf16>
    %291 = arith.truncf %288 : vector<8x64xf32> to vector<8x64xbf16>
    %cst_93 = arith.constant dense<0.000000e+00> : vector<8x32xf32>
    %292 = tpu.matmul %291, %290, %cst_93 {dimension_numbers = #tpu.dot_dimension_numbers<[1], [0], [0], [1], [0, 0, 1, 1], [], []>} : vector<8x64xbf16>, vector<64x32xbf16>, vector<8x32xf32> -> vector<8x32xf32>
    %293 = vector.broadcast %177 : vector<1x32xf32> to vector<8x32xf32>
    %294 = arith.addf %292, %293 : vector<8x32xf32>
    %295 = arith.addf %294, %267 : vector<8x32xf32>
    %cst_94 = arith.constant dense<0.000000e+00> : vector<8xf32>
    %296 = vector.multi_reduction <add>, %295, %cst_94 [1] : vector<8x32xf32> to vector<8xf32>
    %297 = vector.shape_cast %296 : vector<8xf32> to vector<8x1xf32>
    %cst_95 = arith.constant 3.200000e+01 : f32
    %298 = vector.broadcast %cst_95 : f32 to vector<8x1xf32>
    %299 = arith.divf %297, %298 : vector<8x1xf32>
    %300 = vector.broadcast %299 : vector<8x1xf32> to vector<8x32xf32>
    %301 = arith.subf %295, %300 : vector<8x32xf32>
    %302 = arith.mulf %301, %301 : vector<8x32xf32>
    %cst_96 = arith.constant dense<0.000000e+00> : vector<8xf32>
    %303 = vector.multi_reduction <add>, %302, %cst_96 [1] : vector<8x32xf32> to vector<8xf32>
    %304 = vector.shape_cast %303 : vector<8xf32> to vector<8x1xf32>
    %cst_97 = arith.constant 3.200000e+01 : f32
    %305 = vector.broadcast %cst_97 : f32 to vector<8x1xf32>
    %306 = arith.divf %304, %305 : vector<8x1xf32>
    %307 = vector.broadcast %299 : vector<8x1xf32> to vector<8x32xf32>
    %308 = arith.subf %295, %307 : vector<8x32xf32>
    %cst_98 = arith.constant 9.99999974E-6 : f32
    %309 = vector.broadcast %cst_98 : f32 to vector<8x1xf32>
    %310 = arith.addf %306, %309 : vector<8x1xf32>
    %311 = math.rsqrt %310 : vector<8x1xf32>
    %312 = vector.broadcast %311 : vector<8x1xf32> to vector<8x32xf32>
    %313 = arith.mulf %308, %312 : vector<8x32xf32>
    %314 = vector.broadcast %178 : vector<1x32xf32> to vector<8x32xf32>
    %315 = arith.mulf %313, %314 : vector<8x32xf32>
    %316 = vector.broadcast %179 : vector<1x32xf32> to vector<8x32xf32>
    %317 = arith.addf %315, %316 : vector<8x32xf32>
    %318 = vector.broadcast %166 : vector<8x1xf32> to vector<8x32xf32>
    %319 = arith.mulf %317, %318 : vector<8x32xf32>
    %c1_99 = arith.constant 1 : index
    %c0_100 = arith.constant 0 : index
    %c0_101 = arith.constant 0 : index
    %320 = vector.load %arg13[%c1_99, %c0_100, %c0_101] : memref<4x6x32xf32, #tpu.memory_space<vmem>>, vector<1x6x32xf32>
    %321 = vector.shape_cast %320 : vector<1x6x32xf32> to vector<6x32xf32>
    %322 = vector.extract_strided_slice %321 {offsets = [0, 0], sizes = [1, 32], strides = [1, 1]} : vector<6x32xf32> to vector<1x32xf32>
    %323 = vector.extract_strided_slice %321 {offsets = [1, 0], sizes = [1, 32], strides = [1, 1]} : vector<6x32xf32> to vector<1x32xf32>
    %324 = vector.extract_strided_slice %321 {offsets = [2, 0], sizes = [1, 32], strides = [1, 1]} : vector<6x32xf32> to vector<1x32xf32>
    %325 = vector.extract_strided_slice %321 {offsets = [3, 0], sizes = [1, 32], strides = [1, 1]} : vector<6x32xf32> to vector<1x32xf32>
    %326 = vector.extract_strided_slice %321 {offsets = [4, 0], sizes = [1, 32], strides = [1, 1]} : vector<6x32xf32> to vector<1x32xf32>
    %327 = vector.extract_strided_slice %321 {offsets = [5, 0], sizes = [1, 32], strides = [1, 1]} : vector<6x32xf32> to vector<1x32xf32>
    %c1_102 = arith.constant 1 : index
    %c0_103 = arith.constant 0 : index
    %c0_104 = arith.constant 0 : index
    %328 = vector.load %arg7[%c1_102, %c0_103, %c0_104] : memref<4x32x768xbf16, #tpu.memory_space<vmem>>, vector<1x32x768xbf16>
    %329 = vector.shape_cast %328 : vector<1x32x768xbf16> to vector<32x768xbf16>
    %330 = arith.truncf %319 : vector<8x32xf32> to vector<8x32xbf16>
    %cst_105 = arith.constant dense<0.000000e+00> : vector<8x768xf32>
    %331 = tpu.matmul %330, %329, %cst_105 {dimension_numbers = #tpu.dot_dimension_numbers<[1], [0], [0], [1], [0, 0, 1, 1], [], []>} : vector<8x32xbf16>, vector<32x768xbf16>, vector<8x768xf32> -> vector<8x768xf32>
    %c1_106 = arith.constant 1 : index
    %c0_107 = arith.constant 0 : index
    %c0_108 = arith.constant 0 : index
    %332 = vector.load %arg8[%c1_106, %c0_107, %c0_108] : memref<4x1x768xf32, #tpu.memory_space<vmem>>, vector<1x1x768xf32>
    %333 = vector.shape_cast %332 : vector<1x1x768xf32> to vector<1x768xf32>
    %334 = vector.broadcast %333 : vector<1x768xf32> to vector<8x768xf32>
    %335 = arith.addf %331, %334 : vector<8x768xf32>
    %336 = vector.extract_strided_slice %335 {offsets = [0, 0], sizes = [8, 128], strides = [1, 1]} : vector<8x768xf32> to vector<8x128xf32>
    %337 = vector.extract_strided_slice %335 {offsets = [0, 256], sizes = [8, 128], strides = [1, 1]} : vector<8x768xf32> to vector<8x128xf32>
    %338 = vector.extract_strided_slice %335 {offsets = [0, 512], sizes = [8, 128], strides = [1, 1]} : vector<8x768xf32> to vector<8x128xf32>
    %339 = tpu.transpose %337, [1, 0] : vector<8x128xf32> -> vector<128x8xf32>
    %340 = arith.truncf %336 : vector<8x128xf32> to vector<8x128xbf16>
    %341 = arith.truncf %339 : vector<128x8xf32> to vector<128x8xbf16>
    %cst_109 = arith.constant dense<0.000000e+00> : vector<8x8xf32>
    %342 = tpu.matmul %340, %341, %cst_109 {dimension_numbers = #tpu.dot_dimension_numbers<[1], [0], [0], [1], [0, 0, 1, 1], [], []>} : vector<8x128xbf16>, vector<128x8xbf16>, vector<8x8xf32> -> vector<8x8xf32>
    %cst_110 = arith.constant 2.500000e-01 : f32
    %343 = vector.broadcast %cst_110 : f32 to vector<8x8xf32>
    %344 = arith.mulf %342, %343 : vector<8x8xf32>
    %345 = vector.broadcast %171 : vector<1x8xf32> to vector<8x8xf32>
    %346 = arith.addf %344, %345 : vector<8x8xf32>
    %cst_111 = arith.constant dense<0xFF800000> : vector<8xf32>
    %347 = vector.multi_reduction <maximumf>, %346, %cst_111 [1] : vector<8x8xf32> to vector<8xf32>
    %348 = vector.shape_cast %347 : vector<8xf32> to vector<8x1xf32>
    %349 = vector.broadcast %348 : vector<8x1xf32> to vector<8x8xf32>
    %350 = arith.subf %346, %349 : vector<8x8xf32>
    %351 = math.exp %350 : vector<8x8xf32>
    %cst_112 = arith.constant dense<0.000000e+00> : vector<8xf32>
    %352 = vector.multi_reduction <add>, %351, %cst_112 [1] : vector<8x8xf32> to vector<8xf32>
    %353 = vector.shape_cast %352 : vector<8xf32> to vector<8x1xf32>
    %354 = tpu.reciprocal %353 {approx = true} : vector<8x1xf32> -> vector<8x1xf32>
    %355 = vector.broadcast %354 : vector<8x1xf32> to vector<8x8xf32>
    %356 = arith.mulf %351, %355 : vector<8x8xf32>
    %357 = arith.truncf %356 : vector<8x8xf32> to vector<8x8xbf16>
    %358 = arith.truncf %338 : vector<8x128xf32> to vector<8x128xbf16>
    %cst_113 = arith.constant dense<0.000000e+00> : vector<8x128xf32>
    %359 = tpu.matmul %357, %358, %cst_113 {dimension_numbers = #tpu.dot_dimension_numbers<[1], [0], [0], [1], [0, 0, 1, 1], [], []>} : vector<8x8xbf16>, vector<8x128xbf16>, vector<8x128xf32> -> vector<8x128xf32>
    %360 = vector.extract_strided_slice %335 {offsets = [0, 128], sizes = [8, 128], strides = [1, 1]} : vector<8x768xf32> to vector<8x128xf32>
    %361 = vector.extract_strided_slice %335 {offsets = [0, 384], sizes = [8, 128], strides = [1, 1]} : vector<8x768xf32> to vector<8x128xf32>
    %362 = vector.extract_strided_slice %335 {offsets = [0, 640], sizes = [8, 128], strides = [1, 1]} : vector<8x768xf32> to vector<8x128xf32>
    %363 = tpu.transpose %361, [1, 0] : vector<8x128xf32> -> vector<128x8xf32>
    %364 = arith.truncf %360 : vector<8x128xf32> to vector<8x128xbf16>
    %365 = arith.truncf %363 : vector<128x8xf32> to vector<128x8xbf16>
    %cst_114 = arith.constant dense<0.000000e+00> : vector<8x8xf32>
    %366 = tpu.matmul %364, %365, %cst_114 {dimension_numbers = #tpu.dot_dimension_numbers<[1], [0], [0], [1], [0, 0, 1, 1], [], []>} : vector<8x128xbf16>, vector<128x8xbf16>, vector<8x8xf32> -> vector<8x8xf32>
    %cst_115 = arith.constant 2.500000e-01 : f32
    %367 = vector.broadcast %cst_115 : f32 to vector<8x8xf32>
    %368 = arith.mulf %366, %367 : vector<8x8xf32>
    %369 = vector.broadcast %171 : vector<1x8xf32> to vector<8x8xf32>
    %370 = arith.addf %368, %369 : vector<8x8xf32>
    %cst_116 = arith.constant dense<0xFF800000> : vector<8xf32>
    %371 = vector.multi_reduction <maximumf>, %370, %cst_116 [1] : vector<8x8xf32> to vector<8xf32>
    %372 = vector.shape_cast %371 : vector<8xf32> to vector<8x1xf32>
    %373 = vector.broadcast %372 : vector<8x1xf32> to vector<8x8xf32>
    %374 = arith.subf %370, %373 : vector<8x8xf32>
    %375 = math.exp %374 : vector<8x8xf32>
    %cst_117 = arith.constant dense<0.000000e+00> : vector<8xf32>
    %376 = vector.multi_reduction <add>, %375, %cst_117 [1] : vector<8x8xf32> to vector<8xf32>
    %377 = vector.shape_cast %376 : vector<8xf32> to vector<8x1xf32>
    %378 = tpu.reciprocal %377 {approx = true} : vector<8x1xf32> -> vector<8x1xf32>
    %379 = vector.broadcast %378 : vector<8x1xf32> to vector<8x8xf32>
    %380 = arith.mulf %375, %379 : vector<8x8xf32>
    %381 = arith.truncf %380 : vector<8x8xf32> to vector<8x8xbf16>
    %382 = arith.truncf %362 : vector<8x128xf32> to vector<8x128xbf16>
    %cst_118 = arith.constant dense<0.000000e+00> : vector<8x128xf32>
    %383 = tpu.matmul %381, %382, %cst_118 {dimension_numbers = #tpu.dot_dimension_numbers<[1], [0], [0], [1], [0, 0, 1, 1], [], []>} : vector<8x8xbf16>, vector<8x128xbf16>, vector<8x128xf32> -> vector<8x128xf32>
    %384 = tpu.concatenate %359, %383 in 1 : vector<8x128xf32>, vector<8x128xf32> -> vector<8x256xf32>
    %c1_119 = arith.constant 1 : index
    %c0_120 = arith.constant 0 : index
    %c0_121 = arith.constant 0 : index
    %385 = vector.load %arg9[%c1_119, %c0_120, %c0_121] : memref<4x256x32xbf16, #tpu.memory_space<vmem>>, vector<1x256x32xbf16>
    %386 = vector.shape_cast %385 : vector<1x256x32xbf16> to vector<256x32xbf16>
    %387 = arith.truncf %384 : vector<8x256xf32> to vector<8x256xbf16>
    %cst_122 = arith.constant dense<0.000000e+00> : vector<8x32xf32>
    %388 = tpu.matmul %387, %386, %cst_122 {dimension_numbers = #tpu.dot_dimension_numbers<[1], [0], [0], [1], [0, 0, 1, 1], [], []>} : vector<8x256xbf16>, vector<256x32xbf16>, vector<8x32xf32> -> vector<8x32xf32>
    %389 = vector.broadcast %322 : vector<1x32xf32> to vector<8x32xf32>
    %390 = arith.addf %388, %389 : vector<8x32xf32>
    %391 = arith.addf %390, %319 : vector<8x32xf32>
    %cst_123 = arith.constant dense<0.000000e+00> : vector<8xf32>
    %392 = vector.multi_reduction <add>, %391, %cst_123 [1] : vector<8x32xf32> to vector<8xf32>
    %393 = vector.shape_cast %392 : vector<8xf32> to vector<8x1xf32>
    %cst_124 = arith.constant 3.200000e+01 : f32
    %394 = vector.broadcast %cst_124 : f32 to vector<8x1xf32>
    %395 = arith.divf %393, %394 : vector<8x1xf32>
    %396 = vector.broadcast %395 : vector<8x1xf32> to vector<8x32xf32>
    %397 = arith.subf %391, %396 : vector<8x32xf32>
    %398 = arith.mulf %397, %397 : vector<8x32xf32>
    %cst_125 = arith.constant dense<0.000000e+00> : vector<8xf32>
    %399 = vector.multi_reduction <add>, %398, %cst_125 [1] : vector<8x32xf32> to vector<8xf32>
    %400 = vector.shape_cast %399 : vector<8xf32> to vector<8x1xf32>
    %cst_126 = arith.constant 3.200000e+01 : f32
    %401 = vector.broadcast %cst_126 : f32 to vector<8x1xf32>
    %402 = arith.divf %400, %401 : vector<8x1xf32>
    %403 = vector.broadcast %395 : vector<8x1xf32> to vector<8x32xf32>
    %404 = arith.subf %391, %403 : vector<8x32xf32>
    %cst_127 = arith.constant 9.99999974E-6 : f32
    %405 = vector.broadcast %cst_127 : f32 to vector<8x1xf32>
    %406 = arith.addf %402, %405 : vector<8x1xf32>
    %407 = math.rsqrt %406 : vector<8x1xf32>
    %408 = vector.broadcast %407 : vector<8x1xf32> to vector<8x32xf32>
    %409 = arith.mulf %404, %408 : vector<8x32xf32>
    %410 = vector.broadcast %323 : vector<1x32xf32> to vector<8x32xf32>
    %411 = arith.mulf %409, %410 : vector<8x32xf32>
    %412 = vector.broadcast %324 : vector<1x32xf32> to vector<8x32xf32>
    %413 = arith.addf %411, %412 : vector<8x32xf32>
    %414 = vector.broadcast %166 : vector<8x1xf32> to vector<8x32xf32>
    %415 = arith.mulf %413, %414 : vector<8x32xf32>
    %c1_128 = arith.constant 1 : index
    %c0_129 = arith.constant 0 : index
    %c0_130 = arith.constant 0 : index
    %416 = vector.load %arg10[%c1_128, %c0_129, %c0_130] : memref<4x288x64xbf16, #tpu.memory_space<vmem>>, vector<1x288x64xbf16>
    %417 = vector.shape_cast %416 : vector<1x288x64xbf16> to vector<288x64xbf16>
    %c1_131 = arith.constant 1 : index
    %c0_132 = arith.constant 0 : index
    %c0_133 = arith.constant 0 : index
    %418 = vector.load %arg11[%c1_131, %c0_132, %c0_133] : memref<4x1x64xf32, #tpu.memory_space<vmem>>, vector<1x1x64xf32>
    %419 = vector.shape_cast %418 : vector<1x1x64xf32> to vector<1x64xf32>
    %c8_134 = arith.constant 8 : index
    %c0_135 = arith.constant 0 : index
    %420 = vector.load %arg19[%c8_134, %c0_135] : memref<40x32xf32, #tpu.memory_space<vmem>>, vector<8x32xf32>
    tpu.vector_store %arg19[%c8_134, %c0_135], %415 {strides = array<i32>} : memref<40x32xf32, #tpu.memory_space<vmem>>, vector<8x32xf32>,
    %c4_136 = arith.constant 4 : index
    %c0_137 = arith.constant 0 : index
    %421 = vector.load %arg19[%c4_136, %c0_137] : memref<40x32xf32, #tpu.memory_space<vmem>>, vector<8x32xf32>
    %c5_138 = arith.constant 5 : index
    %c0_139 = arith.constant 0 : index
    %422 = vector.load %arg19[%c5_138, %c0_139] : memref<40x32xf32, #tpu.memory_space<vmem>>, vector<8x32xf32>
    %c6_140 = arith.constant 6 : index
    %c0_141 = arith.constant 0 : index
    %423 = vector.load %arg19[%c6_140, %c0_141] : memref<40x32xf32, #tpu.memory_space<vmem>>, vector<8x32xf32>
    %c7_142 = arith.constant 7 : index
    %c0_143 = arith.constant 0 : index
    %424 = vector.load %arg19[%c7_142, %c0_143] : memref<40x32xf32, #tpu.memory_space<vmem>>, vector<8x32xf32>
    %c8_144 = arith.constant 8 : index
    %c0_145 = arith.constant 0 : index
    %425 = vector.load %arg19[%c8_144, %c0_145] : memref<40x32xf32, #tpu.memory_space<vmem>>, vector<8x32xf32>
    %c9_146 = arith.constant 9 : index
    %c0_147 = arith.constant 0 : index
    %426 = vector.load %arg19[%c9_146, %c0_147] : memref<40x32xf32, #tpu.memory_space<vmem>>, vector<8x32xf32>
    %c10_148 = arith.constant 10 : index
    %c0_149 = arith.constant 0 : index
    %427 = vector.load %arg19[%c10_148, %c0_149] : memref<40x32xf32, #tpu.memory_space<vmem>>, vector<8x32xf32>
    %c11_150 = arith.constant 11 : index
    %c0_151 = arith.constant 0 : index
    %428 = vector.load %arg19[%c11_150, %c0_151] : memref<40x32xf32, #tpu.memory_space<vmem>>, vector<8x32xf32>
    %c12_152 = arith.constant 12 : index
    %c0_153 = arith.constant 0 : index
    %429 = vector.load %arg19[%c12_152, %c0_153] : memref<40x32xf32, #tpu.memory_space<vmem>>, vector<8x32xf32>
    %430 = tpu.concatenate %421, %422, %423, %424, %425, %426, %427, %428, %429 in 1 : vector<8x32xf32>, vector<8x32xf32>, vector<8x32xf32>, vector<8x32xf32>, vector<8x32xf32>, vector<8x32xf32>, vector<8x32xf32>, vector<8x32xf32>, vector<8x32xf32> -> vector<8x288xf32>
    %431 = arith.truncf %430 : vector<8x288xf32> to vector<8x288xbf16>
    %cst_154 = arith.constant dense<0.000000e+00> : vector<8x64xf32>
    %432 = tpu.matmul %431, %417, %cst_154 {dimension_numbers = #tpu.dot_dimension_numbers<[1], [0], [0], [1], [0, 0, 1, 1], [], []>} : vector<8x288xbf16>, vector<288x64xbf16>, vector<8x64xf32> -> vector<8x64xf32>
    %433 = vector.broadcast %419 : vector<1x64xf32> to vector<8x64xf32>
    %434 = arith.addf %432, %433 : vector<8x64xf32>
    %cst_155 = arith.constant 0.000000e+00 : f32
    %435 = vector.broadcast %cst_155 : f32 to vector<8x64xf32>
    %436 = arith.maximumf %434, %435 : vector<8x64xf32>
    %c1_156 = arith.constant 1 : index
    %c0_157 = arith.constant 0 : index
    %c0_158 = arith.constant 0 : index
    %437 = vector.load %arg12[%c1_156, %c0_157, %c0_158] : memref<4x64x32xbf16, #tpu.memory_space<vmem>>, vector<1x64x32xbf16>
    %438 = vector.shape_cast %437 : vector<1x64x32xbf16> to vector<64x32xbf16>
    %439 = arith.truncf %436 : vector<8x64xf32> to vector<8x64xbf16>
    %cst_159 = arith.constant dense<0.000000e+00> : vector<8x32xf32>
    %440 = tpu.matmul %439, %438, %cst_159 {dimension_numbers = #tpu.dot_dimension_numbers<[1], [0], [0], [1], [0, 0, 1, 1], [], []>} : vector<8x64xbf16>, vector<64x32xbf16>, vector<8x32xf32> -> vector<8x32xf32>
    %441 = vector.broadcast %325 : vector<1x32xf32> to vector<8x32xf32>
    %442 = arith.addf %440, %441 : vector<8x32xf32>
    %443 = arith.addf %442, %415 : vector<8x32xf32>
    %cst_160 = arith.constant dense<0.000000e+00> : vector<8xf32>
    %444 = vector.multi_reduction <add>, %443, %cst_160 [1] : vector<8x32xf32> to vector<8xf32>
    %445 = vector.shape_cast %444 : vector<8xf32> to vector<8x1xf32>
    %cst_161 = arith.constant 3.200000e+01 : f32
    %446 = vector.broadcast %cst_161 : f32 to vector<8x1xf32>
    %447 = arith.divf %445, %446 : vector<8x1xf32>
    %448 = vector.broadcast %447 : vector<8x1xf32> to vector<8x32xf32>
    %449 = arith.subf %443, %448 : vector<8x32xf32>
    %450 = arith.mulf %449, %449 : vector<8x32xf32>
    %cst_162 = arith.constant dense<0.000000e+00> : vector<8xf32>
    %451 = vector.multi_reduction <add>, %450, %cst_162 [1] : vector<8x32xf32> to vector<8xf32>
    %452 = vector.shape_cast %451 : vector<8xf32> to vector<8x1xf32>
    %cst_163 = arith.constant 3.200000e+01 : f32
    %453 = vector.broadcast %cst_163 : f32 to vector<8x1xf32>
    %454 = arith.divf %452, %453 : vector<8x1xf32>
    %455 = vector.broadcast %447 : vector<8x1xf32> to vector<8x32xf32>
    %456 = arith.subf %443, %455 : vector<8x32xf32>
    %cst_164 = arith.constant 9.99999974E-6 : f32
    %457 = vector.broadcast %cst_164 : f32 to vector<8x1xf32>
    %458 = arith.addf %454, %457 : vector<8x1xf32>
    %459 = math.rsqrt %458 : vector<8x1xf32>
    %460 = vector.broadcast %459 : vector<8x1xf32> to vector<8x32xf32>
    %461 = arith.mulf %456, %460 : vector<8x32xf32>
    %462 = vector.broadcast %326 : vector<1x32xf32> to vector<8x32xf32>
    %463 = arith.mulf %461, %462 : vector<8x32xf32>
    %464 = vector.broadcast %327 : vector<1x32xf32> to vector<8x32xf32>
    %465 = arith.addf %463, %464 : vector<8x32xf32>
    %466 = vector.broadcast %166 : vector<8x1xf32> to vector<8x32xf32>
    %467 = arith.mulf %465, %466 : vector<8x32xf32>
    %468 = tpu.iota {dimensions = array<i32: 0>} : vector<24x8xi32>
    %469 = arith.sitofp %468 : vector<24x8xi32> to vector<24x8xf32>
    %470 = vector.broadcast %141 : vector<1x8xf32> to vector<24x8xf32>
    %471 = arith.cmpf oge, %469, %470 : vector<24x8xf32>
    %472 = vector.broadcast %142 : vector<1x8xf32> to vector<24x8xf32>
    %473 = arith.cmpf olt, %469, %472 : vector<24x8xf32>
    %474 = arith.andi %471, %473 : vector<24x8xi1>
    %cst_165 = arith.constant 1.000000e+00 : f32
    %cst_166 = arith.constant 0.000000e+00 : f32
    %475 = vector.broadcast %cst_165 : f32 to vector<24x8xf32>
    %476 = vector.broadcast %cst_166 : f32 to vector<24x8xf32>
    %477 = arith.select %474, %475, %476 : vector<24x8xi1>, vector<24x8xf32>
    %478 = arith.truncf %477 : vector<24x8xf32> to vector<24x8xbf16>
    %479 = arith.truncf %467 : vector<8x32xf32> to vector<8x32xbf16>
    %cst_167 = arith.constant dense<0.000000e+00> : vector<24x32xf32>
    %480 = tpu.matmul %478, %479, %cst_167 {dimension_numbers = #tpu.dot_dimension_numbers<[1], [0], [0], [1], [0, 0, 1, 1], [], []>} : vector<24x8xbf16>, vector<8x32xbf16>, vector<24x32xf32> -> vector<24x32xf32>
    %481 = arith.index_cast %arg0 : i32 to index
    %c0_168 = arith.constant 0 : index
    %482 = memref.load %arg4[%481, %c0_168] : memref<2x24xi32, #tpu.memory_space<smem>>
    %483 = vector.broadcast %482 : i32 to vector<1x1xi32>
    %484 = vector.broadcast %482 : i32 to vector<1x1xi32>
    %485 = arith.index_cast %arg0 : i32 to index
    %c1_169 = arith.constant 1 : index
    %486 = memref.load %arg4[%485, %c1_169] : memref<2x24xi32, #tpu.memory_space<smem>>
    %487 = vector.broadcast %486 : i32 to vector<1x1xi32>
    %488 = vector.broadcast %486 : i32 to vector<1x1xi32>
    %489 = arith.index_cast %arg0 : i32 to index
    %c2_170 = arith.constant 2 : index
    %490 = memref.load %arg4[%489, %c2_170] : memref<2x24xi32, #tpu.memory_space<smem>>
    %491 = vector.broadcast %490 : i32 to vector<1x1xi32>
    %492 = vector.broadcast %490 : i32 to vector<1x1xi32>
    %493 = arith.index_cast %arg0 : i32 to index
    %c3_171 = arith.constant 3 : index
    %494 = memref.load %arg4[%493, %c3_171] : memref<2x24xi32, #tpu.memory_space<smem>>
    %495 = vector.broadcast %494 : i32 to vector<1x1xi32>
    %496 = vector.broadcast %494 : i32 to vector<1x1xi32>
    %497 = arith.index_cast %arg0 : i32 to index
    %c4_172 = arith.constant 4 : index
    %498 = memref.load %arg4[%497, %c4_172] : memref<2x24xi32, #tpu.memory_space<smem>>
    %499 = vector.broadcast %498 : i32 to vector<1x1xi32>
    %500 = vector.broadcast %498 : i32 to vector<1x1xi32>
    %501 = arith.index_cast %arg0 : i32 to index
    %c5_173 = arith.constant 5 : index
    %502 = memref.load %arg4[%501, %c5_173] : memref<2x24xi32, #tpu.memory_space<smem>>
    %503 = vector.broadcast %502 : i32 to vector<1x1xi32>
    %504 = vector.broadcast %502 : i32 to vector<1x1xi32>
    %505 = arith.index_cast %arg0 : i32 to index
    %c6_174 = arith.constant 6 : index
    %506 = memref.load %arg4[%505, %c6_174] : memref<2x24xi32, #tpu.memory_space<smem>>
    %507 = vector.broadcast %506 : i32 to vector<1x1xi32>
    %508 = vector.broadcast %506 : i32 to vector<1x1xi32>
    %509 = arith.index_cast %arg0 : i32 to index
    %c7_175 = arith.constant 7 : index
    %510 = memref.load %arg4[%509, %c7_175] : memref<2x24xi32, #tpu.memory_space<smem>>
    %511 = vector.broadcast %510 : i32 to vector<1x1xi32>
    %512 = vector.broadcast %510 : i32 to vector<1x1xi32>
    %513 = arith.index_cast %arg0 : i32 to index
    %c8_176 = arith.constant 8 : index
    %514 = memref.load %arg4[%513, %c8_176] : memref<2x24xi32, #tpu.memory_space<smem>>
    %515 = vector.broadcast %514 : i32 to vector<1x1xi32>
    %516 = vector.broadcast %514 : i32 to vector<1x1xi32>
    %517 = arith.index_cast %arg0 : i32 to index
    %c9_177 = arith.constant 9 : index
    %518 = memref.load %arg4[%517, %c9_177] : memref<2x24xi32, #tpu.memory_space<smem>>
    %519 = vector.broadcast %518 : i32 to vector<1x1xi32>
    %520 = vector.broadcast %518 : i32 to vector<1x1xi32>
    %521 = arith.index_cast %arg0 : i32 to index
    %c10_178 = arith.constant 10 : index
    %522 = memref.load %arg4[%521, %c10_178] : memref<2x24xi32, #tpu.memory_space<smem>>
    %523 = vector.broadcast %522 : i32 to vector<1x1xi32>
    %524 = vector.broadcast %522 : i32 to vector<1x1xi32>
    %525 = arith.index_cast %arg0 : i32 to index
    %c11_179 = arith.constant 11 : index
    %526 = memref.load %arg4[%525, %c11_179] : memref<2x24xi32, #tpu.memory_space<smem>>
    %527 = vector.broadcast %526 : i32 to vector<1x1xi32>
    %528 = vector.broadcast %526 : i32 to vector<1x1xi32>
    %529 = arith.index_cast %arg0 : i32 to index
    %c12_180 = arith.constant 12 : index
    %530 = memref.load %arg4[%529, %c12_180] : memref<2x24xi32, #tpu.memory_space<smem>>
    %531 = vector.broadcast %530 : i32 to vector<1x1xi32>
    %532 = vector.broadcast %530 : i32 to vector<1x1xi32>
    %533 = arith.index_cast %arg0 : i32 to index
    %c13 = arith.constant 13 : index
    %534 = memref.load %arg4[%533, %c13] : memref<2x24xi32, #tpu.memory_space<smem>>
    %535 = vector.broadcast %534 : i32 to vector<1x1xi32>
    %536 = vector.broadcast %534 : i32 to vector<1x1xi32>
    %537 = arith.index_cast %arg0 : i32 to index
    %c14 = arith.constant 14 : index
    %538 = memref.load %arg4[%537, %c14] : memref<2x24xi32, #tpu.memory_space<smem>>
    %539 = vector.broadcast %538 : i32 to vector<1x1xi32>
    %540 = vector.broadcast %538 : i32 to vector<1x1xi32>
    %541 = arith.index_cast %arg0 : i32 to index
    %c15 = arith.constant 15 : index
    %542 = memref.load %arg4[%541, %c15] : memref<2x24xi32, #tpu.memory_space<smem>>
    %543 = vector.broadcast %542 : i32 to vector<1x1xi32>
    %544 = vector.broadcast %542 : i32 to vector<1x1xi32>
    %545 = arith.index_cast %arg0 : i32 to index
    %c16 = arith.constant 16 : index
    %546 = memref.load %arg4[%545, %c16] : memref<2x24xi32, #tpu.memory_space<smem>>
    %547 = vector.broadcast %546 : i32 to vector<1x1xi32>
    %548 = vector.broadcast %546 : i32 to vector<1x1xi32>
    %549 = arith.index_cast %arg0 : i32 to index
    %c17 = arith.constant 17 : index
    %550 = memref.load %arg4[%549, %c17] : memref<2x24xi32, #tpu.memory_space<smem>>
    %551 = vector.broadcast %550 : i32 to vector<1x1xi32>
    %552 = vector.broadcast %550 : i32 to vector<1x1xi32>
    %553 = arith.index_cast %arg0 : i32 to index
    %c18 = arith.constant 18 : index
    %554 = memref.load %arg4[%553, %c18] : memref<2x24xi32, #tpu.memory_space<smem>>
    %555 = vector.broadcast %554 : i32 to vector<1x1xi32>
    %556 = vector.broadcast %554 : i32 to vector<1x1xi32>
    %557 = arith.index_cast %arg0 : i32 to index
    %c19 = arith.constant 19 : index
    %558 = memref.load %arg4[%557, %c19] : memref<2x24xi32, #tpu.memory_space<smem>>
    %559 = vector.broadcast %558 : i32 to vector<1x1xi32>
    %560 = vector.broadcast %558 : i32 to vector<1x1xi32>
    %561 = arith.index_cast %arg0 : i32 to index
    %c20 = arith.constant 20 : index
    %562 = memref.load %arg4[%561, %c20] : memref<2x24xi32, #tpu.memory_space<smem>>
    %563 = vector.broadcast %562 : i32 to vector<1x1xi32>
    %564 = vector.broadcast %562 : i32 to vector<1x1xi32>
    %565 = arith.index_cast %arg0 : i32 to index
    %c21 = arith.constant 21 : index
    %566 = memref.load %arg4[%565, %c21] : memref<2x24xi32, #tpu.memory_space<smem>>
    %567 = vector.broadcast %566 : i32 to vector<1x1xi32>
    %568 = vector.broadcast %566 : i32 to vector<1x1xi32>
    %569 = arith.index_cast %arg0 : i32 to index
    %c22 = arith.constant 22 : index
    %570 = memref.load %arg4[%569, %c22] : memref<2x24xi32, #tpu.memory_space<smem>>
    %571 = vector.broadcast %570 : i32 to vector<1x1xi32>
    %572 = vector.broadcast %570 : i32 to vector<1x1xi32>
    %573 = arith.index_cast %arg0 : i32 to index
    %c23 = arith.constant 23 : index
    %574 = memref.load %arg4[%573, %c23] : memref<2x24xi32, #tpu.memory_space<smem>>
    %575 = vector.broadcast %574 : i32 to vector<1x1xi32>
    %576 = vector.broadcast %574 : i32 to vector<1x1xi32>
    %577 = tpu.concatenate %483, %487, %491, %495, %499, %503, %507, %511, %515, %519, %523, %527, %531, %535, %539, %543 in 1 : vector<1x1xi32>, vector<1x1xi32>, vector<1x1xi32>, vector<1x1xi32>, vector<1x1xi32>, vector<1x1xi32>, vector<1x1xi32>, vector<1x1xi32>, vector<1x1xi32>, vector<1x1xi32>, vector<1x1xi32>, vector<1x1xi32>, vector<1x1xi32>, vector<1x1xi32>, vector<1x1xi32>, vector<1x1xi32> -> vector<1x16xi32>
    %578 = tpu.concatenate %547, %551, %555, %559, %563, %567, %571, %575 in 1 : vector<1x1xi32>, vector<1x1xi32>, vector<1x1xi32>, vector<1x1xi32>, vector<1x1xi32>, vector<1x1xi32>, vector<1x1xi32>, vector<1x1xi32> -> vector<1x8xi32>
    %579 = tpu.concatenate %577, %578 in 1 : vector<1x16xi32>, vector<1x8xi32> -> vector<1x24xi32>
    %580 = tpu.concatenate %484, %488, %492, %496, %500, %504, %508, %512, %516, %520, %524, %528, %532, %536, %540, %544 in 0 : vector<1x1xi32>, vector<1x1xi32>, vector<1x1xi32>, vector<1x1xi32>, vector<1x1xi32>, vector<1x1xi32>, vector<1x1xi32>, vector<1x1xi32>, vector<1x1xi32>, vector<1x1xi32>, vector<1x1xi32>, vector<1x1xi32>, vector<1x1xi32>, vector<1x1xi32>, vector<1x1xi32>, vector<1x1xi32> -> vector<16x1xi32>
    %581 = tpu.concatenate %548, %552, %556, %560, %564, %568, %572, %576 in 0 : vector<1x1xi32>, vector<1x1xi32>, vector<1x1xi32>, vector<1x1xi32>, vector<1x1xi32>, vector<1x1xi32>, vector<1x1xi32>, vector<1x1xi32> -> vector<8x1xi32>
    %582 = tpu.concatenate %580, %581 in 0 : vector<16x1xi32>, vector<8x1xi32> -> vector<24x1xi32>
    %583 = tpu.iota {dimensions = array<i32: 1>} : vector<24x145xi32>
    %c80_i32_181 = arith.constant 80 : i32
    %584 = vector.broadcast %c80_i32_181 : i32 to vector<24x1xi32>
    %585 = arith.addi %582, %584 : vector<24x1xi32>
    %586 = vector.broadcast %585 : vector<24x1xi32> to vector<24x145xi32>
    %587 = arith.cmpi eq, %583, %586 : vector<24x145xi32>
    %cst_182 = arith.constant 1.000000e+00 : f32
    %cst_183 = arith.constant 0.000000e+00 : f32
    %588 = vector.broadcast %cst_182 : f32 to vector<24x145xf32>
    %589 = vector.broadcast %cst_183 : f32 to vector<24x145xf32>
    %590 = arith.select %587, %588, %589 : vector<24x145xi1>, vector<24x145xf32>
    %c0_184 = arith.constant 0 : index
    %c0_185 = arith.constant 0 : index
    %591 = vector.load %arg6[%c0_184, %c0_185] : memref<145x32xbf16, #tpu.memory_space<vmem>>, vector<145x32xbf16>
    %592 = arith.truncf %590 : vector<24x145xf32> to vector<24x145xbf16>
    %cst_186 = arith.constant dense<0.000000e+00> : vector<24x32xf32>
    %593 = tpu.matmul %592, %591, %cst_186 {dimension_numbers = #tpu.dot_dimension_numbers<[1], [0], [0], [1], [0, 0, 1, 1], [], []>} : vector<24x145xbf16>, vector<145x32xbf16>, vector<24x32xf32> -> vector<24x32xf32>
    %c0_i32_187 = arith.constant 0 : i32
    %594 = vector.broadcast %c0_i32_187 : i32 to vector<24x1xi32>
    %595 = arith.cmpi ne, %582, %594 : vector<24x1xi32>
    %cst_188 = arith.constant 1.000000e+00 : f32
    %cst_189 = arith.constant 0.000000e+00 : f32
    %596 = vector.broadcast %cst_188 : f32 to vector<24x1xf32>
    %597 = vector.broadcast %cst_189 : f32 to vector<24x1xf32>
    %598 = arith.select %595, %596, %597 : vector<24x1xi1>, vector<24x1xf32>
    %c0_i32_190 = arith.constant 0 : i32
    %599 = vector.broadcast %c0_i32_190 : i32 to vector<1x24xi32>
    %600 = arith.cmpi eq, %579, %599 : vector<1x24xi32>
    %cst_191 = arith.constant -1.000000e+09 : f32
    %cst_192 = arith.constant 0.000000e+00 : f32
    %601 = vector.broadcast %cst_191 : f32 to vector<1x24xf32>
    %602 = vector.broadcast %cst_192 : f32 to vector<1x24xf32>
    %603 = arith.select %600, %601, %602 : vector<1x24xi1>, vector<1x24xf32>
    %604 = arith.addf %480, %593 : vector<24x32xf32>
    %c2_193 = arith.constant 2 : index
    %c0_194 = arith.constant 0 : index
    %c0_195 = arith.constant 0 : index
    %605 = vector.load %arg13[%c2_193, %c0_194, %c0_195] : memref<4x6x32xf32, #tpu.memory_space<vmem>>, vector<1x6x32xf32>
    %606 = vector.shape_cast %605 : vector<1x6x32xf32> to vector<6x32xf32>
    %607 = vector.extract_strided_slice %606 {offsets = [0, 0], sizes = [1, 32], strides = [1, 1]} : vector<6x32xf32> to vector<1x32xf32>
    %608 = vector.extract_strided_slice %606 {offsets = [1, 0], sizes = [1, 32], strides = [1, 1]} : vector<6x32xf32> to vector<1x32xf32>
    %609 = vector.extract_strided_slice %606 {offsets = [2, 0], sizes = [1, 32], strides = [1, 1]} : vector<6x32xf32> to vector<1x32xf32>
    %610 = vector.extract_strided_slice %606 {offsets = [3, 0], sizes = [1, 32], strides = [1, 1]} : vector<6x32xf32> to vector<1x32xf32>
    %611 = vector.extract_strided_slice %606 {offsets = [4, 0], sizes = [1, 32], strides = [1, 1]} : vector<6x32xf32> to vector<1x32xf32>
    %612 = vector.extract_strided_slice %606 {offsets = [5, 0], sizes = [1, 32], strides = [1, 1]} : vector<6x32xf32> to vector<1x32xf32>
    %c2_196 = arith.constant 2 : index
    %c0_197 = arith.constant 0 : index
    %c0_198 = arith.constant 0 : index
    %613 = vector.load %arg7[%c2_196, %c0_197, %c0_198] : memref<4x32x768xbf16, #tpu.memory_space<vmem>>, vector<1x32x768xbf16>
    %614 = vector.shape_cast %613 : vector<1x32x768xbf16> to vector<32x768xbf16>
    %615 = arith.truncf %604 : vector<24x32xf32> to vector<24x32xbf16>
    %cst_199 = arith.constant dense<0.000000e+00> : vector<24x768xf32>
    %616 = tpu.matmul %615, %614, %cst_199 {dimension_numbers = #tpu.dot_dimension_numbers<[1], [0], [0], [1], [0, 0, 1, 1], [], []>} : vector<24x32xbf16>, vector<32x768xbf16>, vector<24x768xf32> -> vector<24x768xf32>
    %c2_200 = arith.constant 2 : index
    %c0_201 = arith.constant 0 : index
    %c0_202 = arith.constant 0 : index
    %617 = vector.load %arg8[%c2_200, %c0_201, %c0_202] : memref<4x1x768xf32, #tpu.memory_space<vmem>>, vector<1x1x768xf32>
    %618 = vector.shape_cast %617 : vector<1x1x768xf32> to vector<1x768xf32>
    %619 = vector.broadcast %618 : vector<1x768xf32> to vector<24x768xf32>
    %620 = arith.addf %616, %619 : vector<24x768xf32>
    %621 = vector.extract_strided_slice %620 {offsets = [0, 0], sizes = [24, 128], strides = [1, 1]} : vector<24x768xf32> to vector<24x128xf32>
    %622 = vector.extract_strided_slice %620 {offsets = [0, 256], sizes = [24, 128], strides = [1, 1]} : vector<24x768xf32> to vector<24x128xf32>
    %623 = vector.extract_strided_slice %620 {offsets = [0, 512], sizes = [24, 128], strides = [1, 1]} : vector<24x768xf32> to vector<24x128xf32>
    %624 = tpu.transpose %622, [1, 0] : vector<24x128xf32> -> vector<128x24xf32>
    %625 = arith.truncf %621 : vector<24x128xf32> to vector<24x128xbf16>
    %626 = arith.truncf %624 : vector<128x24xf32> to vector<128x24xbf16>
    %cst_203 = arith.constant dense<0.000000e+00> : vector<24x24xf32>
    %627 = tpu.matmul %625, %626, %cst_203 {dimension_numbers = #tpu.dot_dimension_numbers<[1], [0], [0], [1], [0, 0, 1, 1], [], []>} : vector<24x128xbf16>, vector<128x24xbf16>, vector<24x24xf32> -> vector<24x24xf32>
    %cst_204 = arith.constant 2.500000e-01 : f32
    %628 = vector.broadcast %cst_204 : f32 to vector<24x24xf32>
    %629 = arith.mulf %627, %628 : vector<24x24xf32>
    %630 = vector.broadcast %603 : vector<1x24xf32> to vector<24x24xf32>
    %631 = arith.addf %629, %630 : vector<24x24xf32>
    %cst_205 = arith.constant dense<0xFF800000> : vector<24xf32>
    %632 = vector.multi_reduction <maximumf>, %631, %cst_205 [1] : vector<24x24xf32> to vector<24xf32>
    %633 = vector.shape_cast %632 : vector<24xf32> to vector<24x1xf32>
    %634 = vector.broadcast %633 : vector<24x1xf32> to vector<24x24xf32>
    %635 = arith.subf %631, %634 : vector<24x24xf32>
    %636 = math.exp %635 : vector<24x24xf32>
    %cst_206 = arith.constant dense<0.000000e+00> : vector<24xf32>
    %637 = vector.multi_reduction <add>, %636, %cst_206 [1] : vector<24x24xf32> to vector<24xf32>
    %638 = vector.shape_cast %637 : vector<24xf32> to vector<24x1xf32>
    %639 = tpu.reciprocal %638 {approx = true} : vector<24x1xf32> -> vector<24x1xf32>
    %640 = vector.broadcast %639 : vector<24x1xf32> to vector<24x24xf32>
    %641 = arith.mulf %636, %640 : vector<24x24xf32>
    %642 = arith.truncf %641 : vector<24x24xf32> to vector<24x24xbf16>
    %643 = arith.truncf %623 : vector<24x128xf32> to vector<24x128xbf16>
    %cst_207 = arith.constant dense<0.000000e+00> : vector<24x128xf32>
    %644 = tpu.matmul %642, %643, %cst_207 {dimension_numbers = #tpu.dot_dimension_numbers<[1], [0], [0], [1], [0, 0, 1, 1], [], []>} : vector<24x24xbf16>, vector<24x128xbf16>, vector<24x128xf32> -> vector<24x128xf32>
    %645 = vector.extract_strided_slice %620 {offsets = [0, 128], sizes = [24, 128], strides = [1, 1]} : vector<24x768xf32> to vector<24x128xf32>
    %646 = vector.extract_strided_slice %620 {offsets = [0, 384], sizes = [24, 128], strides = [1, 1]} : vector<24x768xf32> to vector<24x128xf32>
    %647 = vector.extract_strided_slice %620 {offsets = [0, 640], sizes = [24, 128], strides = [1, 1]} : vector<24x768xf32> to vector<24x128xf32>
    %648 = tpu.transpose %646, [1, 0] : vector<24x128xf32> -> vector<128x24xf32>
    %649 = arith.truncf %645 : vector<24x128xf32> to vector<24x128xbf16>
    %650 = arith.truncf %648 : vector<128x24xf32> to vector<128x24xbf16>
    %cst_208 = arith.constant dense<0.000000e+00> : vector<24x24xf32>
    %651 = tpu.matmul %649, %650, %cst_208 {dimension_numbers = #tpu.dot_dimension_numbers<[1], [0], [0], [1], [0, 0, 1, 1], [], []>} : vector<24x128xbf16>, vector<128x24xbf16>, vector<24x24xf32> -> vector<24x24xf32>
    %cst_209 = arith.constant 2.500000e-01 : f32
    %652 = vector.broadcast %cst_209 : f32 to vector<24x24xf32>
    %653 = arith.mulf %651, %652 : vector<24x24xf32>
    %654 = vector.broadcast %603 : vector<1x24xf32> to vector<24x24xf32>
    %655 = arith.addf %653, %654 : vector<24x24xf32>
    %cst_210 = arith.constant dense<0xFF800000> : vector<24xf32>
    %656 = vector.multi_reduction <maximumf>, %655, %cst_210 [1] : vector<24x24xf32> to vector<24xf32>
    %657 = vector.shape_cast %656 : vector<24xf32> to vector<24x1xf32>
    %658 = vector.broadcast %657 : vector<24x1xf32> to vector<24x24xf32>
    %659 = arith.subf %655, %658 : vector<24x24xf32>
    %660 = math.exp %659 : vector<24x24xf32>
    %cst_211 = arith.constant dense<0.000000e+00> : vector<24xf32>
    %661 = vector.multi_reduction <add>, %660, %cst_211 [1] : vector<24x24xf32> to vector<24xf32>
    %662 = vector.shape_cast %661 : vector<24xf32> to vector<24x1xf32>
    %663 = tpu.reciprocal %662 {approx = true} : vector<24x1xf32> -> vector<24x1xf32>
    %664 = vector.broadcast %663 : vector<24x1xf32> to vector<24x24xf32>
    %665 = arith.mulf %660, %664 : vector<24x24xf32>
    %666 = arith.truncf %665 : vector<24x24xf32> to vector<24x24xbf16>
    %667 = arith.truncf %647 : vector<24x128xf32> to vector<24x128xbf16>
    %cst_212 = arith.constant dense<0.000000e+00> : vector<24x128xf32>
    %668 = tpu.matmul %666, %667, %cst_212 {dimension_numbers = #tpu.dot_dimension_numbers<[1], [0], [0], [1], [0, 0, 1, 1], [], []>} : vector<24x24xbf16>, vector<24x128xbf16>, vector<24x128xf32> -> vector<24x128xf32>
    %669 = tpu.concatenate %644, %668 in 1 : vector<24x128xf32>, vector<24x128xf32> -> vector<24x256xf32>
    %c2_213 = arith.constant 2 : index
    %c0_214 = arith.constant 0 : index
    %c0_215 = arith.constant 0 : index
    %670 = vector.load %arg9[%c2_213, %c0_214, %c0_215] : memref<4x256x32xbf16, #tpu.memory_space<vmem>>, vector<1x256x32xbf16>
    %671 = vector.shape_cast %670 : vector<1x256x32xbf16> to vector<256x32xbf16>
    %672 = arith.truncf %669 : vector<24x256xf32> to vector<24x256xbf16>
    %cst_216 = arith.constant dense<0.000000e+00> : vector<24x32xf32>
    %673 = tpu.matmul %672, %671, %cst_216 {dimension_numbers = #tpu.dot_dimension_numbers<[1], [0], [0], [1], [0, 0, 1, 1], [], []>} : vector<24x256xbf16>, vector<256x32xbf16>, vector<24x32xf32> -> vector<24x32xf32>
    %674 = vector.broadcast %607 : vector<1x32xf32> to vector<24x32xf32>
    %675 = arith.addf %673, %674 : vector<24x32xf32>
    %676 = arith.addf %675, %604 : vector<24x32xf32>
    %cst_217 = arith.constant dense<0.000000e+00> : vector<24xf32>
    %677 = vector.multi_reduction <add>, %676, %cst_217 [1] : vector<24x32xf32> to vector<24xf32>
    %678 = vector.shape_cast %677 : vector<24xf32> to vector<24x1xf32>
    %cst_218 = arith.constant 3.200000e+01 : f32
    %679 = vector.broadcast %cst_218 : f32 to vector<24x1xf32>
    %680 = arith.divf %678, %679 : vector<24x1xf32>
    %681 = vector.broadcast %680 : vector<24x1xf32> to vector<24x32xf32>
    %682 = arith.subf %676, %681 : vector<24x32xf32>
    %683 = arith.mulf %682, %682 : vector<24x32xf32>
    %cst_219 = arith.constant dense<0.000000e+00> : vector<24xf32>
    %684 = vector.multi_reduction <add>, %683, %cst_219 [1] : vector<24x32xf32> to vector<24xf32>
    %685 = vector.shape_cast %684 : vector<24xf32> to vector<24x1xf32>
    %cst_220 = arith.constant 3.200000e+01 : f32
    %686 = vector.broadcast %cst_220 : f32 to vector<24x1xf32>
    %687 = arith.divf %685, %686 : vector<24x1xf32>
    %688 = vector.broadcast %680 : vector<24x1xf32> to vector<24x32xf32>
    %689 = arith.subf %676, %688 : vector<24x32xf32>
    %cst_221 = arith.constant 9.99999974E-6 : f32
    %690 = vector.broadcast %cst_221 : f32 to vector<24x1xf32>
    %691 = arith.addf %687, %690 : vector<24x1xf32>
    %692 = math.rsqrt %691 : vector<24x1xf32>
    %693 = vector.broadcast %692 : vector<24x1xf32> to vector<24x32xf32>
    %694 = arith.mulf %689, %693 : vector<24x32xf32>
    %695 = vector.broadcast %608 : vector<1x32xf32> to vector<24x32xf32>
    %696 = arith.mulf %694, %695 : vector<24x32xf32>
    %697 = vector.broadcast %609 : vector<1x32xf32> to vector<24x32xf32>
    %698 = arith.addf %696, %697 : vector<24x32xf32>
    %699 = vector.broadcast %598 : vector<24x1xf32> to vector<24x32xf32>
    %700 = arith.mulf %698, %699 : vector<24x32xf32>
    %c2_222 = arith.constant 2 : index
    %c0_223 = arith.constant 0 : index
    %c0_224 = arith.constant 0 : index
    %701 = vector.load %arg10[%c2_222, %c0_223, %c0_224] : memref<4x288x64xbf16, #tpu.memory_space<vmem>>, vector<1x288x64xbf16>
    %702 = vector.shape_cast %701 : vector<1x288x64xbf16> to vector<288x64xbf16>
    %c2_225 = arith.constant 2 : index
    %c0_226 = arith.constant 0 : index
    %c0_227 = arith.constant 0 : index
    %703 = vector.load %arg11[%c2_225, %c0_226, %c0_227] : memref<4x1x64xf32, #tpu.memory_space<vmem>>, vector<1x1x64xf32>
    %704 = vector.shape_cast %703 : vector<1x1x64xf32> to vector<1x64xf32>
    %c8_228 = arith.constant 8 : index
    %c0_229 = arith.constant 0 : index
    %705 = vector.load %arg19[%c8_228, %c0_229] : memref<40x32xf32, #tpu.memory_space<vmem>>, vector<24x32xf32>
    tpu.vector_store %arg19[%c8_228, %c0_229], %700 {strides = array<i32>} : memref<40x32xf32, #tpu.memory_space<vmem>>, vector<24x32xf32>,
    %c4_230 = arith.constant 4 : index
    %c0_231 = arith.constant 0 : index
    %706 = vector.load %arg19[%c4_230, %c0_231] : memref<40x32xf32, #tpu.memory_space<vmem>>, vector<24x32xf32>
    %c5_232 = arith.constant 5 : index
    %c0_233 = arith.constant 0 : index
    %707 = vector.load %arg19[%c5_232, %c0_233] : memref<40x32xf32, #tpu.memory_space<vmem>>, vector<24x32xf32>
    %c6_234 = arith.constant 6 : index
    %c0_235 = arith.constant 0 : index
    %708 = vector.load %arg19[%c6_234, %c0_235] : memref<40x32xf32, #tpu.memory_space<vmem>>, vector<24x32xf32>
    %c7_236 = arith.constant 7 : index
    %c0_237 = arith.constant 0 : index
    %709 = vector.load %arg19[%c7_236, %c0_237] : memref<40x32xf32, #tpu.memory_space<vmem>>, vector<24x32xf32>
    %c8_238 = arith.constant 8 : index
    %c0_239 = arith.constant 0 : index
    %710 = vector.load %arg19[%c8_238, %c0_239] : memref<40x32xf32, #tpu.memory_space<vmem>>, vector<24x32xf32>
    %c9_240 = arith.constant 9 : index
    %c0_241 = arith.constant 0 : index
    %711 = vector.load %arg19[%c9_240, %c0_241] : memref<40x32xf32, #tpu.memory_space<vmem>>, vector<24x32xf32>
    %c10_242 = arith.constant 10 : index
    %c0_243 = arith.constant 0 : index
    %712 = vector.load %arg19[%c10_242, %c0_243] : memref<40x32xf32, #tpu.memory_space<vmem>>, vector<24x32xf32>
    %c11_244 = arith.constant 11 : index
    %c0_245 = arith.constant 0 : index
    %713 = vector.load %arg19[%c11_244, %c0_245] : memref<40x32xf32, #tpu.memory_space<vmem>>, vector<24x32xf32>
    %c12_246 = arith.constant 12 : index
    %c0_247 = arith.constant 0 : index
    %714 = vector.load %arg19[%c12_246, %c0_247] : memref<40x32xf32, #tpu.memory_space<vmem>>, vector<24x32xf32>
    %715 = tpu.concatenate %706, %707, %708, %709, %710, %711, %712, %713, %714 in 1 : vector<24x32xf32>, vector<24x32xf32>, vector<24x32xf32>, vector<24x32xf32>, vector<24x32xf32>, vector<24x32xf32>, vector<24x32xf32>, vector<24x32xf32>, vector<24x32xf32> -> vector<24x288xf32>
    %716 = arith.truncf %715 : vector<24x288xf32> to vector<24x288xbf16>
    %cst_248 = arith.constant dense<0.000000e+00> : vector<24x64xf32>
    %717 = tpu.matmul %716, %702, %cst_248 {dimension_numbers = #tpu.dot_dimension_numbers<[1], [0], [0], [1], [0, 0, 1, 1], [], []>} : vector<24x288xbf16>, vector<288x64xbf16>, vector<24x64xf32> -> vector<24x64xf32>
    %718 = vector.broadcast %704 : vector<1x64xf32> to vector<24x64xf32>
    %719 = arith.addf %717, %718 : vector<24x64xf32>
    %cst_249 = arith.constant 0.000000e+00 : f32
    %720 = vector.broadcast %cst_249 : f32 to vector<24x64xf32>
    %721 = arith.maximumf %719, %720 : vector<24x64xf32>
    %c2_250 = arith.constant 2 : index
    %c0_251 = arith.constant 0 : index
    %c0_252 = arith.constant 0 : index
    %722 = vector.load %arg12[%c2_250, %c0_251, %c0_252] : memref<4x64x32xbf16, #tpu.memory_space<vmem>>, vector<1x64x32xbf16>
    %723 = vector.shape_cast %722 : vector<1x64x32xbf16> to vector<64x32xbf16>
    %724 = arith.truncf %721 : vector<24x64xf32> to vector<24x64xbf16>
    %cst_253 = arith.constant dense<0.000000e+00> : vector<24x32xf32>
    %725 = tpu.matmul %724, %723, %cst_253 {dimension_numbers = #tpu.dot_dimension_numbers<[1], [0], [0], [1], [0, 0, 1, 1], [], []>} : vector<24x64xbf16>, vector<64x32xbf16>, vector<24x32xf32> -> vector<24x32xf32>
    %726 = vector.broadcast %610 : vector<1x32xf32> to vector<24x32xf32>
    %727 = arith.addf %725, %726 : vector<24x32xf32>
    %728 = arith.addf %727, %700 : vector<24x32xf32>
    %cst_254 = arith.constant dense<0.000000e+00> : vector<24xf32>
    %729 = vector.multi_reduction <add>, %728, %cst_254 [1] : vector<24x32xf32> to vector<24xf32>
    %730 = vector.shape_cast %729 : vector<24xf32> to vector<24x1xf32>
    %cst_255 = arith.constant 3.200000e+01 : f32
    %731 = vector.broadcast %cst_255 : f32 to vector<24x1xf32>
    %732 = arith.divf %730, %731 : vector<24x1xf32>
    %733 = vector.broadcast %732 : vector<24x1xf32> to vector<24x32xf32>
    %734 = arith.subf %728, %733 : vector<24x32xf32>
    %735 = arith.mulf %734, %734 : vector<24x32xf32>
    %cst_256 = arith.constant dense<0.000000e+00> : vector<24xf32>
    %736 = vector.multi_reduction <add>, %735, %cst_256 [1] : vector<24x32xf32> to vector<24xf32>
    %737 = vector.shape_cast %736 : vector<24xf32> to vector<24x1xf32>
    %cst_257 = arith.constant 3.200000e+01 : f32
    %738 = vector.broadcast %cst_257 : f32 to vector<24x1xf32>
    %739 = arith.divf %737, %738 : vector<24x1xf32>
    %740 = vector.broadcast %732 : vector<24x1xf32> to vector<24x32xf32>
    %741 = arith.subf %728, %740 : vector<24x32xf32>
    %cst_258 = arith.constant 9.99999974E-6 : f32
    %742 = vector.broadcast %cst_258 : f32 to vector<24x1xf32>
    %743 = arith.addf %739, %742 : vector<24x1xf32>
    %744 = math.rsqrt %743 : vector<24x1xf32>
    %745 = vector.broadcast %744 : vector<24x1xf32> to vector<24x32xf32>
    %746 = arith.mulf %741, %745 : vector<24x32xf32>
    %747 = vector.broadcast %611 : vector<1x32xf32> to vector<24x32xf32>
    %748 = arith.mulf %746, %747 : vector<24x32xf32>
    %749 = vector.broadcast %612 : vector<1x32xf32> to vector<24x32xf32>
    %750 = arith.addf %748, %749 : vector<24x32xf32>
    %751 = vector.broadcast %598 : vector<24x1xf32> to vector<24x32xf32>
    %752 = arith.mulf %750, %751 : vector<24x32xf32>
    %c3_259 = arith.constant 3 : index
    %c0_260 = arith.constant 0 : index
    %c0_261 = arith.constant 0 : index
    %753 = vector.load %arg13[%c3_259, %c0_260, %c0_261] : memref<4x6x32xf32, #tpu.memory_space<vmem>>, vector<1x6x32xf32>
    %754 = vector.shape_cast %753 : vector<1x6x32xf32> to vector<6x32xf32>
    %755 = vector.extract_strided_slice %754 {offsets = [0, 0], sizes = [1, 32], strides = [1, 1]} : vector<6x32xf32> to vector<1x32xf32>
    %756 = vector.extract_strided_slice %754 {offsets = [1, 0], sizes = [1, 32], strides = [1, 1]} : vector<6x32xf32> to vector<1x32xf32>
    %757 = vector.extract_strided_slice %754 {offsets = [2, 0], sizes = [1, 32], strides = [1, 1]} : vector<6x32xf32> to vector<1x32xf32>
    %758 = vector.extract_strided_slice %754 {offsets = [3, 0], sizes = [1, 32], strides = [1, 1]} : vector<6x32xf32> to vector<1x32xf32>
    %759 = vector.extract_strided_slice %754 {offsets = [4, 0], sizes = [1, 32], strides = [1, 1]} : vector<6x32xf32> to vector<1x32xf32>
    %760 = vector.extract_strided_slice %754 {offsets = [5, 0], sizes = [1, 32], strides = [1, 1]} : vector<6x32xf32> to vector<1x32xf32>
    %c3_262 = arith.constant 3 : index
    %c0_263 = arith.constant 0 : index
    %c0_264 = arith.constant 0 : index
    %761 = vector.load %arg7[%c3_262, %c0_263, %c0_264] : memref<4x32x768xbf16, #tpu.memory_space<vmem>>, vector<1x32x768xbf16>
    %762 = vector.shape_cast %761 : vector<1x32x768xbf16> to vector<32x768xbf16>
    %763 = arith.truncf %752 : vector<24x32xf32> to vector<24x32xbf16>
    %cst_265 = arith.constant dense<0.000000e+00> : vector<24x768xf32>
    %764 = tpu.matmul %763, %762, %cst_265 {dimension_numbers = #tpu.dot_dimension_numbers<[1], [0], [0], [1], [0, 0, 1, 1], [], []>} : vector<24x32xbf16>, vector<32x768xbf16>, vector<24x768xf32> -> vector<24x768xf32>
    %c3_266 = arith.constant 3 : index
    %c0_267 = arith.constant 0 : index
    %c0_268 = arith.constant 0 : index
    %765 = vector.load %arg8[%c3_266, %c0_267, %c0_268] : memref<4x1x768xf32, #tpu.memory_space<vmem>>, vector<1x1x768xf32>
    %766 = vector.shape_cast %765 : vector<1x1x768xf32> to vector<1x768xf32>
    %767 = vector.broadcast %766 : vector<1x768xf32> to vector<24x768xf32>
    %768 = arith.addf %764, %767 : vector<24x768xf32>
    %769 = vector.extract_strided_slice %768 {offsets = [0, 0], sizes = [24, 128], strides = [1, 1]} : vector<24x768xf32> to vector<24x128xf32>
    %770 = vector.extract_strided_slice %768 {offsets = [0, 256], sizes = [24, 128], strides = [1, 1]} : vector<24x768xf32> to vector<24x128xf32>
    %771 = vector.extract_strided_slice %768 {offsets = [0, 512], sizes = [24, 128], strides = [1, 1]} : vector<24x768xf32> to vector<24x128xf32>
    %772 = tpu.transpose %770, [1, 0] : vector<24x128xf32> -> vector<128x24xf32>
    %773 = arith.truncf %769 : vector<24x128xf32> to vector<24x128xbf16>
    %774 = arith.truncf %772 : vector<128x24xf32> to vector<128x24xbf16>
    %cst_269 = arith.constant dense<0.000000e+00> : vector<24x24xf32>
    %775 = tpu.matmul %773, %774, %cst_269 {dimension_numbers = #tpu.dot_dimension_numbers<[1], [0], [0], [1], [0, 0, 1, 1], [], []>} : vector<24x128xbf16>, vector<128x24xbf16>, vector<24x24xf32> -> vector<24x24xf32>
    %cst_270 = arith.constant 2.500000e-01 : f32
    %776 = vector.broadcast %cst_270 : f32 to vector<24x24xf32>
    %777 = arith.mulf %775, %776 : vector<24x24xf32>
    %778 = vector.broadcast %603 : vector<1x24xf32> to vector<24x24xf32>
    %779 = arith.addf %777, %778 : vector<24x24xf32>
    %cst_271 = arith.constant dense<0xFF800000> : vector<24xf32>
    %780 = vector.multi_reduction <maximumf>, %779, %cst_271 [1] : vector<24x24xf32> to vector<24xf32>
    %781 = vector.shape_cast %780 : vector<24xf32> to vector<24x1xf32>
    %782 = vector.broadcast %781 : vector<24x1xf32> to vector<24x24xf32>
    %783 = arith.subf %779, %782 : vector<24x24xf32>
    %784 = math.exp %783 : vector<24x24xf32>
    %cst_272 = arith.constant dense<0.000000e+00> : vector<24xf32>
    %785 = vector.multi_reduction <add>, %784, %cst_272 [1] : vector<24x24xf32> to vector<24xf32>
    %786 = vector.shape_cast %785 : vector<24xf32> to vector<24x1xf32>
    %787 = tpu.reciprocal %786 {approx = true} : vector<24x1xf32> -> vector<24x1xf32>
    %788 = vector.broadcast %787 : vector<24x1xf32> to vector<24x24xf32>
    %789 = arith.mulf %784, %788 : vector<24x24xf32>
    %790 = arith.truncf %789 : vector<24x24xf32> to vector<24x24xbf16>
    %791 = arith.truncf %771 : vector<24x128xf32> to vector<24x128xbf16>
    %cst_273 = arith.constant dense<0.000000e+00> : vector<24x128xf32>
    %792 = tpu.matmul %790, %791, %cst_273 {dimension_numbers = #tpu.dot_dimension_numbers<[1], [0], [0], [1], [0, 0, 1, 1], [], []>} : vector<24x24xbf16>, vector<24x128xbf16>, vector<24x128xf32> -> vector<24x128xf32>
    %793 = vector.extract_strided_slice %768 {offsets = [0, 128], sizes = [24, 128], strides = [1, 1]} : vector<24x768xf32> to vector<24x128xf32>
    %794 = vector.extract_strided_slice %768 {offsets = [0, 384], sizes = [24, 128], strides = [1, 1]} : vector<24x768xf32> to vector<24x128xf32>
    %795 = vector.extract_strided_slice %768 {offsets = [0, 640], sizes = [24, 128], strides = [1, 1]} : vector<24x768xf32> to vector<24x128xf32>
    %796 = tpu.transpose %794, [1, 0] : vector<24x128xf32> -> vector<128x24xf32>
    %797 = arith.truncf %793 : vector<24x128xf32> to vector<24x128xbf16>
    %798 = arith.truncf %796 : vector<128x24xf32> to vector<128x24xbf16>
    %cst_274 = arith.constant dense<0.000000e+00> : vector<24x24xf32>
    %799 = tpu.matmul %797, %798, %cst_274 {dimension_numbers = #tpu.dot_dimension_numbers<[1], [0], [0], [1], [0, 0, 1, 1], [], []>} : vector<24x128xbf16>, vector<128x24xbf16>, vector<24x24xf32> -> vector<24x24xf32>
    %cst_275 = arith.constant 2.500000e-01 : f32
    %800 = vector.broadcast %cst_275 : f32 to vector<24x24xf32>
    %801 = arith.mulf %799, %800 : vector<24x24xf32>
    %802 = vector.broadcast %603 : vector<1x24xf32> to vector<24x24xf32>
    %803 = arith.addf %801, %802 : vector<24x24xf32>
    %cst_276 = arith.constant dense<0xFF800000> : vector<24xf32>
    %804 = vector.multi_reduction <maximumf>, %803, %cst_276 [1] : vector<24x24xf32> to vector<24xf32>
    %805 = vector.shape_cast %804 : vector<24xf32> to vector<24x1xf32>
    %806 = vector.broadcast %805 : vector<24x1xf32> to vector<24x24xf32>
    %807 = arith.subf %803, %806 : vector<24x24xf32>
    %808 = math.exp %807 : vector<24x24xf32>
    %cst_277 = arith.constant dense<0.000000e+00> : vector<24xf32>
    %809 = vector.multi_reduction <add>, %808, %cst_277 [1] : vector<24x24xf32> to vector<24xf32>
    %810 = vector.shape_cast %809 : vector<24xf32> to vector<24x1xf32>
    %811 = tpu.reciprocal %810 {approx = true} : vector<24x1xf32> -> vector<24x1xf32>
    %812 = vector.broadcast %811 : vector<24x1xf32> to vector<24x24xf32>
    %813 = arith.mulf %808, %812 : vector<24x24xf32>
    %814 = arith.truncf %813 : vector<24x24xf32> to vector<24x24xbf16>
    %815 = arith.truncf %795 : vector<24x128xf32> to vector<24x128xbf16>
    %cst_278 = arith.constant dense<0.000000e+00> : vector<24x128xf32>
    %816 = tpu.matmul %814, %815, %cst_278 {dimension_numbers = #tpu.dot_dimension_numbers<[1], [0], [0], [1], [0, 0, 1, 1], [], []>} : vector<24x24xbf16>, vector<24x128xbf16>, vector<24x128xf32> -> vector<24x128xf32>
    %817 = tpu.concatenate %792, %816 in 1 : vector<24x128xf32>, vector<24x128xf32> -> vector<24x256xf32>
    %c3_279 = arith.constant 3 : index
    %c0_280 = arith.constant 0 : index
    %c0_281 = arith.constant 0 : index
    %818 = vector.load %arg9[%c3_279, %c0_280, %c0_281] : memref<4x256x32xbf16, #tpu.memory_space<vmem>>, vector<1x256x32xbf16>
    %819 = vector.shape_cast %818 : vector<1x256x32xbf16> to vector<256x32xbf16>
    %820 = arith.truncf %817 : vector<24x256xf32> to vector<24x256xbf16>
    %cst_282 = arith.constant dense<0.000000e+00> : vector<24x32xf32>
    %821 = tpu.matmul %820, %819, %cst_282 {dimension_numbers = #tpu.dot_dimension_numbers<[1], [0], [0], [1], [0, 0, 1, 1], [], []>} : vector<24x256xbf16>, vector<256x32xbf16>, vector<24x32xf32> -> vector<24x32xf32>
    %822 = vector.broadcast %755 : vector<1x32xf32> to vector<24x32xf32>
    %823 = arith.addf %821, %822 : vector<24x32xf32>
    %824 = arith.addf %823, %752 : vector<24x32xf32>
    %cst_283 = arith.constant dense<0.000000e+00> : vector<24xf32>
    %825 = vector.multi_reduction <add>, %824, %cst_283 [1] : vector<24x32xf32> to vector<24xf32>
    %826 = vector.shape_cast %825 : vector<24xf32> to vector<24x1xf32>
    %cst_284 = arith.constant 3.200000e+01 : f32
    %827 = vector.broadcast %cst_284 : f32 to vector<24x1xf32>
    %828 = arith.divf %826, %827 : vector<24x1xf32>
    %829 = vector.broadcast %828 : vector<24x1xf32> to vector<24x32xf32>
    %830 = arith.subf %824, %829 : vector<24x32xf32>
    %831 = arith.mulf %830, %830 : vector<24x32xf32>
    %cst_285 = arith.constant dense<0.000000e+00> : vector<24xf32>
    %832 = vector.multi_reduction <add>, %831, %cst_285 [1] : vector<24x32xf32> to vector<24xf32>
    %833 = vector.shape_cast %832 : vector<24xf32> to vector<24x1xf32>
    %cst_286 = arith.constant 3.200000e+01 : f32
    %834 = vector.broadcast %cst_286 : f32 to vector<24x1xf32>
    %835 = arith.divf %833, %834 : vector<24x1xf32>
    %836 = vector.broadcast %828 : vector<24x1xf32> to vector<24x32xf32>
    %837 = arith.subf %824, %836 : vector<24x32xf32>
    %cst_287 = arith.constant 9.99999974E-6 : f32
    %838 = vector.broadcast %cst_287 : f32 to vector<24x1xf32>
    %839 = arith.addf %835, %838 : vector<24x1xf32>
    %840 = math.rsqrt %839 : vector<24x1xf32>
    %841 = vector.broadcast %840 : vector<24x1xf32> to vector<24x32xf32>
    %842 = arith.mulf %837, %841 : vector<24x32xf32>
    %843 = vector.broadcast %756 : vector<1x32xf32> to vector<24x32xf32>
    %844 = arith.mulf %842, %843 : vector<24x32xf32>
    %845 = vector.broadcast %757 : vector<1x32xf32> to vector<24x32xf32>
    %846 = arith.addf %844, %845 : vector<24x32xf32>
    %847 = vector.broadcast %598 : vector<24x1xf32> to vector<24x32xf32>
    %848 = arith.mulf %846, %847 : vector<24x32xf32>
    %c3_288 = arith.constant 3 : index
    %c0_289 = arith.constant 0 : index
    %c0_290 = arith.constant 0 : index
    %849 = vector.load %arg10[%c3_288, %c0_289, %c0_290] : memref<4x288x64xbf16, #tpu.memory_space<vmem>>, vector<1x288x64xbf16>
    %850 = vector.shape_cast %849 : vector<1x288x64xbf16> to vector<288x64xbf16>
    %c3_291 = arith.constant 3 : index
    %c0_292 = arith.constant 0 : index
    %c0_293 = arith.constant 0 : index
    %851 = vector.load %arg11[%c3_291, %c0_292, %c0_293] : memref<4x1x64xf32, #tpu.memory_space<vmem>>, vector<1x1x64xf32>
    %852 = vector.shape_cast %851 : vector<1x1x64xf32> to vector<1x64xf32>
    %c8_294 = arith.constant 8 : index
    %c0_295 = arith.constant 0 : index
    %853 = vector.load %arg19[%c8_294, %c0_295] : memref<40x32xf32, #tpu.memory_space<vmem>>, vector<24x32xf32>
    tpu.vector_store %arg19[%c8_294, %c0_295], %848 {strides = array<i32>} : memref<40x32xf32, #tpu.memory_space<vmem>>, vector<24x32xf32>,
    %c4_296 = arith.constant 4 : index
    %c0_297 = arith.constant 0 : index
    %854 = vector.load %arg19[%c4_296, %c0_297] : memref<40x32xf32, #tpu.memory_space<vmem>>, vector<24x32xf32>
    %c5_298 = arith.constant 5 : index
    %c0_299 = arith.constant 0 : index
    %855 = vector.load %arg19[%c5_298, %c0_299] : memref<40x32xf32, #tpu.memory_space<vmem>>, vector<24x32xf32>
    %c6_300 = arith.constant 6 : index
    %c0_301 = arith.constant 0 : index
    %856 = vector.load %arg19[%c6_300, %c0_301] : memref<40x32xf32, #tpu.memory_space<vmem>>, vector<24x32xf32>
    %c7_302 = arith.constant 7 : index
    %c0_303 = arith.constant 0 : index
    %857 = vector.load %arg19[%c7_302, %c0_303] : memref<40x32xf32, #tpu.memory_space<vmem>>, vector<24x32xf32>
    %c8_304 = arith.constant 8 : index
    %c0_305 = arith.constant 0 : index
    %858 = vector.load %arg19[%c8_304, %c0_305] : memref<40x32xf32, #tpu.memory_space<vmem>>, vector<24x32xf32>
    %c9_306 = arith.constant 9 : index
    %c0_307 = arith.constant 0 : index
    %859 = vector.load %arg19[%c9_306, %c0_307] : memref<40x32xf32, #tpu.memory_space<vmem>>, vector<24x32xf32>
    %c10_308 = arith.constant 10 : index
    %c0_309 = arith.constant 0 : index
    %860 = vector.load %arg19[%c10_308, %c0_309] : memref<40x32xf32, #tpu.memory_space<vmem>>, vector<24x32xf32>
    %c11_310 = arith.constant 11 : index
    %c0_311 = arith.constant 0 : index
    %861 = vector.load %arg19[%c11_310, %c0_311] : memref<40x32xf32, #tpu.memory_space<vmem>>, vector<24x32xf32>
    %c12_312 = arith.constant 12 : index
    %c0_313 = arith.constant 0 : index
    %862 = vector.load %arg19[%c12_312, %c0_313] : memref<40x32xf32, #tpu.memory_space<vmem>>, vector<24x32xf32>
    %863 = tpu.concatenate %854, %855, %856, %857, %858, %859, %860, %861, %862 in 1 : vector<24x32xf32>, vector<24x32xf32>, vector<24x32xf32>, vector<24x32xf32>, vector<24x32xf32>, vector<24x32xf32>, vector<24x32xf32>, vector<24x32xf32>, vector<24x32xf32> -> vector<24x288xf32>
    %864 = arith.truncf %863 : vector<24x288xf32> to vector<24x288xbf16>
    %cst_314 = arith.constant dense<0.000000e+00> : vector<24x64xf32>
    %865 = tpu.matmul %864, %850, %cst_314 {dimension_numbers = #tpu.dot_dimension_numbers<[1], [0], [0], [1], [0, 0, 1, 1], [], []>} : vector<24x288xbf16>, vector<288x64xbf16>, vector<24x64xf32> -> vector<24x64xf32>
    %866 = vector.broadcast %852 : vector<1x64xf32> to vector<24x64xf32>
    %867 = arith.addf %865, %866 : vector<24x64xf32>
    %cst_315 = arith.constant 0.000000e+00 : f32
    %868 = vector.broadcast %cst_315 : f32 to vector<24x64xf32>
    %869 = arith.maximumf %867, %868 : vector<24x64xf32>
    %c3_316 = arith.constant 3 : index
    %c0_317 = arith.constant 0 : index
    %c0_318 = arith.constant 0 : index
    %870 = vector.load %arg12[%c3_316, %c0_317, %c0_318] : memref<4x64x32xbf16, #tpu.memory_space<vmem>>, vector<1x64x32xbf16>
    %871 = vector.shape_cast %870 : vector<1x64x32xbf16> to vector<64x32xbf16>
    %872 = arith.truncf %869 : vector<24x64xf32> to vector<24x64xbf16>
    %cst_319 = arith.constant dense<0.000000e+00> : vector<24x32xf32>
    %873 = tpu.matmul %872, %871, %cst_319 {dimension_numbers = #tpu.dot_dimension_numbers<[1], [0], [0], [1], [0, 0, 1, 1], [], []>} : vector<24x64xbf16>, vector<64x32xbf16>, vector<24x32xf32> -> vector<24x32xf32>
    %874 = vector.broadcast %758 : vector<1x32xf32> to vector<24x32xf32>
    %875 = arith.addf %873, %874 : vector<24x32xf32>
    %876 = arith.addf %875, %848 : vector<24x32xf32>
    %cst_320 = arith.constant dense<0.000000e+00> : vector<24xf32>
    %877 = vector.multi_reduction <add>, %876, %cst_320 [1] : vector<24x32xf32> to vector<24xf32>
    %878 = vector.shape_cast %877 : vector<24xf32> to vector<24x1xf32>
    %cst_321 = arith.constant 3.200000e+01 : f32
    %879 = vector.broadcast %cst_321 : f32 to vector<24x1xf32>
    %880 = arith.divf %878, %879 : vector<24x1xf32>
    %881 = vector.broadcast %880 : vector<24x1xf32> to vector<24x32xf32>
    %882 = arith.subf %876, %881 : vector<24x32xf32>
    %883 = arith.mulf %882, %882 : vector<24x32xf32>
    %cst_322 = arith.constant dense<0.000000e+00> : vector<24xf32>
    %884 = vector.multi_reduction <add>, %883, %cst_322 [1] : vector<24x32xf32> to vector<24xf32>
    %885 = vector.shape_cast %884 : vector<24xf32> to vector<24x1xf32>
    %cst_323 = arith.constant 3.200000e+01 : f32
    %886 = vector.broadcast %cst_323 : f32 to vector<24x1xf32>
    %887 = arith.divf %885, %886 : vector<24x1xf32>
    %888 = vector.broadcast %880 : vector<24x1xf32> to vector<24x32xf32>
    %889 = arith.subf %876, %888 : vector<24x32xf32>
    %cst_324 = arith.constant 9.99999974E-6 : f32
    %890 = vector.broadcast %cst_324 : f32 to vector<24x1xf32>
    %891 = arith.addf %887, %890 : vector<24x1xf32>
    %892 = math.rsqrt %891 : vector<24x1xf32>
    %893 = vector.broadcast %892 : vector<24x1xf32> to vector<24x32xf32>
    %894 = arith.mulf %889, %893 : vector<24x32xf32>
    %895 = vector.broadcast %759 : vector<1x32xf32> to vector<24x32xf32>
    %896 = arith.mulf %894, %895 : vector<24x32xf32>
    %897 = vector.broadcast %760 : vector<1x32xf32> to vector<24x32xf32>
    %898 = arith.addf %896, %897 : vector<24x32xf32>
    %899 = vector.broadcast %598 : vector<24x1xf32> to vector<24x32xf32>
    %900 = arith.mulf %898, %899 : vector<24x32xf32>
    %c0_325 = arith.constant 0 : index
    %c0_326 = arith.constant 0 : index
    %901 = vector.load %arg14[%c0_325, %c0_326] : memref<32x16xbf16, #tpu.memory_space<vmem>>, vector<32x16xbf16>
    %902 = arith.truncf %900 : vector<24x32xf32> to vector<24x32xbf16>
    %cst_327 = arith.constant dense<0.000000e+00> : vector<24x16xf32>
    %903 = tpu.matmul %902, %901, %cst_327 {dimension_numbers = #tpu.dot_dimension_numbers<[1], [0], [0], [1], [0, 0, 1, 1], [], []>} : vector<24x32xbf16>, vector<32x16xbf16>, vector<24x16xf32> -> vector<24x16xf32>
    %c0_328 = arith.constant 0 : index
    %c0_329 = arith.constant 0 : index
    %904 = vector.load %arg15[%c0_328, %c0_329] : memref<1x16xf32, #tpu.memory_space<vmem>>, vector<1x16xf32>
    %905 = vector.broadcast %904 : vector<1x16xf32> to vector<24x16xf32>
    %906 = arith.addf %903, %905 : vector<24x16xf32>
    %c0_330 = arith.constant 0 : index
    %c0_331 = arith.constant 0 : index
    %c0_332 = arith.constant 0 : index
    %907 = vector.load %arg16[%c0_330, %c0_331, %c0_332] : memref<5x160x32xbf16, #tpu.memory_space<vmem>>, vector<1x80x32xbf16>
    %908 = vector.shape_cast %907 : vector<1x80x32xbf16> to vector<80x32xbf16>
    %c0_333 = arith.constant 0 : index
    %c0_334 = arith.constant 0 : index
    %c0_335 = arith.constant 0 : index
    %909 = vector.load %arg17[%c0_333, %c0_334, %c0_335] : memref<5x1x32xf32, #tpu.memory_space<vmem>>, vector<1x1x32xf32>
    %910 = vector.shape_cast %909 : vector<1x1x32xf32> to vector<1x32xf32>
    %c8_336 = arith.constant 8 : index
    %c0_337 = arith.constant 0 : index
    %911 = vector.load %arg19[%c8_336, %c0_337] : memref<40x32xf32, #tpu.memory_space<vmem>>, vector<24x16xf32>
    tpu.vector_store %arg19[%c8_336, %c0_337], %906 {strides = array<i32>} : memref<40x32xf32, #tpu.memory_space<vmem>>, vector<24x16xf32>,
    %c6_338 = arith.constant 6 : index
    %c0_339 = arith.constant 0 : index
    %912 = vector.load %arg19[%c6_338, %c0_339] : memref<40x32xf32, #tpu.memory_space<vmem>>, vector<24x16xf32>
    %c7_340 = arith.constant 7 : index
    %c0_341 = arith.constant 0 : index
    %913 = vector.load %arg19[%c7_340, %c0_341] : memref<40x32xf32, #tpu.memory_space<vmem>>, vector<24x16xf32>
    %c8_342 = arith.constant 8 : index
    %c0_343 = arith.constant 0 : index
    %914 = vector.load %arg19[%c8_342, %c0_343] : memref<40x32xf32, #tpu.memory_space<vmem>>, vector<24x16xf32>
    %c9_344 = arith.constant 9 : index
    %c0_345 = arith.constant 0 : index
    %915 = vector.load %arg19[%c9_344, %c0_345] : memref<40x32xf32, #tpu.memory_space<vmem>>, vector<24x16xf32>
    %c10_346 = arith.constant 10 : index
    %c0_347 = arith.constant 0 : index
    %916 = vector.load %arg19[%c10_346, %c0_347] : memref<40x32xf32, #tpu.memory_space<vmem>>, vector<24x16xf32>
    %917 = tpu.concatenate %912, %913, %914, %915, %916 in 1 : vector<24x16xf32>, vector<24x16xf32>, vector<24x16xf32>, vector<24x16xf32>, vector<24x16xf32> -> vector<24x80xf32>
    %918 = arith.truncf %917 : vector<24x80xf32> to vector<24x80xbf16>
    %cst_348 = arith.constant dense<0.000000e+00> : vector<24x32xf32>
    %919 = tpu.matmul %918, %908, %cst_348 {dimension_numbers = #tpu.dot_dimension_numbers<[1], [0], [0], [1], [0, 0, 1, 1], [], []>} : vector<24x80xbf16>, vector<80x32xbf16>, vector<24x32xf32> -> vector<24x32xf32>
    %920 = vector.broadcast %910 : vector<1x32xf32> to vector<24x32xf32>
    %921 = arith.addf %919, %920 : vector<24x32xf32>
    %922 = math.tanh %921 : vector<24x32xf32>
    %c1_349 = arith.constant 1 : index
    %c0_350 = arith.constant 0 : index
    %c0_351 = arith.constant 0 : index
    %923 = vector.load %arg16[%c1_349, %c0_350, %c0_351] : memref<5x160x32xbf16, #tpu.memory_space<vmem>>, vector<1x160x32xbf16>
    %924 = vector.shape_cast %923 : vector<1x160x32xbf16> to vector<160x32xbf16>
    %c1_352 = arith.constant 1 : index
    %c0_353 = arith.constant 0 : index
    %c0_354 = arith.constant 0 : index
    %925 = vector.load %arg17[%c1_352, %c0_353, %c0_354] : memref<5x1x32xf32, #tpu.memory_space<vmem>>, vector<1x1x32xf32>
    %926 = vector.shape_cast %925 : vector<1x1x32xf32> to vector<1x32xf32>
    %c8_355 = arith.constant 8 : index
    %c0_356 = arith.constant 0 : index
    %927 = vector.load %arg19[%c8_355, %c0_356] : memref<40x32xf32, #tpu.memory_space<vmem>>, vector<24x32xf32>
    tpu.vector_store %arg19[%c8_355, %c0_356], %922 {strides = array<i32>} : memref<40x32xf32, #tpu.memory_space<vmem>>, vector<24x32xf32>,
    %c6_357 = arith.constant 6 : index
    %c0_358 = arith.constant 0 : index
    %928 = vector.load %arg19[%c6_357, %c0_358] : memref<40x32xf32, #tpu.memory_space<vmem>>, vector<24x32xf32>
    %c7_359 = arith.constant 7 : index
    %c0_360 = arith.constant 0 : index
    %929 = vector.load %arg19[%c7_359, %c0_360] : memref<40x32xf32, #tpu.memory_space<vmem>>, vector<24x32xf32>
    %c8_361 = arith.constant 8 : index
    %c0_362 = arith.constant 0 : index
    %930 = vector.load %arg19[%c8_361, %c0_362] : memref<40x32xf32, #tpu.memory_space<vmem>>, vector<24x32xf32>
    %c9_363 = arith.constant 9 : index
    %c0_364 = arith.constant 0 : index
    %931 = vector.load %arg19[%c9_363, %c0_364] : memref<40x32xf32, #tpu.memory_space<vmem>>, vector<24x32xf32>
    %c10_365 = arith.constant 10 : index
    %c0_366 = arith.constant 0 : index
    %932 = vector.load %arg19[%c10_365, %c0_366] : memref<40x32xf32, #tpu.memory_space<vmem>>, vector<24x32xf32>
    %933 = tpu.concatenate %928, %929, %930, %931, %932 in 1 : vector<24x32xf32>, vector<24x32xf32>, vector<24x32xf32>, vector<24x32xf32>, vector<24x32xf32> -> vector<24x160xf32>
    %934 = arith.truncf %933 : vector<24x160xf32> to vector<24x160xbf16>
    %cst_367 = arith.constant dense<0.000000e+00> : vector<24x32xf32>
    %935 = tpu.matmul %934, %924, %cst_367 {dimension_numbers = #tpu.dot_dimension_numbers<[1], [0], [0], [1], [0, 0, 1, 1], [], []>} : vector<24x160xbf16>, vector<160x32xbf16>, vector<24x32xf32> -> vector<24x32xf32>
    %936 = vector.broadcast %926 : vector<1x32xf32> to vector<24x32xf32>
    %937 = arith.addf %935, %936 : vector<24x32xf32>
    %938 = math.tanh %937 : vector<24x32xf32>
    %c2_368 = arith.constant 2 : index
    %c0_369 = arith.constant 0 : index
    %c0_370 = arith.constant 0 : index
    %939 = vector.load %arg16[%c2_368, %c0_369, %c0_370] : memref<5x160x32xbf16, #tpu.memory_space<vmem>>, vector<1x160x32xbf16>
    %940 = vector.shape_cast %939 : vector<1x160x32xbf16> to vector<160x32xbf16>
    %c2_371 = arith.constant 2 : index
    %c0_372 = arith.constant 0 : index
    %c0_373 = arith.constant 0 : index
    %941 = vector.load %arg17[%c2_371, %c0_372, %c0_373] : memref<5x1x32xf32, #tpu.memory_space<vmem>>, vector<1x1x32xf32>
    %942 = vector.shape_cast %941 : vector<1x1x32xf32> to vector<1x32xf32>
    %c8_374 = arith.constant 8 : index
    %c0_375 = arith.constant 0 : index
    %943 = vector.load %arg19[%c8_374, %c0_375] : memref<40x32xf32, #tpu.memory_space<vmem>>, vector<24x32xf32>
    tpu.vector_store %arg19[%c8_374, %c0_375], %938 {strides = array<i32>} : memref<40x32xf32, #tpu.memory_space<vmem>>, vector<24x32xf32>,
    %c6_376 = arith.constant 6 : index
    %c0_377 = arith.constant 0 : index
    %944 = vector.load %arg19[%c6_376, %c0_377] : memref<40x32xf32, #tpu.memory_space<vmem>>, vector<24x32xf32>
    %c7_378 = arith.constant 7 : index
    %c0_379 = arith.constant 0 : index
    %945 = vector.load %arg19[%c7_378, %c0_379] : memref<40x32xf32, #tpu.memory_space<vmem>>, vector<24x32xf32>
    %c8_380 = arith.constant 8 : index
    %c0_381 = arith.constant 0 : index
    %946 = vector.load %arg19[%c8_380, %c0_381] : memref<40x32xf32, #tpu.memory_space<vmem>>, vector<24x32xf32>
    %c9_382 = arith.constant 9 : index
    %c0_383 = arith.constant 0 : index
    %947 = vector.load %arg19[%c9_382, %c0_383] : memref<40x32xf32, #tpu.memory_space<vmem>>, vector<24x32xf32>
    %c10_384 = arith.constant 10 : index
    %c0_385 = arith.constant 0 : index
    %948 = vector.load %arg19[%c10_384, %c0_385] : memref<40x32xf32, #tpu.memory_space<vmem>>, vector<24x32xf32>
    %949 = tpu.concatenate %944, %945, %946, %947, %948 in 1 : vector<24x32xf32>, vector<24x32xf32>, vector<24x32xf32>, vector<24x32xf32>, vector<24x32xf32> -> vector<24x160xf32>
    %950 = arith.truncf %949 : vector<24x160xf32> to vector<24x160xbf16>
    %cst_386 = arith.constant dense<0.000000e+00> : vector<24x32xf32>
    %951 = tpu.matmul %950, %940, %cst_386 {dimension_numbers = #tpu.dot_dimension_numbers<[1], [0], [0], [1], [0, 0, 1, 1], [], []>} : vector<24x160xbf16>, vector<160x32xbf16>, vector<24x32xf32> -> vector<24x32xf32>
    %952 = vector.broadcast %942 : vector<1x32xf32> to vector<24x32xf32>
    %953 = arith.addf %951, %952 : vector<24x32xf32>
    %954 = math.tanh %953 : vector<24x32xf32>
    %c3_387 = arith.constant 3 : index
    %c0_388 = arith.constant 0 : index
    %c0_389 = arith.constant 0 : index
    %955 = vector.load %arg16[%c3_387, %c0_388, %c0_389] : memref<5x160x32xbf16, #tpu.memory_space<vmem>>, vector<1x160x32xbf16>
    %956 = vector.shape_cast %955 : vector<1x160x32xbf16> to vector<160x32xbf16>
    %c3_390 = arith.constant 3 : index
    %c0_391 = arith.constant 0 : index
    %c0_392 = arith.constant 0 : index
    %957 = vector.load %arg17[%c3_390, %c0_391, %c0_392] : memref<5x1x32xf32, #tpu.memory_space<vmem>>, vector<1x1x32xf32>
    %958 = vector.shape_cast %957 : vector<1x1x32xf32> to vector<1x32xf32>
    %c8_393 = arith.constant 8 : index
    %c0_394 = arith.constant 0 : index
    %959 = vector.load %arg19[%c8_393, %c0_394] : memref<40x32xf32, #tpu.memory_space<vmem>>, vector<24x32xf32>
    tpu.vector_store %arg19[%c8_393, %c0_394], %954 {strides = array<i32>} : memref<40x32xf32, #tpu.memory_space<vmem>>, vector<24x32xf32>,
    %c6_395 = arith.constant 6 : index
    %c0_396 = arith.constant 0 : index
    %960 = vector.load %arg19[%c6_395, %c0_396] : memref<40x32xf32, #tpu.memory_space<vmem>>, vector<24x32xf32>
    %c7_397 = arith.constant 7 : index
    %c0_398 = arith.constant 0 : index
    %961 = vector.load %arg19[%c7_397, %c0_398] : memref<40x32xf32, #tpu.memory_space<vmem>>, vector<24x32xf32>
    %c8_399 = arith.constant 8 : index
    %c0_400 = arith.constant 0 : index
    %962 = vector.load %arg19[%c8_399, %c0_400] : memref<40x32xf32, #tpu.memory_space<vmem>>, vector<24x32xf32>
    %c9_401 = arith.constant 9 : index
    %c0_402 = arith.constant 0 : index
    %963 = vector.load %arg19[%c9_401, %c0_402] : memref<40x32xf32, #tpu.memory_space<vmem>>, vector<24x32xf32>
    %c10_403 = arith.constant 10 : index
    %c0_404 = arith.constant 0 : index
    %964 = vector.load %arg19[%c10_403, %c0_404] : memref<40x32xf32, #tpu.memory_space<vmem>>, vector<24x32xf32>
    %965 = tpu.concatenate %960, %961, %962, %963, %964 in 1 : vector<24x32xf32>, vector<24x32xf32>, vector<24x32xf32>, vector<24x32xf32>, vector<24x32xf32> -> vector<24x160xf32>
    %966 = arith.truncf %965 : vector<24x160xf32> to vector<24x160xbf16>
    %cst_405 = arith.constant dense<0.000000e+00> : vector<24x32xf32>
    %967 = tpu.matmul %966, %956, %cst_405 {dimension_numbers = #tpu.dot_dimension_numbers<[1], [0], [0], [1], [0, 0, 1, 1], [], []>} : vector<24x160xbf16>, vector<160x32xbf16>, vector<24x32xf32> -> vector<24x32xf32>
    %968 = vector.broadcast %958 : vector<1x32xf32> to vector<24x32xf32>
    %969 = arith.addf %967, %968 : vector<24x32xf32>
    %970 = math.tanh %969 : vector<24x32xf32>
    %c4_406 = arith.constant 4 : index
    %c0_407 = arith.constant 0 : index
    %c0_408 = arith.constant 0 : index
    %971 = vector.load %arg16[%c4_406, %c0_407, %c0_408] : memref<5x160x32xbf16, #tpu.memory_space<vmem>>, vector<1x160x32xbf16>
    %972 = vector.shape_cast %971 : vector<1x160x32xbf16> to vector<160x32xbf16>
    %c4_409 = arith.constant 4 : index
    %c0_410 = arith.constant 0 : index
    %c0_411 = arith.constant 0 : index
    %973 = vector.load %arg17[%c4_409, %c0_410, %c0_411] : memref<5x1x32xf32, #tpu.memory_space<vmem>>, vector<1x1x32xf32>
    %974 = vector.shape_cast %973 : vector<1x1x32xf32> to vector<1x32xf32>
    %c8_412 = arith.constant 8 : index
    %c0_413 = arith.constant 0 : index
    %975 = vector.load %arg19[%c8_412, %c0_413] : memref<40x32xf32, #tpu.memory_space<vmem>>, vector<24x32xf32>
    tpu.vector_store %arg19[%c8_412, %c0_413], %970 {strides = array<i32>} : memref<40x32xf32, #tpu.memory_space<vmem>>, vector<24x32xf32>,
    %c6_414 = arith.constant 6 : index
    %c0_415 = arith.constant 0 : index
    %976 = vector.load %arg19[%c6_414, %c0_415] : memref<40x32xf32, #tpu.memory_space<vmem>>, vector<24x32xf32>
    %c7_416 = arith.constant 7 : index
    %c0_417 = arith.constant 0 : index
    %977 = vector.load %arg19[%c7_416, %c0_417] : memref<40x32xf32, #tpu.memory_space<vmem>>, vector<24x32xf32>
    %c8_418 = arith.constant 8 : index
    %c0_419 = arith.constant 0 : index
    %978 = vector.load %arg19[%c8_418, %c0_419] : memref<40x32xf32, #tpu.memory_space<vmem>>, vector<24x32xf32>
    %c9_420 = arith.constant 9 : index
    %c0_421 = arith.constant 0 : index
    %979 = vector.load %arg19[%c9_420, %c0_421] : memref<40x32xf32, #tpu.memory_space<vmem>>, vector<24x32xf32>
    %c10_422 = arith.constant 10 : index
    %c0_423 = arith.constant 0 : index
    %980 = vector.load %arg19[%c10_422, %c0_423] : memref<40x32xf32, #tpu.memory_space<vmem>>, vector<24x32xf32>
    %981 = tpu.concatenate %976, %977, %978, %979, %980 in 1 : vector<24x32xf32>, vector<24x32xf32>, vector<24x32xf32>, vector<24x32xf32>, vector<24x32xf32> -> vector<24x160xf32>
    %982 = arith.truncf %981 : vector<24x160xf32> to vector<24x160xbf16>
    %cst_424 = arith.constant dense<0.000000e+00> : vector<24x32xf32>
    %983 = tpu.matmul %982, %972, %cst_424 {dimension_numbers = #tpu.dot_dimension_numbers<[1], [0], [0], [1], [0, 0, 1, 1], [], []>} : vector<24x160xbf16>, vector<160x32xbf16>, vector<24x32xf32> -> vector<24x32xf32>
    %984 = vector.broadcast %974 : vector<1x32xf32> to vector<24x32xf32>
    %985 = arith.addf %983, %984 : vector<24x32xf32>
    %986 = vector.extract_strided_slice %985 {offsets = [0, 0], sizes = [24, 16], strides = [1, 1]} : vector<24x32xf32> to vector<24x16xf32>
    %987 = arith.addf %986, %906 : vector<24x16xf32>
    %cst_425 = arith.constant 0.000000e+00 : f32
    %988 = vector.broadcast %cst_425 : f32 to vector<24x96xf32>
    %989 = tpu.concatenate %906, %987, %988 in 1 : vector<24x16xf32>, vector<24x16xf32>, vector<24x96xf32> -> vector<24x128xf32>
    %c0_426 = arith.constant 0 : index
    %c0_427 = arith.constant 0 : index
    %c0_428 = arith.constant 0 : index
    %990 = vector.load %arg18[%c0_426, %c0_427, %c0_428] : memref<1x24x128xf32, #tpu.memory_space<vmem>>, vector<1x24x128xf32>
    %991 = vector.shape_cast %990 : vector<1x24x128xf32> to vector<24x128xf32>
    %992 = vector.shape_cast %989 : vector<24x128xf32> to vector<1x24x128xf32>
    tpu.vector_store %arg18[%c0_426, %c0_427, %c0_428], %992 {strides = array<i32>} : memref<1x24x128xf32, #tpu.memory_space<vmem>>, vector<1x24x128xf32>,
    return
  }
  func.func @transform_0(%arg0: i32, %arg1: memref<2x8xi32, #tpu.memory_space<smem>>, %arg2: memref<2x8xi32, #tpu.memory_space<smem>>, %arg3: memref<2x8xi32, #tpu.memory_space<smem>>, %arg4: memref<2x24xi32, #tpu.memory_space<smem>>, %arg5: memref<2x8xi32, #tpu.memory_space<smem>>) -> (i32, i32) {
    %c0_i32 = arith.constant 0 : i32
    %c0_i32_0 = arith.constant 0 : i32
    %c0_i32_1 = arith.constant 0 : i32
    return %c0_i32, %c0_i32_0 : i32, i32
  }
  func.func @transform_1(%arg0: i32, %arg1: memref<2x8xi32, #tpu.memory_space<smem>>, %arg2: memref<2x8xi32, #tpu.memory_space<smem>>, %arg3: memref<2x8xi32, #tpu.memory_space<smem>>, %arg4: memref<2x24xi32, #tpu.memory_space<smem>>, %arg5: memref<2x8xi32, #tpu.memory_space<smem>>) -> (i32, i32, i32) {
    %c0_i32 = arith.constant 0 : i32
    %c0_i32_0 = arith.constant 0 : i32
    %c0_i32_1 = arith.constant 0 : i32
    %c0_i32_2 = arith.constant 0 : i32
    return %c0_i32, %c0_i32_0, %c0_i32_1 : i32, i32, i32
  }
  func.func @transform_2(%arg0: i32, %arg1: memref<2x8xi32, #tpu.memory_space<smem>>, %arg2: memref<2x8xi32, #tpu.memory_space<smem>>, %arg3: memref<2x8xi32, #tpu.memory_space<smem>>, %arg4: memref<2x24xi32, #tpu.memory_space<smem>>, %arg5: memref<2x8xi32, #tpu.memory_space<smem>>) -> (i32, i32, i32) {
    %c0_i32 = arith.constant 0 : i32
    %c0_i32_0 = arith.constant 0 : i32
    %c0_i32_1 = arith.constant 0 : i32
    %c0_i32_2 = arith.constant 0 : i32
    return %c0_i32, %c0_i32_0, %c0_i32_1 : i32, i32, i32
  }
  func.func @transform_3(%arg0: i32, %arg1: memref<2x8xi32, #tpu.memory_space<smem>>, %arg2: memref<2x8xi32, #tpu.memory_space<smem>>, %arg3: memref<2x8xi32, #tpu.memory_space<smem>>, %arg4: memref<2x24xi32, #tpu.memory_space<smem>>, %arg5: memref<2x8xi32, #tpu.memory_space<smem>>) -> (i32, i32, i32) {
    %c0_i32 = arith.constant 0 : i32
    %c0_i32_0 = arith.constant 0 : i32
    %c0_i32_1 = arith.constant 0 : i32
    %c0_i32_2 = arith.constant 0 : i32
    return %c0_i32, %c0_i32_0, %c0_i32_1 : i32, i32, i32
  }
  func.func @transform_4(%arg0: i32, %arg1: memref<2x8xi32, #tpu.memory_space<smem>>, %arg2: memref<2x8xi32, #tpu.memory_space<smem>>, %arg3: memref<2x8xi32, #tpu.memory_space<smem>>, %arg4: memref<2x24xi32, #tpu.memory_space<smem>>, %arg5: memref<2x8xi32, #tpu.memory_space<smem>>) -> (i32, i32, i32) {
    %c0_i32 = arith.constant 0 : i32
    %c0_i32_0 = arith.constant 0 : i32
    %c0_i32_1 = arith.constant 0 : i32
    %c0_i32_2 = arith.constant 0 : i32
    return %c0_i32, %c0_i32_0, %c0_i32_1 : i32, i32, i32
  }
  func.func @transform_5(%arg0: i32, %arg1: memref<2x8xi32, #tpu.memory_space<smem>>, %arg2: memref<2x8xi32, #tpu.memory_space<smem>>, %arg3: memref<2x8xi32, #tpu.memory_space<smem>>, %arg4: memref<2x24xi32, #tpu.memory_space<smem>>, %arg5: memref<2x8xi32, #tpu.memory_space<smem>>) -> (i32, i32, i32) {
    %c0_i32 = arith.constant 0 : i32
    %c0_i32_0 = arith.constant 0 : i32
    %c0_i32_1 = arith.constant 0 : i32
    %c0_i32_2 = arith.constant 0 : i32
    return %c0_i32, %c0_i32_0, %c0_i32_1 : i32, i32, i32
  }
  func.func @transform_6(%arg0: i32, %arg1: memref<2x8xi32, #tpu.memory_space<smem>>, %arg2: memref<2x8xi32, #tpu.memory_space<smem>>, %arg3: memref<2x8xi32, #tpu.memory_space<smem>>, %arg4: memref<2x24xi32, #tpu.memory_space<smem>>, %arg5: memref<2x8xi32, #tpu.memory_space<smem>>) -> (i32, i32, i32) {
    %c0_i32 = arith.constant 0 : i32
    %c0_i32_0 = arith.constant 0 : i32
    %c0_i32_1 = arith.constant 0 : i32
    %c0_i32_2 = arith.constant 0 : i32
    return %c0_i32, %c0_i32_0, %c0_i32_1 : i32, i32, i32
  }
  func.func @transform_7(%arg0: i32, %arg1: memref<2x8xi32, #tpu.memory_space<smem>>, %arg2: memref<2x8xi32, #tpu.memory_space<smem>>, %arg3: memref<2x8xi32, #tpu.memory_space<smem>>, %arg4: memref<2x24xi32, #tpu.memory_space<smem>>, %arg5: memref<2x8xi32, #tpu.memory_space<smem>>) -> (i32, i32, i32) {
    %c0_i32 = arith.constant 0 : i32
    %c0_i32_0 = arith.constant 0 : i32
    %c0_i32_1 = arith.constant 0 : i32
    %c0_i32_2 = arith.constant 0 : i32
    return %c0_i32, %c0_i32_0, %c0_i32_1 : i32, i32, i32
  }
  func.func @transform_8(%arg0: i32, %arg1: memref<2x8xi32, #tpu.memory_space<smem>>, %arg2: memref<2x8xi32, #tpu.memory_space<smem>>, %arg3: memref<2x8xi32, #tpu.memory_space<smem>>, %arg4: memref<2x24xi32, #tpu.memory_space<smem>>, %arg5: memref<2x8xi32, #tpu.memory_space<smem>>) -> (i32, i32) {
    %c0_i32 = arith.constant 0 : i32
    %c0_i32_0 = arith.constant 0 : i32
    %c0_i32_1 = arith.constant 0 : i32
    return %c0_i32, %c0_i32_0 : i32, i32
  }
  func.func @transform_9(%arg0: i32, %arg1: memref<2x8xi32, #tpu.memory_space<smem>>, %arg2: memref<2x8xi32, #tpu.memory_space<smem>>, %arg3: memref<2x8xi32, #tpu.memory_space<smem>>, %arg4: memref<2x24xi32, #tpu.memory_space<smem>>, %arg5: memref<2x8xi32, #tpu.memory_space<smem>>) -> (i32, i32) {
    %c0_i32 = arith.constant 0 : i32
    %c0_i32_0 = arith.constant 0 : i32
    %c0_i32_1 = arith.constant 0 : i32
    return %c0_i32, %c0_i32_0 : i32, i32
  }
  func.func @transform_10(%arg0: i32, %arg1: memref<2x8xi32, #tpu.memory_space<smem>>, %arg2: memref<2x8xi32, #tpu.memory_space<smem>>, %arg3: memref<2x8xi32, #tpu.memory_space<smem>>, %arg4: memref<2x24xi32, #tpu.memory_space<smem>>, %arg5: memref<2x8xi32, #tpu.memory_space<smem>>) -> (i32, i32, i32) {
    %c0_i32 = arith.constant 0 : i32
    %c0_i32_0 = arith.constant 0 : i32
    %c0_i32_1 = arith.constant 0 : i32
    %c0_i32_2 = arith.constant 0 : i32
    return %c0_i32, %c0_i32_0, %c0_i32_1 : i32, i32, i32
  }
  func.func @transform_11(%arg0: i32, %arg1: memref<2x8xi32, #tpu.memory_space<smem>>, %arg2: memref<2x8xi32, #tpu.memory_space<smem>>, %arg3: memref<2x8xi32, #tpu.memory_space<smem>>, %arg4: memref<2x24xi32, #tpu.memory_space<smem>>, %arg5: memref<2x8xi32, #tpu.memory_space<smem>>) -> (i32, i32, i32) {
    %c0_i32 = arith.constant 0 : i32
    %c0_i32_0 = arith.constant 0 : i32
    %c0_i32_1 = arith.constant 0 : i32
    %c0_i32_2 = arith.constant 0 : i32
    return %c0_i32, %c0_i32_0, %c0_i32_1 : i32, i32, i32
  }
  func.func @transform_12(%arg0: i32, %arg1: memref<2x8xi32, #tpu.memory_space<smem>>, %arg2: memref<2x8xi32, #tpu.memory_space<smem>>, %arg3: memref<2x8xi32, #tpu.memory_space<smem>>, %arg4: memref<2x24xi32, #tpu.memory_space<smem>>, %arg5: memref<2x8xi32, #tpu.memory_space<smem>>) -> (i32, i32, i32) {
    %c0_i32 = arith.constant 0 : i32
    %c0_i32_0 = arith.constant 0 : i32
    %c0_i32_1 = arith.constant 0 : i32
    return %arg0, %c0_i32, %c0_i32_0 : i32, i32, i32
  }
}

</mosaic_0001>

<llo_original>
// kernel: fastspeech_forward.1
$region0: #{fastspeech_forward.1}
  #allocation0 [shape = 'u32[]', space=smem, size = 0x4, offset = 0x4, fixed_abs, tag = 'smem constant byte address 0x4 - core index']
  #allocation1 [shape = 'u32[144,128]{1,0:T(1,128)}', space=vmem, size = 0x12000, scoped, tag = 'internal scratch']
  #allocation2 [shape = 'f32[40,32]{1,0:T(8,128)}', space=vmem, size = 0x5000, scoped, tag = 'scratch operand']
  #allocation3 [shape = 's32[1]{0}', space=sflag, size = 0x4, scoped, tag = 'scoped memory for fastspeech_forward.1']
  #allocation4 [shape = 'u8[1024]{0}', space=smem, size = 0x400, scoped, tag = 'prefetched SMEM operand 0']
  #allocation5 [shape = 'u8[1024]{0}', space=smem, size = 0x400, scoped, tag = 'prefetched SMEM operand 1']
  #allocation6 [shape = 'u8[1024]{0}', space=smem, size = 0x400, scoped, tag = 'prefetched SMEM operand 2']
  #allocation7 [shape = 'u8[1024]{0}', space=smem, size = 0x400, scoped, tag = 'prefetched SMEM operand 3']
  #allocation8 [shape = 'u8[1024]{0}', space=smem, size = 0x400, scoped, tag = 'prefetched SMEM operand 4']
  %s0 = inlined_call_operand.vmem [shape: s32[2,8], index: 0, kind: input, shape index: {}]
  %s1 = inlined_call_operand.vmem [shape: s32[2,8], index: 1, kind: input, shape index: {}]
  %s2 = inlined_call_operand.vmem [shape: s32[2,8], index: 2, kind: input, shape index: {}]
  %s3 = inlined_call_operand.vmem [shape: s32[2,24], index: 3, kind: input, shape index: {}]
  %s4 = inlined_call_operand.vmem [shape: s32[2,8], index: 4, kind: input, shape index: {}]
  %s5 = inlined_call_operand.vmem [shape: bf16[145,32], index: 5, kind: input, shape index: {}]
  %s6 = inlined_call_operand.vmem [shape: bf16[4,32,768], index: 6, kind: input, shape index: {}]
  %s7 = inlined_call_operand.vmem [shape: f32[4,1,768], index: 7, kind: input, shape index: {}]
  %s8 = inlined_call_operand.vmem [shape: bf16[4,256,32], index: 8, kind: input, shape index: {}]
  %s9 = inlined_call_operand.vmem [shape: bf16[4,288,64], index: 9, kind: input, shape index: {}]
  %s10 = inlined_call_operand.vmem [shape: f32[4,1,64], index: 10, kind: input, shape index: {}]
  %s11 = inlined_call_operand.vmem [shape: bf16[4,64,32], index: 11, kind: input, shape index: {}]
  %s12 = inlined_call_operand.vmem [shape: f32[4,6,32], index: 12, kind: input, shape index: {}]
  %s13 = inlined_call_operand.vmem [shape: bf16[32,16], index: 13, kind: input, shape index: {}]
  %s14 = inlined_call_operand.vmem [shape: f32[1,16], index: 14, kind: input, shape index: {}]
  %s15 = inlined_call_operand.vmem [shape: bf16[5,160,32], index: 15, kind: input, shape index: {}]
  %s16 = inlined_call_operand.vmem [shape: f32[5,1,32], index: 16, kind: input, shape index: {}]
  %s17 = inlined_call_operand.vmem [shape: f32[2,24,128], index: 17, kind: output, shape index: {}]
  %s18 = sld [smem:[#allocation0]]
  $region81: #{fastspeech_forward.1} parent=0
    _
  %s20 = ssub.s32 1, %s18
  %s21 = scalar_select 0, %s20, %s18
  %s22 = sshll.u32 %s0, 4
  %s23 = int_to_ptr.vmem [resolvable:$true] %s22
  %25 = dma.vmem_to_smem %s23, 32, [#allocation4], [#allocation3]
  %s26 = sshll.u32 %s1, 4
  %s27 = int_to_ptr.vmem [resolvable:$true] %s26
  %29 = dma.vmem_to_smem %s27, 32, [#allocation5], [#allocation3]
  %s30 = sshll.u32 %s2, 4
  %s31 = int_to_ptr.vmem [resolvable:$true] %s30
  %33 = dma.vmem_to_smem %s31, 32, [#allocation6], [#allocation3]
  %s34 = sshll.u32 %s3, 4
  %s35 = int_to_ptr.vmem [resolvable:$true] %s34
  %37 = dma.vmem_to_smem %s35, 32, [#allocation7], [#allocation3]
  %s38 = sshll.u32 %s4, 4
  %s39 = int_to_ptr.vmem [resolvable:$true] %s38
  %41 = dma.vmem_to_smem %s39, 32, [#allocation8], [#allocation3]
  %42 = dma.done [#allocation3], 160
  %43 = sfence
  loop: start=0, step=1, limit=4
  $region2: #{fastspeech_forward.1} parent=0 // loop_pre_header
    _
  $region3: #{fastspeech_forward.1} parent=0 // loop_header
    %s45 = sphi 0, %s49
    %p46 = scmp.ge.s32.totalorder %s45, 4
    %s53 = sphi 0, %s53
    %s55 = sphi 0, %s53
    %s56 = sphi 0, %s55
    %s70 = sphi 0, %s56
    %s74 = sphi 0, %s74
    %s76 = sphi 0, %s74
    %s77 = sphi 0, %s76
    %s91 = sphi 0, %s77
    %s95 = sphi 0, %s95
    %s97 = sphi 0, %s95
    %s98 = sphi 0, %s97
    %s112 = sphi 0, %s98
    %s116 = sphi 0, %s116
    %s118 = sphi 0, %s116
    %s119 = sphi 0, %s118
    %s133 = sphi 0, %s119
    %s137 = sphi 0, %s137
    %s139 = sphi 0, %s137
    %s140 = sphi 0, %s139
    %s154 = sphi 0, %s140
    %s158 = sphi 0, %s158
    %s160 = sphi 0, %s158
    %s161 = sphi 0, %s160
    %s175 = sphi 0, %s161
    %s179 = sphi 0, %s179
    %s181 = sphi 0, %s179
    %s182 = sphi 0, %s181
    %s196 = sphi 0, %s182
    %s200 = sphi 0, %s200
    %s202 = sphi 0, %s200
    %s203 = sphi 0, %s202
    %s217 = sphi 0, %s203
    %s221 = sphi 0, %s221
    %s223 = sphi 0, %s221
    %s224 = sphi 0, %s223
    %s238 = sphi 0, %s224
    %s242 = sphi 0, %s242
    %s244 = sphi 0, %s242
    %s245 = sphi 0, %s244
    %s259 = sphi 0, %s245
    %s263 = sphi 0, %s263
    %s265 = sphi 0, %s263
    %s266 = sphi 0, %s265
    %s280 = sphi 0, %s266
    %s284 = sphi 0, %s284
    %s286 = sphi 0, %s284
    %s287 = sphi 0, %s286
    %s301 = sphi 0, %s287
    %s307 = sphi 0, %s309
    %s310 = sphi 0, %s307
    %s311 = sphi 0, %s310
    %s327 = sphi 0, %s311
  $region4: #{fastspeech_forward.1} parent=0 // loop_header_branch
    %48 = sbr.rel (%p46) target = $region8
  $region5: #{fastspeech_forward.1} parent=0 // loop_body
    %s50 = ssub.s32 %s45, 1
    %s51 = ssub.s32 %s45, 2
    %s52 = sadd.s32 %s45, 1
    %s54 = sadd.s32 %s53, 1
    %p57 = scmp.eq.s32.totalorder %s45, 1
    %p58 = scmp.ne.s32.totalorder %s53, %s55
    %p59 = scmp.eq.s32.totalorder %s45, 0
    %p60 = por %p58, %p59
    %p61 = scmp.ne.s32.totalorder %s53, %s55
    %p62 = scmp.eq.s32.totalorder %s50, 1
    %p63 = por %p61, %p62
    %p64 = scmp.ne.s32.totalorder %s55, %s56
    %p65 = scmp.eq.s32.totalorder %s50, 0
    %p66 = por %p64, %p65
    %p67 = scmp.ne.s32.totalorder %s55, %s56
    %p68 = scmp.eq.s32.totalorder %s51, 1
    %p69 = por %p67, %p68
    %p71 = scmp.ne.s32.totalorder %s56, %s70
    %p72 = scmp.eq.s32.totalorder %s51, 0
    %p73 = por %p71, %p72
    %s75 = sadd.s32 %s74, 1
    %p78 = scmp.eq.s32.totalorder %s45, 1
    %p79 = scmp.ne.s32.totalorder %s74, %s76
    %p80 = scmp.eq.s32.totalorder %s45, 0
    %p81 = por %p79, %p80
    %p82 = scmp.ne.s32.totalorder %s74, %s76
    %p83 = scmp.eq.s32.totalorder %s50, 1
    %p84 = por %p82, %p83
    %p85 = scmp.ne.s32.totalorder %s76, %s77
    %p86 = scmp.eq.s32.totalorder %s50, 0
    %p87 = por %p85, %p86
    %p88 = scmp.ne.s32.totalorder %s76, %s77
    %p89 = scmp.eq.s32.totalorder %s51, 1
    %p90 = por %p88, %p89
    %p92 = scmp.ne.s32.totalorder %s77, %s91
    %p93 = scmp.eq.s32.totalorder %s51, 0
    %p94 = por %p92, %p93
    %s96 = sadd.s32 %s95, 1
    %p99 = scmp.eq.s32.totalorder %s45, 1
    %p100 = scmp.ne.s32.totalorder %s95, %s97
    %p101 = scmp.eq.s32.totalorder %s45, 0
    %p102 = por %p100, %p101
    %p103 = scmp.ne.s32.totalorder %s95, %s97
    %p104 = scmp.eq.s32.totalorder %s50, 1
    %p105 = por %p103, %p104
    %p106 = scmp.ne.s32.totalorder %s97, %s98
    %p107 = scmp.eq.s32.totalorder %s50, 0
    %p108 = por %p106, %p107
    %p109 = scmp.ne.s32.totalorder %s97, %s98
    %p110 = scmp.eq.s32.totalorder %s51, 1
    %p111 = por %p109, %p110
    %p113 = scmp.ne.s32.totalorder %s98, %s112
    %p114 = scmp.eq.s32.totalorder %s51, 0
    %p115 = por %p113, %p114
    %s117 = sadd.s32 %s116, 1
    %p120 = scmp.eq.s32.totalorder %s45, 1
    %p121 = scmp.ne.s32.totalorder %s116, %s118
    %p122 = scmp.eq.s32.totalorder %s45, 0
    %p123 = por %p121, %p122
    %p124 = scmp.ne.s32.totalorder %s116, %s118
    %p125 = scmp.eq.s32.totalorder %s50, 1
    %p126 = por %p124, %p125
    %p127 = scmp.ne.s32.totalorder %s118, %s119
    %p128 = scmp.eq.s32.totalorder %s50, 0
    %p129 = por %p127, %p128
    %p130 = scmp.ne.s32.totalorder %s118, %s119
    %p131 = scmp.eq.s32.totalorder %s51, 1
    %p132 = por %p130, %p131
    %p134 = scmp.ne.s32.totalorder %s119, %s133
    %p135 = scmp.eq.s32.totalorder %s51, 0
    %p136 = por %p134, %p135
    %s138 = sadd.s32 %s137, 1
    %p141 = scmp.eq.s32.totalorder %s45, 1
    %p142 = scmp.ne.s32.totalorder %s137, %s139
    %p143 = scmp.eq.s32.totalorder %s45, 0
    %p144 = por %p142, %p143
    %p145 = scmp.ne.s32.totalorder %s137, %s139
    %p146 = scmp.eq.s32.totalorder %s50, 1
    %p147 = por %p145, %p146
    %p148 = scmp.ne.s32.totalorder %s139, %s140
    %p149 = scmp.eq.s32.totalorder %s50, 0
    %p150 = por %p148, %p149
    %p151 = scmp.ne.s32.totalorder %s139, %s140
    %p152 = scmp.eq.s32.totalorder %s51, 1
    %p153 = por %p151, %p152
    %p155 = scmp.ne.s32.totalorder %s140, %s154
    %p156 = scmp.eq.s32.totalorder %s51, 0
    %p157 = por %p155, %p156
    %s159 = sadd.s32 %s158, 1
    %p162 = scmp.eq.s32.totalorder %s45, 1
    %p163 = scmp.ne.s32.totalorder %s158, %s160
    %p164 = scmp.eq.s32.totalorder %s45, 0
    %p165 = por %p163, %p164
    %p166 = scmp.ne.s32.totalorder %s158, %s160
    %p167 = scmp.eq.s32.totalorder %s50, 1
    %p168 = por %p166, %p167
    %p169 = scmp.ne.s32.totalorder %s160, %s161
    %p170 = scmp.eq.s32.totalorder %s50, 0
    %p171 = por %p169, %p170
    %p172 = scmp.ne.s32.totalorder %s160, %s161
    %p173 = scmp.eq.s32.totalorder %s51, 1
    %p174 = por %p172, %p173
    %p176 = scmp.ne.s32.totalorder %s161, %s175
    %p177 = scmp.eq.s32.totalorder %s51, 0
    %p178 = por %p176, %p177
    %s180 = sadd.s32 %s179, 1
    %p183 = scmp.eq.s32.totalorder %s45, 1
    %p184 = scmp.ne.s32.totalorder %s179, %s181
    %p185 = scmp.eq.s32.totalorder %s45, 0
    %p186 = por %p184, %p185
    %p187 = scmp.ne.s32.totalorder %s179, %s181
    %p188 = scmp.eq.s32.totalorder %s50, 1
    %p189 = por %p187, %p188
    %p190 = scmp.ne.s32.totalorder %s181, %s182
    %p191 = scmp.eq.s32.totalorder %s50, 0
    %p192 = por %p190, %p191
    %p193 = scmp.ne.s32.totalorder %s181, %s182
    %p194 = scmp.eq.s32.totalorder %s51, 1
    %p195 = por %p193, %p194
    %p197 = scmp.ne.s32.totalorder %s182, %s196
    %p198 = scmp.eq.s32.totalorder %s51, 0
    %p199 = por %p197, %p198
    %s201 = sadd.s32 %s200, 1
    %p204 = scmp.eq.s32.totalorder %s45, 1
    %p205 = scmp.ne.s32.totalorder %s200, %s202
    %p206 = scmp.eq.s32.totalorder %s45, 0
    %p207 = por %p205, %p206
    %p208 = scmp.ne.s32.totalorder %s200, %s202
    %p209 = scmp.eq.s32.totalorder %s50, 1
    %p210 = por %p208, %p209
    %p211 = scmp.ne.s32.totalorder %s202, %s203
    %p212 = scmp.eq.s32.totalorder %s50, 0
    %p213 = por %p211, %p212
    %p214 = scmp.ne.s32.totalorder %s202, %s203
    %p215 = scmp.eq.s32.totalorder %s51, 1
    %p216 = por %p214, %p215
    %p218 = scmp.ne.s32.totalorder %s203, %s217
    %p219 = scmp.eq.s32.totalorder %s51, 0
    %p220 = por %p218, %p219
    %s222 = sadd.s32 %s221, 1
    %p225 = scmp.eq.s32.totalorder %s45, 1
    %p226 = scmp.ne.s32.totalorder %s221, %s223
    %p227 = scmp.eq.s32.totalorder %s45, 0
    %p228 = por %p226, %p227
    %p229 = scmp.ne.s32.totalorder %s221, %s223
    %p230 = scmp.eq.s32.totalorder %s50, 1
    %p231 = por %p229, %p230
    %p232 = scmp.ne.s32.totalorder %s223, %s224
    %p233 = scmp.eq.s32.totalorder %s50, 0
    %p234 = por %p232, %p233
    %p235 = scmp.ne.s32.totalorder %s223, %s224
    %p236 = scmp.eq.s32.totalorder %s51, 1
    %p237 = por %p235, %p236
    %p239 = scmp.ne.s32.totalorder %s224, %s238
    %p240 = scmp.eq.s32.totalorder %s51, 0
    %p241 = por %p239, %p240
    %s243 = sadd.s32 %s242, 1
    %p246 = scmp.eq.s32.totalorder %s45, 1
    %p247 = scmp.ne.s32.totalorder %s242, %s244
    %p248 = scmp.eq.s32.totalorder %s45, 0
    %p249 = por %p247, %p248
    %p250 = scmp.ne.s32.totalorder %s242, %s244
    %p251 = scmp.eq.s32.totalorder %s50, 1
    %p252 = por %p250, %p251
    %p253 = scmp.ne.s32.totalorder %s244, %s245
    %p254 = scmp.eq.s32.totalorder %s50, 0
    %p255 = por %p253, %p254
    %p256 = scmp.ne.s32.totalorder %s244, %s245
    %p257 = scmp.eq.s32.totalorder %s51, 1
    %p258 = por %p256, %p257
    %p260 = scmp.ne.s32.totalorder %s245, %s259
    %p261 = scmp.eq.s32.totalorder %s51, 0
    %p262 = por %p260, %p261
    %s264 = sadd.s32 %s263, 1
    %p267 = scmp.eq.s32.totalorder %s45, 1
    %p268 = scmp.ne.s32.totalorder %s263, %s265
    %p269 = scmp.eq.s32.totalorder %s45, 0
    %p270 = por %p268, %p269
    %p271 = scmp.ne.s32.totalorder %s263, %s265
    %p272 = scmp.eq.s32.totalorder %s50, 1
    %p273 = por %p271, %p272
    %p274 = scmp.ne.s32.totalorder %s265, %s266
    %p275 = scmp.eq.s32.totalorder %s50, 0
    %p276 = por %p274, %p275
    %p277 = scmp.ne.s32.totalorder %s265, %s266
    %p278 = scmp.eq.s32.totalorder %s51, 1
    %p279 = por %p277, %p278
    %p281 = scmp.ne.s32.totalorder %s266, %s280
    %p282 = scmp.eq.s32.totalorder %s51, 0
    %p283 = por %p281, %p282
    %s285 = sadd.s32 %s284, 1
    %p288 = scmp.eq.s32.totalorder %s45, 1
    %p289 = scmp.ne.s32.totalorder %s284, %s286
    %p290 = scmp.eq.s32.totalorder %s45, 0
    %p291 = por %p289, %p290
    %p292 = scmp.ne.s32.totalorder %s284, %s286
    %p293 = scmp.eq.s32.totalorder %s50, 1
    %p294 = por %p292, %p293
    %p295 = scmp.ne.s32.totalorder %s286, %s287
    %p296 = scmp.eq.s32.totalorder %s50, 0
    %p297 = por %p295, %p296
    %p298 = scmp.ne.s32.totalorder %s286, %s287
    %p299 = scmp.eq.s32.totalorder %s51, 1
    %p300 = por %p298, %p299
    %p302 = scmp.ne.s32.totalorder %s287, %s301
    %p303 = scmp.eq.s32.totalorder %s51, 0
    %p304 = por %p302, %p303
    %s305 = ssub.s32 %s45, %s52
    %p306 = scmp.eq.s32.totalorder %s305, 0
    %s308 = sadd.s32 %s307, 1
    %s309 = scalar_select %p306, %s307, %s308
    %p312 = pneg %p306
    %p313 = scmp.eq.s32.totalorder %s45, 1
    %p314 = por %p312, %p313
    %p315 = scmp.ne.s32.totalorder %s307, %s310
    %p316 = scmp.eq.s32.totalorder %s45, 0
    %p317 = por %p315, %p316
    %p318 = scmp.ne.s32.totalorder %s307, %s310
    %p319 = scmp.eq.s32.totalorder %s50, 1
    %p320 = por %p318, %p319
    %p321 = scmp.ne.s32.totalorder %s310, %s311
    %p322 = scmp.eq.s32.totalorder %s50, 0
    %p323 = por %p321, %p322
    %p324 = scmp.ne.s32.totalorder %s310, %s311
    %p325 = scmp.eq.s32.totalorder %s51, 1
    %p326 = por %p324, %p325
    %p328 = scmp.ne.s32.totalorder %s311, %s327
    %p329 = scmp.eq.s32.totalorder %s51, 0
    %p330 = por %p328, %p329
    %p331 = scmp.le.s32.totalorder 1, %s45
    %p332 = scmp.lt.s32.totalorder %s45, 3
    %p333 = pnand %p331, %p332
    %p334 = pneg %p333
    // Predicated region
    $region9: #{fastspeech_forward.1} parent=5 // pred_check
      _
    $region10: #{fastspeech_forward.1} parent=5 // pred_check_branch
      %336 = sbr.rel (%p333) target = $region12
    $region11: #{fastspeech_forward.1} parent=5 // pred_region
      %s337 = ssub.s32 %s45, 1
      // Predicated region
      $region13: #{fastspeech_forward.1} parent=11 // pred_check
        %p338 = pneg %p66
      $region14: #{fastspeech_forward.1} parent=11 // pred_check_branch
        %340 = sbr.rel (%p338) target = $region16
      $region15: #{fastspeech_forward.1} parent=11 // pred_region
        _
      $region16: #{fastspeech_forward.1} parent=11 // pred_fallthru
        _
      // Predicated region
      $region17: #{fastspeech_forward.1} parent=11 // pred_check
        %p341 = pneg %p87
      $region18: #{fastspeech_forward.1} parent=11 // pred_check_branch
        %343 = sbr.rel (%p341) target = $region20
      $region19: #{fastspeech_forward.1} parent=11 // pred_region
        _
      $region20: #{fastspeech_forward.1} parent=11 // pred_fallthru
        _
      // Predicated region
      $region21: #{fastspeech_forward.1} parent=11 // pred_check
        %p344 = pneg %p108
      $region22: #{fastspeech_forward.1} parent=11 // pred_check_branch
        %346 = sbr.rel (%p344) target = $region24
      $region23: #{fastspeech_forward.1} parent=11 // pred_region
        _
      $region24: #{fastspeech_forward.1} parent=11 // pred_fallthru
        _
      // Predicated region
      $region25: #{fastspeech_forward.1} parent=11 // pred_check
        %p347 = pneg %p129
      $region26: #{fastspeech_forward.1} parent=11 // pred_check_branch
        %349 = sbr.rel (%p347) target = $region28
      $region27: #{fastspeech_forward.1} parent=11 // pred_region
        _
      $region28: #{fastspeech_forward.1} parent=11 // pred_fallthru
        _
      // Predicated region
      $region29: #{fastspeech_forward.1} parent=11 // pred_check
        %p350 = pneg %p150
      $region30: #{fastspeech_forward.1} parent=11 // pred_check_branch
        %352 = sbr.rel (%p350) target = $region32
      $region31: #{fastspeech_forward.1} parent=11 // pred_region
        _
      $region32: #{fastspeech_forward.1} parent=11 // pred_fallthru
        _
      // Predicated region
      $region33: #{fastspeech_forward.1} parent=11 // pred_check
        %p353 = pneg %p171
      $region34: #{fastspeech_forward.1} parent=11 // pred_check_branch
        %355 = sbr.rel (%p353) target = $region36
      $region35: #{fastspeech_forward.1} parent=11 // pred_region
        _
      $region36: #{fastspeech_forward.1} parent=11 // pred_fallthru
        _
      // Predicated region
      $region37: #{fastspeech_forward.1} parent=11 // pred_check
        %p356 = pneg %p192
      $region38: #{fastspeech_forward.1} parent=11 // pred_check_branch
        %358 = sbr.rel (%p356) target = $region40
      $region39: #{fastspeech_forward.1} parent=11 // pred_region
        _
      $region40: #{fastspeech_forward.1} parent=11 // pred_fallthru
        _
      // Predicated region
      $region41: #{fastspeech_forward.1} parent=11 // pred_check
        %p359 = pneg %p213
      $region42: #{fastspeech_forward.1} parent=11 // pred_check_branch
        %361 = sbr.rel (%p359) target = $region44
      $region43: #{fastspeech_forward.1} parent=11 // pred_region
        _
      $region44: #{fastspeech_forward.1} parent=11 // pred_fallthru
        _
      // Predicated region
      $region45: #{fastspeech_forward.1} parent=11 // pred_check
        %p362 = pneg %p234
      $region46: #{fastspeech_forward.1} parent=11 // pred_check_branch
        %364 = sbr.rel (%p362) target = $region48
      $region47: #{fastspeech_forward.1} parent=11 // pred_region
        _
      $region48: #{fastspeech_forward.1} parent=11 // pred_fallthru
        _
      // Predicated region
      $region49: #{fastspeech_forward.1} parent=11 // pred_check
        %p365 = pneg %p255
      $region50: #{fastspeech_forward.1} parent=11 // pred_check_branch
        %367 = sbr.rel (%p365) target = $region52
      $region51: #{fastspeech_forward.1} parent=11 // pred_region
        _
      $region52: #{fastspeech_forward.1} parent=11 // pred_fallthru
        _
      // Predicated region
      $region53: #{fastspeech_forward.1} parent=11 // pred_check
        %p368 = pneg %p276
      $region54: #{fastspeech_forward.1} parent=11 // pred_check_branch
        %370 = sbr.rel (%p368) target = $region56
      $region55: #{fastspeech_forward.1} parent=11 // pred_region
        _
      $region56: #{fastspeech_forward.1} parent=11 // pred_fallthru
        _
      // Predicated region
      $region57: #{fastspeech_forward.1} parent=11 // pred_check
        %p371 = pneg %p297
      $region58: #{fastspeech_forward.1} parent=11 // pred_check_branch
        %373 = sbr.rel (%p371) target = $region60
      $region59: #{fastspeech_forward.1} parent=11 // pred_region
        _
      $region60: #{fastspeech_forward.1} parent=11 // pred_fallthru
        _
    $region12: #{fastspeech_forward.1} parent=5 // pred_fallthru
      _
    %p374 = scmp.lt.s32.totalorder %s45, 2
    // Predicated region
    $region61: #{fastspeech_forward.1} parent=5 // pred_check
      %p375 = pneg %p374
    $region62: #{fastspeech_forward.1} parent=5 // pred_check_branch
      %377 = sbr.rel (%p375) target = $region64
    $region63: #{fastspeech_forward.1} parent=5 // pred_region
      _
    $region64: #{fastspeech_forward.1} parent=5 // pred_fallthru
      _
    %p378 = scmp.le.s32.totalorder 1, %s45
    %p379 = scmp.lt.s32.totalorder %s45, 3
    %p380 = pnand %p378, %p379
    %p381 = pneg %p380
    // Predicated region
    $region65: #{fastspeech_forward.1} parent=5 // pred_check
      _
    $region66: #{fastspeech_forward.1} parent=5 // pred_check_branch
      %383 = sbr.rel (%p380) target = $region68
    $region67: #{fastspeech_forward.1} parent=5 // pred_region
      %s384 = ssub.s32 %s45, 1
      %p385 = pneg %p66
      %p386 = pneg %p63
      %p387 = pneg %p87
      %p388 = pneg %p84
      %p389 = pneg %p108
      %p390 = pneg %p105
      %p391 = pneg %p129
      %p392 = pneg %p126
      %p393 = pneg %p150
      %p394 = pneg %p147
      %p395 = pneg %p171
      %p396 = pneg %p168
      %p397 = pneg %p192
      %p398 = pneg %p189
      %p399 = pneg %p213
      %p400 = pneg %p210
      %p401 = pneg %p234
      %p402 = pneg %p231
      %p403 = pneg %p255
      %p404 = pneg %p252
      %p405 = pneg %p276
      %p406 = pneg %p273
      %p407 = pneg %p297
      %p408 = pneg %p294
      %p409 = pneg %p323
      %p410 = pneg %p320
      %p411 = scmp.lt.s32.totalorder %s50, 1
      %s412 = scalar_select %p411, %s50, 1
      %s413 = smul.addr %s412, 3
      %s414 = smul.addr %s413, 8
      %s415 = scalar_lea.vmem %s17, %s414
      %p416 = scmp.lt.s32.totalorder %s50, 1
      %s417 = scalar_select %p416, %s50, 1
      %s418 = smul.addr %s417, 3
      %s419 = smul.addr %s418, 8
      %s420 = scalar_lea.vmem %s17, %s419
      %vm422 = vcmask 261120
      %423 = vst.msk [vmem:[#allocation2] sm:$0xff] %vm422, 0.0
      %424 = vst.msk [vmem:[#allocation2 + $0x8] sm:$0xff] %vm422, 0.0
      %425 = vst.msk [vmem:[#allocation2 + $0x10] sm:$0xff] %vm422, 0.0
      %426 = vst.msk [vmem:[#allocation2 + $0x18] sm:$0xff] %vm422, 0.0
      %427 = vst.msk [vmem:[#allocation2 + $0x20] sm:$0xff] %vm422, 0.0
      %s428 = smul.u32 %s50, 128
      %s429 = sld [smem:[#allocation4 + %s428]]
      %s430 = sld [smem:[#allocation5 + %s428]]
      %s431 = sld [smem:[#allocation6 + %s428]]
      %s432 = sld [smem:[#allocation8 + %s428]]
      %v433 = vstv %s429
      %v434 = vstv %s430
      %v435 = vstv %s431
      %s436 = scvt.s32.f32 %s432
      %v437 = vstv %s436
      %s438 = sadd.s32 %s428, 1
      %s439 = sld [smem:[#allocation4 + %s438]]
      %s440 = sld [smem:[#allocation5 + %s438]]
      %s441 = sld [smem:[#allocation6 + %s438]]
      %s442 = sld [smem:[#allocation8 + %s438]]
      %v443 = vstv %s439
      %v444 = vstv %s440
      %v445 = vstv %s441
      %s446 = sadd.s32 %s432, %s442
      %s447 = scvt.s32.f32 %s446
      %v448 = vstv %s447
      %s449 = sadd.s32 %s428, 2
      %s450 = sld [smem:[#allocation4 + %s449]]
      %s451 = sld [smem:[#allocation5 + %s449]]
      %s452 = sld [smem:[#allocation6 + %s449]]
      %s453 = sld [smem:[#allocation8 + %s449]]
      %v454 = vstv %s450
      %v455 = vstv %s451
      %v456 = vstv %s452
      %s457 = sadd.s32 %s446, %s453
      %s458 = scvt.s32.f32 %s457
      %v459 = vstv %s458
      %s460 = sadd.s32 %s428, 3
      %s461 = sld [smem:[#allocation4 + %s460]]
      %s462 = sld [smem:[#allocation5 + %s460]]
      %s463 = sld [smem:[#allocation6 + %s460]]
      %s464 = sld [smem:[#allocation8 + %s460]]
      %v465 = vstv %s461
      %v466 = vstv %s462
      %v467 = vstv %s463
      %s468 = sadd.s32 %s457, %s464
      %s469 = scvt.s32.f32 %s468
      %v470 = vstv %s469
      %s471 = sadd.s32 %s428, 4
      %s472 = sld [smem:[#allocation4 + %s471]]
      %s473 = sld [smem:[#allocation5 + %s471]]
      %s474 = sld [smem:[#allocation6 + %s471]]
      %s475 = sld [smem:[#allocation8 + %s471]]
      %v476 = vstv %s472
      %v477 = vstv %s473
      %v478 = vstv %s474
      %s479 = sadd.s32 %s468, %s475
      %s480 = scvt.s32.f32 %s479
      %v481 = vstv %s480
      %s482 = sadd.s32 %s428, 5
      %s483 = sld [smem:[#allocation4 + %s482]]
      %s484 = sld [smem:[#allocation5 + %s482]]
      %s485 = sld [smem:[#allocation6 + %s482]]
      %s486 = sld [smem:[#allocation8 + %s482]]
      %v487 = vstv %s483
      %v488 = vstv %s484
      %v489 = vstv %s485
      %s490 = sadd.s32 %s479, %s486
      %s491 = scvt.s32.f32 %s490
      %v492 = vstv %s491
      %s493 = sadd.s32 %s428, 6
      %s494 = sld [smem:[#allocation4 + %s493]]
      %s495 = sld [smem:[#allocation5 + %s493]]
      %s496 = sld [smem:[#allocation6 + %s493]]
      %s497 = sld [smem:[#allocation8 + %s493]]
      %v498 = vstv %s494
      %v499 = vstv %s495
      %v500 = vstv %s496
      %s501 = sadd.s32 %s490, %s497
      %s502 = scvt.s32.f32 %s501
      %v503 = vstv %s502
      %s504 = sadd.s32 %s428, 7
      %s505 = sld [smem:[#allocation4 + %s504]]
      %s506 = sld [smem:[#allocation5 + %s504]]
      %s507 = sld [smem:[#allocation6 + %s504]]
      %s508 = sld [smem:[#allocation8 + %s504]]
      %v509 = vstv %s505
      %v510 = vstv %s506
      %v511 = vstv %s507
      %s512 = sadd.s32 %s501, %s508
      %s513 = scvt.s32.f32 %s512
      %v514 = vstv %s513
      %vm515 = vcmask 7168
      %v516 = vsel %vm515, %v433, %v443
      %vm517 = vcmask 15360
      %v518 = vsel %vm517, %v516, %v454
      %vm519 = vcmask 23552
      %v520 = vsel %vm519, %v518, %v465
      %vm521 = vcmask 31744
      %v522 = vsel %vm521, %v520, %v476
      %vm523 = vcmask 39936
      %v524 = vsel %vm523, %v522, %v487
      %vm525 = vcmask 48128
      %v526 = vsel %vm525, %v524, %v498
      %vm527 = vcmask 56320
      %v528 = vsel %vm527, %v526, %v509
      %vm529 = vcmask 1040384
      %v530 = vsel %vm529, %v433, %v443
      %vm531 = vcmask 1041408
      %v532 = vsel %vm531, %v530, %v454
      %vm533 = vcmask 1042432
      %v534 = vsel %vm533, %v532, %v465
      %vm535 = vcmask 1043456
      %v536 = vsel %vm535, %v534, %v476
      %vm537 = vcmask 1044480
      %v538 = vsel %vm537, %v536, %v487
      %vm539 = vcmask 1045504
      %v540 = vsel %vm539, %v538, %v498
      %vm541 = vcmask 1046528
      %v542 = vsel %vm541, %v540, %v509
      %v543 = vsel %vm529, %v434, %v444
      %v544 = vsel %vm531, %v543, %v455
      %v545 = vsel %vm533, %v544, %v466
      %v546 = vsel %vm535, %v545, %v477
      %v547 = vsel %vm537, %v546, %v488
      %v548 = vsel %vm539, %v547, %v499
      %v549 = vsel %vm541, %v548, %v510
      %v550 = vsel %vm529, %v435, %v445
      %v551 = vsel %vm531, %v550, %v456
      %v552 = vsel %vm533, %v551, %v467
      %v553 = vsel %vm535, %v552, %v478
      %v554 = vsel %vm537, %v553, %v489
      %v555 = vsel %vm539, %v554, %v500
      %v556 = vsel %vm541, %v555, %v511
      %v557 = vsel %vm515, 0.0, %v437
      %v558 = vsel %vm517, %v557, %v448
      %v559 = vsel %vm519, %v558, %v459
      %v560 = vsel %vm521, %v559, %v470
      %v561 = vsel %vm523, %v560, %v481
      %v562 = vsel %vm525, %v561, %v492
      %v563 = vsel %vm527, %v562, %v503
      %v564 = vsel %vm515, %v437, %v448
      %v565 = vsel %vm517, %v564, %v459
      %v566 = vsel %vm519, %v565, %v470
      %v567 = vsel %vm521, %v566, %v481
      %v568 = vsel %vm523, %v567, %v492
      %v569 = vsel %vm525, %v568, %v503
      %v570 = vsel %vm527, %v569, %v514
      %v571 = vlaneseq
      %v572 = vand.u32 %v571, 127
      %v573 = vadd.s32 %v572, 128
      %574 = vset.pattern.permute.xlu0 0
      %575 = vperm.xlu0 %574, %v542
      %v576 = vpop.permute.xlu0 %575
      %vm577 = vcmp.eq.s32.totalorder %v572, %v576
      %vm578 = vcmp.eq.s32.totalorder %v573, %v576
      %v579 = vadd.s32 %v549, 40
      %580 = vset.pattern.permute.xlu0 0
      %581 = vperm.xlu0 %580, %v579
      %v582 = vpop.permute.xlu0 %581
      %vm583 = vcmp.eq.s32.totalorder %v572, %v582
      %vm584 = vcmp.eq.s32.totalorder %v573, %v582
      %vm585 = vmor %vm577, %vm583
      %vm586 = vmor %vm578, %vm584
      %v587 = vadd.s32 %v556, 80
      %588 = vset.pattern.permute.xlu0 0
      %589 = vperm.xlu0 %588, %v587
      %v590 = vpop.permute.xlu0 %589
      %vm591 = vcmp.eq.s32.totalorder %v572, %v590
      %vm592 = vcmp.eq.s32.totalorder %v573, %v590
      %vm593 = vmor %vm585, %vm591
      %vm594 = vmor %vm586, %vm592
      %v595 = vsel %vm593, 1.0, 0.0
      %v596 = vsel %vm594, 1.0, 0.0
      %v597 = vld [vmem:[%s5] sm:$0xf]
      %v598 = vld [vmem:[%s5 + $0x4] sm:$0xf]
      %v599 = vld [vmem:[%s5 + $0x8] sm:$0xf]
      %v600 = vld [vmem:[%s5 + $0xc] sm:$0xf]
      %v601 = vld [vmem:[%s5 + $0x10] sm:$0xf]
      %v602 = vld [vmem:[%s5 + $0x14] sm:$0xf]
      %v603 = vld [vmem:[%s5 + $0x18] sm:$0xf]
      %v604 = vld [vmem:[%s5 + $0x1c] sm:$0xf]
      %v605 = vld [vmem:[%s5 + $0x20] sm:$0xf]
      %v606 = vld [vmem:[%s5 + $0x24] sm:$0xf]
      %v607 = vld [vmem:[%s5 + $0x28] sm:$0xf]
      %v608 = vld [vmem:[%s5 + $0x2c] sm:$0xf]
      %v609 = vld [vmem:[%s5 + $0x30] sm:$0xf]
      %v610 = vld [vmem:[%s5 + $0x34] sm:$0xf]
      %v611 = vld [vmem:[%s5 + $0x38] sm:$0xf]
      %v612 = vld [vmem:[%s5 + $0x3c] sm:$0xf]
      %v613 = vld [vmem:[%s5 + $0x40] sm:$0xf]
      %v614 = vld [vmem:[%s5 + $0x44] sm:$0xf]
      %v615 = vld [vmem:[%s5 + $0x48] sm:$0x1]
      %v616 = vpack.c.bf16 %v595, %v595
      %v617 = vpack.c.bf16 %v596, %v596
      %v637 = vunpack.c.l.b16 %v597
      %v638 = vunpack.c.l.b16 %v598
      %v639 = vunpack.c.l.b16 %v599
      %v640 = vunpack.c.l.b16 %v600
      %v641 = vunpack.c.l.b16 %v601
      %v642 = vunpack.c.l.b16 %v602
      %v643 = vunpack.c.l.b16 %v603
      %v644 = vunpack.c.l.b16 %v604
      %v645 = vunpack.c.l.b16 %v605
      %v646 = vunpack.c.l.b16 %v606
      %v647 = vunpack.c.l.b16 %v607
      %v648 = vunpack.c.l.b16 %v608
      %v649 = vunpack.c.l.b16 %v609
      %v650 = vunpack.c.l.b16 %v610
      %v651 = vunpack.c.l.b16 %v611
      %v652 = vunpack.c.l.b16 %v612
      %v653 = vunpack.c.l.b16 %v613
      %v654 = vunpack.c.l.b16 %v614
      %v655 = vunpack.c.l.b16 %v615
      %v656 = vpack.c.b16 %v638, %v637
      %v657 = vpack.c.b16 %v640, %v639
      %v658 = vpack.c.b16 %v642, %v641
      %v659 = vpack.c.b16 %v644, %v643
      %v660 = vpack.c.b16 %v646, %v645
      %v661 = vpack.c.b16 %v648, %v647
      %v662 = vpack.c.b16 %v650, %v649
      %v663 = vpack.c.b16 %v652, %v651
      %v664 = vpack.c.b16 %v654, %v653
      %v665 = vpack.c.b16 %v655, %v655
      %vm675 = vcmask 138240
      %v677 = vsel %vm675, %v617, 0
      %v679 = vsel 0, 4294967295, 65535
      %v680 = vsel %vm529, %v679, 0
      %v682 = vand.u32 %v665, %v680
      %684 = vmatprep.subr.bf16.mxu0 0
      %685 = vmatpush1.bf16.msra.mxu0 %v656
      %686 = vmatprep.subr.bf16.mxu0 0
      %687 = vmatpush1.bf16.msra.mxu0 %v657
      %688 = vmatprep.subr.bf16.mxu0 0
      %689 = vmatpush1.bf16.msra.mxu0 %v658
      %690 = vmatprep.subr.bf16.mxu0 0
      %691 = vmatpush1.bf16.msra.mxu0 %v659
      %692 = vmatprep.subr.bf16.mxu0 0
      %693 = vmatpush1.bf16.msra.mxu0 %v660
      %694 = vmatprep.subr.bf16.mxu0 0
      %695 = vmatpush1.bf16.msra.mxu0 %v661
      %696 = vmatprep.subr.bf16.mxu0 0
      %697 = vmatpush1.bf16.msra.mxu0 %v662
      %698 = vmatprep.subr.bf16.mxu0 0
      %699 = vmatpush1.bf16.msra.mxu0 %v663
      %700 = vmatprep.subr.bf16.mxu0 0
      %701 = vmatpush1.bf16.msra.mxu0 %v664
      %702 = vmatprep.subr.bf16.mxu0 0
      %703 = vmatpush1.bf16.msra.mxu0 %v682
      %704 = vmatprep.subr.bf16.mxu0 0
      %705 = vmatpush1.bf16.msra.mxu0 0
      %706 = vmatprep.subr.bf16.mxu0 0
      %707 = vmatpush1.bf16.msra.mxu0 0
      %708 = vmatprep.subr.bf16.mxu0 0
      %709 = vmatpush1.bf16.msra.mxu0 0
      %710 = vmatprep.subr.bf16.mxu0 0
      %711 = vmatpush1.bf16.msra.mxu0 0
      %712 = vmatprep.subr.bf16.mxu0 0
      %713 = vmatpush1.bf16.msra.mxu0 0
      %714 = vmatprep.subr.bf16.mxu0 0
      %715 = vmatpush1.bf16.msra.mxu0 0
      %716 = vmatprep.mubr.bf16.mxu0 %v677
      %717 = vmatmul.mubr.bf16.gmra.mrb[0].mxu0 %v616
      %v718 = vpop.f32.mrb[0].mxu0
      %v719 = vadd.f32 0.0, %v718
      %v720 = vpop.f32.mrb[0].mxu0
      %v721 = vpop.f32.mrb[0].mxu0
      %v722 = vpop.f32.mrb[0].mxu0
      %723 = vdwg.mxu0
      %vm724 = vcmp.ne.s32.totalorder %v542, 0
      %v725 = vsel %vm724, 1.0, 0.0
      %vm726 = vcmp.eq.s32.totalorder %v528, 0
      %v727 = vsel %vm726, -1e+09, 0.0
      %v728 = vld [vmem:[%s12] sm:$0x3f]
      %v729 = vld [vmem:[%s6] sm:$0xff]
      %v730 = vld [vmem:[%s6 + $0x8] sm:$0xff]
      %v731 = vld [vmem:[%s6 + $0x10] sm:$0xff]
      %v732 = vld [vmem:[%s6 + $0x18] sm:$0xff]
      %v733 = vld [vmem:[%s6 + $0x20] sm:$0xff]
      %v734 = vld [vmem:[%s6 + $0x28] sm:$0xff]
      %v735 = vld [vmem:[%s6 + $0x30] sm:$0xff]
      %v736 = vld [vmem:[%s6 + $0x38] sm:$0xff]
      %v737 = vld [vmem:[%s6 + $0x40] sm:$0xff]
      %v738 = vld [vmem:[%s6 + $0x48] sm:$0xff]
      %v739 = vld [vmem:[%s6 + $0x50] sm:$0xff]
      %v740 = vld [vmem:[%s6 + $0x58] sm:$0xff]
      %v741 = vpack.c.bf16 %v719, %v719
      %v742 = vld [vmem:[%s7] sm:$0x3f]
      %v744 = vlaneseq
      %v745 = vshrl.u32 %v744, 7
      %v746 = vsub.s32 0, %v745
      %v747 = vrot.slane %v742, %v746
      %v748 = vlaneseq
      %v749 = vshrl.u32 %v748, 7
      %v750 = vsub.s32 1, %v749
      %v751 = vrot.slane %v742, %v750
      %v752 = vlaneseq
      %v753 = vshrl.u32 %v752, 7
      %v754 = vsub.s32 2, %v753
      %v755 = vrot.slane %v742, %v754
      %v756 = vlaneseq
      %v757 = vshrl.u32 %v756, 7
      %v758 = vsub.s32 3, %v757
      %v759 = vrot.slane %v742, %v758
      %v760 = vlaneseq
      %v761 = vshrl.u32 %v760, 7
      %v762 = vsub.s32 4, %v761
      %v763 = vrot.slane %v742, %v762
      %v764 = vlaneseq
      %v765 = vshrl.u32 %v764, 7
      %v766 = vsub.s32 5, %v765
      %v767 = vrot.slane %v742, %v766
      %v786 = vunpack.c.l.b16 %v729
      %v787 = vunpack.c.h.b16 %v729
      %v788 = vunpack.c.l.b16 %v730
      %v789 = vunpack.c.h.b16 %v730
      %v790 = vunpack.c.l.b16 %v731
      %v791 = vunpack.c.h.b16 %v731
      %v792 = vunpack.c.l.b16 %v732
      %v793 = vunpack.c.h.b16 %v732
      %v794 = vunpack.c.l.b16 %v733
      %v795 = vunpack.c.h.b16 %v733
      %v796 = vunpack.c.l.b16 %v734
      %v797 = vunpack.c.h.b16 %v734
      %v798 = vunpack.c.l.b16 %v735
      %v799 = vunpack.c.h.b16 %v735
      %v800 = vunpack.c.l.b16 %v736
      %v801 = vunpack.c.h.b16 %v736
      %v802 = vunpack.c.l.b16 %v737
      %v803 = vunpack.c.h.b16 %v737
      %v804 = vunpack.c.l.b16 %v738
      %v805 = vunpack.c.h.b16 %v738
      %v806 = vunpack.c.l.b16 %v739
      %v807 = vunpack.c.h.b16 %v739
      %v808 = vunpack.c.l.b16 %v740
      %v809 = vunpack.c.h.b16 %v740
      %v810 = vpack.c.b16 %v792, %v786
      %v811 = vpack.c.b16 %v793, %v787
      %v812 = vpack.c.b16 %v794, %v788
      %v813 = vpack.c.b16 %v795, %v789
      %v814 = vpack.c.b16 %v796, %v790
      %v815 = vpack.c.b16 %v797, %v791
      %v816 = vpack.c.b16 %v804, %v798
      %v817 = vpack.c.b16 %v805, %v799
      %v818 = vpack.c.b16 %v806, %v800
      %v819 = vpack.c.b16 %v807, %v801
      %v820 = vpack.c.b16 %v808, %v802
      %v821 = vpack.c.b16 %v809, %v803
      %v835 = vsel %vm422, %v741, 0
      %837 = vmatprep.subr.bf16.mxu0 %v811
      %838 = vmatpush1.bf16.msra.mxu0 %v810
      %839 = vmatprep.subr.bf16.mxu0 %v817
      %840 = vmatpush1.bf16.msra.mxu0 %v816
      %841 = vmatprep.subr.bf16.mxu0 0
      %842 = vmatpush1.bf16.msra.mxu0 0
      %843 = vmatprep.subr.bf16.mxu0 0
      %844 = vmatpush1.bf16.msra.mxu0 0
      %845 = vmatprep.subr.bf16.mxu0 0
      %846 = vmatpush1.bf16.msra.mxu0 0
      %847 = vmatprep.subr.bf16.mxu0 0
      %848 = vmatpush1.bf16.msra.mxu0 0
      %849 = vmatprep.subr.bf16.mxu0 0
      %850 = vmatpush1.bf16.msra.mxu0 0
      %851 = vmatprep.subr.bf16.mxu0 0
      %852 = vmatpush1.bf16.msra.mxu0 0
      %853 = vmatprep.subr.bf16.mxu0 0
      %854 = vmatpush1.bf16.msra.mxu0 0
      %855 = vmatprep.subr.bf16.mxu0 0
      %856 = vmatpush1.bf16.msra.mxu0 0
      %857 = vmatprep.subr.bf16.mxu0 0
      %858 = vmatpush1.bf16.msra.mxu0 0
      %859 = vmatprep.subr.bf16.mxu0 0
      %860 = vmatpush1.bf16.msra.mxu0 0
      %861 = vmatprep.subr.bf16.mxu0 0
      %862 = vmatpush1.bf16.msra.mxu0 0
      %863 = vmatprep.subr.bf16.mxu0 0
      %864 = vmatpush1.bf16.msra.mxu0 0
      %865 = vmatprep.subr.bf16.mxu0 0
      %866 = vmatpush1.bf16.msra.mxu0 0
      %867 = vmatprep.subr.bf16.mxu0 0
      %868 = vmatpush1.bf16.msra.mxu0 0
      %869 = vmatprep.mubr.bf16.mxu0 0
      %870 = vmatmul.mubr.bf16.gmra.mrb[0].mxu0 %v835
      %v871 = vpop.f32.mrb[0].mxu0
      %v872 = vadd.f32 %v747, %v871
      %v873 = vpop.f32.mrb[0].mxu0
      %v874 = vadd.f32 %v751, %v873
      %v875 = vpop.f32.mrb[0].mxu0
      %v876 = vpop.f32.mrb[0].mxu0
      %877 = vdwg.mxu0
      %878 = vmatprep.subr.bf16.mxu0 %v813
      %879 = vmatpush1.bf16.msra.mxu0 %v812
      %880 = vmatprep.subr.bf16.mxu0 %v819
      %881 = vmatpush1.bf16.msra.mxu0 %v818
      %882 = vmatprep.subr.bf16.mxu0 0
      %883 = vmatpush1.bf16.msra.mxu0 0
      %884 = vmatprep.subr.bf16.mxu0 0
      %885 = vmatpush1.bf16.msra.mxu0 0
      %886 = vmatprep.subr.bf16.mxu0 0
      %887 = vmatpush1.bf16.msra.mxu0 0
      %888 = vmatprep.subr.bf16.mxu0 0
      %889 = vmatpush1.bf16.msra.mxu0 0
      %890 = vmatprep.subr.bf16.mxu0 0
      %891 = vmatpush1.bf16.msra.mxu0 0
      %892 = vmatprep.subr.bf16.mxu0 0
      %893 = vmatpush1.bf16.msra.mxu0 0
      %894 = vmatprep.subr.bf16.mxu0 0
      %895 = vmatpush1.bf16.msra.mxu0 0
      %896 = vmatprep.subr.bf16.mxu0 0
      %897 = vmatpush1.bf16.msra.mxu0 0
      %898 = vmatprep.subr.bf16.mxu0 0
      %899 = vmatpush1.bf16.msra.mxu0 0
      %900 = vmatprep.subr.bf16.mxu0 0
      %901 = vmatpush1.bf16.msra.mxu0 0
      %902 = vmatprep.subr.bf16.mxu0 0
      %903 = vmatpush1.bf16.msra.mxu0 0
      %904 = vmatprep.subr.bf16.mxu0 0
      %905 = vmatpush1.bf16.msra.mxu0 0
      %906 = vmatprep.subr.bf16.mxu0 0
      %907 = vmatpush1.bf16.msra.mxu0 0
      %908 = vmatprep.subr.bf16.mxu0 0
      %909 = vmatpush1.bf16.msra.mxu0 0
      %910 = vmatprep.mubr.bf16.mxu0 0
      %911 = vmatmul.mubr.bf16.gmra.mrb[0].mxu0 %v835
      %v912 = vpop.f32.mrb[0].mxu0
      %v913 = vadd.f32 %v755, %v912
      %v914 = vpop.f32.mrb[0].mxu0
      %v915 = vadd.f32 %v759, %v914
      %v916 = vpop.f32.mrb[0].mxu0
      %v917 = vpop.f32.mrb[0].mxu0
      %918 = vdwg.mxu0
      %919 = vmatprep.subr.bf16.mxu0 %v815
      %920 = vmatpush1.bf16.msra.mxu0 %v814
      %921 = vmatprep.subr.bf16.mxu0 %v821
      %922 = vmatpush1.bf16.msra.mxu0 %v820
      %923 = vmatprep.subr.bf16.mxu0 0
      %924 = vmatpush1.bf16.msra.mxu0 0
      %925 = vmatprep.subr.bf16.mxu0 0
      %926 = vmatpush1.bf16.msra.mxu0 0
      %927 = vmatprep.subr.bf16.mxu0 0
      %928 = vmatpush1.bf16.msra.mxu0 0
      %929 = vmatprep.subr.bf16.mxu0 0
      %930 = vmatpush1.bf16.msra.mxu0 0
      %931 = vmatprep.subr.bf16.mxu0 0
      %932 = vmatpush1.bf16.msra.mxu0 0
      %933 = vmatprep.subr.bf16.mxu0 0
      %934 = vmatpush1.bf16.msra.mxu0 0
      %935 = vmatprep.subr.bf16.mxu0 0
      %936 = vmatpush1.bf16.msra.mxu0 0
      %937 = vmatprep.subr.bf16.mxu0 0
      %938 = vmatpush1.bf16.msra.mxu0 0
      %939 = vmatprep.subr.bf16.mxu0 0
      %940 = vmatpush1.bf16.msra.mxu0 0
      %941 = vmatprep.subr.bf16.mxu0 0
      %942 = vmatpush1.bf16.msra.mxu0 0
      %943 = vmatprep.subr.bf16.mxu0 0
      %944 = vmatpush1.bf16.msra.mxu0 0
      %945 = vmatprep.subr.bf16.mxu0 0
      %946 = vmatpush1.bf16.msra.mxu0 0
      %947 = vmatprep.subr.bf16.mxu0 0
      %948 = vmatpush1.bf16.msra.mxu0 0
      %949 = vmatprep.subr.bf16.mxu0 0
      %950 = vmatpush1.bf16.msra.mxu0 0
      %951 = vmatprep.mubr.bf16.mxu0 0
      %952 = vmatmul.mubr.bf16.gmra.mrb[0].mxu0 %v835
      %v953 = vpop.f32.mrb[0].mxu0
      %v954 = vadd.f32 %v763, %v953
      %v955 = vpop.f32.mrb[0].mxu0
      %v956 = vadd.f32 %v767, %v955
      %v957 = vpop.f32.mrb[0].mxu0
      %v958 = vpop.f32.mrb[0].mxu0
      %959 = vdwg.mxu0
      %960 = vxpose.xlu0.b32.start [1/16] %v913, 128
      %961 = vxpose.xlu0.b32.cont [2/16] 0.0, 128
      %962 = vxpose.xlu0.b32.cont [3/16] 0.0, 128
      %963 = vxpose.xlu0.b32.cont [4/16] 0.0, 128
      %964 = vxpose.xlu0.b32.cont [5/16] 0.0, 128
      %965 = vxpose.xlu0.b32.cont [6/16] 0.0, 128
      %966 = vxpose.xlu0.b32.cont [7/16] 0.0, 128
      %967 = vxpose.xlu0.b32.cont [8/16] 0.0, 128
      %968 = vxpose.xlu0.b32.cont [9/16] 0.0, 128
      %969 = vxpose.xlu0.b32.cont [10/16] 0.0, 128
      %970 = vxpose.xlu0.b32.cont [11/16] 0.0, 128
      %971 = vxpose.xlu0.b32.cont [12/16] 0.0, 128
      %972 = vxpose.xlu0.b32.cont [13/16] 0.0, 128
      %973 = vxpose.xlu0.b32.cont [14/16] 0.0, 128
      %974 = vxpose.xlu0.b32.cont [15/16] 0.0, 128
      %975 = vxpose.xlu0.b32.end [16/16] 0.0, 128
      %v976 = vpop.trf.xlu0
      %v977 = vpop.trf.xlu0
      %v978 = vpop.trf.xlu0
      %v979 = vpop.trf.xlu0
      %v980 = vpop.trf.xlu0
      %v981 = vpop.trf.xlu0
      %v982 = vpop.trf.xlu0
      %v983 = vpop.trf.xlu0
      %v984 = vpop.trf.xlu0
      %v985 = vpop.trf.xlu0
      %v986 = vpop.trf.xlu0
      %v987 = vpop.trf.xlu0
      %v988 = vpop.trf.xlu0
      %v989 = vpop.trf.xlu0
      %v990 = vpop.trf.xlu0
      %v991 = vpop.trf.xlu0
      %v992 = vpack.c.bf16 %v872, %v872
      %v993 = vpack.c.bf16 %v977, %v976
      %v994 = vpack.c.bf16 %v979, %v978
      %v995 = vpack.c.bf16 %v981, %v980
      %v996 = vpack.c.bf16 %v983, %v982
      %v997 = vpack.c.bf16 %v985, %v984
      %v998 = vpack.c.bf16 %v987, %v986
      %v999 = vpack.c.bf16 %v989, %v988
      %v1000 = vpack.c.bf16 %v991, %v990
      %1001 = vmatprep.subr.bf16.mxu0 0
      %1002 = vmatpush1.bf16.msra.mxu0 %v993
      %1003 = vmatprep.subr.bf16.mxu0 0
      %1004 = vmatpush1.bf16.msra.mxu0 %v994
      %1005 = vmatprep.subr.bf16.mxu0 0
      %1006 = vmatpush1.bf16.msra.mxu0 %v995
      %1007 = vmatprep.subr.bf16.mxu0 0
      %1008 = vmatpush1.bf16.msra.mxu0 %v996
      %1009 = vmatprep.subr.bf16.mxu0 0
      %1010 = vmatpush1.bf16.msra.mxu0 %v997
      %1011 = vmatprep.subr.bf16.mxu0 0
      %1012 = vmatpush1.bf16.msra.mxu0 %v998
      %1013 = vmatprep.subr.bf16.mxu0 0
      %1014 = vmatpush1.bf16.msra.mxu0 %v999
      %1015 = vmatprep.subr.bf16.mxu0 0
      %1016 = vmatpush1.bf16.msra.mxu0 %v1000
      %1017 = vmatprep.subr.bf16.mxu0 0
      %1018 = vmatpush1.bf16.msra.mxu0 0
      %1019 = vmatprep.subr.bf16.mxu0 0
      %1020 = vmatpush1.bf16.msra.mxu0 0
      %1021 = vmatprep.subr.bf16.mxu0 0
      %1022 = vmatpush1.bf16.msra.mxu0 0
      %1023 = vmatprep.subr.bf16.mxu0 0
      %1024 = vmatpush1.bf16.msra.mxu0 0
      %1025 = vmatprep.subr.bf16.mxu0 0
      %1026 = vmatpush1.bf16.msra.mxu0 0
      %1027 = vmatprep.subr.bf16.mxu0 0
      %1028 = vmatpush1.bf16.msra.mxu0 0
      %1029 = vmatprep.subr.bf16.mxu0 0
      %1030 = vmatpush1.bf16.msra.mxu0 0
      %1031 = vmatprep.subr.bf16.mxu0 0
      %1032 = vmatpush1.bf16.msra.mxu0 0
      %1033 = vmatprep.mubr.bf16.mxu0 0
      %1034 = vmatmul.mubr.bf16.gmra.mrb[0].mxu0 %v992
      %v1035 = vpop.f32.mrb[0].mxu0
      %v1036 = vadd.f32 0.0, %v1035
      %v1037 = vpop.f32.mrb[0].mxu0
      %v1038 = vpop.f32.mrb[0].mxu0
      %v1039 = vpop.f32.mrb[0].mxu0
      %1040 = vdwg.mxu0
      %v1041 = vmul.f32 %v1036, 0.25
      %v1042 = vlaneseq
      %v1043 = vshrl.u32 %v1042, 7
      %v1044 = vsub.s32 0, %v1043
      %v1045 = vrot.slane %v727, %v1044
      %v1046 = vadd.f32 %v1041, %v1045
      %vm1047 = vcmask 64512
      %v1048 = vsel %vm1047, %v1046, -inf
      %1049 = vmax.xlane.f32.xlu0 %v1048
      %v1050 = vpop.xlane.xlu0 %1049
      %v1051 = vsub.f32 %v1046, %v1050
      %v1052 = vmul.f32 %v1051, 1.442695
      %v1053 = vpow.pop %v1052
      %v1054 = vsel %vm1047, %v1053, 0.0
      %1055 = vadd.xlane.f32.xlu0 %v1054
      %v1056 = vpop.xlane.xlu0 %1055
      %v1057 = vrcp.pop %v1056
      %v1058 = vmul.f32 %v1053, %v1057
      %v1059 = vpack.c.bf16 %v1058, %v1058
      %v1060 = vpack.c.bf16 %v954, %v954
      %v1062 = vsel %vm1047, %v1059, 0
      %v1065 = vsel %vm535, %v1060, 0
      %1067 = vmatprep.subr.bf16.mxu0 0
      %1068 = vmatpush1.bf16.msra.mxu0 %v1065
      %1069 = vmatprep.subr.bf16.mxu0 0
      %1070 = vmatpush1.bf16.msra.mxu0 0
      %1071 = vmatprep.subr.bf16.mxu0 0
      %1072 = vmatpush1.bf16.msra.mxu0 0
      %1073 = vmatprep.subr.bf16.mxu0 0
      %1074 = vmatpush1.bf16.msra.mxu0 0
      %1075 = vmatprep.subr.bf16.mxu0 0
      %1076 = vmatpush1.bf16.msra.mxu0 0
      %1077 = vmatprep.subr.bf16.mxu0 0
      %1078 = vmatpush1.bf16.msra.mxu0 0
      %1079 = vmatprep.subr.bf16.mxu0 0
      %1080 = vmatpush1.bf16.msra.mxu0 0
      %1081 = vmatprep.subr.bf16.mxu0 0
      %1082 = vmatpush1.bf16.msra.mxu0 0
      %1083 = vmatprep.subr.bf16.mxu0 0
      %1084 = vmatpush1.bf16.msra.mxu0 0
      %1085 = vmatprep.subr.bf16.mxu0 0
      %1086 = vmatpush1.bf16.msra.mxu0 0
      %1087 = vmatprep.subr.bf16.mxu0 0
      %1088 = vmatpush1.bf16.msra.mxu0 0
      %1089 = vmatprep.subr.bf16.mxu0 0
      %1090 = vmatpush1.bf16.msra.mxu0 0
      %1091 = vmatprep.subr.bf16.mxu0 0
      %1092 = vmatpush1.bf16.msra.mxu0 0
      %1093 = vmatprep.subr.bf16.mxu0 0
      %1094 = vmatpush1.bf16.msra.mxu0 0
      %1095 = vmatprep.subr.bf16.mxu0 0
      %1096 = vmatpush1.bf16.msra.mxu0 0
      %1097 = vmatprep.subr.bf16.mxu0 0
      %1098 = vmatpush1.bf16.msra.mxu0 0
      %1099 = vmatprep.mubr.bf16.mxu0 0
      %1100 = vmatmul.mubr.bf16.gmra.mrb[0].mxu0 %v1062
      %v1101 = vpop.f32.mrb[0].mxu0
      %v1102 = vadd.f32 0.0, %v1101
      %v1103 = vpop.f32.mrb[0].mxu0
      %v1104 = vpop.f32.mrb[0].mxu0
      %v1105 = vpop.f32.mrb[0].mxu0
      %1106 = vdwg.mxu0
      %1107 = vxpose.xlu0.b32.start [1/16] %v915, 128
      %1108 = vxpose.xlu0.b32.cont [2/16] 0.0, 128
      %1109 = vxpose.xlu0.b32.cont [3/16] 0.0, 128
      %1110 = vxpose.xlu0.b32.cont [4/16] 0.0, 128
      %1111 = vxpose.xlu0.b32.cont [5/16] 0.0, 128
      %1112 = vxpose.xlu0.b32.cont [6/16] 0.0, 128
      %1113 = vxpose.xlu0.b32.cont [7/16] 0.0, 128
      %1114 = vxpose.xlu0.b32.cont [8/16] 0.0, 128
      %1115 = vxpose.xlu0.b32.cont [9/16] 0.0, 128
      %1116 = vxpose.xlu0.b32.cont [10/16] 0.0, 128
      %1117 = vxpose.xlu0.b32.cont [11/16] 0.0, 128
      %1118 = vxpose.xlu0.b32.cont [12/16] 0.0, 128
      %1119 = vxpose.xlu0.b32.cont [13/16] 0.0, 128
      %1120 = vxpose.xlu0.b32.cont [14/16] 0.0, 128
      %1121 = vxpose.xlu0.b32.cont [15/16] 0.0, 128
      %1122 = vxpose.xlu0.b32.end [16/16] 0.0, 128
      %v1123 = vpop.trf.xlu0
      %v1124 = vpop.trf.xlu0
      %v1125 = vpop.trf.xlu0
      %v1126 = vpop.trf.xlu0
      %v1127 = vpop.trf.xlu0
      %v1128 = vpop.trf.xlu0
      %v1129 = vpop.trf.xlu0
      %v1130 = vpop.trf.xlu0
      %v1131 = vpop.trf.xlu0
      %v1132 = vpop.trf.xlu0
      %v1133 = vpop.trf.xlu0
      %v1134 = vpop.trf.xlu0
      %v1135 = vpop.trf.xlu0
      %v1136 = vpop.trf.xlu0
      %v1137 = vpop.trf.xlu0
      %v1138 = vpop.trf.xlu0
      %v1139 = vpack.c.bf16 %v874, %v874
      %v1140 = vpack.c.bf16 %v1124, %v1123
      %v1141 = vpack.c.bf16 %v1126, %v1125
      %v1142 = vpack.c.bf16 %v1128, %v1127
      %v1143 = vpack.c.bf16 %v1130, %v1129
      %v1144 = vpack.c.bf16 %v1132, %v1131
      %v1145 = vpack.c.bf16 %v1134, %v1133
      %v1146 = vpack.c.bf16 %v1136, %v1135
      %v1147 = vpack.c.bf16 %v1138, %v1137
      %1148 = vmatprep.subr.bf16.mxu0 0
      %1149 = vmatpush1.bf16.msra.mxu0 %v1140
      %1150 = vmatprep.subr.bf16.mxu0 0
      %1151 = vmatpush1.bf16.msra.mxu0 %v1141
      %1152 = vmatprep.subr.bf16.mxu0 0
      %1153 = vmatpush1.bf16.msra.mxu0 %v1142
      %1154 = vmatprep.subr.bf16.mxu0 0
      %1155 = vmatpush1.bf16.msra.mxu0 %v1143
      %1156 = vmatprep.subr.bf16.mxu0 0
      %1157 = vmatpush1.bf16.msra.mxu0 %v1144
      %1158 = vmatprep.subr.bf16.mxu0 0
      %1159 = vmatpush1.bf16.msra.mxu0 %v1145
      %1160 = vmatprep.subr.bf16.mxu0 0
      %1161 = vmatpush1.bf16.msra.mxu0 %v1146
      %1162 = vmatprep.subr.bf16.mxu0 0
      %1163 = vmatpush1.bf16.msra.mxu0 %v1147
      %1164 = vmatprep.subr.bf16.mxu0 0
      %1165 = vmatpush1.bf16.msra.mxu0 0
      %1166 = vmatprep.subr.bf16.mxu0 0
      %1167 = vmatpush1.bf16.msra.mxu0 0
      %1168 = vmatprep.subr.bf16.mxu0 0
      %1169 = vmatpush1.bf16.msra.mxu0 0
      %1170 = vmatprep.subr.bf16.mxu0 0
      %1171 = vmatpush1.bf16.msra.mxu0 0
      %1172 = vmatprep.subr.bf16.mxu0 0
      %1173 = vmatpush1.bf16.msra.mxu0 0
      %1174 = vmatprep.subr.bf16.mxu0 0
      %1175 = vmatpush1.bf16.msra.mxu0 0
      %1176 = vmatprep.subr.bf16.mxu0 0
      %1177 = vmatpush1.bf16.msra.mxu0 0
      %1178 = vmatprep.subr.bf16.mxu0 0
      %1179 = vmatpush1.bf16.msra.mxu0 0
      %1180 = vmatprep.mubr.bf16.mxu0 0
      %1181 = vmatmul.mubr.bf16.gmra.mrb[0].mxu0 %v1139
      %v1182 = vpop.f32.mrb[0].mxu0
      %v1183 = vadd.f32 0.0, %v1182
      %v1184 = vpop.f32.mrb[0].mxu0
      %v1185 = vpop.f32.mrb[0].mxu0
      %v1186 = vpop.f32.mrb[0].mxu0
      %1187 = vdwg.mxu0
      %v1188 = vmul.f32 %v1183, 0.25
      %v1189 = vadd.f32 %v1188, %v1045
      %v1190 = vsel %vm1047, %v1189, -inf
      %1191 = vmax.xlane.f32.xlu0 %v1190
      %v1192 = vpop.xlane.xlu0 %1191
      %v1193 = vsub.f32 %v1189, %v1192
      %v1194 = vmul.f32 %v1193, 1.442695
      %v1195 = vpow.pop %v1194
      %v1196 = vsel %vm1047, %v1195, 0.0
      %1197 = vadd.xlane.f32.xlu0 %v1196
      %v1198 = vpop.xlane.xlu0 %1197
      %v1199 = vrcp.pop %v1198
      %v1200 = vmul.f32 %v1195, %v1199
      %v1201 = vpack.c.bf16 %v1200, %v1200
      %v1202 = vpack.c.bf16 %v956, %v956
      %v1204 = vsel %vm1047, %v1201, 0
      %v1207 = vsel %vm535, %v1202, 0
      %1209 = vmatprep.subr.bf16.mxu0 0
      %1210 = vmatpush1.bf16.msra.mxu0 %v1207
      %1211 = vmatprep.subr.bf16.mxu0 0
      %1212 = vmatpush1.bf16.msra.mxu0 0
      %1213 = vmatprep.subr.bf16.mxu0 0
      %1214 = vmatpush1.bf16.msra.mxu0 0
      %1215 = vmatprep.subr.bf16.mxu0 0
      %1216 = vmatpush1.bf16.msra.mxu0 0
      %1217 = vmatprep.subr.bf16.mxu0 0
      %1218 = vmatpush1.bf16.msra.mxu0 0
      %1219 = vmatprep.subr.bf16.mxu0 0
      %1220 = vmatpush1.bf16.msra.mxu0 0
      %1221 = vmatprep.subr.bf16.mxu0 0
      %1222 = vmatpush1.bf16.msra.mxu0 0
      %1223 = vmatprep.subr.bf16.mxu0 0
      %1224 = vmatpush1.bf16.msra.mxu0 0
      %1225 = vmatprep.subr.bf16.mxu0 0
      %1226 = vmatpush1.bf16.msra.mxu0 0
      %1227 = vmatprep.subr.bf16.mxu0 0
      %1228 = vmatpush1.bf16.msra.mxu0 0
      %1229 = vmatprep.subr.bf16.mxu0 0
      %1230 = vmatpush1.bf16.msra.mxu0 0
      %1231 = vmatprep.subr.bf16.mxu0 0
      %1232 = vmatpush1.bf16.msra.mxu0 0
      %1233 = vmatprep.subr.bf16.mxu0 0
      %1234 = vmatpush1.bf16.msra.mxu0 0
      %1235 = vmatprep.subr.bf16.mxu0 0
      %1236 = vmatpush1.bf16.msra.mxu0 0
      %1237 = vmatprep.subr.bf16.mxu0 0
      %1238 = vmatpush1.bf16.msra.mxu0 0
      %1239 = vmatprep.subr.bf16.mxu0 0
      %1240 = vmatpush1.bf16.msra.mxu0 0
      %1241 = vmatprep.mubr.bf16.mxu0 0
      %1242 = vmatmul.mubr.bf16.gmra.mrb[0].mxu0 %v1204
      %v1243 = vpop.f32.mrb[0].mxu0
      %v1244 = vadd.f32 0.0, %v1243
      %v1245 = vpop.f32.mrb[0].mxu0
      %v1246 = vpop.f32.mrb[0].mxu0
      %v1247 = vpop.f32.mrb[0].mxu0
      %1248 = vdwg.mxu0
      %v1249 = vld [vmem:[%s8] sm:$0xf]
      %v1250 = vld [vmem:[%s8 + $0x4] sm:$0xf]
      %v1251 = vld [vmem:[%s8 + $0x8] sm:$0xf]
      %v1252 = vld [vmem:[%s8 + $0xc] sm:$0xf]
      %v1253 = vld [vmem:[%s8 + $0x10] sm:$0xf]
      %v1254 = vld [vmem:[%s8 + $0x14] sm:$0xf]
      %v1255 = vld [vmem:[%s8 + $0x18] sm:$0xf]
      %v1256 = vld [vmem:[%s8 + $0x1c] sm:$0xf]
      %v1257 = vld [vmem:[%s8 + $0x20] sm:$0xf]
      %v1258 = vld [vmem:[%s8 + $0x24] sm:$0xf]
      %v1259 = vld [vmem:[%s8 + $0x28] sm:$0xf]
      %v1260 = vld [vmem:[%s8 + $0x2c] sm:$0xf]
      %v1261 = vld [vmem:[%s8 + $0x30] sm:$0xf]
      %v1262 = vld [vmem:[%s8 + $0x34] sm:$0xf]
      %v1263 = vld [vmem:[%s8 + $0x38] sm:$0xf]
      %v1264 = vld [vmem:[%s8 + $0x3c] sm:$0xf]
      %v1265 = vld [vmem:[%s8 + $0x40] sm:$0xf]
      %v1266 = vld [vmem:[%s8 + $0x44] sm:$0xf]
      %v1267 = vld [vmem:[%s8 + $0x48] sm:$0xf]
      %v1268 = vld [vmem:[%s8 + $0x4c] sm:$0xf]
      %v1269 = vld [vmem:[%s8 + $0x50] sm:$0xf]
      %v1270 = vld [vmem:[%s8 + $0x54] sm:$0xf]
      %v1271 = vld [vmem:[%s8 + $0x58] sm:$0xf]
      %v1272 = vld [vmem:[%s8 + $0x5c] sm:$0xf]
      %v1273 = vld [vmem:[%s8 + $0x60] sm:$0xf]
      %v1274 = vld [vmem:[%s8 + $0x64] sm:$0xf]
      %v1275 = vld [vmem:[%s8 + $0x68] sm:$0xf]
      %v1276 = vld [vmem:[%s8 + $0x6c] sm:$0xf]
      %v1277 = vld [vmem:[%s8 + $0x70] sm:$0xf]
      %v1278 = vld [vmem:[%s8 + $0x74] sm:$0xf]
      %v1279 = vld [vmem:[%s8 + $0x78] sm:$0xf]
      %v1280 = vld [vmem:[%s8 + $0x7c] sm:$0xf]
      %v1281 = vpack.c.bf16 %v1102, %v1102
      %v1282 = vpack.c.bf16 %v1244, %v1244
      %v1283 = vlaneseq
      %v1284 = vshrl.u32 %v1283, 7
      %v1285 = vsub.s32 0, %v1284
      %v1286 = vrot.slane %v728, %v1285
      %v1319 = vunpack.c.l.b16 %v1249
      %v1320 = vunpack.c.l.b16 %v1250
      %v1321 = vunpack.c.l.b16 %v1251
      %v1322 = vunpack.c.l.b16 %v1252
      %v1323 = vunpack.c.l.b16 %v1253
      %v1324 = vunpack.c.l.b16 %v1254
      %v1325 = vunpack.c.l.b16 %v1255
      %v1326 = vunpack.c.l.b16 %v1256
      %v1327 = vunpack.c.l.b16 %v1257
      %v1328 = vunpack.c.l.b16 %v1258
      %v1329 = vunpack.c.l.b16 %v1259
      %v1330 = vunpack.c.l.b16 %v1260
      %v1331 = vunpack.c.l.b16 %v1261
      %v1332 = vunpack.c.l.b16 %v1262
      %v1333 = vunpack.c.l.b16 %v1263
      %v1334 = vunpack.c.l.b16 %v1264
      %v1335 = vunpack.c.l.b16 %v1265
      %v1336 = vunpack.c.l.b16 %v1266
      %v1337 = vunpack.c.l.b16 %v1267
      %v1338 = vunpack.c.l.b16 %v1268
      %v1339 = vunpack.c.l.b16 %v1269
      %v1340 = vunpack.c.l.b16 %v1270
      %v1341 = vunpack.c.l.b16 %v1271
      %v1342 = vunpack.c.l.b16 %v1272
      %v1343 = vunpack.c.l.b16 %v1273
      %v1344 = vunpack.c.l.b16 %v1274
      %v1345 = vunpack.c.l.b16 %v1275
      %v1346 = vunpack.c.l.b16 %v1276
      %v1347 = vunpack.c.l.b16 %v1277
      %v1348 = vunpack.c.l.b16 %v1278
      %v1349 = vunpack.c.l.b16 %v1279
      %v1350 = vunpack.c.l.b16 %v1280
      %v1351 = vpack.c.b16 %v1320, %v1319
      %v1352 = vpack.c.b16 %v1322, %v1321
      %v1353 = vpack.c.b16 %v1324, %v1323
      %v1354 = vpack.c.b16 %v1326, %v1325
      %v1355 = vpack.c.b16 %v1328, %v1327
      %v1356 = vpack.c.b16 %v1330, %v1329
      %v1357 = vpack.c.b16 %v1332, %v1331
      %v1358 = vpack.c.b16 %v1334, %v1333
      %v1359 = vpack.c.b16 %v1336, %v1335
      %v1360 = vpack.c.b16 %v1338, %v1337
      %v1361 = vpack.c.b16 %v1340, %v1339
      %v1362 = vpack.c.b16 %v1342, %v1341
      %v1363 = vpack.c.b16 %v1344, %v1343
      %v1364 = vpack.c.b16 %v1346, %v1345
      %v1365 = vpack.c.b16 %v1348, %v1347
      %v1366 = vpack.c.b16 %v1350, %v1349
      %1383 = vmatprep.subr.bf16.mxu0 0
      %1384 = vmatpush1.bf16.msra.mxu0 %v1351
      %1385 = vmatprep.subr.bf16.mxu0 0
      %1386 = vmatpush1.bf16.msra.mxu0 %v1352
      %1387 = vmatprep.subr.bf16.mxu0 0
      %1388 = vmatpush1.bf16.msra.mxu0 %v1353
      %1389 = vmatprep.subr.bf16.mxu0 0
      %1390 = vmatpush1.bf16.msra.mxu0 %v1354
      %1391 = vmatprep.subr.bf16.mxu0 0
      %1392 = vmatpush1.bf16.msra.mxu0 %v1355
      %1393 = vmatprep.subr.bf16.mxu0 0
      %1394 = vmatpush1.bf16.msra.mxu0 %v1356
      %1395 = vmatprep.subr.bf16.mxu0 0
      %1396 = vmatpush1.bf16.msra.mxu0 %v1357
      %1397 = vmatprep.subr.bf16.mxu0 0
      %1398 = vmatpush1.bf16.msra.mxu0 %v1358
      %1399 = vmatprep.subr.bf16.mxu0 0
      %1400 = vmatpush1.bf16.msra.mxu0 %v1359
      %1401 = vmatprep.subr.bf16.mxu0 0
      %1402 = vmatpush1.bf16.msra.mxu0 %v1360
      %1403 = vmatprep.subr.bf16.mxu0 0
      %1404 = vmatpush1.bf16.msra.mxu0 %v1361
      %1405 = vmatprep.subr.bf16.mxu0 0
      %1406 = vmatpush1.bf16.msra.mxu0 %v1362
      %1407 = vmatprep.subr.bf16.mxu0 0
      %1408 = vmatpush1.bf16.msra.mxu0 %v1363
      %1409 = vmatprep.subr.bf16.mxu0 0
      %1410 = vmatpush1.bf16.msra.mxu0 %v1364
      %1411 = vmatprep.subr.bf16.mxu0 0
      %1412 = vmatpush1.bf16.msra.mxu0 %v1365
      %1413 = vmatprep.subr.bf16.mxu0 0
      %1414 = vmatpush1.bf16.msra.mxu0 %v1366
      %1415 = vmatprep.mubr.bf16.mxu0 %v1282
      %1416 = vmatmul.mubr.bf16.gmra.mrb[0].mxu0 %v1281
      %v1417 = vpop.f32.mrb[0].mxu0
      %v1418 = vadd.f32 %v1286, %v1417
      %v1419 = vpop.f32.mrb[0].mxu0
      %v1420 = vpop.f32.mrb[0].mxu0
      %v1421 = vpop.f32.mrb[0].mxu0
      %1422 = vdwg.mxu0
      %v1423 = vadd.f32 %v1418, %v719
      %v1424 = vsel %vm422, %v1423, 0.0
      %1425 = vadd.xlane.f32.xlu0 %v1424
      %v1426 = vpop.xlane.xlu0 %1425
      %v1427 = vrcp.pop 32.0
      %v1428 = vmul.f32 %v1426, %v1427
      %v1429 = vsub.f32 %v1423, %v1428
      %v1430 = vmul.f32 %v1429, %v1429
      %v1431 = vsel %vm422, %v1430, 0.0
      %1432 = vadd.xlane.f32.xlu0 %v1431
      %v1433 = vpop.xlane.xlu0 %1432
      %v1434 = vmul.f32 %v1433, %v1427
      %v1435 = vadd.f32 %v1434, 1e-05
      %v1436 = vrsqrt.pop %v1435
      %v1437 = vmul.f32 %v1429, %v1436
      %v1438 = vlaneseq
      %v1439 = vshrl.u32 %v1438, 7
      %v1440 = vsub.s32 1, %v1439
      %v1441 = vrot.slane %v728, %v1440
      %v1442 = vmul.f32 %v1437, %v1441
      %v1443 = vlaneseq
      %v1444 = vshrl.u32 %v1443, 7
      %v1445 = vsub.s32 2, %v1444
      %v1446 = vrot.slane %v728, %v1445
      %v1447 = vadd.f32 %v1442, %v1446
      %1449 = vset.pattern.permute.xlu0 0
      %1450 = vperm.xlu0 %1449, %v725
      %v1451 = vpop.permute.xlu0 %1450
      %v1453 = vmul.f32 %v1447, %v1451
      %v1454 = vld [vmem:[%s9] sm:$0xf]
      %v1455 = vld [vmem:[%s9 + $0x4] sm:$0xf]
      %v1456 = vld [vmem:[%s9 + $0x8] sm:$0xf]
      %v1457 = vld [vmem:[%s9 + $0xc] sm:$0xf]
      %v1458 = vld [vmem:[%s9 + $0x10] sm:$0xf]
      %v1459 = vld [vmem:[%s9 + $0x14] sm:$0xf]
      %v1460 = vld [vmem:[%s9 + $0x18] sm:$0xf]
      %v1461 = vld [vmem:[%s9 + $0x1c] sm:$0xf]
      %v1462 = vld [vmem:[%s9 + $0x20] sm:$0xf]
      %v1463 = vld [vmem:[%s9 + $0x24] sm:$0xf]
      %v1464 = vld [vmem:[%s9 + $0x28] sm:$0xf]
      %v1465 = vld [vmem:[%s9 + $0x2c] sm:$0xf]
      %v1466 = vld [vmem:[%s9 + $0x30] sm:$0xf]
      %v1467 = vld [vmem:[%s9 + $0x34] sm:$0xf]
      %v1468 = vld [vmem:[%s9 + $0x38] sm:$0xf]
      %v1469 = vld [vmem:[%s9 + $0x3c] sm:$0xf]
      %v1470 = vld [vmem:[%s9 + $0x40] sm:$0xf]
      %v1471 = vld [vmem:[%s9 + $0x44] sm:$0xf]
      %v1472 = vld [vmem:[%s9 + $0x48] sm:$0xf]
      %v1473 = vld [vmem:[%s9 + $0x4c] sm:$0xf]
      %v1474 = vld [vmem:[%s9 + $0x50] sm:$0xf]
      %v1475 = vld [vmem:[%s9 + $0x54] sm:$0xf]
      %v1476 = vld [vmem:[%s9 + $0x58] sm:$0xf]
      %v1477 = vld [vmem:[%s9 + $0x5c] sm:$0xf]
      %v1478 = vld [vmem:[%s9 + $0x60] sm:$0xf]
      %v1479 = vld [vmem:[%s9 + $0x64] sm:$0xf]
      %v1480 = vld [vmem:[%s9 + $0x68] sm:$0xf]
      %v1481 = vld [vmem:[%s9 + $0x6c] sm:$0xf]
      %v1482 = vld [vmem:[%s9 + $0x70] sm:$0xf]
      %v1483 = vld [vmem:[%s9 + $0x74] sm:$0xf]
      %v1484 = vld [vmem:[%s9 + $0x78] sm:$0xf]
      %v1485 = vld [vmem:[%s9 + $0x7c] sm:$0xf]
      %v1486 = vld [vmem:[%s9 + $0x80] sm:$0xf]
      %v1487 = vld [vmem:[%s9 + $0x84] sm:$0xf]
      %v1488 = vld [vmem:[%s9 + $0x88] sm:$0xf]
      %v1489 = vld [vmem:[%s9 + $0x8c] sm:$0xf]
      %v1490 = vld [vmem:[%s10] sm:$0x1]
      %1491 = vst.msk [vmem:[#allocation2 + $0x8] sm:$0xff] %vm422, %v1453
      %v1492 = vld [vmem:[#allocation2 + $0x4] sm:$0xff]
      %v1493 = vld [vmem:[#allocation2 + $0x5] sm:$0xff]
      %v1494 = vld [vmem:[#allocation2 + $0x6] sm:$0xff]
      %v1495 = vld [vmem:[#allocation2 + $0x7] sm:$0xff]
      %v1496 = vld [vmem:[#allocation2 + $0x8] sm:$0xff]
      %v1497 = vld [vmem:[#allocation2 + $0x9] sm:$0xff]
      %v1498 = vld [vmem:[#allocation2 + $0xa] sm:$0xff]
      %v1499 = vld [vmem:[#allocation2 + $0xb] sm:$0xff]
      %v1500 = vld [vmem:[#allocation2 + $0xc] sm:$0xff]
      %1502 = vrot.lane.b32.xlu0 %v1493, 32
      %v1503 = vpop.permute.xlu0 %1502
      %1506 = vrot.lane.b32.xlu0 %v1494, 64
      %v1507 = vpop.permute.xlu0 %1506
      %1510 = vrot.lane.b32.xlu0 %v1495, 96
      %v1511 = vpop.permute.xlu0 %1510
      %1514 = vrot.lane.b32.xlu0 %v1497, 32
      %v1515 = vpop.permute.xlu0 %1514
      %1518 = vrot.lane.b32.xlu0 %v1498, 64
      %v1519 = vpop.permute.xlu0 %1518
      %1522 = vrot.lane.b32.xlu0 %v1499, 96
      %v1523 = vpop.permute.xlu0 %1522
      %v1525 = vsel %vm422, %v1492, %v1503
      %vm1526 = vcmask 523264
      %v1527 = vsel %vm1526, %v1525, %v1507
      %vm1528 = vcmask 785408
      %v1529 = vsel %vm1528, %v1527, %v1511
      %v1530 = vsel %vm422, %v1496, %v1515
      %v1531 = vsel %vm1526, %v1530, %v1519
      %v1532 = vsel %vm1528, %v1531, %v1523
      %v1533 = vpack.c.bf16 %v1529, %v1529
      %v1534 = vpack.c.bf16 %v1532, %v1532
      %v1535 = vpack.c.bf16 %v1500, %v1500
      %v1537 = vlaneseq
      %v1538 = vshrl.u32 %v1537, 7
      %v1539 = vsub.s32 0, %v1538
      %v1540 = vrot.slane %v1490, %v1539
      %v1578 = vunpack.c.l.b16 %v1454
      %v1579 = vunpack.c.l.b16 %v1455
      %v1580 = vunpack.c.l.b16 %v1456
      %v1581 = vunpack.c.l.b16 %v1457
      %v1582 = vunpack.c.l.b16 %v1458
      %v1583 = vunpack.c.l.b16 %v1459
      %v1584 = vunpack.c.l.b16 %v1460
      %v1585 = vunpack.c.l.b16 %v1461
      %v1586 = vunpack.c.l.b16 %v1462
      %v1587 = vunpack.c.l.b16 %v1463
      %v1588 = vunpack.c.l.b16 %v1464
      %v1589 = vunpack.c.l.b16 %v1465
      %v1590 = vunpack.c.l.b16 %v1466
      %v1591 = vunpack.c.l.b16 %v1467
      %v1592 = vunpack.c.l.b16 %v1468
      %v1593 = vunpack.c.l.b16 %v1469
      %v1594 = vunpack.c.l.b16 %v1470
      %v1595 = vunpack.c.l.b16 %v1471
      %v1596 = vunpack.c.l.b16 %v1472
      %v1597 = vunpack.c.l.b16 %v1473
      %v1598 = vunpack.c.l.b16 %v1474
      %v1599 = vunpack.c.l.b16 %v1475
      %v1600 = vunpack.c.l.b16 %v1476
      %v1601 = vunpack.c.l.b16 %v1477
      %v1602 = vunpack.c.l.b16 %v1478
      %v1603 = vunpack.c.l.b16 %v1479
      %v1604 = vunpack.c.l.b16 %v1480
      %v1605 = vunpack.c.l.b16 %v1481
      %v1606 = vunpack.c.l.b16 %v1482
      %v1607 = vunpack.c.l.b16 %v1483
      %v1608 = vunpack.c.l.b16 %v1484
      %v1609 = vunpack.c.l.b16 %v1485
      %v1610 = vunpack.c.l.b16 %v1486
      %v1611 = vunpack.c.l.b16 %v1487
      %v1612 = vunpack.c.l.b16 %v1488
      %v1613 = vunpack.c.l.b16 %v1489
      %v1614 = vpack.c.b16 %v1579, %v1578
      %v1615 = vpack.c.b16 %v1581, %v1580
      %v1616 = vpack.c.b16 %v1583, %v1582
      %v1617 = vpack.c.b16 %v1585, %v1584
      %v1618 = vpack.c.b16 %v1587, %v1586
      %v1619 = vpack.c.b16 %v1589, %v1588
      %v1620 = vpack.c.b16 %v1591, %v1590
      %v1621 = vpack.c.b16 %v1593, %v1592
      %v1622 = vpack.c.b16 %v1595, %v1594
      %v1623 = vpack.c.b16 %v1597, %v1596
      %v1624 = vpack.c.b16 %v1599, %v1598
      %v1625 = vpack.c.b16 %v1601, %v1600
      %v1626 = vpack.c.b16 %v1603, %v1602
      %v1627 = vpack.c.b16 %v1605, %v1604
      %v1628 = vpack.c.b16 %v1607, %v1606
      %v1629 = vpack.c.b16 %v1609, %v1608
      %v1630 = vpack.c.b16 %v1611, %v1610
      %v1631 = vpack.c.b16 %v1613, %v1612
      %v1651 = vsel %vm422, %v1535, 0
      %1653 = vmatprep.subr.bf16.mxu0 0
      %1654 = vmatpush1.bf16.msra.mxu0 %v1614
      %1655 = vmatprep.subr.bf16.mxu0 0
      %1656 = vmatpush1.bf16.msra.mxu0 %v1615
      %1657 = vmatprep.subr.bf16.mxu0 0
      %1658 = vmatpush1.bf16.msra.mxu0 %v1616
      %1659 = vmatprep.subr.bf16.mxu0 0
      %1660 = vmatpush1.bf16.msra.mxu0 %v1617
      %1661 = vmatprep.subr.bf16.mxu0 0
      %1662 = vmatpush1.bf16.msra.mxu0 %v1618
      %1663 = vmatprep.subr.bf16.mxu0 0
      %1664 = vmatpush1.bf16.msra.mxu0 %v1619
      %1665 = vmatprep.subr.bf16.mxu0 0
      %1666 = vmatpush1.bf16.msra.mxu0 %v1620
      %1667 = vmatprep.subr.bf16.mxu0 0
      %1668 = vmatpush1.bf16.msra.mxu0 %v1621
      %1669 = vmatprep.subr.bf16.mxu0 0
      %1670 = vmatpush1.bf16.msra.mxu0 %v1622
      %1671 = vmatprep.subr.bf16.mxu0 0
      %1672 = vmatpush1.bf16.msra.mxu0 %v1623
      %1673 = vmatprep.subr.bf16.mxu0 0
      %1674 = vmatpush1.bf16.msra.mxu0 %v1624
      %1675 = vmatprep.subr.bf16.mxu0 0
      %1676 = vmatpush1.bf16.msra.mxu0 %v1625
      %1677 = vmatprep.subr.bf16.mxu0 0
      %1678 = vmatpush1.bf16.msra.mxu0 %v1626
      %1679 = vmatprep.subr.bf16.mxu0 0
      %1680 = vmatpush1.bf16.msra.mxu0 %v1627
      %1681 = vmatprep.subr.bf16.mxu0 0
      %1682 = vmatpush1.bf16.msra.mxu0 %v1628
      %1683 = vmatprep.subr.bf16.mxu0 0
      %1684 = vmatpush1.bf16.msra.mxu0 %v1629
      %1685 = vmatprep.mubr.bf16.mxu0 %v1534
      %1686 = vmatmul.mubr.bf16.gmra.mrb[0].mxu0 %v1533
      %v1687 = vpop.f32.mrb[0].mxu0
      %v1688 = vadd.f32 %v1540, %v1687
      %v1689 = vpop.f32.mrb[0].mxu0
      %v1690 = vpop.f32.mrb[0].mxu0
      %v1691 = vpop.f32.mrb[0].mxu0
      %1692 = vdwg.mxu0
      %1693 = vmatprep.subr.bf16.mxu0 0
      %1694 = vmatpush1.bf16.msra.mxu0 %v1630
      %1695 = vmatprep.subr.bf16.mxu0 0
      %1696 = vmatpush1.bf16.msra.mxu0 %v1631
      %1697 = vmatprep.subr.bf16.mxu0 0
      %1698 = vmatpush1.bf16.msra.mxu0 0
      %1699 = vmatprep.subr.bf16.mxu0 0
      %1700 = vmatpush1.bf16.msra.mxu0 0
      %1701 = vmatprep.subr.bf16.mxu0 0
      %1702 = vmatpush1.bf16.msra.mxu0 0
      %1703 = vmatprep.subr.bf16.mxu0 0
      %1704 = vmatpush1.bf16.msra.mxu0 0
      %1705 = vmatprep.subr.bf16.mxu0 0
      %1706 = vmatpush1.bf16.msra.mxu0 0
      %1707 = vmatprep.subr.bf16.mxu0 0
      %1708 = vmatpush1.bf16.msra.mxu0 0
      %1709 = vmatprep.subr.bf16.mxu0 0
      %1710 = vmatpush1.bf16.msra.mxu0 0
      %1711 = vmatprep.subr.bf16.mxu0 0
      %1712 = vmatpush1.bf16.msra.mxu0 0
      %1713 = vmatprep.subr.bf16.mxu0 0
      %1714 = vmatpush1.bf16.msra.mxu0 0
      %1715 = vmatprep.subr.bf16.mxu0 0
      %1716 = vmatpush1.bf16.msra.mxu0 0
      %1717 = vmatprep.subr.bf16.mxu0 0
      %1718 = vmatpush1.bf16.msra.mxu0 0
      %1719 = vmatprep.subr.bf16.mxu0 0
      %1720 = vmatpush1.bf16.msra.mxu0 0
      %1721 = vmatprep.subr.bf16.mxu0 0
      %1722 = vmatpush1.bf16.msra.mxu0 0
      %1723 = vmatprep.subr.bf16.mxu0 0
      %1724 = vmatpush1.bf16.msra.mxu0 0
      %1725 = vmatprep.mubr.bf16.mxu0 0
      %1726 = vmatmul.mubr.bf16.gmra.mrb[0].mxu0 %v1651
      %v1727 = vpop.f32.mrb[0].mxu0
      %v1728 = vadd.f32 %v1688, %v1727
      %v1729 = vpop.f32.mrb[0].mxu0
      %v1730 = vpop.f32.mrb[0].mxu0
      %v1731 = vpop.f32.mrb[0].mxu0
      %1732 = vdwg.mxu0
      %v1733 = vmax.f32 %v1728, 0.0
      %v1734 = vld [vmem:[%s11] sm:$0xf]
      %v1735 = vld [vmem:[%s11 + $0x4] sm:$0xf]
      %v1736 = vld [vmem:[%s11 + $0x8] sm:$0xf]
      %v1737 = vld [vmem:[%s11 + $0xc] sm:$0xf]
      %v1738 = vld [vmem:[%s11 + $0x10] sm:$0xf]
      %v1739 = vld [vmem:[%s11 + $0x14] sm:$0xf]
      %v1740 = vld [vmem:[%s11 + $0x18] sm:$0xf]
      %v1741 = vld [vmem:[%s11 + $0x1c] sm:$0xf]
      %v1742 = vpack.c.bf16 %v1733, %v1733
      %v1743 = vlaneseq
      %v1744 = vshrl.u32 %v1743, 7
      %v1745 = vsub.s32 3, %v1744
      %v1746 = vrot.slane %v728, %v1745
      %v1755 = vunpack.c.l.b16 %v1734
      %v1756 = vunpack.c.l.b16 %v1735
      %v1757 = vunpack.c.l.b16 %v1736
      %v1758 = vunpack.c.l.b16 %v1737
      %v1759 = vunpack.c.l.b16 %v1738
      %v1760 = vunpack.c.l.b16 %v1739
      %v1761 = vunpack.c.l.b16 %v1740
      %v1762 = vunpack.c.l.b16 %v1741
      %v1763 = vpack.c.b16 %v1756, %v1755
      %v1764 = vpack.c.b16 %v1758, %v1757
      %v1765 = vpack.c.b16 %v1760, %v1759
      %v1766 = vpack.c.b16 %v1762, %v1761
      %v1772 = vsel %vm1526, %v1742, 0
      %1774 = vmatprep.subr.bf16.mxu0 0
      %1775 = vmatpush1.bf16.msra.mxu0 %v1763
      %1776 = vmatprep.subr.bf16.mxu0 0
      %1777 = vmatpush1.bf16.msra.mxu0 %v1764
      %1778 = vmatprep.subr.bf16.mxu0 0
      %1779 = vmatpush1.bf16.msra.mxu0 %v1765
      %1780 = vmatprep.subr.bf16.mxu0 0
      %1781 = vmatpush1.bf16.msra.mxu0 %v1766
      %1782 = vmatprep.subr.bf16.mxu0 0
      %1783 = vmatpush1.bf16.msra.mxu0 0
      %1784 = vmatprep.subr.bf16.mxu0 0
      %1785 = vmatpush1.bf16.msra.mxu0 0
      %1786 = vmatprep.subr.bf16.mxu0 0
      %1787 = vmatpush1.bf16.msra.mxu0 0
      %1788 = vmatprep.subr.bf16.mxu0 0
      %1789 = vmatpush1.bf16.msra.mxu0 0
      %1790 = vmatprep.subr.bf16.mxu0 0
      %1791 = vmatpush1.bf16.msra.mxu0 0
      %1792 = vmatprep.subr.bf16.mxu0 0
      %1793 = vmatpush1.bf16.msra.mxu0 0
      %1794 = vmatprep.subr.bf16.mxu0 0
      %1795 = vmatpush1.bf16.msra.mxu0 0
      %1796 = vmatprep.subr.bf16.mxu0 0
      %1797 = vmatpush1.bf16.msra.mxu0 0
      %1798 = vmatprep.subr.bf16.mxu0 0
      %1799 = vmatpush1.bf16.msra.mxu0 0
      %1800 = vmatprep.subr.bf16.mxu0 0
      %1801 = vmatpush1.bf16.msra.mxu0 0
      %1802 = vmatprep.subr.bf16.mxu0 0
      %1803 = vmatpush1.bf16.msra.mxu0 0
      %1804 = vmatprep.subr.bf16.mxu0 0
      %1805 = vmatpush1.bf16.msra.mxu0 0
      %1806 = vmatprep.mubr.bf16.mxu0 0
      %1807 = vmatmul.mubr.bf16.gmra.mrb[0].mxu0 %v1772
      %v1808 = vpop.f32.mrb[0].mxu0
      %v1809 = vadd.f32 %v1746, %v1808
      %v1810 = vpop.f32.mrb[0].mxu0
      %v1811 = vpop.f32.mrb[0].mxu0
      %v1812 = vpop.f32.mrb[0].mxu0
      %1813 = vdwg.mxu0
      %v1814 = vadd.f32 %v1809, %v1453
      %v1815 = vsel %vm422, %v1814, 0.0
      %1816 = vadd.xlane.f32.xlu0 %v1815
      %v1817 = vpop.xlane.xlu0 %1816
      %v1818 = vmul.f32 %v1817, %v1427
      %v1819 = vsub.f32 %v1814, %v1818
      %v1820 = vmul.f32 %v1819, %v1819
      %v1821 = vsel %vm422, %v1820, 0.0
      %1822 = vadd.xlane.f32.xlu0 %v1821
      %v1823 = vpop.xlane.xlu0 %1822
      %v1824 = vmul.f32 %v1823, %v1427
      %v1825 = vadd.f32 %v1824, 1e-05
      %v1826 = vrsqrt.pop %v1825
      %v1827 = vmul.f32 %v1819, %v1826
      %v1828 = vlaneseq
      %v1829 = vshrl.u32 %v1828, 7
      %v1830 = vsub.s32 4, %v1829
      %v1831 = vrot.slane %v728, %v1830
      %v1832 = vmul.f32 %v1827, %v1831
      %v1833 = vlaneseq
      %v1834 = vshrl.u32 %v1833, 7
      %v1835 = vsub.s32 5, %v1834
      %v1836 = vrot.slane %v728, %v1835
      %v1837 = vadd.f32 %v1832, %v1836
      %v1838 = vmul.f32 %v1837, %v1451
      %s1839 = scalar_lea.vmem %s12, 8
      %v1840 = vld [vmem:[%s1839] sm:$0x3f]
      %s1841 = scalar_lea.vmem %s6, 96
      %v1842 = vld [vmem:[%s1841] sm:$0xff]
      %v1843 = vld [vmem:[%s1841 + $0x8] sm:$0xff]
      %v1844 = vld [vmem:[%s1841 + $0x10] sm:$0xff]
      %v1845 = vld [vmem:[%s1841 + $0x18] sm:$0xff]
      %v1846 = vld [vmem:[%s1841 + $0x20] sm:$0xff]
      %v1847 = vld [vmem:[%s1841 + $0x28] sm:$0xff]
      %v1848 = vld [vmem:[%s1841 + $0x30] sm:$0xff]
      %v1849 = vld [vmem:[%s1841 + $0x38] sm:$0xff]
      %v1850 = vld [vmem:[%s1841 + $0x40] sm:$0xff]
      %v1851 = vld [vmem:[%s1841 + $0x48] sm:$0xff]
      %v1852 = vld [vmem:[%s1841 + $0x50] sm:$0xff]
      %v1853 = vld [vmem:[%s1841 + $0x58] sm:$0xff]
      %v1854 = vpack.c.bf16 %v1838, %v1838
      %s1855 = scalar_lea.vmem %s7, 6
      %v1856 = vld [vmem:[%s1855] sm:$0x3f]
      %v1858 = vlaneseq
      %v1859 = vshrl.u32 %v1858, 7
      %v1860 = vsub.s32 0, %v1859
      %v1861 = vrot.slane %v1856, %v1860
      %v1862 = vlaneseq
      %v1863 = vshrl.u32 %v1862, 7
      %v1864 = vsub.s32 1, %v1863
      %v1865 = vrot.slane %v1856, %v1864
      %v1866 = vlaneseq
      %v1867 = vshrl.u32 %v1866, 7
      %v1868 = vsub.s32 2, %v1867
      %v1869 = vrot.slane %v1856, %v1868
      %v1870 = vlaneseq
      %v1871 = vshrl.u32 %v1870, 7
      %v1872 = vsub.s32 3, %v1871
      %v1873 = vrot.slane %v1856, %v1872
      %v1874 = vlaneseq
      %v1875 = vshrl.u32 %v1874, 7
      %v1876 = vsub.s32 4, %v1875
      %v1877 = vrot.slane %v1856, %v1876
      %v1878 = vlaneseq
      %v1879 = vshrl.u32 %v1878, 7
      %v1880 = vsub.s32 5, %v1879
      %v1881 = vrot.slane %v1856, %v1880
      %v1900 = vunpack.c.l.b16 %v1842
      %v1901 = vunpack.c.h.b16 %v1842
      %v1902 = vunpack.c.l.b16 %v1843
      %v1903 = vunpack.c.h.b16 %v1843
      %v1904 = vunpack.c.l.b16 %v1844
      %v1905 = vunpack.c.h.b16 %v1844
      %v1906 = vunpack.c.l.b16 %v1845
      %v1907 = vunpack.c.h.b16 %v1845
      %v1908 = vunpack.c.l.b16 %v1846
      %v1909 = vunpack.c.h.b16 %v1846
      %v1910 = vunpack.c.l.b16 %v1847
      %v1911 = vunpack.c.h.b16 %v1847
      %v1912 = vunpack.c.l.b16 %v1848
      %v1913 = vunpack.c.h.b16 %v1848
      %v1914 = vunpack.c.l.b16 %v1849
      %v1915 = vunpack.c.h.b16 %v1849
      %v1916 = vunpack.c.l.b16 %v1850
      %v1917 = vunpack.c.h.b16 %v1850
      %v1918 = vunpack.c.l.b16 %v1851
      %v1919 = vunpack.c.h.b16 %v1851
      %v1920 = vunpack.c.l.b16 %v1852
      %v1921 = vunpack.c.h.b16 %v1852
      %v1922 = vunpack.c.l.b16 %v1853
      %v1923 = vunpack.c.h.b16 %v1853
      %v1924 = vpack.c.b16 %v1906, %v1900
      %v1925 = vpack.c.b16 %v1907, %v1901
      %v1926 = vpack.c.b16 %v1908, %v1902
      %v1927 = vpack.c.b16 %v1909, %v1903
      %v1928 = vpack.c.b16 %v1910, %v1904
      %v1929 = vpack.c.b16 %v1911, %v1905
      %v1930 = vpack.c.b16 %v1918, %v1912
      %v1931 = vpack.c.b16 %v1919, %v1913
      %v1932 = vpack.c.b16 %v1920, %v1914
      %v1933 = vpack.c.b16 %v1921, %v1915
      %v1934 = vpack.c.b16 %v1922, %v1916
      %v1935 = vpack.c.b16 %v1923, %v1917
      %v1949 = vsel %vm422, %v1854, 0
      %1951 = vmatprep.subr.bf16.mxu0 %v1925
      %1952 = vmatpush1.bf16.msra.mxu0 %v1924
      %1953 = vmatprep.subr.bf16.mxu0 %v1931
      %1954 = vmatpush1.bf16.msra.mxu0 %v1930
      %1955 = vmatprep.subr.bf16.mxu0 0
      %1956 = vmatpush1.bf16.msra.mxu0 0
      %1957 = vmatprep.subr.bf16.mxu0 0
      %1958 = vmatpush1.bf16.msra.mxu0 0
      %1959 = vmatprep.subr.bf16.mxu0 0
      %1960 = vmatpush1.bf16.msra.mxu0 0
      %1961 = vmatprep.subr.bf16.mxu0 0
      %1962 = vmatpush1.bf16.msra.mxu0 0
      %1963 = vmatprep.subr.bf16.mxu0 0
      %1964 = vmatpush1.bf16.msra.mxu0 0
      %1965 = vmatprep.subr.bf16.mxu0 0
      %1966 = vmatpush1.bf16.msra.mxu0 0
      %1967 = vmatprep.subr.bf16.mxu0 0
      %1968 = vmatpush1.bf16.msra.mxu0 0
      %1969 = vmatprep.subr.bf16.mxu0 0
      %1970 = vmatpush1.bf16.msra.mxu0 0
      %1971 = vmatprep.subr.bf16.mxu0 0
      %1972 = vmatpush1.bf16.msra.mxu0 0
      %1973 = vmatprep.subr.bf16.mxu0 0
      %1974 = vmatpush1.bf16.msra.mxu0 0
      %1975 = vmatprep.subr.bf16.mxu0 0
      %1976 = vmatpush1.bf16.msra.mxu0 0
      %1977 = vmatprep.subr.bf16.mxu0 0
      %1978 = vmatpush1.bf16.msra.mxu0 0
      %1979 = vmatprep.subr.bf16.mxu0 0
      %1980 = vmatpush1.bf16.msra.mxu0 0
      %1981 = vmatprep.subr.bf16.mxu0 0
      %1982 = vmatpush1.bf16.msra.mxu0 0
      %1983 = vmatprep.mubr.bf16.mxu0 0
      %1984 = vmatmul.mubr.bf16.gmra.mrb[0].mxu0 %v1949
      %v1985 = vpop.f32.mrb[0].mxu0
      %v1986 = vadd.f32 %v1861, %v1985
      %v1987 = vpop.f32.mrb[0].mxu0
      %v1988 = vadd.f32 %v1865, %v1987
      %v1989 = vpop.f32.mrb[0].mxu0
      %v1990 = vpop.f32.mrb[0].mxu0
      %1991 = vdwg.mxu0
      %1992 = vmatprep.subr.bf16.mxu0 %v1927
      %1993 = vmatpush1.bf16.msra.mxu0 %v1926
      %1994 = vmatprep.subr.bf16.mxu0 %v1933
      %1995 = vmatpush1.bf16.msra.mxu0 %v1932
      %1996 = vmatprep.subr.bf16.mxu0 0
      %1997 = vmatpush1.bf16.msra.mxu0 0
      %1998 = vmatprep.subr.bf16.mxu0 0
      %1999 = vmatpush1.bf16.msra.mxu0 0
      %2000 = vmatprep.subr.bf16.mxu0 0
      %2001 = vmatpush1.bf16.msra.mxu0 0
      %2002 = vmatprep.subr.bf16.mxu0 0
      %2003 = vmatpush1.bf16.msra.mxu0 0
      %2004 = vmatprep.subr.bf16.mxu0 0
      %2005 = vmatpush1.bf16.msra.mxu0 0
      %2006 = vmatprep.subr.bf16.mxu0 0
      %2007 = vmatpush1.bf16.msra.mxu0 0
      %2008 = vmatprep.subr.bf16.mxu0 0
      %2009 = vmatpush1.bf16.msra.mxu0 0
      %2010 = vmatprep.subr.bf16.mxu0 0
      %2011 = vmatpush1.bf16.msra.mxu0 0
      %2012 = vmatprep.subr.bf16.mxu0 0
      %2013 = vmatpush1.bf16.msra.mxu0 0
      %2014 = vmatprep.subr.bf16.mxu0 0
      %2015 = vmatpush1.bf16.msra.mxu0 0
      %2016 = vmatprep.subr.bf16.mxu0 0
      %2017 = vmatpush1.bf16.msra.mxu0 0
      %2018 = vmatprep.subr.bf16.mxu0 0
      %2019 = vmatpush1.bf16.msra.mxu0 0
      %2020 = vmatprep.subr.bf16.mxu0 0
      %2021 = vmatpush1.bf16.msra.mxu0 0
      %2022 = vmatprep.subr.bf16.mxu0 0
      %2023 = vmatpush1.bf16.msra.mxu0 0
      %2024 = vmatprep.mubr.bf16.mxu0 0
      %2025 = vmatmul.mubr.bf16.gmra.mrb[0].mxu0 %v1949
      %v2026 = vpop.f32.mrb[0].mxu0
      %v2027 = vadd.f32 %v1869, %v2026
      %v2028 = vpop.f32.mrb[0].mxu0
      %v2029 = vadd.f32 %v1873, %v2028
      %v2030 = vpop.f32.mrb[0].mxu0
      %v2031 = vpop.f32.mrb[0].mxu0
      %2032 = vdwg.mxu0
      %2033 = vmatprep.subr.bf16.mxu0 %v1929
      %2034 = vmatpush1.bf16.msra.mxu0 %v1928
      %2035 = vmatprep.subr.bf16.mxu0 %v1935
      %2036 = vmatpush1.bf16.msra.mxu0 %v1934
      %2037 = vmatprep.subr.bf16.mxu0 0
      %2038 = vmatpush1.bf16.msra.mxu0 0
      %2039 = vmatprep.subr.bf16.mxu0 0
      %2040 = vmatpush1.bf16.msra.mxu0 0
      %2041 = vmatprep.subr.bf16.mxu0 0
      %2042 = vmatpush1.bf16.msra.mxu0 0
      %2043 = vmatprep.subr.bf16.mxu0 0
      %2044 = vmatpush1.bf16.msra.mxu0 0
      %2045 = vmatprep.subr.bf16.mxu0 0
      %2046 = vmatpush1.bf16.msra.mxu0 0
      %2047 = vmatprep.subr.bf16.mxu0 0
      %2048 = vmatpush1.bf16.msra.mxu0 0
      %2049 = vmatprep.subr.bf16.mxu0 0
      %2050 = vmatpush1.bf16.msra.mxu0 0
      %2051 = vmatprep.subr.bf16.mxu0 0
      %2052 = vmatpush1.bf16.msra.mxu0 0
      %2053 = vmatprep.subr.bf16.mxu0 0
      %2054 = vmatpush1.bf16.msra.mxu0 0
      %2055 = vmatprep.subr.bf16.mxu0 0
      %2056 = vmatpush1.bf16.msra.mxu0 0
      %2057 = vmatprep.subr.bf16.mxu0 0
      %2058 = vmatpush1.bf16.msra.mxu0 0
      %2059 = vmatprep.subr.bf16.mxu0 0
      %2060 = vmatpush1.bf16.msra.mxu0 0
      %2061 = vmatprep.subr.bf16.mxu0 0
      %2062 = vmatpush1.bf16.msra.mxu0 0
      %2063 = vmatprep.subr.bf16.mxu0 0
      %2064 = vmatpush1.bf16.msra.mxu0 0
      %2065 = vmatprep.mubr.bf16.mxu0 0
      %2066 = vmatmul.mubr.bf16.gmra.mrb[0].mxu0 %v1949
      %v2067 = vpop.f32.mrb[0].mxu0
      %v2068 = vadd.f32 %v1877, %v2067
      %v2069 = vpop.f32.mrb[0].mxu0
      %v2070 = vadd.f32 %v1881, %v2069
      %v2071 = vpop.f32.mrb[0].mxu0
      %v2072 = vpop.f32.mrb[0].mxu0
      %2073 = vdwg.mxu0
      %2074 = vxpose.xlu0.b32.start [1/16] %v2027, 128
      %2075 = vxpose.xlu0.b32.cont [2/16] 0.0, 128
      %2076 = vxpose.xlu0.b32.cont [3/16] 0.0, 128
      %2077 = vxpose.xlu0.b32.cont [4/16] 0.0, 128
      %2078 = vxpose.xlu0.b32.cont [5/16] 0.0, 128
      %2079 = vxpose.xlu0.b32.cont [6/16] 0.0, 128
      %2080 = vxpose.xlu0.b32.cont [7/16] 0.0, 128
      %2081 = vxpose.xlu0.b32.cont [8/16] 0.0, 128
      %2082 = vxpose.xlu0.b32.cont [9/16] 0.0, 128
      %2083 = vxpose.xlu0.b32.cont [10/16] 0.0, 128
      %2084 = vxpose.xlu0.b32.cont [11/16] 0.0, 128
      %2085 = vxpose.xlu0.b32.cont [12/16] 0.0, 128
      %2086 = vxpose.xlu0.b32.cont [13/16] 0.0, 128
      %2087 = vxpose.xlu0.b32.cont [14/16] 0.0, 128
      %2088 = vxpose.xlu0.b32.cont [15/16] 0.0, 128
      %2089 = vxpose.xlu0.b32.end [16/16] 0.0, 128
      %v2090 = vpop.trf.xlu0
      %v2091 = vpop.trf.xlu0
      %v2092 = vpop.trf.xlu0
      %v2093 = vpop.trf.xlu0
      %v2094 = vpop.trf.xlu0
      %v2095 = vpop.trf.xlu0
      %v2096 = vpop.trf.xlu0
      %v2097 = vpop.trf.xlu0
      %v2098 = vpop.trf.xlu0
      %v2099 = vpop.trf.xlu0
      %v2100 = vpop.trf.xlu0
      %v2101 = vpop.trf.xlu0
      %v2102 = vpop.trf.xlu0
      %v2103 = vpop.trf.xlu0
      %v2104 = vpop.trf.xlu0
      %v2105 = vpop.trf.xlu0
      %v2106 = vpack.c.bf16 %v1986, %v1986
      %v2107 = vpack.c.bf16 %v2091, %v2090
      %v2108 = vpack.c.bf16 %v2093, %v2092
      %v2109 = vpack.c.bf16 %v2095, %v2094
      %v2110 = vpack.c.bf16 %v2097, %v2096
      %v2111 = vpack.c.bf16 %v2099, %v2098
      %v2112 = vpack.c.bf16 %v2101, %v2100
      %v2113 = vpack.c.bf16 %v2103, %v2102
      %v2114 = vpack.c.bf16 %v2105, %v2104
      %2115 = vmatprep.subr.bf16.mxu0 0
      %2116 = vmatpush1.bf16.msra.mxu0 %v2107
      %2117 = vmatprep.subr.bf16.mxu0 0
      %2118 = vmatpush1.bf16.msra.mxu0 %v2108
      %2119 = vmatprep.subr.bf16.mxu0 0
      %2120 = vmatpush1.bf16.msra.mxu0 %v2109
      %2121 = vmatprep.subr.bf16.mxu0 0
      %2122 = vmatpush1.bf16.msra.mxu0 %v2110
      %2123 = vmatprep.subr.bf16.mxu0 0
      %2124 = vmatpush1.bf16.msra.mxu0 %v2111
      %2125 = vmatprep.subr.bf16.mxu0 0
      %2126 = vmatpush1.bf16.msra.mxu0 %v2112
      %2127 = vmatprep.subr.bf16.mxu0 0
      %2128 = vmatpush1.bf16.msra.mxu0 %v2113
      %2129 = vmatprep.subr.bf16.mxu0 0
      %2130 = vmatpush1.bf16.msra.mxu0 %v2114
      %2131 = vmatprep.subr.bf16.mxu0 0
      %2132 = vmatpush1.bf16.msra.mxu0 0
      %2133 = vmatprep.subr.bf16.mxu0 0
      %2134 = vmatpush1.bf16.msra.mxu0 0
      %2135 = vmatprep.subr.bf16.mxu0 0
      %2136 = vmatpush1.bf16.msra.mxu0 0
      %2137 = vmatprep.subr.bf16.mxu0 0
      %2138 = vmatpush1.bf16.msra.mxu0 0
      %2139 = vmatprep.subr.bf16.mxu0 0
      %2140 = vmatpush1.bf16.msra.mxu0 0
      %2141 = vmatprep.subr.bf16.mxu0 0
      %2142 = vmatpush1.bf16.msra.mxu0 0
      %2143 = vmatprep.subr.bf16.mxu0 0
      %2144 = vmatpush1.bf16.msra.mxu0 0
      %2145 = vmatprep.subr.bf16.mxu0 0
      %2146 = vmatpush1.bf16.msra.mxu0 0
      %2147 = vmatprep.mubr.bf16.mxu0 0
      %2148 = vmatmul.mubr.bf16.gmra.mrb[0].mxu0 %v2106
      %v2149 = vpop.f32.mrb[0].mxu0
      %v2150 = vadd.f32 0.0, %v2149
      %v2151 = vpop.f32.mrb[0].mxu0
      %v2152 = vpop.f32.mrb[0].mxu0
      %v2153 = vpop.f32.mrb[0].mxu0
      %2154 = vdwg.mxu0
      %v2155 = vmul.f32 %v2150, 0.25
      %v2156 = vadd.f32 %v2155, %v1045
      %v2157 = vsel %vm1047, %v2156, -inf
      %2158 = vmax.xlane.f32.xlu0 %v2157
      %v2159 = vpop.xlane.xlu0 %2158
      %v2160 = vsub.f32 %v2156, %v2159
      %v2161 = vmul.f32 %v2160, 1.442695
      %v2162 = vpow.pop %v2161
      %v2163 = vsel %vm1047, %v2162, 0.0
      %2164 = vadd.xlane.f32.xlu0 %v2163
      %v2165 = vpop.xlane.xlu0 %2164
      %v2166 = vrcp.pop %v2165
      %v2167 = vmul.f32 %v2162, %v2166
      %v2168 = vpack.c.bf16 %v2167, %v2167
      %v2169 = vpack.c.bf16 %v2068, %v2068
      %v2171 = vsel %vm1047, %v2168, 0
      %v2174 = vsel %vm535, %v2169, 0
      %2176 = vmatprep.subr.bf16.mxu0 0
      %2177 = vmatpush1.bf16.msra.mxu0 %v2174
      %2178 = vmatprep.subr.bf16.mxu0 0
      %2179 = vmatpush1.bf16.msra.mxu0 0
      %2180 = vmatprep.subr.bf16.mxu0 0
      %2181 = vmatpush1.bf16.msra.mxu0 0
      %2182 = vmatprep.subr.bf16.mxu0 0
      %2183 = vmatpush1.bf16.msra.mxu0 0
      %2184 = vmatprep.subr.bf16.mxu0 0
      %2185 = vmatpush1.bf16.msra.mxu0 0
      %2186 = vmatprep.subr.bf16.mxu0 0
      %2187 = vmatpush1.bf16.msra.mxu0 0
      %2188 = vmatprep.subr.bf16.mxu0 0
      %2189 = vmatpush1.bf16.msra.mxu0 0
      %2190 = vmatprep.subr.bf16.mxu0 0
      %2191 = vmatpush1.bf16.msra.mxu0 0
      %2192 = vmatprep.subr.bf16.mxu0 0
      %2193 = vmatpush1.bf16.msra.mxu0 0
      %2194 = vmatprep.subr.bf16.mxu0 0
      %2195 = vmatpush1.bf16.msra.mxu0 0
      %2196 = vmatprep.subr.bf16.mxu0 0
      %2197 = vmatpush1.bf16.msra.mxu0 0
      %2198 = vmatprep.subr.bf16.mxu0 0
      %2199 = vmatpush1.bf16.msra.mxu0 0
      %2200 = vmatprep.subr.bf16.mxu0 0
      %2201 = vmatpush1.bf16.msra.mxu0 0
      %2202 = vmatprep.subr.bf16.mxu0 0
      %2203 = vmatpush1.bf16.msra.mxu0 0
      %2204 = vmatprep.subr.bf16.mxu0 0
      %2205 = vmatpush1.bf16.msra.mxu0 0
      %2206 = vmatprep.subr.bf16.mxu0 0
      %2207 = vmatpush1.bf16.msra.mxu0 0
      %2208 = vmatprep.mubr.bf16.mxu0 0
      %2209 = vmatmul.mubr.bf16.gmra.mrb[0].mxu0 %v2171
      %v2210 = vpop.f32.mrb[0].mxu0
      %v2211 = vadd.f32 0.0, %v2210
      %v2212 = vpop.f32.mrb[0].mxu0
      %v2213 = vpop.f32.mrb[0].mxu0
      %v2214 = vpop.f32.mrb[0].mxu0
      %2215 = vdwg.mxu0
      %2216 = vxpose.xlu0.b32.start [1/16] %v2029, 128
      %2217 = vxpose.xlu0.b32.cont [2/16] 0.0, 128
      %2218 = vxpose.xlu0.b32.cont [3/16] 0.0, 128
      %2219 = vxpose.xlu0.b32.cont [4/16] 0.0, 128
      %2220 = vxpose.xlu0.b32.cont [5/16] 0.0, 128
      %2221 = vxpose.xlu0.b32.cont [6/16] 0.0, 128
      %2222 = vxpose.xlu0.b32.cont [7/16] 0.0, 128
      %2223 = vxpose.xlu0.b32.cont [8/16] 0.0, 128
      %2224 = vxpose.xlu0.b32.cont [9/16] 0.0, 128
      %2225 = vxpose.xlu0.b32.cont [10/16] 0.0, 128
      %2226 = vxpose.xlu0.b32.cont [11/16] 0.0, 128
      %2227 = vxpose.xlu0.b32.cont [12/16] 0.0, 128
      %2228 = vxpose.xlu0.b32.cont [13/16] 0.0, 128
      %2229 = vxpose.xlu0.b32.cont [14/16] 0.0, 128
      %2230 = vxpose.xlu0.b32.cont [15/16] 0.0, 128
      %2231 = vxpose.xlu0.b32.end [16/16] 0.0, 128
      %v2232 = vpop.trf.xlu0
      %v2233 = vpop.trf.xlu0
      %v2234 = vpop.trf.xlu0
      %v2235 = vpop.trf.xlu0
      %v2236 = vpop.trf.xlu0
      %v2237 = vpop.trf.xlu0
      %v2238 = vpop.trf.xlu0
      %v2239 = vpop.trf.xlu0
      %v2240 = vpop.trf.xlu0
      %v2241 = vpop.trf.xlu0
      %v2242 = vpop.trf.xlu0
      %v2243 = vpop.trf.xlu0
      %v2244 = vpop.trf.xlu0
      %v2245 = vpop.trf.xlu0
      %v2246 = vpop.trf.xlu0
      %v2247 = vpop.trf.xlu0
      %v2248 = vpack.c.bf16 %v1988, %v1988
      %v2249 = vpack.c.bf16 %v2233, %v2232
      %v2250 = vpack.c.bf16 %v2235, %v2234
      %v2251 = vpack.c.bf16 %v2237, %v2236
      %v2252 = vpack.c.bf16 %v2239, %v2238
      %v2253 = vpack.c.bf16 %v2241, %v2240
      %v2254 = vpack.c.bf16 %v2243, %v2242
      %v2255 = vpack.c.bf16 %v2245, %v2244
      %v2256 = vpack.c.bf16 %v2247, %v2246
      %2257 = vmatprep.subr.bf16.mxu0 0
      %2258 = vmatpush1.bf16.msra.mxu0 %v2249
      %2259 = vmatprep.subr.bf16.mxu0 0
      %2260 = vmatpush1.bf16.msra.mxu0 %v2250
      %2261 = vmatprep.subr.bf16.mxu0 0
      %2262 = vmatpush1.bf16.msra.mxu0 %v2251
      %2263 = vmatprep.subr.bf16.mxu0 0
      %2264 = vmatpush1.bf16.msra.mxu0 %v2252
      %2265 = vmatprep.subr.bf16.mxu0 0
      %2266 = vmatpush1.bf16.msra.mxu0 %v2253
      %2267 = vmatprep.subr.bf16.mxu0 0
      %2268 = vmatpush1.bf16.msra.mxu0 %v2254
      %2269 = vmatprep.subr.bf16.mxu0 0
      %2270 = vmatpush1.bf16.msra.mxu0 %v2255
      %2271 = vmatprep.subr.bf16.mxu0 0
      %2272 = vmatpush1.bf16.msra.mxu0 %v2256
      %2273 = vmatprep.subr.bf16.mxu0 0
      %2274 = vmatpush1.bf16.msra.mxu0 0
      %2275 = vmatprep.subr.bf16.mxu0 0
      %2276 = vmatpush1.bf16.msra.mxu0 0
      %2277 = vmatprep.subr.bf16.mxu0 0
      %2278 = vmatpush1.bf16.msra.mxu0 0
      %2279 = vmatprep.subr.bf16.mxu0 0
      %2280 = vmatpush1.bf16.msra.mxu0 0
      %2281 = vmatprep.subr.bf16.mxu0 0
      %2282 = vmatpush1.bf16.msra.mxu0 0
      %2283 = vmatprep.subr.bf16.mxu0 0
      %2284 = vmatpush1.bf16.msra.mxu0 0
      %2285 = vmatprep.subr.bf16.mxu0 0
      %2286 = vmatpush1.bf16.msra.mxu0 0
      %2287 = vmatprep.subr.bf16.mxu0 0
      %2288 = vmatpush1.bf16.msra.mxu0 0
      %2289 = vmatprep.mubr.bf16.mxu0 0
      %2290 = vmatmul.mubr.bf16.gmra.mrb[0].mxu0 %v2248
      %v2291 = vpop.f32.mrb[0].mxu0
      %v2292 = vadd.f32 0.0, %v2291
      %v2293 = vpop.f32.mrb[0].mxu0
      %v2294 = vpop.f32.mrb[0].mxu0
      %v2295 = vpop.f32.mrb[0].mxu0
      %2296 = vdwg.mxu0
      %v2297 = vmul.f32 %v2292, 0.25
      %v2298 = vadd.f32 %v2297, %v1045
      %v2299 = vsel %vm1047, %v2298, -inf
      %2300 = vmax.xlane.f32.xlu0 %v2299
      %v2301 = vpop.xlane.xlu0 %2300
      %v2302 = vsub.f32 %v2298, %v2301
      %v2303 = vmul.f32 %v2302, 1.442695
      %v2304 = vpow.pop %v2303
      %v2305 = vsel %vm1047, %v2304, 0.0
      %2306 = vadd.xlane.f32.xlu0 %v2305
      %v2307 = vpop.xlane.xlu0 %2306
      %v2308 = vrcp.pop %v2307
      %v2309 = vmul.f32 %v2304, %v2308
      %v2310 = vpack.c.bf16 %v2309, %v2309
      %v2311 = vpack.c.bf16 %v2070, %v2070
      %v2313 = vsel %vm1047, %v2310, 0
      %v2316 = vsel %vm535, %v2311, 0
      %2318 = vmatprep.subr.bf16.mxu0 0
      %2319 = vmatpush1.bf16.msra.mxu0 %v2316
      %2320 = vmatprep.subr.bf16.mxu0 0
      %2321 = vmatpush1.bf16.msra.mxu0 0
      %2322 = vmatprep.subr.bf16.mxu0 0
      %2323 = vmatpush1.bf16.msra.mxu0 0
      %2324 = vmatprep.subr.bf16.mxu0 0
      %2325 = vmatpush1.bf16.msra.mxu0 0
      %2326 = vmatprep.subr.bf16.mxu0 0
      %2327 = vmatpush1.bf16.msra.mxu0 0
      %2328 = vmatprep.subr.bf16.mxu0 0
      %2329 = vmatpush1.bf16.msra.mxu0 0
      %2330 = vmatprep.subr.bf16.mxu0 0
      %2331 = vmatpush1.bf16.msra.mxu0 0
      %2332 = vmatprep.subr.bf16.mxu0 0
      %2333 = vmatpush1.bf16.msra.mxu0 0
      %2334 = vmatprep.subr.bf16.mxu0 0
      %2335 = vmatpush1.bf16.msra.mxu0 0
      %2336 = vmatprep.subr.bf16.mxu0 0
      %2337 = vmatpush1.bf16.msra.mxu0 0
      %2338 = vmatprep.subr.bf16.mxu0 0
      %2339 = vmatpush1.bf16.msra.mxu0 0
      %2340 = vmatprep.subr.bf16.mxu0 0
      %2341 = vmatpush1.bf16.msra.mxu0 0
      %2342 = vmatprep.subr.bf16.mxu0 0
      %2343 = vmatpush1.bf16.msra.mxu0 0
      %2344 = vmatprep.subr.bf16.mxu0 0
      %2345 = vmatpush1.bf16.msra.mxu0 0
      %2346 = vmatprep.subr.bf16.mxu0 0
      %2347 = vmatpush1.bf16.msra.mxu0 0
      %2348 = vmatprep.subr.bf16.mxu0 0
      %2349 = vmatpush1.bf16.msra.mxu0 0
      %2350 = vmatprep.mubr.bf16.mxu0 0
      %2351 = vmatmul.mubr.bf16.gmra.mrb[0].mxu0 %v2313
      %v2352 = vpop.f32.mrb[0].mxu0
      %v2353 = vadd.f32 0.0, %v2352
      %v2354 = vpop.f32.mrb[0].mxu0
      %v2355 = vpop.f32.mrb[0].mxu0
      %v2356 = vpop.f32.mrb[0].mxu0
      %2357 = vdwg.mxu0
      %s2358 = scalar_lea.vmem %s8, 128
      %v2359 = vld [vmem:[%s2358] sm:$0xf]
      %v2360 = vld [vmem:[%s2358 + $0x4] sm:$0xf]
      %v2361 = vld [vmem:[%s2358 + $0x8] sm:$0xf]
      %v2362 = vld [vmem:[%s2358 + $0xc] sm:$0xf]
      %v2363 = vld [vmem:[%s2358 + $0x10] sm:$0xf]
      %v2364 = vld [vmem:[%s2358 + $0x14] sm:$0xf]
      %v2365 = vld [vmem:[%s2358 + $0x18] sm:$0xf]
      %v2366 = vld [vmem:[%s2358 + $0x1c] sm:$0xf]
      %v2367 = vld [vmem:[%s2358 + $0x20] sm:$0xf]
      %v2368 = vld [vmem:[%s2358 + $0x24] sm:$0xf]
      %v2369 = vld [vmem:[%s2358 + $0x28] sm:$0xf]
      %v2370 = vld [vmem:[%s2358 + $0x2c] sm:$0xf]
      %v2371 = vld [vmem:[%s2358 + $0x30] sm:$0xf]
      %v2372 = vld [vmem:[%s2358 + $0x34] sm:$0xf]
      %v2373 = vld [vmem:[%s2358 + $0x38] sm:$0xf]
      %v2374 = vld [vmem:[%s2358 + $0x3c] sm:$0xf]
      %v2375 = vld [vmem:[%s2358 + $0x40] sm:$0xf]
      %v2376 = vld [vmem:[%s2358 + $0x44] sm:$0xf]
      %v2377 = vld [vmem:[%s2358 + $0x48] sm:$0xf]
      %v2378 = vld [vmem:[%s2358 + $0x4c] sm:$0xf]
      %v2379 = vld [vmem:[%s2358 + $0x50] sm:$0xf]
      %v2380 = vld [vmem:[%s2358 + $0x54] sm:$0xf]
      %v2381 = vld [vmem:[%s2358 + $0x58] sm:$0xf]
      %v2382 = vld [vmem:[%s2358 + $0x5c] sm:$0xf]
      %v2383 = vld [vmem:[%s2358 + $0x60] sm:$0xf]
      %v2384 = vld [vmem:[%s2358 + $0x64] sm:$0xf]
      %v2385 = vld [vmem:[%s2358 + $0x68] sm:$0xf]
      %v2386 = vld [vmem:[%s2358 + $0x6c] sm:$0xf]
      %v2387 = vld [vmem:[%s2358 + $0x70] sm:$0xf]
      %v2388 = vld [vmem:[%s2358 + $0x74] sm:$0xf]
      %v2389 = vld [vmem:[%s2358 + $0x78] sm:$0xf]
      %v2390 = vld [vmem:[%s2358 + $0x7c] sm:$0xf]
      %v2391 = vpack.c.bf16 %v2211, %v2211
      %v2392 = vpack.c.bf16 %v2353, %v2353
      %v2393 = vlaneseq
      %v2394 = vshrl.u32 %v2393, 7
      %v2395 = vsub.s32 0, %v2394
      %v2396 = vrot.slane %v1840, %v2395
      %v2429 = vunpack.c.l.b16 %v2359
      %v2430 = vunpack.c.l.b16 %v2360
      %v2431 = vunpack.c.l.b16 %v2361
      %v2432 = vunpack.c.l.b16 %v2362
      %v2433 = vunpack.c.l.b16 %v2363
      %v2434 = vunpack.c.l.b16 %v2364
      %v2435 = vunpack.c.l.b16 %v2365
      %v2436 = vunpack.c.l.b16 %v2366
      %v2437 = vunpack.c.l.b16 %v2367
      %v2438 = vunpack.c.l.b16 %v2368
      %v2439 = vunpack.c.l.b16 %v2369
      %v2440 = vunpack.c.l.b16 %v2370
      %v2441 = vunpack.c.l.b16 %v2371
      %v2442 = vunpack.c.l.b16 %v2372
      %v2443 = vunpack.c.l.b16 %v2373
      %v2444 = vunpack.c.l.b16 %v2374
      %v2445 = vunpack.c.l.b16 %v2375
      %v2446 = vunpack.c.l.b16 %v2376
      %v2447 = vunpack.c.l.b16 %v2377
      %v2448 = vunpack.c.l.b16 %v2378
      %v2449 = vunpack.c.l.b16 %v2379
      %v2450 = vunpack.c.l.b16 %v2380
      %v2451 = vunpack.c.l.b16 %v2381
      %v2452 = vunpack.c.l.b16 %v2382
      %v2453 = vunpack.c.l.b16 %v2383
      %v2454 = vunpack.c.l.b16 %v2384
      %v2455 = vunpack.c.l.b16 %v2385
      %v2456 = vunpack.c.l.b16 %v2386
      %v2457 = vunpack.c.l.b16 %v2387
      %v2458 = vunpack.c.l.b16 %v2388
      %v2459 = vunpack.c.l.b16 %v2389
      %v2460 = vunpack.c.l.b16 %v2390
      %v2461 = vpack.c.b16 %v2430, %v2429
      %v2462 = vpack.c.b16 %v2432, %v2431
      %v2463 = vpack.c.b16 %v2434, %v2433
      %v2464 = vpack.c.b16 %v2436, %v2435
      %v2465 = vpack.c.b16 %v2438, %v2437
      %v2466 = vpack.c.b16 %v2440, %v2439
      %v2467 = vpack.c.b16 %v2442, %v2441
      %v2468 = vpack.c.b16 %v2444, %v2443
      %v2469 = vpack.c.b16 %v2446, %v2445
      %v2470 = vpack.c.b16 %v2448, %v2447
      %v2471 = vpack.c.b16 %v2450, %v2449
      %v2472 = vpack.c.b16 %v2452, %v2451
      %v2473 = vpack.c.b16 %v2454, %v2453
      %v2474 = vpack.c.b16 %v2456, %v2455
      %v2475 = vpack.c.b16 %v2458, %v2457
      %v2476 = vpack.c.b16 %v2460, %v2459
      %2493 = vmatprep.subr.bf16.mxu0 0
      %2494 = vmatpush1.bf16.msra.mxu0 %v2461
      %2495 = vmatprep.subr.bf16.mxu0 0
      %2496 = vmatpush1.bf16.msra.mxu0 %v2462
      %2497 = vmatprep.subr.bf16.mxu0 0
      %2498 = vmatpush1.bf16.msra.mxu0 %v2463
      %2499 = vmatprep.subr.bf16.mxu0 0
      %2500 = vmatpush1.bf16.msra.mxu0 %v2464
      %2501 = vmatprep.subr.bf16.mxu0 0
      %2502 = vmatpush1.bf16.msra.mxu0 %v2465
      %2503 = vmatprep.subr.bf16.mxu0 0
      %2504 = vmatpush1.bf16.msra.mxu0 %v2466
      %2505 = vmatprep.subr.bf16.mxu0 0
      %2506 = vmatpush1.bf16.msra.mxu0 %v2467
      %2507 = vmatprep.subr.bf16.mxu0 0
      %2508 = vmatpush1.bf16.msra.mxu0 %v2468
      %2509 = vmatprep.subr.bf16.mxu0 0
      %2510 = vmatpush1.bf16.msra.mxu0 %v2469
      %2511 = vmatprep.subr.bf16.mxu0 0
      %2512 = vmatpush1.bf16.msra.mxu0 %v2470
      %2513 = vmatprep.subr.bf16.mxu0 0
      %2514 = vmatpush1.bf16.msra.mxu0 %v2471
      %2515 = vmatprep.subr.bf16.mxu0 0
      %2516 = vmatpush1.bf16.msra.mxu0 %v2472
      %2517 = vmatprep.subr.bf16.mxu0 0
      %2518 = vmatpush1.bf16.msra.mxu0 %v2473
      %2519 = vmatprep.subr.bf16.mxu0 0
      %2520 = vmatpush1.bf16.msra.mxu0 %v2474
      %2521 = vmatprep.subr.bf16.mxu0 0
      %2522 = vmatpush1.bf16.msra.mxu0 %v2475
      %2523 = vmatprep.subr.bf16.mxu0 0
      %2524 = vmatpush1.bf16.msra.mxu0 %v2476
      %2525 = vmatprep.mubr.bf16.mxu0 %v2392
      %2526 = vmatmul.mubr.bf16.gmra.mrb[0].mxu0 %v2391
      %v2527 = vpop.f32.mrb[0].mxu0
      %v2528 = vadd.f32 %v2396, %v2527
      %v2529 = vpop.f32.mrb[0].mxu0
      %v2530 = vpop.f32.mrb[0].mxu0
      %v2531 = vpop.f32.mrb[0].mxu0
      %2532 = vdwg.mxu0
      %v2533 = vadd.f32 %v2528, %v1838
      %v2534 = vsel %vm422, %v2533, 0.0
      %2535 = vadd.xlane.f32.xlu0 %v2534
      %v2536 = vpop.xlane.xlu0 %2535
      %v2537 = vmul.f32 %v2536, %v1427
      %v2538 = vsub.f32 %v2533, %v2537
      %v2539 = vmul.f32 %v2538, %v2538
      %v2540 = vsel %vm422, %v2539, 0.0
      %2541 = vadd.xlane.f32.xlu0 %v2540
      %v2542 = vpop.xlane.xlu0 %2541
      %v2543 = vmul.f32 %v2542, %v1427
      %v2544 = vadd.f32 %v2543, 1e-05
      %v2545 = vrsqrt.pop %v2544
      %v2546 = vmul.f32 %v2538, %v2545
      %v2547 = vlaneseq
      %v2548 = vshrl.u32 %v2547, 7
      %v2549 = vsub.s32 1, %v2548
      %v2550 = vrot.slane %v1840, %v2549
      %v2551 = vmul.f32 %v2546, %v2550
      %v2552 = vlaneseq
      %v2553 = vshrl.u32 %v2552, 7
      %v2554 = vsub.s32 2, %v2553
      %v2555 = vrot.slane %v1840, %v2554
      %v2556 = vadd.f32 %v2551, %v2555
      %v2557 = vmul.f32 %v2556, %v1451
      %s2558 = scalar_lea.vmem %s9, 144
      %v2559 = vld [vmem:[%s2558] sm:$0xf]
      %v2560 = vld [vmem:[%s2558 + $0x4] sm:$0xf]
      %v2561 = vld [vmem:[%s2558 + $0x8] sm:$0xf]
      %v2562 = vld [vmem:[%s2558 + $0xc] sm:$0xf]
      %v2563 = vld [vmem:[%s2558 + $0x10] sm:$0xf]
      %v2564 = vld [vmem:[%s2558 + $0x14] sm:$0xf]
      %v2565 = vld [vmem:[%s2558 + $0x18] sm:$0xf]
      %v2566 = vld [vmem:[%s2558 + $0x1c] sm:$0xf]
      %v2567 = vld [vmem:[%s2558 + $0x20] sm:$0xf]
      %v2568 = vld [vmem:[%s2558 + $0x24] sm:$0xf]
      %v2569 = vld [vmem:[%s2558 + $0x28] sm:$0xf]
      %v2570 = vld [vmem:[%s2558 + $0x2c] sm:$0xf]
      %v2571 = vld [vmem:[%s2558 + $0x30] sm:$0xf]
      %v2572 = vld [vmem:[%s2558 + $0x34] sm:$0xf]
      %v2573 = vld [vmem:[%s2558 + $0x38] sm:$0xf]
      %v2574 = vld [vmem:[%s2558 + $0x3c] sm:$0xf]
      %v2575 = vld [vmem:[%s2558 + $0x40] sm:$0xf]
      %v2576 = vld [vmem:[%s2558 + $0x44] sm:$0xf]
      %v2577 = vld [vmem:[%s2558 + $0x48] sm:$0xf]
      %v2578 = vld [vmem:[%s2558 + $0x4c] sm:$0xf]
      %v2579 = vld [vmem:[%s2558 + $0x50] sm:$0xf]
      %v2580 = vld [vmem:[%s2558 + $0x54] sm:$0xf]
      %v2581 = vld [vmem:[%s2558 + $0x58] sm:$0xf]
      %v2582 = vld [vmem:[%s2558 + $0x5c] sm:$0xf]
      %v2583 = vld [vmem:[%s2558 + $0x60] sm:$0xf]
      %v2584 = vld [vmem:[%s2558 + $0x64] sm:$0xf]
      %v2585 = vld [vmem:[%s2558 + $0x68] sm:$0xf]
      %v2586 = vld [vmem:[%s2558 + $0x6c] sm:$0xf]
      %v2587 = vld [vmem:[%s2558 + $0x70] sm:$0xf]
      %v2588 = vld [vmem:[%s2558 + $0x74] sm:$0xf]
      %v2589 = vld [vmem:[%s2558 + $0x78] sm:$0xf]
      %v2590 = vld [vmem:[%s2558 + $0x7c] sm:$0xf]
      %v2591 = vld [vmem:[%s2558 + $0x80] sm:$0xf]
      %v2592 = vld [vmem:[%s2558 + $0x84] sm:$0xf]
      %v2593 = vld [vmem:[%s2558 + $0x88] sm:$0xf]
      %v2594 = vld [vmem:[%s2558 + $0x8c] sm:$0xf]
      %s2595 = scalar_lea.vmem %s10, 1
      %v2596 = vld [vmem:[%s2595] sm:$0x1]
      %2597 = vst.msk [vmem:[#allocation2 + $0x8] sm:$0xff] %vm422, %v2557
      %v2598 = vld [vmem:[#allocation2 + $0x4] sm:$0xff]
      %v2599 = vld [vmem:[#allocation2 + $0x5] sm:$0xff]
      %v2600 = vld [vmem:[#allocation2 + $0x6] sm:$0xff]
      %v2601 = vld [vmem:[#allocation2 + $0x7] sm:$0xff]
      %v2602 = vld [vmem:[#allocation2 + $0x8] sm:$0xff]
      %v2603 = vld [vmem:[#allocation2 + $0x9] sm:$0xff]
      %v2604 = vld [vmem:[#allocation2 + $0xa] sm:$0xff]
      %v2605 = vld [vmem:[#allocation2 + $0xb] sm:$0xff]
      %v2606 = vld [vmem:[#allocation2 + $0xc] sm:$0xff]
      %2608 = vrot.lane.b32.xlu0 %v2599, 32
      %v2609 = vpop.permute.xlu0 %2608
      %2612 = vrot.lane.b32.xlu0 %v2600, 64
      %v2613 = vpop.permute.xlu0 %2612
      %2616 = vrot.lane.b32.xlu0 %v2601, 96
      %v2617 = vpop.permute.xlu0 %2616
      %2620 = vrot.lane.b32.xlu0 %v2603, 32
      %v2621 = vpop.permute.xlu0 %2620
      %2624 = vrot.lane.b32.xlu0 %v2604, 64
      %v2625 = vpop.permute.xlu0 %2624
      %2628 = vrot.lane.b32.xlu0 %v2605, 96
      %v2629 = vpop.permute.xlu0 %2628
      %v2631 = vsel %vm422, %v2598, %v2609
      %v2632 = vsel %vm1526, %v2631, %v2613
      %v2633 = vsel %vm1528, %v2632, %v2617
      %v2634 = vsel %vm422, %v2602, %v2621
      %v2635 = vsel %vm1526, %v2634, %v2625
      %v2636 = vsel %vm1528, %v2635, %v2629
      %v2637 = vpack.c.bf16 %v2633, %v2633
      %v2638 = vpack.c.bf16 %v2636, %v2636
      %v2639 = vpack.c.bf16 %v2606, %v2606
      %v2641 = vlaneseq
      %v2642 = vshrl.u32 %v2641, 7
      %v2643 = vsub.s32 0, %v2642
      %v2644 = vrot.slane %v2596, %v2643
      %v2682 = vunpack.c.l.b16 %v2559
      %v2683 = vunpack.c.l.b16 %v2560
      %v2684 = vunpack.c.l.b16 %v2561
      %v2685 = vunpack.c.l.b16 %v2562
      %v2686 = vunpack.c.l.b16 %v2563
      %v2687 = vunpack.c.l.b16 %v2564
      %v2688 = vunpack.c.l.b16 %v2565
      %v2689 = vunpack.c.l.b16 %v2566
      %v2690 = vunpack.c.l.b16 %v2567
      %v2691 = vunpack.c.l.b16 %v2568
      %v2692 = vunpack.c.l.b16 %v2569
      %v2693 = vunpack.c.l.b16 %v2570
      %v2694 = vunpack.c.l.b16 %v2571
      %v2695 = vunpack.c.l.b16 %v2572
      %v2696 = vunpack.c.l.b16 %v2573
      %v2697 = vunpack.c.l.b16 %v2574
      %v2698 = vunpack.c.l.b16 %v2575
      %v2699 = vunpack.c.l.b16 %v2576
      %v2700 = vunpack.c.l.b16 %v2577
      %v2701 = vunpack.c.l.b16 %v2578
      %v2702 = vunpack.c.l.b16 %v2579
      %v2703 = vunpack.c.l.b16 %v2580
      %v2704 = vunpack.c.l.b16 %v2581
      %v2705 = vunpack.c.l.b16 %v2582
      %v2706 = vunpack.c.l.b16 %v2583
      %v2707 = vunpack.c.l.b16 %v2584
      %v2708 = vunpack.c.l.b16 %v2585
      %v2709 = vunpack.c.l.b16 %v2586
      %v2710 = vunpack.c.l.b16 %v2587
      %v2711 = vunpack.c.l.b16 %v2588
      %v2712 = vunpack.c.l.b16 %v2589
      %v2713 = vunpack.c.l.b16 %v2590
      %v2714 = vunpack.c.l.b16 %v2591
      %v2715 = vunpack.c.l.b16 %v2592
      %v2716 = vunpack.c.l.b16 %v2593
      %v2717 = vunpack.c.l.b16 %v2594
      %v2718 = vpack.c.b16 %v2683, %v2682
      %v2719 = vpack.c.b16 %v2685, %v2684
      %v2720 = vpack.c.b16 %v2687, %v2686
      %v2721 = vpack.c.b16 %v2689, %v2688
      %v2722 = vpack.c.b16 %v2691, %v2690
      %v2723 = vpack.c.b16 %v2693, %v2692
      %v2724 = vpack.c.b16 %v2695, %v2694
      %v2725 = vpack.c.b16 %v2697, %v2696
      %v2726 = vpack.c.b16 %v2699, %v2698
      %v2727 = vpack.c.b16 %v2701, %v2700
      %v2728 = vpack.c.b16 %v2703, %v2702
      %v2729 = vpack.c.b16 %v2705, %v2704
      %v2730 = vpack.c.b16 %v2707, %v2706
      %v2731 = vpack.c.b16 %v2709, %v2708
      %v2732 = vpack.c.b16 %v2711, %v2710
      %v2733 = vpack.c.b16 %v2713, %v2712
      %v2734 = vpack.c.b16 %v2715, %v2714
      %v2735 = vpack.c.b16 %v2717, %v2716
      %v2755 = vsel %vm422, %v2639, 0
      %2757 = vmatprep.subr.bf16.mxu0 0
      %2758 = vmatpush1.bf16.msra.mxu0 %v2718
      %2759 = vmatprep.subr.bf16.mxu0 0
      %2760 = vmatpush1.bf16.msra.mxu0 %v2719
      %2761 = vmatprep.subr.bf16.mxu0 0
      %2762 = vmatpush1.bf16.msra.mxu0 %v2720
      %2763 = vmatprep.subr.bf16.mxu0 0
      %2764 = vmatpush1.bf16.msra.mxu0 %v2721
      %2765 = vmatprep.subr.bf16.mxu0 0
      %2766 = vmatpush1.bf16.msra.mxu0 %v2722
      %2767 = vmatprep.subr.bf16.mxu0 0
      %2768 = vmatpush1.bf16.msra.mxu0 %v2723
      %2769 = vmatprep.subr.bf16.mxu0 0
      %2770 = vmatpush1.bf16.msra.mxu0 %v2724
      %2771 = vmatprep.subr.bf16.mxu0 0
      %2772 = vmatpush1.bf16.msra.mxu0 %v2725
      %2773 = vmatprep.subr.bf16.mxu0 0
      %2774 = vmatpush1.bf16.msra.mxu0 %v2726
      %2775 = vmatprep.subr.bf16.mxu0 0
      %2776 = vmatpush1.bf16.msra.mxu0 %v2727
      %2777 = vmatprep.subr.bf16.mxu0 0
      %2778 = vmatpush1.bf16.msra.mxu0 %v2728
      %2779 = vmatprep.subr.bf16.mxu0 0
      %2780 = vmatpush1.bf16.msra.mxu0 %v2729
      %2781 = vmatprep.subr.bf16.mxu0 0
      %2782 = vmatpush1.bf16.msra.mxu0 %v2730
      %2783 = vmatprep.subr.bf16.mxu0 0
      %2784 = vmatpush1.bf16.msra.mxu0 %v2731
      %2785 = vmatprep.subr.bf16.mxu0 0
      %2786 = vmatpush1.bf16.msra.mxu0 %v2732
      %2787 = vmatprep.subr.bf16.mxu0 0
      %2788 = vmatpush1.bf16.msra.mxu0 %v2733
      %2789 = vmatprep.mubr.bf16.mxu0 %v2638
      %2790 = vmatmul.mubr.bf16.gmra.mrb[0].mxu0 %v2637
      %v2791 = vpop.f32.mrb[0].mxu0
      %v2792 = vadd.f32 %v2644, %v2791
      %v2793 = vpop.f32.mrb[0].mxu0
      %v2794 = vpop.f32.mrb[0].mxu0
      %v2795 = vpop.f32.mrb[0].mxu0
      %2796 = vdwg.mxu0
      %2797 = vmatprep.subr.bf16.mxu0 0
      %2798 = vmatpush1.bf16.msra.mxu0 %v2734
      %2799 = vmatprep.subr.bf16.mxu0 0
      %2800 = vmatpush1.bf16.msra.mxu0 %v2735
      %2801 = vmatprep.subr.bf16.mxu0 0
      %2802 = vmatpush1.bf16.msra.mxu0 0
      %2803 = vmatprep.subr.bf16.mxu0 0
      %2804 = vmatpush1.bf16.msra.mxu0 0
      %2805 = vmatprep.subr.bf16.mxu0 0
      %2806 = vmatpush1.bf16.msra.mxu0 0
      %2807 = vmatprep.subr.bf16.mxu0 0
      %2808 = vmatpush1.bf16.msra.mxu0 0
      %2809 = vmatprep.subr.bf16.mxu0 0
      %2810 = vmatpush1.bf16.msra.mxu0 0
      %2811 = vmatprep.subr.bf16.mxu0 0
      %2812 = vmatpush1.bf16.msra.mxu0 0
      %2813 = vmatprep.subr.bf16.mxu0 0
      %2814 = vmatpush1.bf16.msra.mxu0 0
      %2815 = vmatprep.subr.bf16.mxu0 0
      %2816 = vmatpush1.bf16.msra.mxu0 0
      %2817 = vmatprep.subr.bf16.mxu0 0
      %2818 = vmatpush1.bf16.msra.mxu0 0
      %2819 = vmatprep.subr.bf16.mxu0 0
      %2820 = vmatpush1.bf16.msra.mxu0 0
      %2821 = vmatprep.subr.bf16.mxu0 0
      %2822 = vmatpush1.bf16.msra.mxu0 0
      %2823 = vmatprep.subr.bf16.mxu0 0
      %2824 = vmatpush1.bf16.msra.mxu0 0
      %2825 = vmatprep.subr.bf16.mxu0 0
      %2826 = vmatpush1.bf16.msra.mxu0 0
      %2827 = vmatprep.subr.bf16.mxu0 0
      %2828 = vmatpush1.bf16.msra.mxu0 0
      %2829 = vmatprep.mubr.bf16.mxu0 0
      %2830 = vmatmul.mubr.bf16.gmra.mrb[0].mxu0 %v2755
      %v2831 = vpop.f32.mrb[0].mxu0
      %v2832 = vadd.f32 %v2792, %v2831
      %v2833 = vpop.f32.mrb[0].mxu0
      %v2834 = vpop.f32.mrb[0].mxu0
      %v2835 = vpop.f32.mrb[0].mxu0
      %2836 = vdwg.mxu0
      %v2837 = vmax.f32 %v2832, 0.0
      %s2838 = scalar_lea.vmem %s11, 32
      %v2839 = vld [vmem:[%s2838] sm:$0xf]
      %v2840 = vld [vmem:[%s2838 + $0x4] sm:$0xf]
      %v2841 = vld [vmem:[%s2838 + $0x8] sm:$0xf]
      %v2842 = vld [vmem:[%s2838 + $0xc] sm:$0xf]
      %v2843 = vld [vmem:[%s2838 + $0x10] sm:$0xf]
      %v2844 = vld [vmem:[%s2838 + $0x14] sm:$0xf]
      %v2845 = vld [vmem:[%s2838 + $0x18] sm:$0xf]
      %v2846 = vld [vmem:[%s2838 + $0x1c] sm:$0xf]
      %v2847 = vpack.c.bf16 %v2837, %v2837
      %v2848 = vlaneseq
      %v2849 = vshrl.u32 %v2848, 7
      %v2850 = vsub.s32 3, %v2849
      %v2851 = vrot.slane %v1840, %v2850
      %v2860 = vunpack.c.l.b16 %v2839
      %v2861 = vunpack.c.l.b16 %v2840
      %v2862 = vunpack.c.l.b16 %v2841
      %v2863 = vunpack.c.l.b16 %v2842
      %v2864 = vunpack.c.l.b16 %v2843
      %v2865 = vunpack.c.l.b16 %v2844
      %v2866 = vunpack.c.l.b16 %v2845
      %v2867 = vunpack.c.l.b16 %v2846
      %v2868 = vpack.c.b16 %v2861, %v2860
      %v2869 = vpack.c.b16 %v2863, %v2862
      %v2870 = vpack.c.b16 %v2865, %v2864
      %v2871 = vpack.c.b16 %v2867, %v2866
      %v2877 = vsel %vm1526, %v2847, 0
      %2879 = vmatprep.subr.bf16.mxu0 0
      %2880 = vmatpush1.bf16.msra.mxu0 %v2868
      %2881 = vmatprep.subr.bf16.mxu0 0
      %2882 = vmatpush1.bf16.msra.mxu0 %v2869
      %2883 = vmatprep.subr.bf16.mxu0 0
      %2884 = vmatpush1.bf16.msra.mxu0 %v2870
      %2885 = vmatprep.subr.bf16.mxu0 0
      %2886 = vmatpush1.bf16.msra.mxu0 %v2871
      %2887 = vmatprep.subr.bf16.mxu0 0
      %2888 = vmatpush1.bf16.msra.mxu0 0
      %2889 = vmatprep.subr.bf16.mxu0 0
      %2890 = vmatpush1.bf16.msra.mxu0 0
      %2891 = vmatprep.subr.bf16.mxu0 0
      %2892 = vmatpush1.bf16.msra.mxu0 0
      %2893 = vmatprep.subr.bf16.mxu0 0
      %2894 = vmatpush1.bf16.msra.mxu0 0
      %2895 = vmatprep.subr.bf16.mxu0 0
      %2896 = vmatpush1.bf16.msra.mxu0 0
      %2897 = vmatprep.subr.bf16.mxu0 0
      %2898 = vmatpush1.bf16.msra.mxu0 0
      %2899 = vmatprep.subr.bf16.mxu0 0
      %2900 = vmatpush1.bf16.msra.mxu0 0
      %2901 = vmatprep.subr.bf16.mxu0 0
      %2902 = vmatpush1.bf16.msra.mxu0 0
      %2903 = vmatprep.subr.bf16.mxu0 0
      %2904 = vmatpush1.bf16.msra.mxu0 0
      %2905 = vmatprep.subr.bf16.mxu0 0
      %2906 = vmatpush1.bf16.msra.mxu0 0
      %2907 = vmatprep.subr.bf16.mxu0 0
      %2908 = vmatpush1.bf16.msra.mxu0 0
      %2909 = vmatprep.subr.bf16.mxu0 0
      %2910 = vmatpush1.bf16.msra.mxu0 0
      %2911 = vmatprep.mubr.bf16.mxu0 0
      %2912 = vmatmul.mubr.bf16.gmra.mrb[0].mxu0 %v2877
      %v2913 = vpop.f32.mrb[0].mxu0
      %v2914 = vadd.f32 %v2851, %v2913
      %v2915 = vpop.f32.mrb[0].mxu0
      %v2916 = vpop.f32.mrb[0].mxu0
      %v2917 = vpop.f32.mrb[0].mxu0
      %2918 = vdwg.mxu0
      %v2919 = vadd.f32 %v2914, %v2557
      %v2920 = vsel %vm422, %v2919, 0.0
      %2921 = vadd.xlane.f32.xlu0 %v2920
      %v2922 = vpop.xlane.xlu0 %2921
      %v2923 = vmul.f32 %v2922, %v1427
      %v2924 = vsub.f32 %v2919, %v2923
      %v2925 = vmul.f32 %v2924, %v2924
      %v2926 = vsel %vm422, %v2925, 0.0
      %2927 = vadd.xlane.f32.xlu0 %v2926
      %v2928 = vpop.xlane.xlu0 %2927
      %v2929 = vmul.f32 %v2928, %v1427
      %v2930 = vadd.f32 %v2929, 1e-05
      %v2931 = vrsqrt.pop %v2930
      %v2932 = vmul.f32 %v2924, %v2931
      %v2933 = vlaneseq
      %v2934 = vshrl.u32 %v2933, 7
      %v2935 = vsub.s32 4, %v2934
      %v2936 = vrot.slane %v1840, %v2935
      %v2937 = vmul.f32 %v2932, %v2936
      %v2938 = vlaneseq
      %v2939 = vshrl.u32 %v2938, 7
      %v2940 = vsub.s32 5, %v2939
      %v2941 = vrot.slane %v1840, %v2940
      %v2942 = vadd.f32 %v2937, %v2941
      %v2943 = vmul.f32 %v2942, %v1451
      %v2944 = vlaneseq
      %v2945 = vshrl.u32 %v2944, 7
      %v2946 = vadd.s32 %v2945, 8
      %v2947 = vadd.s32 %v2945, 16
      %v2948 = vcvt.s32.f32 %v2945
      %v2949 = vcvt.s32.f32 %v2946
      %v2950 = vcvt.s32.f32 %v2947
      %v2951 = vlaneseq
      %v2952 = vshrl.u32 %v2951, 7
      %v2953 = vsub.s32 0, %v2952
      %v2954 = vrot.slane %v563, %v2953
      %vm2955 = vcmp.ge.f32.partialorder %v2948, %v2954
      %vm2956 = vcmp.ge.f32.partialorder %v2949, %v2954
      %vm2957 = vcmp.ge.f32.partialorder %v2950, %v2954
      %v2958 = vlaneseq
      %v2959 = vshrl.u32 %v2958, 7
      %v2960 = vsub.s32 0, %v2959
      %v2961 = vrot.slane %v570, %v2960
      %vm2962 = vcmp.lt.f32.partialorder %v2948, %v2961
      %vm2963 = vcmp.lt.f32.partialorder %v2949, %v2961
      %vm2964 = vcmp.lt.f32.partialorder %v2950, %v2961
      %vm2965 = vmand %vm2955, %vm2962
      %vm2966 = vmand %vm2956, %vm2963
      %vm2967 = vmand %vm2957, %vm2964
      %v2968 = vsel %vm2965, 1.0, 0.0
      %v2969 = vsel %vm2966, 1.0, 0.0
      %v2970 = vsel %vm2967, 1.0, 0.0
      %v2971 = vpack.c.bf16 %v2969, %v2968
      %v2972 = vpack.c.bf16 %v2970, %v2970
      %v2973 = vpack.c.bf16 %v2943, %v2943
      %s2974 = sld [smem:[#allocation7 + %s428]]
      %v2975 = vstv %s2974
      %s2976 = sld [smem:[#allocation7 + %s438]]
      %v2977 = vstv %s2976
      %s2978 = sld [smem:[#allocation7 + %s449]]
      %v2979 = vstv %s2978
      %s2980 = sld [smem:[#allocation7 + %s460]]
      %v2981 = vstv %s2980
      %s2982 = sld [smem:[#allocation7 + %s471]]
      %v2983 = vstv %s2982
      %s2984 = sld [smem:[#allocation7 + %s482]]
      %v2985 = vstv %s2984
      %s2986 = sld [smem:[#allocation7 + %s493]]
      %v2987 = vstv %s2986
      %s2988 = sld [smem:[#allocation7 + %s504]]
      %v2989 = vstv %s2988
      %s2990 = sadd.s32 %s428, 8
      %s2991 = sld [smem:[#allocation7 + %s2990]]
      %v2992 = vstv %s2991
      %s2993 = sadd.s32 %s428, 9
      %s2994 = sld [smem:[#allocation7 + %s2993]]
      %v2995 = vstv %s2994
      %s2996 = sadd.s32 %s428, 10
      %s2997 = sld [smem:[#allocation7 + %s2996]]
      %v2998 = vstv %s2997
      %s2999 = sadd.s32 %s428, 11
      %s3000 = sld [smem:[#allocation7 + %s2999]]
      %v3001 = vstv %s3000
      %s3002 = sadd.s32 %s428, 12
      %s3003 = sld [smem:[#allocation7 + %s3002]]
      %v3004 = vstv %s3003
      %s3005 = sadd.s32 %s428, 13
      %s3006 = sld [smem:[#allocation7 + %s3005]]
      %v3007 = vstv %s3006
      %s3008 = sadd.s32 %s428, 14
      %s3009 = sld [smem:[#allocation7 + %s3008]]
      %v3010 = vstv %s3009
      %s3011 = sadd.s32 %s428, 15
      %s3012 = sld [smem:[#allocation7 + %s3011]]
      %v3013 = vstv %s3012
      %s3014 = sadd.s32 %s428, 16
      %s3015 = sld [smem:[#allocation7 + %s3014]]
      %v3016 = vstv %s3015
      %s3017 = sadd.s32 %s428, 17
      %s3018 = sld [smem:[#allocation7 + %s3017]]
      %v3019 = vstv %s3018
      %s3020 = sadd.s32 %s428, 18
      %s3021 = sld [smem:[#allocation7 + %s3020]]
      %v3022 = vstv %s3021
      %s3023 = sadd.s32 %s428, 19
      %s3024 = sld [smem:[#allocation7 + %s3023]]
      %v3025 = vstv %s3024
      %s3026 = sadd.s32 %s428, 20
      %s3027 = sld [smem:[#allocation7 + %s3026]]
      %v3028 = vstv %s3027
      %s3029 = sadd.s32 %s428, 21
      %s3030 = sld [smem:[#allocation7 + %s3029]]
      %v3031 = vstv %s3030
      %s3032 = sadd.s32 %s428, 22
      %s3033 = sld [smem:[#allocation7 + %s3032]]
      %v3034 = vstv %s3033
      %s3035 = sadd.s32 %s428, 23
      %s3036 = sld [smem:[#allocation7 + %s3035]]
      %v3037 = vstv %s3036
      %v3038 = vsel %vm515, %v2975, %v2977
      %v3039 = vsel %vm517, %v3038, %v2979
      %v3040 = vsel %vm519, %v3039, %v2981
      %v3041 = vsel %vm521, %v3040, %v2983
      %v3042 = vsel %vm523, %v3041, %v2985
      %v3043 = vsel %vm525, %v3042, %v2987
      %v3044 = vsel %vm527, %v3043, %v2989
      %v3045 = vsel %vm1047, %v3044, %v2992
      %vm3046 = vcmask 72704
      %v3047 = vsel %vm3046, %v3045, %v2995
      %vm3048 = vcmask 80896
      %v3049 = vsel %vm3048, %v3047, %v2998
      %vm3050 = vcmask 89088
      %v3051 = vsel %vm3050, %v3049, %v3001
      %vm3052 = vcmask 97280
      %v3053 = vsel %vm3052, %v3051, %v3004
      %vm3054 = vcmask 105472
      %v3055 = vsel %vm3054, %v3053, %v3007
      %vm3056 = vcmask 113664
      %v3057 = vsel %vm3056, %v3055, %v3010
      %vm3058 = vcmask 121856
      %v3059 = vsel %vm3058, %v3057, %v3013
      %v3060 = vsel %vm515, %v3016, %v3019
      %v3061 = vsel %vm517, %v3060, %v3022
      %v3062 = vsel %vm519, %v3061, %v3025
      %v3063 = vsel %vm521, %v3062, %v3028
      %v3064 = vsel %vm523, %v3063, %v3031
      %v3065 = vsel %vm525, %v3064, %v3034
      %v3066 = vsel %vm527, %v3065, %v3037
      %3067 = vrot.lane.b32.xlu0 %v3066, 16
      %v3068 = vpop.permute.xlu0 %3067
      %vm3069 = vcmask 130048
      %v3070 = vsel %vm3069, %v3059, %v3068
      %v3071 = vsel %vm529, %v2975, %v2977
      %v3072 = vsel %vm531, %v3071, %v2979
      %v3073 = vsel %vm533, %v3072, %v2981
      %v3074 = vsel %vm535, %v3073, %v2983
      %v3075 = vsel %vm537, %v3074, %v2985
      %v3076 = vsel %vm539, %v3075, %v2987
      %v3077 = vsel %vm541, %v3076, %v2989
      %v3078 = vsel %vm529, %v2992, %v2995
      %v3079 = vsel %vm531, %v3078, %v2998
      %v3080 = vsel %vm533, %v3079, %v3001
      %v3081 = vsel %vm535, %v3080, %v3004
      %v3082 = vsel %vm537, %v3081, %v3007
      %v3083 = vsel %vm539, %v3082, %v3010
      %v3084 = vsel %vm541, %v3083, %v3013
      %v3085 = vsel %vm529, %v3016, %v3019
      %v3086 = vsel %vm531, %v3085, %v3022
      %v3087 = vsel %vm533, %v3086, %v3025
      %v3088 = vsel %vm535, %v3087, %v3028
      %v3089 = vsel %vm537, %v3088, %v3031
      %v3090 = vsel %vm539, %v3089, %v3034
      %v3091 = vsel %vm541, %v3090, %v3037
      %v3092 = vadd.s32 %v3077, 80
      %v3093 = vadd.s32 %v3084, 80
      %v3094 = vadd.s32 %v3091, 80
      %3095 = vset.pattern.permute.xlu0 0
      %3096 = vperm.xlu0 %3095, %v3092
      %v3097 = vpop.permute.xlu0 %3096
      %3098 = vset.pattern.permute.xlu0 0
      %3099 = vperm.xlu0 %3098, %v3093
      %v3100 = vpop.permute.xlu0 %3099
      %3101 = vset.pattern.permute.xlu0 0
      %3102 = vperm.xlu0 %3101, %v3094
      %v3103 = vpop.permute.xlu0 %3102
      %vm3104 = vcmp.eq.s32.totalorder %v572, %v3097
      %vm3105 = vcmp.eq.s32.totalorder %v573, %v3097
      %vm3106 = vcmp.eq.s32.totalorder %v572, %v3100
      %vm3107 = vcmp.eq.s32.totalorder %v573, %v3100
      %vm3108 = vcmp.eq.s32.totalorder %v572, %v3103
      %vm3109 = vcmp.eq.s32.totalorder %v573, %v3103
      %v3110 = vsel %vm3104, 1.0, 0.0
      %v3111 = vsel %vm3105, 1.0, 0.0
      %v3112 = vsel %vm3106, 1.0, 0.0
      %v3113 = vsel %vm3107, 1.0, 0.0
      %v3114 = vsel %vm3108, 1.0, 0.0
      %v3115 = vsel %vm3109, 1.0, 0.0
      %v3116 = vld [vmem:[%s5] sm:$0xf]
      %v3117 = vld [vmem:[%s5 + $0x4] sm:$0xf]
      %v3118 = vld [vmem:[%s5 + $0x8] sm:$0xf]
      %v3119 = vld [vmem:[%s5 + $0xc] sm:$0xf]
      %v3120 = vld [vmem:[%s5 + $0x10] sm:$0xf]
      %v3121 = vld [vmem:[%s5 + $0x14] sm:$0xf]
      %v3122 = vld [vmem:[%s5 + $0x18] sm:$0xf]
      %v3123 = vld [vmem:[%s5 + $0x1c] sm:$0xf]
      %v3124 = vld [vmem:[%s5 + $0x20] sm:$0xf]
      %v3125 = vld [vmem:[%s5 + $0x24] sm:$0xf]
      %v3126 = vld [vmem:[%s5 + $0x28] sm:$0xf]
      %v3127 = vld [vmem:[%s5 + $0x2c] sm:$0xf]
      %v3128 = vld [vmem:[%s5 + $0x30] sm:$0xf]
      %v3129 = vld [vmem:[%s5 + $0x34] sm:$0xf]
      %v3130 = vld [vmem:[%s5 + $0x38] sm:$0xf]
      %v3131 = vld [vmem:[%s5 + $0x3c] sm:$0xf]
      %v3132 = vld [vmem:[%s5 + $0x40] sm:$0xf]
      %v3133 = vld [vmem:[%s5 + $0x44] sm:$0xf]
      %v3134 = vld [vmem:[%s5 + $0x48] sm:$0x1]
      %v3135 = vpack.c.bf16 %v3112, %v3110
      %v3136 = vpack.c.bf16 %v3113, %v3111
      %v3137 = vpack.c.bf16 %v3114, %v3114
      %v3138 = vpack.c.bf16 %v3115, %v3115
      %v3158 = vunpack.c.l.b16 %v3116
      %v3159 = vunpack.c.l.b16 %v3117
      %v3160 = vunpack.c.l.b16 %v3118
      %v3161 = vunpack.c.l.b16 %v3119
      %v3162 = vunpack.c.l.b16 %v3120
      %v3163 = vunpack.c.l.b16 %v3121
      %v3164 = vunpack.c.l.b16 %v3122
      %v3165 = vunpack.c.l.b16 %v3123
      %v3166 = vunpack.c.l.b16 %v3124
      %v3167 = vunpack.c.l.b16 %v3125
      %v3168 = vunpack.c.l.b16 %v3126
      %v3169 = vunpack.c.l.b16 %v3127
      %v3170 = vunpack.c.l.b16 %v3128
      %v3171 = vunpack.c.l.b16 %v3129
      %v3172 = vunpack.c.l.b16 %v3130
      %v3173 = vunpack.c.l.b16 %v3131
      %v3174 = vunpack.c.l.b16 %v3132
      %v3175 = vunpack.c.l.b16 %v3133
      %v3176 = vunpack.c.l.b16 %v3134
      %v3177 = vpack.c.b16 %v3159, %v3158
      %v3178 = vpack.c.b16 %v3161, %v3160
      %v3179 = vpack.c.b16 %v3163, %v3162
      %v3180 = vpack.c.b16 %v3165, %v3164
      %v3181 = vpack.c.b16 %v3167, %v3166
      %v3182 = vpack.c.b16 %v3169, %v3168
      %v3183 = vpack.c.b16 %v3171, %v3170
      %v3184 = vpack.c.b16 %v3173, %v3172
      %v3185 = vpack.c.b16 %v3175, %v3174
      %v3186 = vpack.c.b16 %v3176, %v3176
      %v3197 = vsel %vm675, %v3136, 0
      %v3200 = vsel %vm675, %v3138, 0
      %v3203 = vand.u32 %v3186, %v680
      %3205 = vmatprep.subr.bf16.mxu0 0
      %3206 = vmatpush1.bf16.msra.mxu0 %v3177
      %3207 = vmatprep.subr.bf16.mxu0 0
      %3208 = vmatpush1.bf16.msra.mxu0 %v3178
      %3209 = vmatprep.subr.bf16.mxu0 0
      %3210 = vmatpush1.bf16.msra.mxu0 %v3179
      %3211 = vmatprep.subr.bf16.mxu0 0
      %3212 = vmatpush1.bf16.msra.mxu0 %v3180
      %3213 = vmatprep.subr.bf16.mxu0 0
      %3214 = vmatpush1.bf16.msra.mxu0 %v3181
      %3215 = vmatprep.subr.bf16.mxu0 0
      %3216 = vmatpush1.bf16.msra.mxu0 %v3182
      %3217 = vmatprep.subr.bf16.mxu0 0
      %3218 = vmatpush1.bf16.msra.mxu0 %v3183
      %3219 = vmatprep.subr.bf16.mxu0 0
      %3220 = vmatpush1.bf16.msra.mxu0 %v3184
      %3221 = vmatprep.subr.bf16.mxu0 0
      %3222 = vmatpush1.bf16.msra.mxu0 %v3185
      %3223 = vmatprep.subr.bf16.mxu0 0
      %3224 = vmatpush1.bf16.msra.mxu0 %v3203
      %3225 = vmatprep.subr.bf16.mxu0 0
      %3226 = vmatpush1.bf16.msra.mxu0 0
      %3227 = vmatprep.subr.bf16.mxu0 0
      %3228 = vmatpush1.bf16.msra.mxu0 0
      %3229 = vmatprep.subr.bf16.mxu0 0
      %3230 = vmatpush1.bf16.msra.mxu0 0
      %3231 = vmatprep.subr.bf16.mxu0 0
      %3232 = vmatpush1.bf16.msra.mxu0 0
      %3233 = vmatprep.subr.bf16.mxu0 0
      %3234 = vmatpush1.bf16.msra.mxu0 0
      %3235 = vmatprep.subr.bf16.mxu0 0
      %3236 = vmatpush1.bf16.msra.mxu0 0
      %3237 = vmatprep.mubr.bf16.mxu0 %v3197
      %3238 = vmatmul.mubr.bf16.gmra.mrb[0].mxu0 %v3135
      %v3239 = vpop.f32.mrb[0].mxu0
      %v3240 = vadd.f32 0.0, %v3239
      %v3241 = vpop.f32.mrb[0].mxu0
      %v3242 = vpop.f32.mrb[0].mxu0
      %v3243 = vadd.f32 0.0, %v3242
      %v3244 = vpop.f32.mrb[0].mxu0
      %3245 = vmatprep.mubr.bf16.mxu0 %v3200
      %3246 = vmatmul.mubr.bf16.gmra.mrb[0].mxu0 %v3137
      %v3247 = vpop.f32.mrb[0].mxu0
      %v3248 = vadd.f32 0.0, %v3247
      %v3249 = vpop.f32.mrb[0].mxu0
      %v3250 = vpop.f32.mrb[0].mxu0
      %v3251 = vpop.f32.mrb[0].mxu0
      %3252 = vdwg.mxu0
      %vm3253 = vcmp.ne.s32.totalorder %v3077, 0
      %vm3254 = vcmp.ne.s32.totalorder %v3084, 0
      %vm3255 = vcmp.ne.s32.totalorder %v3091, 0
      %v3256 = vsel %vm3253, 1.0, 0.0
      %v3257 = vsel %vm3254, 1.0, 0.0
      %v3258 = vsel %vm3255, 1.0, 0.0
      %vm3259 = vcmp.eq.s32.totalorder %v3070, 0
      %v3260 = vsel %vm3259, -1e+09, 0.0
      %v3262 = vsel %vm1047, %v2971, 0
      %v3265 = vsel %vm1047, %v2972, 0
      %v3268 = vsel %vm535, %v2973, 0
      %3270 = vmatprep.subr.bf16.mxu0 0
      %3271 = vmatpush1.bf16.msra.mxu0 %v3268
      %3272 = vmatprep.subr.bf16.mxu0 0
      %3273 = vmatpush1.bf16.msra.mxu0 0
      %3274 = vmatprep.subr.bf16.mxu0 0
      %3275 = vmatpush1.bf16.msra.mxu0 0
      %3276 = vmatprep.subr.bf16.mxu0 0
      %3277 = vmatpush1.bf16.msra.mxu0 0
      %3278 = vmatprep.subr.bf16.mxu0 0
      %3279 = vmatpush1.bf16.msra.mxu0 0
      %3280 = vmatprep.subr.bf16.mxu0 0
      %3281 = vmatpush1.bf16.msra.mxu0 0
      %3282 = vmatprep.subr.bf16.mxu0 0
      %3283 = vmatpush1.bf16.msra.mxu0 0
      %3284 = vmatprep.subr.bf16.mxu0 0
      %3285 = vmatpush1.bf16.msra.mxu0 0
      %3286 = vmatprep.subr.bf16.mxu0 0
      %3287 = vmatpush1.bf16.msra.mxu0 0
      %3288 = vmatprep.subr.bf16.mxu0 0
      %3289 = vmatpush1.bf16.msra.mxu0 0
      %3290 = vmatprep.subr.bf16.mxu0 0
      %3291 = vmatpush1.bf16.msra.mxu0 0
      %3292 = vmatprep.subr.bf16.mxu0 0
      %3293 = vmatpush1.bf16.msra.mxu0 0
      %3294 = vmatprep.subr.bf16.mxu0 0
      %3295 = vmatpush1.bf16.msra.mxu0 0
      %3296 = vmatprep.subr.bf16.mxu0 0
      %3297 = vmatpush1.bf16.msra.mxu0 0
      %3298 = vmatprep.subr.bf16.mxu0 0
      %3299 = vmatpush1.bf16.msra.mxu0 0
      %3300 = vmatprep.subr.bf16.mxu0 0
      %3301 = vmatpush1.bf16.msra.mxu0 0
      %3302 = vmatprep.mubr.bf16.mxu0 0
      %3303 = vmatmul.mubr.bf16.gmra.mrb[0].mxu0 %v3262
      %v3304 = vpop.f32.mrb[0].mxu0
      %v3305 = vadd.f32 %v3240, %v3304
      %v3306 = vpop.f32.mrb[0].mxu0
      %v3307 = vpop.f32.mrb[0].mxu0
      %v3308 = vadd.f32 %v3243, %v3307
      %v3309 = vpop.f32.mrb[0].mxu0
      %3310 = vmatprep.mubr.bf16.mxu0 0
      %3311 = vmatmul.mubr.bf16.gmra.mrb[0].mxu0 %v3265
      %v3312 = vpop.f32.mrb[0].mxu0
      %v3313 = vadd.f32 %v3248, %v3312
      %v3314 = vpop.f32.mrb[0].mxu0
      %v3315 = vpop.f32.mrb[0].mxu0
      %v3316 = vpop.f32.mrb[0].mxu0
      %3317 = vdwg.mxu0
      %s3318 = scalar_lea.vmem %s12, 16
      %v3319 = vld [vmem:[%s3318] sm:$0x3f]
      %s3320 = scalar_lea.vmem %s6, 192
      %v3321 = vld [vmem:[%s3320] sm:$0xff]
      %v3322 = vld [vmem:[%s3320 + $0x8] sm:$0xff]
      %v3323 = vld [vmem:[%s3320 + $0x10] sm:$0xff]
      %v3324 = vld [vmem:[%s3320 + $0x18] sm:$0xff]
      %v3325 = vld [vmem:[%s3320 + $0x20] sm:$0xff]
      %v3326 = vld [vmem:[%s3320 + $0x28] sm:$0xff]
      %v3327 = vld [vmem:[%s3320 + $0x30] sm:$0xff]
      %v3328 = vld [vmem:[%s3320 + $0x38] sm:$0xff]
      %v3329 = vld [vmem:[%s3320 + $0x40] sm:$0xff]
      %v3330 = vld [vmem:[%s3320 + $0x48] sm:$0xff]
      %v3331 = vld [vmem:[%s3320 + $0x50] sm:$0xff]
      %v3332 = vld [vmem:[%s3320 + $0x58] sm:$0xff]
      %v3333 = vpack.c.bf16 %v3308, %v3305
      %v3334 = vpack.c.bf16 %v3313, %v3313
      %s3335 = scalar_lea.vmem %s7, 12
      %v3336 = vld [vmem:[%s3335] sm:$0x3f]
      %v3338 = vlaneseq
      %v3339 = vshrl.u32 %v3338, 7
      %v3340 = vsub.s32 0, %v3339
      %v3341 = vrot.slane %v3336, %v3340
      %v3342 = vlaneseq
      %v3343 = vshrl.u32 %v3342, 7
      %v3344 = vsub.s32 1, %v3343
      %v3345 = vrot.slane %v3336, %v3344
      %v3346 = vlaneseq
      %v3347 = vshrl.u32 %v3346, 7
      %v3348 = vsub.s32 2, %v3347
      %v3349 = vrot.slane %v3336, %v3348
      %v3350 = vlaneseq
      %v3351 = vshrl.u32 %v3350, 7
      %v3352 = vsub.s32 3, %v3351
      %v3353 = vrot.slane %v3336, %v3352
      %v3354 = vlaneseq
      %v3355 = vshrl.u32 %v3354, 7
      %v3356 = vsub.s32 4, %v3355
      %v3357 = vrot.slane %v3336, %v3356
      %v3358 = vlaneseq
      %v3359 = vshrl.u32 %v3358, 7
      %v3360 = vsub.s32 5, %v3359
      %v3361 = vrot.slane %v3336, %v3360
      %v3380 = vunpack.c.l.b16 %v3321
      %v3381 = vunpack.c.h.b16 %v3321
      %v3382 = vunpack.c.l.b16 %v3322
      %v3383 = vunpack.c.h.b16 %v3322
      %v3384 = vunpack.c.l.b16 %v3323
      %v3385 = vunpack.c.h.b16 %v3323
      %v3386 = vunpack.c.l.b16 %v3324
      %v3387 = vunpack.c.h.b16 %v3324
      %v3388 = vunpack.c.l.b16 %v3325
      %v3389 = vunpack.c.h.b16 %v3325
      %v3390 = vunpack.c.l.b16 %v3326
      %v3391 = vunpack.c.h.b16 %v3326
      %v3392 = vunpack.c.l.b16 %v3327
      %v3393 = vunpack.c.h.b16 %v3327
      %v3394 = vunpack.c.l.b16 %v3328
      %v3395 = vunpack.c.h.b16 %v3328
      %v3396 = vunpack.c.l.b16 %v3329
      %v3397 = vunpack.c.h.b16 %v3329
      %v3398 = vunpack.c.l.b16 %v3330
      %v3399 = vunpack.c.h.b16 %v3330
      %v3400 = vunpack.c.l.b16 %v3331
      %v3401 = vunpack.c.h.b16 %v3331
      %v3402 = vunpack.c.l.b16 %v3332
      %v3403 = vunpack.c.h.b16 %v3332
      %v3404 = vpack.c.b16 %v3386, %v3380
      %v3405 = vpack.c.b16 %v3387, %v3381
      %v3406 = vpack.c.b16 %v3388, %v3382
      %v3407 = vpack.c.b16 %v3389, %v3383
      %v3408 = vpack.c.b16 %v3390, %v3384
      %v3409 = vpack.c.b16 %v3391, %v3385
      %v3410 = vpack.c.b16 %v3398, %v3392
      %v3411 = vpack.c.b16 %v3399, %v3393
      %v3412 = vpack.c.b16 %v3400, %v3394
      %v3413 = vpack.c.b16 %v3401, %v3395
      %v3414 = vpack.c.b16 %v3402, %v3396
      %v3415 = vpack.c.b16 %v3403, %v3397
      %v3429 = vsel %vm422, %v3333, 0
      %v3432 = vsel %vm422, %v3334, 0
      %3434 = vmatprep.subr.bf16.mxu0 %v3405
      %3435 = vmatpush1.bf16.msra.mxu0 %v3404
      %3436 = vmatprep.subr.bf16.mxu0 %v3411
      %3437 = vmatpush1.bf16.msra.mxu0 %v3410
      %3438 = vmatprep.subr.bf16.mxu0 0
      %3439 = vmatpush1.bf16.msra.mxu0 0
      %3440 = vmatprep.subr.bf16.mxu0 0
      %3441 = vmatpush1.bf16.msra.mxu0 0
      %3442 = vmatprep.subr.bf16.mxu0 0
      %3443 = vmatpush1.bf16.msra.mxu0 0
      %3444 = vmatprep.subr.bf16.mxu0 0
      %3445 = vmatpush1.bf16.msra.mxu0 0
      %3446 = vmatprep.subr.bf16.mxu0 0
      %3447 = vmatpush1.bf16.msra.mxu0 0
      %3448 = vmatprep.subr.bf16.mxu0 0
      %3449 = vmatpush1.bf16.msra.mxu0 0
      %3450 = vmatprep.subr.bf16.mxu0 0
      %3451 = vmatpush1.bf16.msra.mxu0 0
      %3452 = vmatprep.subr.bf16.mxu0 0
      %3453 = vmatpush1.bf16.msra.mxu0 0
      %3454 = vmatprep.subr.bf16.mxu0 0
      %3455 = vmatpush1.bf16.msra.mxu0 0
      %3456 = vmatprep.subr.bf16.mxu0 0
      %3457 = vmatpush1.bf16.msra.mxu0 0
      %3458 = vmatprep.subr.bf16.mxu0 0
      %3459 = vmatpush1.bf16.msra.mxu0 0
      %3460 = vmatprep.subr.bf16.mxu0 0
      %3461 = vmatpush1.bf16.msra.mxu0 0
      %3462 = vmatprep.subr.bf16.mxu0 0
      %3463 = vmatpush1.bf16.msra.mxu0 0
      %3464 = vmatprep.subr.bf16.mxu0 0
      %3465 = vmatpush1.bf16.msra.mxu0 0
      %3466 = vmatprep.mubr.bf16.mxu0 0
      %3467 = vmatmul.mubr.bf16.gmra.mrb[0].mxu0 %v3429
      %v3468 = vpop.f32.mrb[0].mxu0
      %v3469 = vadd.f32 %v3341, %v3468
      %v3470 = vpop.f32.mrb[0].mxu0
      %v3471 = vadd.f32 %v3345, %v3470
      %v3472 = vpop.f32.mrb[0].mxu0
      %v3473 = vadd.f32 %v3341, %v3472
      %v3474 = vpop.f32.mrb[0].mxu0
      %v3475 = vadd.f32 %v3345, %v3474
      %3476 = vmatprep.mubr.bf16.mxu0 0
      %3477 = vmatmul.mubr.bf16.gmra.mrb[0].mxu0 %v3432
      %v3478 = vpop.f32.mrb[0].mxu0
      %v3479 = vadd.f32 %v3341, %v3478
      %v3480 = vpop.f32.mrb[0].mxu0
      %v3481 = vadd.f32 %v3345, %v3480
      %v3482 = vpop.f32.mrb[0].mxu0
      %v3483 = vpop.f32.mrb[0].mxu0
      %3484 = vdwg.mxu0
      %3485 = vmatprep.subr.bf16.mxu0 %v3407
      %3486 = vmatpush1.bf16.msra.mxu0 %v3406
      %3487 = vmatprep.subr.bf16.mxu0 %v3413
      %3488 = vmatpush1.bf16.msra.mxu0 %v3412
      %3489 = vmatprep.subr.bf16.mxu0 0
      %3490 = vmatpush1.bf16.msra.mxu0 0
      %3491 = vmatprep.subr.bf16.mxu0 0
      %3492 = vmatpush1.bf16.msra.mxu0 0
      %3493 = vmatprep.subr.bf16.mxu0 0
      %3494 = vmatpush1.bf16.msra.mxu0 0
      %3495 = vmatprep.subr.bf16.mxu0 0
      %3496 = vmatpush1.bf16.msra.mxu0 0
      %3497 = vmatprep.subr.bf16.mxu0 0
      %3498 = vmatpush1.bf16.msra.mxu0 0
      %3499 = vmatprep.subr.bf16.mxu0 0
      %3500 = vmatpush1.bf16.msra.mxu0 0
      %3501 = vmatprep.subr.bf16.mxu0 0
      %3502 = vmatpush1.bf16.msra.mxu0 0
      %3503 = vmatprep.subr.bf16.mxu0 0
      %3504 = vmatpush1.bf16.msra.mxu0 0
      %3505 = vmatprep.subr.bf16.mxu0 0
      %3506 = vmatpush1.bf16.msra.mxu0 0
      %3507 = vmatprep.subr.bf16.mxu0 0
      %3508 = vmatpush1.bf16.msra.mxu0 0
      %3509 = vmatprep.subr.bf16.mxu0 0
      %3510 = vmatpush1.bf16.msra.mxu0 0
      %3511 = vmatprep.subr.bf16.mxu0 0
      %3512 = vmatpush1.bf16.msra.mxu0 0
      %3513 = vmatprep.subr.bf16.mxu0 0
      %3514 = vmatpush1.bf16.msra.mxu0 0
      %3515 = vmatprep.subr.bf16.mxu0 0
      %3516 = vmatpush1.bf16.msra.mxu0 0
      %3517 = vmatprep.mubr.bf16.mxu0 0
      %3518 = vmatmul.mubr.bf16.gmra.mrb[0].mxu0 %v3429
      %v3519 = vpop.f32.mrb[0].mxu0
      %v3520 = vadd.f32 %v3349, %v3519
      %v3521 = vpop.f32.mrb[0].mxu0
      %v3522 = vadd.f32 %v3353, %v3521
      %v3523 = vpop.f32.mrb[0].mxu0
      %v3524 = vadd.f32 %v3349, %v3523
      %v3525 = vpop.f32.mrb[0].mxu0
      %v3526 = vadd.f32 %v3353, %v3525
      %3527 = vmatprep.mubr.bf16.mxu0 0
      %3528 = vmatmul.mubr.bf16.gmra.mrb[0].mxu0 %v3432
      %v3529 = vpop.f32.mrb[0].mxu0
      %v3530 = vadd.f32 %v3349, %v3529
      %v3531 = vpop.f32.mrb[0].mxu0
      %v3532 = vadd.f32 %v3353, %v3531
      %v3533 = vpop.f32.mrb[0].mxu0
      %v3534 = vpop.f32.mrb[0].mxu0
      %3535 = vdwg.mxu0
      %3536 = vmatprep.subr.bf16.mxu0 %v3409
      %3537 = vmatpush1.bf16.msra.mxu0 %v3408
      %3538 = vmatprep.subr.bf16.mxu0 %v3415
      %3539 = vmatpush1.bf16.msra.mxu0 %v3414
      %3540 = vmatprep.subr.bf16.mxu0 0
      %3541 = vmatpush1.bf16.msra.mxu0 0
      %3542 = vmatprep.subr.bf16.mxu0 0
      %3543 = vmatpush1.bf16.msra.mxu0 0
      %3544 = vmatprep.subr.bf16.mxu0 0
      %3545 = vmatpush1.bf16.msra.mxu0 0
      %3546 = vmatprep.subr.bf16.mxu0 0
      %3547 = vmatpush1.bf16.msra.mxu0 0
      %3548 = vmatprep.subr.bf16.mxu0 0
      %3549 = vmatpush1.bf16.msra.mxu0 0
      %3550 = vmatprep.subr.bf16.mxu0 0
      %3551 = vmatpush1.bf16.msra.mxu0 0
      %3552 = vmatprep.subr.bf16.mxu0 0
      %3553 = vmatpush1.bf16.msra.mxu0 0
      %3554 = vmatprep.subr.bf16.mxu0 0
      %3555 = vmatpush1.bf16.msra.mxu0 0
      %3556 = vmatprep.subr.bf16.mxu0 0
      %3557 = vmatpush1.bf16.msra.mxu0 0
      %3558 = vmatprep.subr.bf16.mxu0 0
      %3559 = vmatpush1.bf16.msra.mxu0 0
      %3560 = vmatprep.subr.bf16.mxu0 0
      %3561 = vmatpush1.bf16.msra.mxu0 0
      %3562 = vmatprep.subr.bf16.mxu0 0
      %3563 = vmatpush1.bf16.msra.mxu0 0
      %3564 = vmatprep.subr.bf16.mxu0 0
      %3565 = vmatpush1.bf16.msra.mxu0 0
      %3566 = vmatprep.subr.bf16.mxu0 0
      %3567 = vmatpush1.bf16.msra.mxu0 0
      %3568 = vmatprep.mubr.bf16.mxu0 0
      %3569 = vmatmul.mubr.bf16.gmra.mrb[0].mxu0 %v3429
      %v3570 = vpop.f32.mrb[0].mxu0
      %v3571 = vadd.f32 %v3357, %v3570
      %v3572 = vpop.f32.mrb[0].mxu0
      %v3573 = vadd.f32 %v3361, %v3572
      %v3574 = vpop.f32.mrb[0].mxu0
      %v3575 = vadd.f32 %v3357, %v3574
      %v3576 = vpop.f32.mrb[0].mxu0
      %v3577 = vadd.f32 %v3361, %v3576
      %3578 = vmatprep.mubr.bf16.mxu0 0
      %3579 = vmatmul.mubr.bf16.gmra.mrb[0].mxu0 %v3432
      %v3580 = vpop.f32.mrb[0].mxu0
      %v3581 = vadd.f32 %v3357, %v3580
      %v3582 = vpop.f32.mrb[0].mxu0
      %v3583 = vadd.f32 %v3361, %v3582
      %v3584 = vpop.f32.mrb[0].mxu0
      %v3585 = vpop.f32.mrb[0].mxu0
      %3586 = vdwg.mxu0
      %3587 = vxpose.xlu0.b32.start [1/16] %v3520, 128
      %3588 = vxpose.xlu0.b32.cont [2/16] %v3524, 128
      %3589 = vxpose.xlu0.b32.cont [3/16] %v3530, 128
      %3590 = vxpose.xlu0.b32.cont [4/16] 0.0, 128
      %3591 = vxpose.xlu0.b32.cont [5/16] 0.0, 128
      %3592 = vxpose.xlu0.b32.cont [6/16] 0.0, 128
      %3593 = vxpose.xlu0.b32.cont [7/16] 0.0, 128
      %3594 = vxpose.xlu0.b32.cont [8/16] 0.0, 128
      %3595 = vxpose.xlu0.b32.cont [9/16] 0.0, 128
      %3596 = vxpose.xlu0.b32.cont [10/16] 0.0, 128
      %3597 = vxpose.xlu0.b32.cont [11/16] 0.0, 128
      %3598 = vxpose.xlu0.b32.cont [12/16] 0.0, 128
      %3599 = vxpose.xlu0.b32.cont [13/16] 0.0, 128
      %3600 = vxpose.xlu0.b32.cont [14/16] 0.0, 128
      %3601 = vxpose.xlu0.b32.cont [15/16] 0.0, 128
      %3602 = vxpose.xlu0.b32.end [16/16] 0.0, 128
      %v3603 = vpop.trf.xlu0
      %v3604 = vpop.trf.xlu0
      %v3605 = vpop.trf.xlu0
      %v3606 = vpop.trf.xlu0
      %v3607 = vpop.trf.xlu0
      %v3608 = vpop.trf.xlu0
      %v3609 = vpop.trf.xlu0
      %v3610 = vpop.trf.xlu0
      %v3611 = vpop.trf.xlu0
      %v3612 = vpop.trf.xlu0
      %v3613 = vpop.trf.xlu0
      %v3614 = vpop.trf.xlu0
      %v3615 = vpop.trf.xlu0
      %v3616 = vpop.trf.xlu0
      %v3617 = vpop.trf.xlu0
      %v3618 = vpop.trf.xlu0
      %v3619 = vpack.c.bf16 %v3473, %v3469
      %v3620 = vpack.c.bf16 %v3479, %v3479
      %v3621 = vpack.c.bf16 %v3604, %v3603
      %v3622 = vpack.c.bf16 %v3606, %v3605
      %v3623 = vpack.c.bf16 %v3608, %v3607
      %v3624 = vpack.c.bf16 %v3610, %v3609
      %v3625 = vpack.c.bf16 %v3612, %v3611
      %v3626 = vpack.c.bf16 %v3614, %v3613
      %v3627 = vpack.c.bf16 %v3616, %v3615
      %v3628 = vpack.c.bf16 %v3618, %v3617
      %3629 = vmatprep.subr.bf16.mxu0 0
      %3630 = vmatpush1.bf16.msra.mxu0 %v3621
      %3631 = vmatprep.subr.bf16.mxu0 0
      %3632 = vmatpush1.bf16.msra.mxu0 %v3622
      %3633 = vmatprep.subr.bf16.mxu0 0
      %3634 = vmatpush1.bf16.msra.mxu0 %v3623
      %3635 = vmatprep.subr.bf16.mxu0 0
      %3636 = vmatpush1.bf16.msra.mxu0 %v3624
      %3637 = vmatprep.subr.bf16.mxu0 0
      %3638 = vmatpush1.bf16.msra.mxu0 %v3625
      %3639 = vmatprep.subr.bf16.mxu0 0
      %3640 = vmatpush1.bf16.msra.mxu0 %v3626
      %3641 = vmatprep.subr.bf16.mxu0 0
      %3642 = vmatpush1.bf16.msra.mxu0 %v3627
      %3643 = vmatprep.subr.bf16.mxu0 0
      %3644 = vmatpush1.bf16.msra.mxu0 %v3628
      %3645 = vmatprep.subr.bf16.mxu0 0
      %3646 = vmatpush1.bf16.msra.mxu0 0
      %3647 = vmatprep.subr.bf16.mxu0 0
      %3648 = vmatpush1.bf16.msra.mxu0 0
      %3649 = vmatprep.subr.bf16.mxu0 0
      %3650 = vmatpush1.bf16.msra.mxu0 0
      %3651 = vmatprep.subr.bf16.mxu0 0
      %3652 = vmatpush1.bf16.msra.mxu0 0
      %3653 = vmatprep.subr.bf16.mxu0 0
      %3654 = vmatpush1.bf16.msra.mxu0 0
      %3655 = vmatprep.subr.bf16.mxu0 0
      %3656 = vmatpush1.bf16.msra.mxu0 0
      %3657 = vmatprep.subr.bf16.mxu0 0
      %3658 = vmatpush1.bf16.msra.mxu0 0
      %3659 = vmatprep.subr.bf16.mxu0 0
      %3660 = vmatpush1.bf16.msra.mxu0 0
      %3661 = vmatprep.mubr.bf16.mxu0 0
      %3662 = vmatmul.mubr.bf16.gmra.mrb[0].mxu0 %v3619
      %v3663 = vpop.f32.mrb[0].mxu0
      %v3664 = vadd.f32 0.0, %v3663
      %v3665 = vpop.f32.mrb[0].mxu0
      %v3666 = vpop.f32.mrb[0].mxu0
      %v3667 = vadd.f32 0.0, %v3666
      %v3668 = vpop.f32.mrb[0].mxu0
      %3669 = vmatprep.mubr.bf16.mxu0 0
      %3670 = vmatmul.mubr.bf16.gmra.mrb[0].mxu0 %v3620
      %v3671 = vpop.f32.mrb[0].mxu0
      %v3672 = vadd.f32 0.0, %v3671
      %v3673 = vpop.f32.mrb[0].mxu0
      %v3674 = vpop.f32.mrb[0].mxu0
      %v3675 = vpop.f32.mrb[0].mxu0
      %3676 = vdwg.mxu0
      %v3677 = vmul.f32 %v3664, 0.25
      %v3678 = vmul.f32 %v3667, 0.25
      %v3679 = vmul.f32 %v3672, 0.25
      %v3680 = vlaneseq
      %v3681 = vshrl.u32 %v3680, 7
      %v3682 = vsub.s32 0, %v3681
      %v3683 = vrot.slane %v3260, %v3682
      %v3684 = vadd.f32 %v3677, %v3683
      %v3685 = vadd.f32 %v3678, %v3683
      %v3686 = vadd.f32 %v3679, %v3683
      %vm3687 = vcmask 195584
      %v3688 = vsel %vm3687, %v3684, -inf
      %3689 = vmax.xlane.f32.xlu0 %v3688
      %v3690 = vpop.xlane.xlu0 %3689
      %v3691 = vsel %vm3687, %v3685, -inf
      %3692 = vmax.xlane.f32.xlu0 %v3691
      %v3693 = vpop.xlane.xlu0 %3692
      %v3694 = vsel %vm3687, %v3686, -inf
      %3695 = vmax.xlane.f32.xlu0 %v3694
      %v3696 = vpop.xlane.xlu0 %3695
      %v3697 = vsub.f32 %v3684, %v3690
      %v3698 = vsub.f32 %v3685, %v3693
      %v3699 = vsub.f32 %v3686, %v3696
      %v3700 = vmul.f32 %v3697, 1.442695
      %v3701 = vpow.pop %v3700
      %v3702 = vmul.f32 %v3698, 1.442695
      %v3703 = vpow.pop %v3702
      %v3704 = vmul.f32 %v3699, 1.442695
      %v3705 = vpow.pop %v3704
      %v3706 = vsel %vm3687, %v3701, 0.0
      %3707 = vadd.xlane.f32.xlu0 %v3706
      %v3708 = vpop.xlane.xlu0 %3707
      %v3709 = vsel %vm3687, %v3703, 0.0
      %3710 = vadd.xlane.f32.xlu0 %v3709
      %v3711 = vpop.xlane.xlu0 %3710
      %v3712 = vsel %vm3687, %v3705, 0.0
      %3713 = vadd.xlane.f32.xlu0 %v3712
      %v3714 = vpop.xlane.xlu0 %3713
      %v3715 = vrcp.pop %v3708
      %v3716 = vrcp.pop %v3711
      %v3717 = vrcp.pop %v3714
      %v3718 = vmul.f32 %v3701, %v3715
      %v3719 = vmul.f32 %v3703, %v3716
      %v3720 = vmul.f32 %v3705, %v3717
      %v3721 = vpack.c.bf16 %v3719, %v3718
      %v3722 = vpack.c.bf16 %v3720, %v3720
      %v3723 = vpack.c.bf16 %v3575, %v3571
      %v3724 = vpack.c.bf16 %v3581, %v3581
      %v3726 = vsel %vm3687, %v3721, 0
      %v3729 = vsel %vm3687, %v3722, 0
      %v3732 = vsel %vm535, %v3724, 0
      %3734 = vmatprep.subr.bf16.mxu0 0
      %3735 = vmatpush1.bf16.msra.mxu0 %v3723
      %3736 = vmatprep.subr.bf16.mxu0 0
      %3737 = vmatpush1.bf16.msra.mxu0 %v3732
      %3738 = vmatprep.subr.bf16.mxu0 0
      %3739 = vmatpush1.bf16.msra.mxu0 0
      %3740 = vmatprep.subr.bf16.mxu0 0
      %3741 = vmatpush1.bf16.msra.mxu0 0
      %3742 = vmatprep.subr.bf16.mxu0 0
      %3743 = vmatpush1.bf16.msra.mxu0 0
      %3744 = vmatprep.subr.bf16.mxu0 0
      %3745 = vmatpush1.bf16.msra.mxu0 0
      %3746 = vmatprep.subr.bf16.mxu0 0
      %3747 = vmatpush1.bf16.msra.mxu0 0
      %3748 = vmatprep.subr.bf16.mxu0 0
      %3749 = vmatpush1.bf16.msra.mxu0 0
      %3750 = vmatprep.subr.bf16.mxu0 0
      %3751 = vmatpush1.bf16.msra.mxu0 0
      %3752 = vmatprep.subr.bf16.mxu0 0
      %3753 = vmatpush1.bf16.msra.mxu0 0
      %3754 = vmatprep.subr.bf16.mxu0 0
      %3755 = vmatpush1.bf16.msra.mxu0 0
      %3756 = vmatprep.subr.bf16.mxu0 0
      %3757 = vmatpush1.bf16.msra.mxu0 0
      %3758 = vmatprep.subr.bf16.mxu0 0
      %3759 = vmatpush1.bf16.msra.mxu0 0
      %3760 = vmatprep.subr.bf16.mxu0 0
      %3761 = vmatpush1.bf16.msra.mxu0 0
      %3762 = vmatprep.subr.bf16.mxu0 0
      %3763 = vmatpush1.bf16.msra.mxu0 0
      %3764 = vmatprep.subr.bf16.mxu0 0
      %3765 = vmatpush1.bf16.msra.mxu0 0
      %3766 = vmatprep.mubr.bf16.mxu0 0
      %3767 = vmatmul.mubr.bf16.gmra.mrb[0].mxu0 %v3726
      %v3768 = vpop.f32.mrb[0].mxu0
      %v3769 = vadd.f32 0.0, %v3768
      %v3770 = vpop.f32.mrb[0].mxu0
      %v3771 = vpop.f32.mrb[0].mxu0
      %v3772 = vadd.f32 0.0, %v3771
      %v3773 = vpop.f32.mrb[0].mxu0
      %3774 = vmatprep.mubr.bf16.mxu0 0
      %3775 = vmatmul.mubr.bf16.gmra.mrb[0].mxu0 %v3729
      %v3776 = vpop.f32.mrb[0].mxu0
      %v3777 = vadd.f32 0.0, %v3776
      %v3778 = vpop.f32.mrb[0].mxu0
      %v3779 = vpop.f32.mrb[0].mxu0
      %v3780 = vpop.f32.mrb[0].mxu0
      %3781 = vdwg.mxu0
      %3782 = vxpose.xlu0.b32.start [1/16] %v3522, 128
      %3783 = vxpose.xlu0.b32.cont [2/16] %v3526, 128
      %3784 = vxpose.xlu0.b32.cont [3/16] %v3532, 128
      %3785 = vxpose.xlu0.b32.cont [4/16] 0.0, 128
      %3786 = vxpose.xlu0.b32.cont [5/16] 0.0, 128
      %3787 = vxpose.xlu0.b32.cont [6/16] 0.0, 128
      %3788 = vxpose.xlu0.b32.cont [7/16] 0.0, 128
      %3789 = vxpose.xlu0.b32.cont [8/16] 0.0, 128
      %3790 = vxpose.xlu0.b32.cont [9/16] 0.0, 128
      %3791 = vxpose.xlu0.b32.cont [10/16] 0.0, 128
      %3792 = vxpose.xlu0.b32.cont [11/16] 0.0, 128
      %3793 = vxpose.xlu0.b32.cont [12/16] 0.0, 128
      %3794 = vxpose.xlu0.b32.cont [13/16] 0.0, 128
      %3795 = vxpose.xlu0.b32.cont [14/16] 0.0, 128
      %3796 = vxpose.xlu0.b32.cont [15/16] 0.0, 128
      %3797 = vxpose.xlu0.b32.end [16/16] 0.0, 128
      %v3798 = vpop.trf.xlu0
      %v3799 = vpop.trf.xlu0
      %v3800 = vpop.trf.xlu0
      %v3801 = vpop.trf.xlu0
      %v3802 = vpop.trf.xlu0
      %v3803 = vpop.trf.xlu0
      %v3804 = vpop.trf.xlu0
      %v3805 = vpop.trf.xlu0
      %v3806 = vpop.trf.xlu0
      %v3807 = vpop.trf.xlu0
      %v3808 = vpop.trf.xlu0
      %v3809 = vpop.trf.xlu0
      %v3810 = vpop.trf.xlu0
      %v3811 = vpop.trf.xlu0
      %v3812 = vpop.trf.xlu0
      %v3813 = vpop.trf.xlu0
      %v3814 = vpack.c.bf16 %v3475, %v3471
      %v3815 = vpack.c.bf16 %v3481, %v3481
      %v3816 = vpack.c.bf16 %v3799, %v3798
      %v3817 = vpack.c.bf16 %v3801, %v3800
      %v3818 = vpack.c.bf16 %v3803, %v3802
      %v3819 = vpack.c.bf16 %v3805, %v3804
      %v3820 = vpack.c.bf16 %v3807, %v3806
      %v3821 = vpack.c.bf16 %v3809, %v3808
      %v3822 = vpack.c.bf16 %v3811, %v3810
      %v3823 = vpack.c.bf16 %v3813, %v3812
      %3824 = vmatprep.subr.bf16.mxu0 0
      %3825 = vmatpush1.bf16.msra.mxu0 %v3816
      %3826 = vmatprep.subr.bf16.mxu0 0
      %3827 = vmatpush1.bf16.msra.mxu0 %v3817
      %3828 = vmatprep.subr.bf16.mxu0 0
      %3829 = vmatpush1.bf16.msra.mxu0 %v3818
      %3830 = vmatprep.subr.bf16.mxu0 0
      %3831 = vmatpush1.bf16.msra.mxu0 %v3819
      %3832 = vmatprep.subr.bf16.mxu0 0
      %3833 = vmatpush1.bf16.msra.mxu0 %v3820
      %3834 = vmatprep.subr.bf16.mxu0 0
      %3835 = vmatpush1.bf16.msra.mxu0 %v3821
      %3836 = vmatprep.subr.bf16.mxu0 0
      %3837 = vmatpush1.bf16.msra.mxu0 %v3822
      %3838 = vmatprep.subr.bf16.mxu0 0
      %3839 = vmatpush1.bf16.msra.mxu0 %v3823
      %3840 = vmatprep.subr.bf16.mxu0 0
      %3841 = vmatpush1.bf16.msra.mxu0 0
      %3842 = vmatprep.subr.bf16.mxu0 0
      %3843 = vmatpush1.bf16.msra.mxu0 0
      %3844 = vmatprep.subr.bf16.mxu0 0
      %3845 = vmatpush1.bf16.msra.mxu0 0
      %3846 = vmatprep.subr.bf16.mxu0 0
      %3847 = vmatpush1.bf16.msra.mxu0 0
      %3848 = vmatprep.subr.bf16.mxu0 0
      %3849 = vmatpush1.bf16.msra.mxu0 0
      %3850 = vmatprep.subr.bf16.mxu0 0
      %3851 = vmatpush1.bf16.msra.mxu0 0
      %3852 = vmatprep.subr.bf16.mxu0 0
      %3853 = vmatpush1.bf16.msra.mxu0 0
      %3854 = vmatprep.subr.bf16.mxu0 0
      %3855 = vmatpush1.bf16.msra.mxu0 0
      %3856 = vmatprep.mubr.bf16.mxu0 0
      %3857 = vmatmul.mubr.bf16.gmra.mrb[0].mxu0 %v3814
      %v3858 = vpop.f32.mrb[0].mxu0
      %v3859 = vadd.f32 0.0, %v3858
      %v3860 = vpop.f32.mrb[0].mxu0
      %v3861 = vpop.f32.mrb[0].mxu0
      %v3862 = vadd.f32 0.0, %v3861
      %v3863 = vpop.f32.mrb[0].mxu0
      %3864 = vmatprep.mubr.bf16.mxu0 0
      %3865 = vmatmul.mubr.bf16.gmra.mrb[0].mxu0 %v3815
      %v3866 = vpop.f32.mrb[0].mxu0
      %v3867 = vadd.f32 0.0, %v3866
      %v3868 = vpop.f32.mrb[0].mxu0
      %v3869 = vpop.f32.mrb[0].mxu0
      %v3870 = vpop.f32.mrb[0].mxu0
      %3871 = vdwg.mxu0
      %v3872 = vmul.f32 %v3859, 0.25
      %v3873 = vmul.f32 %v3862, 0.25
      %v3874 = vmul.f32 %v3867, 0.25
      %v3875 = vadd.f32 %v3872, %v3683
      %v3876 = vadd.f32 %v3873, %v3683
      %v3877 = vadd.f32 %v3874, %v3683
      %v3878 = vsel %vm3687, %v3875, -inf
      %3879 = vmax.xlane.f32.xlu0 %v3878
      %v3880 = vpop.xlane.xlu0 %3879
      %v3881 = vsel %vm3687, %v3876, -inf
      %3882 = vmax.xlane.f32.xlu0 %v3881
      %v3883 = vpop.xlane.xlu0 %3882
      %v3884 = vsel %vm3687, %v3877, -inf
      %3885 = vmax.xlane.f32.xlu0 %v3884
      %v3886 = vpop.xlane.xlu0 %3885
      %v3887 = vsub.f32 %v3875, %v3880
      %v3888 = vsub.f32 %v3876, %v3883
      %v3889 = vsub.f32 %v3877, %v3886
      %v3890 = vmul.f32 %v3887, 1.442695
      %v3891 = vpow.pop %v3890
      %v3892 = vmul.f32 %v3888, 1.442695
      %v3893 = vpow.pop %v3892
      %v3894 = vmul.f32 %v3889, 1.442695
      %v3895 = vpow.pop %v3894
      %v3896 = vsel %vm3687, %v3891, 0.0
      %3897 = vadd.xlane.f32.xlu0 %v3896
      %v3898 = vpop.xlane.xlu0 %3897
      %v3899 = vsel %vm3687, %v3893, 0.0
      %3900 = vadd.xlane.f32.xlu0 %v3899
      %v3901 = vpop.xlane.xlu0 %3900
      %v3902 = vsel %vm3687, %v3895, 0.0
      %3903 = vadd.xlane.f32.xlu0 %v3902
      %v3904 = vpop.xlane.xlu0 %3903
      %v3905 = vrcp.pop %v3898
      %v3906 = vrcp.pop %v3901
      %v3907 = vrcp.pop %v3904
      %v3908 = vmul.f32 %v3891, %v3905
      %v3909 = vmul.f32 %v3893, %v3906
      %v3910 = vmul.f32 %v3895, %v3907
      %v3911 = vpack.c.bf16 %v3909, %v3908
      %v3912 = vpack.c.bf16 %v3910, %v3910
      %v3913 = vpack.c.bf16 %v3577, %v3573
      %v3914 = vpack.c.bf16 %v3583, %v3583
      %v3916 = vsel %vm3687, %v3911, 0
      %v3919 = vsel %vm3687, %v3912, 0
      %v3922 = vsel %vm535, %v3914, 0
      %3924 = vmatprep.subr.bf16.mxu0 0
      %3925 = vmatpush1.bf16.msra.mxu0 %v3913
      %3926 = vmatprep.subr.bf16.mxu0 0
      %3927 = vmatpush1.bf16.msra.mxu0 %v3922
      %3928 = vmatprep.subr.bf16.mxu0 0
      %3929 = vmatpush1.bf16.msra.mxu0 0
      %3930 = vmatprep.subr.bf16.mxu0 0
      %3931 = vmatpush1.bf16.msra.mxu0 0
      %3932 = vmatprep.subr.bf16.mxu0 0
      %3933 = vmatpush1.bf16.msra.mxu0 0
      %3934 = vmatprep.subr.bf16.mxu0 0
      %3935 = vmatpush1.bf16.msra.mxu0 0
      %3936 = vmatprep.subr.bf16.mxu0 0
      %3937 = vmatpush1.bf16.msra.mxu0 0
      %3938 = vmatprep.subr.bf16.mxu0 0
      %3939 = vmatpush1.bf16.msra.mxu0 0
      %3940 = vmatprep.subr.bf16.mxu0 0
      %3941 = vmatpush1.bf16.msra.mxu0 0
      %3942 = vmatprep.subr.bf16.mxu0 0
      %3943 = vmatpush1.bf16.msra.mxu0 0
      %3944 = vmatprep.subr.bf16.mxu0 0
      %3945 = vmatpush1.bf16.msra.mxu0 0
      %3946 = vmatprep.subr.bf16.mxu0 0
      %3947 = vmatpush1.bf16.msra.mxu0 0
      %3948 = vmatprep.subr.bf16.mxu0 0
      %3949 = vmatpush1.bf16.msra.mxu0 0
      %3950 = vmatprep.subr.bf16.mxu0 0
      %3951 = vmatpush1.bf16.msra.mxu0 0
      %3952 = vmatprep.subr.bf16.mxu0 0
      %3953 = vmatpush1.bf16.msra.mxu0 0
      %3954 = vmatprep.subr.bf16.mxu0 0
      %3955 = vmatpush1.bf16.msra.mxu0 0
      %3956 = vmatprep.mubr.bf16.mxu0 0
      %3957 = vmatmul.mubr.bf16.gmra.mrb[0].mxu0 %v3916
      %v3958 = vpop.f32.mrb[0].mxu0
      %v3959 = vadd.f32 0.0, %v3958
      %v3960 = vpop.f32.mrb[0].mxu0
      %v3961 = vpop.f32.mrb[0].mxu0
      %v3962 = vadd.f32 0.0, %v3961
      %v3963 = vpop.f32.mrb[0].mxu0
      %3964 = vmatprep.mubr.bf16.mxu0 0
      %3965 = vmatmul.mubr.bf16.gmra.mrb[0].mxu0 %v3919
      %v3966 = vpop.f32.mrb[0].mxu0
      %v3967 = vadd.f32 0.0, %v3966
      %v3968 = vpop.f32.mrb[0].mxu0
      %v3969 = vpop.f32.mrb[0].mxu0
      %v3970 = vpop.f32.mrb[0].mxu0
      %3971 = vdwg.mxu0
      %s3972 = scalar_lea.vmem %s8, 256
      %v3973 = vld [vmem:[%s3972] sm:$0xf]
      %v3974 = vld [vmem:[%s3972 + $0x4] sm:$0xf]
      %v3975 = vld [vmem:[%s3972 + $0x8] sm:$0xf]
      %v3976 = vld [vmem:[%s3972 + $0xc] sm:$0xf]
      %v3977 = vld [vmem:[%s3972 + $0x10] sm:$0xf]
      %v3978 = vld [vmem:[%s3972 + $0x14] sm:$0xf]
      %v3979 = vld [vmem:[%s3972 + $0x18] sm:$0xf]
      %v3980 = vld [vmem:[%s3972 + $0x1c] sm:$0xf]
      %v3981 = vld [vmem:[%s3972 + $0x20] sm:$0xf]
      %v3982 = vld [vmem:[%s3972 + $0x24] sm:$0xf]
      %v3983 = vld [vmem:[%s3972 + $0x28] sm:$0xf]
      %v3984 = vld [vmem:[%s3972 + $0x2c] sm:$0xf]
      %v3985 = vld [vmem:[%s3972 + $0x30] sm:$0xf]
      %v3986 = vld [vmem:[%s3972 + $0x34] sm:$0xf]
      %v3987 = vld [vmem:[%s3972 + $0x38] sm:$0xf]
      %v3988 = vld [vmem:[%s3972 + $0x3c] sm:$0xf]
      %v3989 = vld [vmem:[%s3972 + $0x40] sm:$0xf]
      %v3990 = vld [vmem:[%s3972 + $0x44] sm:$0xf]
      %v3991 = vld [vmem:[%s3972 + $0x48] sm:$0xf]
      %v3992 = vld [vmem:[%s3972 + $0x4c] sm:$0xf]
      %v3993 = vld [vmem:[%s3972 + $0x50] sm:$0xf]
      %v3994 = vld [vmem:[%s3972 + $0x54] sm:$0xf]
      %v3995 = vld [vmem:[%s3972 + $0x58] sm:$0xf]
      %v3996 = vld [vmem:[%s3972 + $0x5c] sm:$0xf]
      %v3997 = vld [vmem:[%s3972 + $0x60] sm:$0xf]
      %v3998 = vld [vmem:[%s3972 + $0x64] sm:$0xf]
      %v3999 = vld [vmem:[%s3972 + $0x68] sm:$0xf]
      %v4000 = vld [vmem:[%s3972 + $0x6c] sm:$0xf]
      %v4001 = vld [vmem:[%s3972 + $0x70] sm:$0xf]
      %v4002 = vld [vmem:[%s3972 + $0x74] sm:$0xf]
      %v4003 = vld [vmem:[%s3972 + $0x78] sm:$0xf]
      %v4004 = vld [vmem:[%s3972 + $0x7c] sm:$0xf]
      %v4005 = vpack.c.bf16 %v3772, %v3769
      %v4006 = vpack.c.bf16 %v3962, %v3959
      %v4007 = vpack.c.bf16 %v3777, %v3777
      %v4008 = vpack.c.bf16 %v3967, %v3967
      %v4009 = vlaneseq
      %v4010 = vshrl.u32 %v4009, 7
      %v4011 = vsub.s32 0, %v4010
      %v4012 = vrot.slane %v3319, %v4011
      %v4045 = vunpack.c.l.b16 %v3973
      %v4046 = vunpack.c.l.b16 %v3974
      %v4047 = vunpack.c.l.b16 %v3975
      %v4048 = vunpack.c.l.b16 %v3976
      %v4049 = vunpack.c.l.b16 %v3977
      %v4050 = vunpack.c.l.b16 %v3978
      %v4051 = vunpack.c.l.b16 %v3979
      %v4052 = vunpack.c.l.b16 %v3980
      %v4053 = vunpack.c.l.b16 %v3981
      %v4054 = vunpack.c.l.b16 %v3982
      %v4055 = vunpack.c.l.b16 %v3983
      %v4056 = vunpack.c.l.b16 %v3984
      %v4057 = vunpack.c.l.b16 %v3985
      %v4058 = vunpack.c.l.b16 %v3986
      %v4059 = vunpack.c.l.b16 %v3987
      %v4060 = vunpack.c.l.b16 %v3988
      %v4061 = vunpack.c.l.b16 %v3989
      %v4062 = vunpack.c.l.b16 %v3990
      %v4063 = vunpack.c.l.b16 %v3991
      %v4064 = vunpack.c.l.b16 %v3992
      %v4065 = vunpack.c.l.b16 %v3993
      %v4066 = vunpack.c.l.b16 %v3994
      %v4067 = vunpack.c.l.b16 %v3995
      %v4068 = vunpack.c.l.b16 %v3996
      %v4069 = vunpack.c.l.b16 %v3997
      %v4070 = vunpack.c.l.b16 %v3998
      %v4071 = vunpack.c.l.b16 %v3999
      %v4072 = vunpack.c.l.b16 %v4000
      %v4073 = vunpack.c.l.b16 %v4001
      %v4074 = vunpack.c.l.b16 %v4002
      %v4075 = vunpack.c.l.b16 %v4003
      %v4076 = vunpack.c.l.b16 %v4004
      %v4077 = vpack.c.b16 %v4046, %v4045
      %v4078 = vpack.c.b16 %v4048, %v4047
      %v4079 = vpack.c.b16 %v4050, %v4049
      %v4080 = vpack.c.b16 %v4052, %v4051
      %v4081 = vpack.c.b16 %v4054, %v4053
      %v4082 = vpack.c.b16 %v4056, %v4055
      %v4083 = vpack.c.b16 %v4058, %v4057
      %v4084 = vpack.c.b16 %v4060, %v4059
      %v4085 = vpack.c.b16 %v4062, %v4061
      %v4086 = vpack.c.b16 %v4064, %v4063
      %v4087 = vpack.c.b16 %v4066, %v4065
      %v4088 = vpack.c.b16 %v4068, %v4067
      %v4089 = vpack.c.b16 %v4070, %v4069
      %v4090 = vpack.c.b16 %v4072, %v4071
      %v4091 = vpack.c.b16 %v4074, %v4073
      %v4092 = vpack.c.b16 %v4076, %v4075
      %4109 = vmatprep.subr.bf16.mxu0 0
      %4110 = vmatpush1.bf16.msra.mxu0 %v4077
      %4111 = vmatprep.subr.bf16.mxu0 0
      %4112 = vmatpush1.bf16.msra.mxu0 %v4078
      %4113 = vmatprep.subr.bf16.mxu0 0
      %4114 = vmatpush1.bf16.msra.mxu0 %v4079
      %4115 = vmatprep.subr.bf16.mxu0 0
      %4116 = vmatpush1.bf16.msra.mxu0 %v4080
      %4117 = vmatprep.subr.bf16.mxu0 0
      %4118 = vmatpush1.bf16.msra.mxu0 %v4081
      %4119 = vmatprep.subr.bf16.mxu0 0
      %4120 = vmatpush1.bf16.msra.mxu0 %v4082
      %4121 = vmatprep.subr.bf16.mxu0 0
      %4122 = vmatpush1.bf16.msra.mxu0 %v4083
      %4123 = vmatprep.subr.bf16.mxu0 0
      %4124 = vmatpush1.bf16.msra.mxu0 %v4084
      %4125 = vmatprep.subr.bf16.mxu0 0
      %4126 = vmatpush1.bf16.msra.mxu0 %v4085
      %4127 = vmatprep.subr.bf16.mxu0 0
      %4128 = vmatpush1.bf16.msra.mxu0 %v4086
      %4129 = vmatprep.subr.bf16.mxu0 0
      %4130 = vmatpush1.bf16.msra.mxu0 %v4087
      %4131 = vmatprep.subr.bf16.mxu0 0
      %4132 = vmatpush1.bf16.msra.mxu0 %v4088
      %4133 = vmatprep.subr.bf16.mxu0 0
      %4134 = vmatpush1.bf16.msra.mxu0 %v4089
      %4135 = vmatprep.subr.bf16.mxu0 0
      %4136 = vmatpush1.bf16.msra.mxu0 %v4090
      %4137 = vmatprep.subr.bf16.mxu0 0
      %4138 = vmatpush1.bf16.msra.mxu0 %v4091
      %4139 = vmatprep.subr.bf16.mxu0 0
      %4140 = vmatpush1.bf16.msra.mxu0 %v4092
      %4141 = vmatprep.mubr.bf16.mxu0 %v4006
      %4142 = vmatmul.mubr.bf16.gmra.mrb[0].mxu0 %v4005
      %v4143 = vpop.f32.mrb[0].mxu0
      %v4144 = vadd.f32 %v4012, %v4143
      %v4145 = vpop.f32.mrb[0].mxu0
      %v4146 = vpop.f32.mrb[0].mxu0
      %v4147 = vadd.f32 %v4012, %v4146
      %v4148 = vpop.f32.mrb[0].mxu0
      %4149 = vmatprep.mubr.bf16.mxu0 %v4008
      %4150 = vmatmul.mubr.bf16.gmra.mrb[0].mxu0 %v4007
      %v4151 = vpop.f32.mrb[0].mxu0
      %v4152 = vadd.f32 %v4012, %v4151
      %v4153 = vpop.f32.mrb[0].mxu0
      %v4154 = vpop.f32.mrb[0].mxu0
      %v4155 = vpop.f32.mrb[0].mxu0
      %4156 = vdwg.mxu0
      %v4157 = vadd.f32 %v4144, %v3305
      %v4158 = vadd.f32 %v4147, %v3308
      %v4159 = vadd.f32 %v4152, %v3313
      %v4160 = vsel %vm422, %v4157, 0.0
      %4161 = vadd.xlane.f32.xlu0 %v4160
      %v4162 = vpop.xlane.xlu0 %4161
      %v4163 = vsel %vm422, %v4158, 0.0
      %4164 = vadd.xlane.f32.xlu0 %v4163
      %v4165 = vpop.xlane.xlu0 %4164
      %v4166 = vsel %vm422, %v4159, 0.0
      %4167 = vadd.xlane.f32.xlu0 %v4166
      %v4168 = vpop.xlane.xlu0 %4167
      %v4169 = vmul.f32 %v4162, %v1427
      %v4170 = vmul.f32 %v4165, %v1427
      %v4171 = vmul.f32 %v4168, %v1427
      %v4172 = vsub.f32 %v4157, %v4169
      %v4173 = vsub.f32 %v4158, %v4170
      %v4174 = vsub.f32 %v4159, %v4171
      %v4175 = vmul.f32 %v4172, %v4172
      %v4176 = vmul.f32 %v4173, %v4173
      %v4177 = vmul.f32 %v4174, %v4174
      %v4178 = vsel %vm422, %v4175, 0.0
      %4179 = vadd.xlane.f32.xlu0 %v4178
      %v4180 = vpop.xlane.xlu0 %4179
      %v4181 = vsel %vm422, %v4176, 0.0
      %4182 = vadd.xlane.f32.xlu0 %v4181
      %v4183 = vpop.xlane.xlu0 %4182
      %v4184 = vsel %vm422, %v4177, 0.0
      %4185 = vadd.xlane.f32.xlu0 %v4184
      %v4186 = vpop.xlane.xlu0 %4185
      %v4187 = vmul.f32 %v4180, %v1427
      %v4188 = vmul.f32 %v4183, %v1427
      %v4189 = vmul.f32 %v4186, %v1427
      %v4190 = vadd.f32 %v4187, 1e-05
      %v4191 = vadd.f32 %v4188, 1e-05
      %v4192 = vadd.f32 %v4189, 1e-05
      %v4193 = vrsqrt.pop %v4190
      %v4194 = vrsqrt.pop %v4191
      %v4195 = vrsqrt.pop %v4192
      %v4196 = vmul.f32 %v4172, %v4193
      %v4197 = vmul.f32 %v4173, %v4194
      %v4198 = vmul.f32 %v4174, %v4195
      %v4199 = vlaneseq
      %v4200 = vshrl.u32 %v4199, 7
      %v4201 = vsub.s32 1, %v4200
      %v4202 = vrot.slane %v3319, %v4201
      %v4203 = vmul.f32 %v4196, %v4202
      %v4204 = vmul.f32 %v4197, %v4202
      %v4205 = vmul.f32 %v4198, %v4202
      %v4206 = vlaneseq
      %v4207 = vshrl.u32 %v4206, 7
      %v4208 = vsub.s32 2, %v4207
      %v4209 = vrot.slane %v3319, %v4208
      %v4210 = vadd.f32 %v4203, %v4209
      %v4211 = vadd.f32 %v4204, %v4209
      %v4212 = vadd.f32 %v4205, %v4209
      %4214 = vset.pattern.permute.xlu0 0
      %4215 = vperm.xlu0 %4214, %v3256
      %v4216 = vpop.permute.xlu0 %4215
      %4219 = vset.pattern.permute.xlu0 0
      %4220 = vperm.xlu0 %4219, %v3257
      %v4221 = vpop.permute.xlu0 %4220
      %4224 = vset.pattern.permute.xlu0 0
      %4225 = vperm.xlu0 %4224, %v3258
      %v4226 = vpop.permute.xlu0 %4225
      %v4228 = vmul.f32 %v4210, %v4216
      %v4229 = vmul.f32 %v4211, %v4221
      %v4230 = vmul.f32 %v4212, %v4226
      %s4231 = scalar_lea.vmem %s9, 288
      %v4232 = vld [vmem:[%s4231] sm:$0xf]
      %v4233 = vld [vmem:[%s4231 + $0x4] sm:$0xf]
      %v4234 = vld [vmem:[%s4231 + $0x8] sm:$0xf]
      %v4235 = vld [vmem:[%s4231 + $0xc] sm:$0xf]
      %v4236 = vld [vmem:[%s4231 + $0x10] sm:$0xf]
      %v4237 = vld [vmem:[%s4231 + $0x14] sm:$0xf]
      %v4238 = vld [vmem:[%s4231 + $0x18] sm:$0xf]
      %v4239 = vld [vmem:[%s4231 + $0x1c] sm:$0xf]
      %v4240 = vld [vmem:[%s4231 + $0x20] sm:$0xf]
      %v4241 = vld [vmem:[%s4231 + $0x24] sm:$0xf]
      %v4242 = vld [vmem:[%s4231 + $0x28] sm:$0xf]
      %v4243 = vld [vmem:[%s4231 + $0x2c] sm:$0xf]
      %v4244 = vld [vmem:[%s4231 + $0x30] sm:$0xf]
      %v4245 = vld [vmem:[%s4231 + $0x34] sm:$0xf]
      %v4246 = vld [vmem:[%s4231 + $0x38] sm:$0xf]
      %v4247 = vld [vmem:[%s4231 + $0x3c] sm:$0xf]
      %v4248 = vld [vmem:[%s4231 + $0x40] sm:$0xf]
      %v4249 = vld [vmem:[%s4231 + $0x44] sm:$0xf]
      %v4250 = vld [vmem:[%s4231 + $0x48] sm:$0xf]
      %v4251 = vld [vmem:[%s4231 + $0x4c] sm:$0xf]
      %v4252 = vld [vmem:[%s4231 + $0x50] sm:$0xf]
      %v4253 = vld [vmem:[%s4231 + $0x54] sm:$0xf]
      %v4254 = vld [vmem:[%s4231 + $0x58] sm:$0xf]
      %v4255 = vld [vmem:[%s4231 + $0x5c] sm:$0xf]
      %v4256 = vld [vmem:[%s4231 + $0x60] sm:$0xf]
      %v4257 = vld [vmem:[%s4231 + $0x64] sm:$0xf]
      %v4258 = vld [vmem:[%s4231 + $0x68] sm:$0xf]
      %v4259 = vld [vmem:[%s4231 + $0x6c] sm:$0xf]
      %v4260 = vld [vmem:[%s4231 + $0x70] sm:$0xf]
      %v4261 = vld [vmem:[%s4231 + $0x74] sm:$0xf]
      %v4262 = vld [vmem:[%s4231 + $0x78] sm:$0xf]
      %v4263 = vld [vmem:[%s4231 + $0x7c] sm:$0xf]
      %v4264 = vld [vmem:[%s4231 + $0x80] sm:$0xf]
      %v4265 = vld [vmem:[%s4231 + $0x84] sm:$0xf]
      %v4266 = vld [vmem:[%s4231 + $0x88] sm:$0xf]
      %v4267 = vld [vmem:[%s4231 + $0x8c] sm:$0xf]
      %s4268 = scalar_lea.vmem %s10, 2
      %v4269 = vld [vmem:[%s4268] sm:$0x1]
      %4270 = vst.msk [vmem:[#allocation2 + $0x8] sm:$0xff] %vm422, %v4228
      %4271 = vst.msk [vmem:[#allocation2 + $0x10] sm:$0xff] %vm422, %v4229
      %4272 = vst.msk [vmem:[#allocation2 + $0x18] sm:$0xff] %vm422, %v4230
      %v4273 = vld [vmem:[#allocation2 + $0x4] sm:$0xff]
      %v4274 = vld [vmem:[#allocation2 + $0xc] sm:$0xff]
      %v4275 = vld [vmem:[#allocation2 + $0x14] sm:$0xff]
      %v4276 = vld [vmem:[#allocation2 + $0x5] sm:$0xff]
      %v4277 = vld [vmem:[#allocation2 + $0xd] sm:$0xff]
      %v4278 = vld [vmem:[#allocation2 + $0x15] sm:$0xff]
      %v4279 = vld [vmem:[#allocation2 + $0x6] sm:$0xff]
      %v4280 = vld [vmem:[#allocation2 + $0xe] sm:$0xff]
      %v4281 = vld [vmem:[#allocation2 + $0x16] sm:$0xff]
      %v4282 = vld [vmem:[#allocation2 + $0x7] sm:$0xff]
      %v4283 = vld [vmem:[#allocation2 + $0xf] sm:$0xff]
      %v4284 = vld [vmem:[#allocation2 + $0x17] sm:$0xff]
      %v4285 = vld [vmem:[#allocation2 + $0x8] sm:$0xff]
      %v4286 = vld [vmem:[#allocation2 + $0x10] sm:$0xff]
      %v4287 = vld [vmem:[#allocation2 + $0x18] sm:$0xff]
      %v4288 = vld [vmem:[#allocation2 + $0x9] sm:$0xff]
      %v4289 = vld [vmem:[#allocation2 + $0x11] sm:$0xff]
      %v4290 = vld [vmem:[#allocation2 + $0x19] sm:$0xff]
      %v4291 = vld [vmem:[#allocation2 + $0xa] sm:$0xff]
      %v4292 = vld [vmem:[#allocation2 + $0x12] sm:$0xff]
      %v4293 = vld [vmem:[#allocation2 + $0x1a] sm:$0xff]
      %v4294 = vld [vmem:[#allocation2 + $0xb] sm:$0xff]
      %v4295 = vld [vmem:[#allocation2 + $0x13] sm:$0xff]
      %v4296 = vld [vmem:[#allocation2 + $0x1b] sm:$0xff]
      %v4297 = vld [vmem:[#allocation2 + $0x1c] sm:$0xff]
      %4301 = vrot.lane.b32.xlu0 %v4276, 32
      %v4302 = vpop.permute.xlu0 %4301
      %4303 = vrot.lane.b32.xlu0 %v4277, 32
      %v4304 = vpop.permute.xlu0 %4303
      %4305 = vrot.lane.b32.xlu0 %v4278, 32
      %v4306 = vpop.permute.xlu0 %4305
      %4313 = vrot.lane.b32.xlu0 %v4279, 64
      %v4314 = vpop.permute.xlu0 %4313
      %4315 = vrot.lane.b32.xlu0 %v4280, 64
      %v4316 = vpop.permute.xlu0 %4315
      %4317 = vrot.lane.b32.xlu0 %v4281, 64
      %v4318 = vpop.permute.xlu0 %4317
      %4325 = vrot.lane.b32.xlu0 %v4282, 96
      %v4326 = vpop.permute.xlu0 %4325
      %4327 = vrot.lane.b32.xlu0 %v4283, 96
      %v4328 = vpop.permute.xlu0 %4327
      %4329 = vrot.lane.b32.xlu0 %v4284, 96
      %v4330 = vpop.permute.xlu0 %4329
      %4337 = vrot.lane.b32.xlu0 %v4288, 32
      %v4338 = vpop.permute.xlu0 %4337
      %4339 = vrot.lane.b32.xlu0 %v4289, 32
      %v4340 = vpop.permute.xlu0 %4339
      %4341 = vrot.lane.b32.xlu0 %v4290, 32
      %v4342 = vpop.permute.xlu0 %4341
      %4349 = vrot.lane.b32.xlu0 %v4291, 64
      %v4350 = vpop.permute.xlu0 %4349
      %4351 = vrot.lane.b32.xlu0 %v4292, 64
      %v4352 = vpop.permute.xlu0 %4351
      %4353 = vrot.lane.b32.xlu0 %v4293, 64
      %v4354 = vpop.permute.xlu0 %4353
      %4361 = vrot.lane.b32.xlu0 %v4294, 96
      %v4362 = vpop.permute.xlu0 %4361
      %4363 = vrot.lane.b32.xlu0 %v4295, 96
      %v4364 = vpop.permute.xlu0 %4363
      %4365 = vrot.lane.b32.xlu0 %v4296, 96
      %v4366 = vpop.permute.xlu0 %4365
      %v4370 = vsel %vm422, %v4273, %v4302
      %v4371 = vsel %vm422, %v4274, %v4304
      %v4372 = vsel %vm422, %v4275, %v4306
      %v4373 = vsel %vm1526, %v4370, %v4314
      %v4374 = vsel %vm1526, %v4371, %v4316
      %v4375 = vsel %vm1526, %v4372, %v4318
      %v4376 = vsel %vm1528, %v4373, %v4326
      %v4377 = vsel %vm1528, %v4374, %v4328
      %v4378 = vsel %vm1528, %v4375, %v4330
      %v4379 = vsel %vm422, %v4285, %v4338
      %v4380 = vsel %vm422, %v4286, %v4340
      %v4381 = vsel %vm422, %v4287, %v4342
      %v4382 = vsel %vm1526, %v4379, %v4350
      %v4383 = vsel %vm1526, %v4380, %v4352
      %v4384 = vsel %vm1526, %v4381, %v4354
      %v4385 = vsel %vm1528, %v4382, %v4362
      %v4386 = vsel %vm1528, %v4383, %v4364
      %v4387 = vsel %vm1528, %v4384, %v4366
      %v4388 = vpack.c.bf16 %v4377, %v4376
      %v4389 = vpack.c.bf16 %v4386, %v4385
      %v4390 = vpack.c.bf16 %v4275, %v4274
      %v4391 = vpack.c.bf16 %v4378, %v4378
      %v4392 = vpack.c.bf16 %v4387, %v4387
      %v4393 = vpack.c.bf16 %v4297, %v4297
      %v4395 = vlaneseq
      %v4396 = vshrl.u32 %v4395, 7
      %v4397 = vsub.s32 0, %v4396
      %v4398 = vrot.slane %v4269, %v4397
      %v4436 = vunpack.c.l.b16 %v4232
      %v4437 = vunpack.c.l.b16 %v4233
      %v4438 = vunpack.c.l.b16 %v4234
      %v4439 = vunpack.c.l.b16 %v4235
      %v4440 = vunpack.c.l.b16 %v4236
      %v4441 = vunpack.c.l.b16 %v4237
      %v4442 = vunpack.c.l.b16 %v4238
      %v4443 = vunpack.c.l.b16 %v4239
      %v4444 = vunpack.c.l.b16 %v4240
      %v4445 = vunpack.c.l.b16 %v4241
      %v4446 = vunpack.c.l.b16 %v4242
      %v4447 = vunpack.c.l.b16 %v4243
      %v4448 = vunpack.c.l.b16 %v4244
      %v4449 = vunpack.c.l.b16 %v4245
      %v4450 = vunpack.c.l.b16 %v4246
      %v4451 = vunpack.c.l.b16 %v4247
      %v4452 = vunpack.c.l.b16 %v4248
      %v4453 = vunpack.c.l.b16 %v4249
      %v4454 = vunpack.c.l.b16 %v4250
      %v4455 = vunpack.c.l.b16 %v4251
      %v4456 = vunpack.c.l.b16 %v4252
      %v4457 = vunpack.c.l.b16 %v4253
      %v4458 = vunpack.c.l.b16 %v4254
      %v4459 = vunpack.c.l.b16 %v4255
      %v4460 = vunpack.c.l.b16 %v4256
      %v4461 = vunpack.c.l.b16 %v4257
      %v4462 = vunpack.c.l.b16 %v4258
      %v4463 = vunpack.c.l.b16 %v4259
      %v4464 = vunpack.c.l.b16 %v4260
      %v4465 = vunpack.c.l.b16 %v4261
      %v4466 = vunpack.c.l.b16 %v4262
      %v4467 = vunpack.c.l.b16 %v4263
      %v4468 = vunpack.c.l.b16 %v4264
      %v4469 = vunpack.c.l.b16 %v4265
      %v4470 = vunpack.c.l.b16 %v4266
      %v4471 = vunpack.c.l.b16 %v4267
      %v4472 = vpack.c.b16 %v4437, %v4436
      %v4473 = vpack.c.b16 %v4439, %v4438
      %v4474 = vpack.c.b16 %v4441, %v4440
      %v4475 = vpack.c.b16 %v4443, %v4442
      %v4476 = vpack.c.b16 %v4445, %v4444
      %v4477 = vpack.c.b16 %v4447, %v4446
      %v4478 = vpack.c.b16 %v4449, %v4448
      %v4479 = vpack.c.b16 %v4451, %v4450
      %v4480 = vpack.c.b16 %v4453, %v4452
      %v4481 = vpack.c.b16 %v4455, %v4454
      %v4482 = vpack.c.b16 %v4457, %v4456
      %v4483 = vpack.c.b16 %v4459, %v4458
      %v4484 = vpack.c.b16 %v4461, %v4460
      %v4485 = vpack.c.b16 %v4463, %v4462
      %v4486 = vpack.c.b16 %v4465, %v4464
      %v4487 = vpack.c.b16 %v4467, %v4466
      %v4488 = vpack.c.b16 %v4469, %v4468
      %v4489 = vpack.c.b16 %v4471, %v4470
      %v4509 = vsel %vm422, %v4390, 0
      %v4512 = vsel %vm422, %v4393, 0
      %4514 = vmatprep.subr.bf16.mxu0 0
      %4515 = vmatpush1.bf16.msra.mxu0 %v4472
      %4516 = vmatprep.subr.bf16.mxu0 0
      %4517 = vmatpush1.bf16.msra.mxu0 %v4473
      %4518 = vmatprep.subr.bf16.mxu0 0
      %4519 = vmatpush1.bf16.msra.mxu0 %v4474
      %4520 = vmatprep.subr.bf16.mxu0 0
      %4521 = vmatpush1.bf16.msra.mxu0 %v4475
      %4522 = vmatprep.subr.bf16.mxu0 0
      %4523 = vmatpush1.bf16.msra.mxu0 %v4476
      %4524 = vmatprep.subr.bf16.mxu0 0
      %4525 = vmatpush1.bf16.msra.mxu0 %v4477
      %4526 = vmatprep.subr.bf16.mxu0 0
      %4527 = vmatpush1.bf16.msra.mxu0 %v4478
      %4528 = vmatprep.subr.bf16.mxu0 0
      %4529 = vmatpush1.bf16.msra.mxu0 %v4479
      %4530 = vmatprep.subr.bf16.mxu0 0
      %4531 = vmatpush1.bf16.msra.mxu0 %v4480
      %4532 = vmatprep.subr.bf16.mxu0 0
      %4533 = vmatpush1.bf16.msra.mxu0 %v4481
      %4534 = vmatprep.subr.bf16.mxu0 0
      %4535 = vmatpush1.bf16.msra.mxu0 %v4482
      %4536 = vmatprep.subr.bf16.mxu0 0
      %4537 = vmatpush1.bf16.msra.mxu0 %v4483
      %4538 = vmatprep.subr.bf16.mxu0 0
      %4539 = vmatpush1.bf16.msra.mxu0 %v4484
      %4540 = vmatprep.subr.bf16.mxu0 0
      %4541 = vmatpush1.bf16.msra.mxu0 %v4485
      %4542 = vmatprep.subr.bf16.mxu0 0
      %4543 = vmatpush1.bf16.msra.mxu0 %v4486
      %4544 = vmatprep.subr.bf16.mxu0 0
      %4545 = vmatpush1.bf16.msra.mxu0 %v4487
      %4546 = vmatprep.mubr.bf16.mxu0 %v4389
      %4547 = vmatmul.mubr.bf16.gmra.mrb[0].mxu0 %v4388
      %v4548 = vpop.f32.mrb[0].mxu0
      %v4549 = vadd.f32 %v4398, %v4548
      %v4550 = vpop.f32.mrb[0].mxu0
      %v4551 = vpop.f32.mrb[0].mxu0
      %v4552 = vadd.f32 %v4398, %v4551
      %v4553 = vpop.f32.mrb[0].mxu0
      %4554 = vmatprep.mubr.bf16.mxu0 %v4392
      %4555 = vmatmul.mubr.bf16.gmra.mrb[0].mxu0 %v4391
      %v4556 = vpop.f32.mrb[0].mxu0
      %v4557 = vadd.f32 %v4398, %v4556
      %v4558 = vpop.f32.mrb[0].mxu0
      %v4559 = vpop.f32.mrb[0].mxu0
      %v4560 = vpop.f32.mrb[0].mxu0
      %4561 = vdwg.mxu0
      %4562 = vmatprep.subr.bf16.mxu0 0
      %4563 = vmatpush1.bf16.msra.mxu0 %v4488
      %4564 = vmatprep.subr.bf16.mxu0 0
      %4565 = vmatpush1.bf16.msra.mxu0 %v4489
      %4566 = vmatprep.subr.bf16.mxu0 0
      %4567 = vmatpush1.bf16.msra.mxu0 0
      %4568 = vmatprep.subr.bf16.mxu0 0
      %4569 = vmatpush1.bf16.msra.mxu0 0
      %4570 = vmatprep.subr.bf16.mxu0 0
      %4571 = vmatpush1.bf16.msra.mxu0 0
      %4572 = vmatprep.subr.bf16.mxu0 0
      %4573 = vmatpush1.bf16.msra.mxu0 0
      %4574 = vmatprep.subr.bf16.mxu0 0
      %4575 = vmatpush1.bf16.msra.mxu0 0
      %4576 = vmatprep.subr.bf16.mxu0 0
      %4577 = vmatpush1.bf16.msra.mxu0 0
      %4578 = vmatprep.subr.bf16.mxu0 0
      %4579 = vmatpush1.bf16.msra.mxu0 0
      %4580 = vmatprep.subr.bf16.mxu0 0
      %4581 = vmatpush1.bf16.msra.mxu0 0
      %4582 = vmatprep.subr.bf16.mxu0 0
      %4583 = vmatpush1.bf16.msra.mxu0 0
      %4584 = vmatprep.subr.bf16.mxu0 0
      %4585 = vmatpush1.bf16.msra.mxu0 0
      %4586 = vmatprep.subr.bf16.mxu0 0
      %4587 = vmatpush1.bf16.msra.mxu0 0
      %4588 = vmatprep.subr.bf16.mxu0 0
      %4589 = vmatpush1.bf16.msra.mxu0 0
      %4590 = vmatprep.subr.bf16.mxu0 0
      %4591 = vmatpush1.bf16.msra.mxu0 0
      %4592 = vmatprep.subr.bf16.mxu0 0
      %4593 = vmatpush1.bf16.msra.mxu0 0
      %4594 = vmatprep.mubr.bf16.mxu0 0
      %4595 = vmatmul.mubr.bf16.gmra.mrb[0].mxu0 %v4509
      %v4596 = vpop.f32.mrb[0].mxu0
      %v4597 = vadd.f32 %v4549, %v4596
      %v4598 = vpop.f32.mrb[0].mxu0
      %v4599 = vpop.f32.mrb[0].mxu0
      %v4600 = vadd.f32 %v4552, %v4599
      %v4601 = vpop.f32.mrb[0].mxu0
      %4602 = vmatprep.mubr.bf16.mxu0 0
      %4603 = vmatmul.mubr.bf16.gmra.mrb[0].mxu0 %v4512
      %v4604 = vpop.f32.mrb[0].mxu0
      %v4605 = vadd.f32 %v4557, %v4604
      %v4606 = vpop.f32.mrb[0].mxu0
      %v4607 = vpop.f32.mrb[0].mxu0
      %v4608 = vpop.f32.mrb[0].mxu0
      %4609 = vdwg.mxu0
      %v4610 = vmax.f32 %v4597, 0.0
      %v4611 = vmax.f32 %v4600, 0.0
      %v4612 = vmax.f32 %v4605, 0.0
      %s4613 = scalar_lea.vmem %s11, 64
      %v4614 = vld [vmem:[%s4613] sm:$0xf]
      %v4615 = vld [vmem:[%s4613 + $0x4] sm:$0xf]
      %v4616 = vld [vmem:[%s4613 + $0x8] sm:$0xf]
      %v4617 = vld [vmem:[%s4613 + $0xc] sm:$0xf]
      %v4618 = vld [vmem:[%s4613 + $0x10] sm:$0xf]
      %v4619 = vld [vmem:[%s4613 + $0x14] sm:$0xf]
      %v4620 = vld [vmem:[%s4613 + $0x18] sm:$0xf]
      %v4621 = vld [vmem:[%s4613 + $0x1c] sm:$0xf]
      %v4622 = vpack.c.bf16 %v4611, %v4610
      %v4623 = vpack.c.bf16 %v4612, %v4612
      %v4624 = vlaneseq
      %v4625 = vshrl.u32 %v4624, 7
      %v4626 = vsub.s32 3, %v4625
      %v4627 = vrot.slane %v3319, %v4626
      %v4636 = vunpack.c.l.b16 %v4614
      %v4637 = vunpack.c.l.b16 %v4615
      %v4638 = vunpack.c.l.b16 %v4616
      %v4639 = vunpack.c.l.b16 %v4617
      %v4640 = vunpack.c.l.b16 %v4618
      %v4641 = vunpack.c.l.b16 %v4619
      %v4642 = vunpack.c.l.b16 %v4620
      %v4643 = vunpack.c.l.b16 %v4621
      %v4644 = vpack.c.b16 %v4637, %v4636
      %v4645 = vpack.c.b16 %v4639, %v4638
      %v4646 = vpack.c.b16 %v4641, %v4640
      %v4647 = vpack.c.b16 %v4643, %v4642
      %v4653 = vsel %vm1526, %v4622, 0
      %v4656 = vsel %vm1526, %v4623, 0
      %4658 = vmatprep.subr.bf16.mxu0 0
      %4659 = vmatpush1.bf16.msra.mxu0 %v4644
      %4660 = vmatprep.subr.bf16.mxu0 0
      %4661 = vmatpush1.bf16.msra.mxu0 %v4645
      %4662 = vmatprep.subr.bf16.mxu0 0
      %4663 = vmatpush1.bf16.msra.mxu0 %v4646
      %4664 = vmatprep.subr.bf16.mxu0 0
      %4665 = vmatpush1.bf16.msra.mxu0 %v4647
      %4666 = vmatprep.subr.bf16.mxu0 0
      %4667 = vmatpush1.bf16.msra.mxu0 0
      %4668 = vmatprep.subr.bf16.mxu0 0
      %4669 = vmatpush1.bf16.msra.mxu0 0
      %4670 = vmatprep.subr.bf16.mxu0 0
      %4671 = vmatpush1.bf16.msra.mxu0 0
      %4672 = vmatprep.subr.bf16.mxu0 0
      %4673 = vmatpush1.bf16.msra.mxu0 0
      %4674 = vmatprep.subr.bf16.mxu0 0
      %4675 = vmatpush1.bf16.msra.mxu0 0
      %4676 = vmatprep.subr.bf16.mxu0 0
      %4677 = vmatpush1.bf16.msra.mxu0 0
      %4678 = vmatprep.subr.bf16.mxu0 0
      %4679 = vmatpush1.bf16.msra.mxu0 0
      %4680 = vmatprep.subr.bf16.mxu0 0
      %4681 = vmatpush1.bf16.msra.mxu0 0
      %4682 = vmatprep.subr.bf16.mxu0 0
      %4683 = vmatpush1.bf16.msra.mxu0 0
      %4684 = vmatprep.subr.bf16.mxu0 0
      %4685 = vmatpush1.bf16.msra.mxu0 0
      %4686 = vmatprep.subr.bf16.mxu0 0
      %4687 = vmatpush1.bf16.msra.mxu0 0
      %4688 = vmatprep.subr.bf16.mxu0 0
      %4689 = vmatpush1.bf16.msra.mxu0 0
      %4690 = vmatprep.mubr.bf16.mxu0 0
      %4691 = vmatmul.mubr.bf16.gmra.mrb[0].mxu0 %v4653
      %v4692 = vpop.f32.mrb[0].mxu0
      %v4693 = vadd.f32 %v4627, %v4692
      %v4694 = vpop.f32.mrb[0].mxu0
      %v4695 = vpop.f32.mrb[0].mxu0
      %v4696 = vadd.f32 %v4627, %v4695
      %v4697 = vpop.f32.mrb[0].mxu0
      %4698 = vmatprep.mubr.bf16.mxu0 0
      %4699 = vmatmul.mubr.bf16.gmra.mrb[0].mxu0 %v4656
      %v4700 = vpop.f32.mrb[0].mxu0
      %v4701 = vadd.f32 %v4627, %v4700
      %v4702 = vpop.f32.mrb[0].mxu0
      %v4703 = vpop.f32.mrb[0].mxu0
      %v4704 = vpop.f32.mrb[0].mxu0
      %4705 = vdwg.mxu0
      %v4706 = vadd.f32 %v4693, %v4228
      %v4707 = vadd.f32 %v4696, %v4229
      %v4708 = vadd.f32 %v4701, %v4230
      %v4709 = vsel %vm422, %v4706, 0.0
      %4710 = vadd.xlane.f32.xlu0 %v4709
      %v4711 = vpop.xlane.xlu0 %4710
      %v4712 = vsel %vm422, %v4707, 0.0
      %4713 = vadd.xlane.f32.xlu0 %v4712
      %v4714 = vpop.xlane.xlu0 %4713
      %v4715 = vsel %vm422, %v4708, 0.0
      %4716 = vadd.xlane.f32.xlu0 %v4715
      %v4717 = vpop.xlane.xlu0 %4716
      %v4718 = vmul.f32 %v4711, %v1427
      %v4719 = vmul.f32 %v4714, %v1427
      %v4720 = vmul.f32 %v4717, %v1427
      %v4721 = vsub.f32 %v4706, %v4718
      %v4722 = vsub.f32 %v4707, %v4719
      %v4723 = vsub.f32 %v4708, %v4720
      %v4724 = vmul.f32 %v4721, %v4721
      %v4725 = vmul.f32 %v4722, %v4722
      %v4726 = vmul.f32 %v4723, %v4723
      %v4727 = vsel %vm422, %v4724, 0.0
      %4728 = vadd.xlane.f32.xlu0 %v4727
      %v4729 = vpop.xlane.xlu0 %4728
      %v4730 = vsel %vm422, %v4725, 0.0
      %4731 = vadd.xlane.f32.xlu0 %v4730
      %v4732 = vpop.xlane.xlu0 %4731
      %v4733 = vsel %vm422, %v4726, 0.0
      %4734 = vadd.xlane.f32.xlu0 %v4733
      %v4735 = vpop.xlane.xlu0 %4734
      %v4736 = vmul.f32 %v4729, %v1427
      %v4737 = vmul.f32 %v4732, %v1427
      %v4738 = vmul.f32 %v4735, %v1427
      %v4739 = vadd.f32 %v4736, 1e-05
      %v4740 = vadd.f32 %v4737, 1e-05
      %v4741 = vadd.f32 %v4738, 1e-05
      %v4742 = vrsqrt.pop %v4739
      %v4743 = vrsqrt.pop %v4740
      %v4744 = vrsqrt.pop %v4741
      %v4745 = vmul.f32 %v4721, %v4742
      %v4746 = vmul.f32 %v4722, %v4743
      %v4747 = vmul.f32 %v4723, %v4744
      %v4748 = vlaneseq
      %v4749 = vshrl.u32 %v4748, 7
      %v4750 = vsub.s32 4, %v4749
      %v4751 = vrot.slane %v3319, %v4750
      %v4752 = vmul.f32 %v4745, %v4751
      %v4753 = vmul.f32 %v4746, %v4751
      %v4754 = vmul.f32 %v4747, %v4751
      %v4755 = vlaneseq
      %v4756 = vshrl.u32 %v4755, 7
      %v4757 = vsub.s32 5, %v4756
      %v4758 = vrot.slane %v3319, %v4757
      %v4759 = vadd.f32 %v4752, %v4758
      %v4760 = vadd.f32 %v4753, %v4758
      %v4761 = vadd.f32 %v4754, %v4758
      %v4762 = vmul.f32 %v4759, %v4216
      %v4763 = vmul.f32 %v4760, %v4221
      %v4764 = vmul.f32 %v4761, %v4226
      %s4765 = scalar_lea.vmem %s12, 24
      %v4766 = vld [vmem:[%s4765] sm:$0x3f]
      %s4767 = scalar_lea.vmem %s6, 288
      %v4768 = vld [vmem:[%s4767] sm:$0xff]
      %v4769 = vld [vmem:[%s4767 + $0x8] sm:$0xff]
      %v4770 = vld [vmem:[%s4767 + $0x10] sm:$0xff]
      %v4771 = vld [vmem:[%s4767 + $0x18] sm:$0xff]
      %v4772 = vld [vmem:[%s4767 + $0x20] sm:$0xff]
      %v4773 = vld [vmem:[%s4767 + $0x28] sm:$0xff]
      %v4774 = vld [vmem:[%s4767 + $0x30] sm:$0xff]
      %v4775 = vld [vmem:[%s4767 + $0x38] sm:$0xff]
      %v4776 = vld [vmem:[%s4767 + $0x40] sm:$0xff]
      %v4777 = vld [vmem:[%s4767 + $0x48] sm:$0xff]
      %v4778 = vld [vmem:[%s4767 + $0x50] sm:$0xff]
      %v4779 = vld [vmem:[%s4767 + $0x58] sm:$0xff]
      %v4780 = vpack.c.bf16 %v4763, %v4762
      %v4781 = vpack.c.bf16 %v4764, %v4764
      %s4782 = scalar_lea.vmem %s7, 18
      %v4783 = vld [vmem:[%s4782] sm:$0x3f]
      %v4785 = vlaneseq
      %v4786 = vshrl.u32 %v4785, 7
      %v4787 = vsub.s32 0, %v4786
      %v4788 = vrot.slane %v4783, %v4787
      %v4789 = vlaneseq
      %v4790 = vshrl.u32 %v4789, 7
      %v4791 = vsub.s32 1, %v4790
      %v4792 = vrot.slane %v4783, %v4791
      %v4793 = vlaneseq
      %v4794 = vshrl.u32 %v4793, 7
      %v4795 = vsub.s32 2, %v4794
      %v4796 = vrot.slane %v4783, %v4795
      %v4797 = vlaneseq
      %v4798 = vshrl.u32 %v4797, 7
      %v4799 = vsub.s32 3, %v4798
      %v4800 = vrot.slane %v4783, %v4799
      %v4801 = vlaneseq
      %v4802 = vshrl.u32 %v4801, 7
      %v4803 = vsub.s32 4, %v4802
      %v4804 = vrot.slane %v4783, %v4803
      %v4805 = vlaneseq
      %v4806 = vshrl.u32 %v4805, 7
      %v4807 = vsub.s32 5, %v4806
      %v4808 = vrot.slane %v4783, %v4807
      %v4827 = vunpack.c.l.b16 %v4768
      %v4828 = vunpack.c.h.b16 %v4768
      %v4829 = vunpack.c.l.b16 %v4769
      %v4830 = vunpack.c.h.b16 %v4769
      %v4831 = vunpack.c.l.b16 %v4770
      %v4832 = vunpack.c.h.b16 %v4770
      %v4833 = vunpack.c.l.b16 %v4771
      %v4834 = vunpack.c.h.b16 %v4771
      %v4835 = vunpack.c.l.b16 %v4772
      %v4836 = vunpack.c.h.b16 %v4772
      %v4837 = vunpack.c.l.b16 %v4773
      %v4838 = vunpack.c.h.b16 %v4773
      %v4839 = vunpack.c.l.b16 %v4774
      %v4840 = vunpack.c.h.b16 %v4774
      %v4841 = vunpack.c.l.b16 %v4775
      %v4842 = vunpack.c.h.b16 %v4775
      %v4843 = vunpack.c.l.b16 %v4776
      %v4844 = vunpack.c.h.b16 %v4776
      %v4845 = vunpack.c.l.b16 %v4777
      %v4846 = vunpack.c.h.b16 %v4777
      %v4847 = vunpack.c.l.b16 %v4778
      %v4848 = vunpack.c.h.b16 %v4778
      %v4849 = vunpack.c.l.b16 %v4779
      %v4850 = vunpack.c.h.b16 %v4779
      %v4851 = vpack.c.b16 %v4833, %v4827
      %v4852 = vpack.c.b16 %v4834, %v4828
      %v4853 = vpack.c.b16 %v4835, %v4829
      %v4854 = vpack.c.b16 %v4836, %v4830
      %v4855 = vpack.c.b16 %v4837, %v4831
      %v4856 = vpack.c.b16 %v4838, %v4832
      %v4857 = vpack.c.b16 %v4845, %v4839
      %v4858 = vpack.c.b16 %v4846, %v4840
      %v4859 = vpack.c.b16 %v4847, %v4841
      %v4860 = vpack.c.b16 %v4848, %v4842
      %v4861 = vpack.c.b16 %v4849, %v4843
      %v4862 = vpack.c.b16 %v4850, %v4844
      %v4876 = vsel %vm422, %v4780, 0
      %v4879 = vsel %vm422, %v4781, 0
      %4881 = vmatprep.subr.bf16.mxu0 %v4852
      %4882 = vmatpush1.bf16.msra.mxu0 %v4851
      %4883 = vmatprep.subr.bf16.mxu0 %v4858
      %4884 = vmatpush1.bf16.msra.mxu0 %v4857
      %4885 = vmatprep.subr.bf16.mxu0 0
      %4886 = vmatpush1.bf16.msra.mxu0 0
      %4887 = vmatprep.subr.bf16.mxu0 0
      %4888 = vmatpush1.bf16.msra.mxu0 0
      %4889 = vmatprep.subr.bf16.mxu0 0
      %4890 = vmatpush1.bf16.msra.mxu0 0
      %4891 = vmatprep.subr.bf16.mxu0 0
      %4892 = vmatpush1.bf16.msra.mxu0 0
      %4893 = vmatprep.subr.bf16.mxu0 0
      %4894 = vmatpush1.bf16.msra.mxu0 0
      %4895 = vmatprep.subr.bf16.mxu0 0
      %4896 = vmatpush1.bf16.msra.mxu0 0
      %4897 = vmatprep.subr.bf16.mxu0 0
      %4898 = vmatpush1.bf16.msra.mxu0 0
      %4899 = vmatprep.subr.bf16.mxu0 0
      %4900 = vmatpush1.bf16.msra.mxu0 0
      %4901 = vmatprep.subr.bf16.mxu0 0
      %4902 = vmatpush1.bf16.msra.mxu0 0
      %4903 = vmatprep.subr.bf16.mxu0 0
      %4904 = vmatpush1.bf16.msra.mxu0 0
      %4905 = vmatprep.subr.bf16.mxu0 0
      %4906 = vmatpush1.bf16.msra.mxu0 0
      %4907 = vmatprep.subr.bf16.mxu0 0
      %4908 = vmatpush1.bf16.msra.mxu0 0
      %4909 = vmatprep.subr.bf16.mxu0 0
      %4910 = vmatpush1.bf16.msra.mxu0 0
      %4911 = vmatprep.subr.bf16.mxu0 0
      %4912 = vmatpush1.bf16.msra.mxu0 0
      %4913 = vmatprep.mubr.bf16.mxu0 0
      %4914 = vmatmul.mubr.bf16.gmra.mrb[0].mxu0 %v4876
      %v4915 = vpop.f32.mrb[0].mxu0
      %v4916 = vadd.f32 %v4788, %v4915
      %v4917 = vpop.f32.mrb[0].mxu0
      %v4918 = vadd.f32 %v4792, %v4917
      %v4919 = vpop.f32.mrb[0].mxu0
      %v4920 = vadd.f32 %v4788, %v4919
      %v4921 = vpop.f32.mrb[0].mxu0
      %v4922 = vadd.f32 %v4792, %v4921
      %4923 = vmatprep.mubr.bf16.mxu0 0
      %4924 = vmatmul.mubr.bf16.gmra.mrb[0].mxu0 %v4879
      %v4925 = vpop.f32.mrb[0].mxu0
      %v4926 = vadd.f32 %v4788, %v4925
      %v4927 = vpop.f32.mrb[0].mxu0
      %v4928 = vadd.f32 %v4792, %v4927
      %v4929 = vpop.f32.mrb[0].mxu0
      %v4930 = vpop.f32.mrb[0].mxu0
      %4931 = vdwg.mxu0
      %4932 = vmatprep.subr.bf16.mxu0 %v4854
      %4933 = vmatpush1.bf16.msra.mxu0 %v4853
      %4934 = vmatprep.subr.bf16.mxu0 %v4860
      %4935 = vmatpush1.bf16.msra.mxu0 %v4859
      %4936 = vmatprep.subr.bf16.mxu0 0
      %4937 = vmatpush1.bf16.msra.mxu0 0
      %4938 = vmatprep.subr.bf16.mxu0 0
      %4939 = vmatpush1.bf16.msra.mxu0 0
      %4940 = vmatprep.subr.bf16.mxu0 0
      %4941 = vmatpush1.bf16.msra.mxu0 0
      %4942 = vmatprep.subr.bf16.mxu0 0
      %4943 = vmatpush1.bf16.msra.mxu0 0
      %4944 = vmatprep.subr.bf16.mxu0 0
      %4945 = vmatpush1.bf16.msra.mxu0 0
      %4946 = vmatprep.subr.bf16.mxu0 0
      %4947 = vmatpush1.bf16.msra.mxu0 0
      %4948 = vmatprep.subr.bf16.mxu0 0
      %4949 = vmatpush1.bf16.msra.mxu0 0
      %4950 = vmatprep.subr.bf16.mxu0 0
      %4951 = vmatpush1.bf16.msra.mxu0 0
      %4952 = vmatprep.subr.bf16.mxu0 0
      %4953 = vmatpush1.bf16.msra.mxu0 0
      %4954 = vmatprep.subr.bf16.mxu0 0
      %4955 = vmatpush1.bf16.msra.mxu0 0
      %4956 = vmatprep.subr.bf16.mxu0 0
      %4957 = vmatpush1.bf16.msra.mxu0 0
      %4958 = vmatprep.subr.bf16.mxu0 0
      %4959 = vmatpush1.bf16.msra.mxu0 0
      %4960 = vmatprep.subr.bf16.mxu0 0
      %4961 = vmatpush1.bf16.msra.mxu0 0
      %4962 = vmatprep.subr.bf16.mxu0 0
      %4963 = vmatpush1.bf16.msra.mxu0 0
      %4964 = vmatprep.mubr.bf16.mxu0 0
      %4965 = vmatmul.mubr.bf16.gmra.mrb[0].mxu0 %v4876
      %v4966 = vpop.f32.mrb[0].mxu0
      %v4967 = vadd.f32 %v4796, %v4966
      %v4968 = vpop.f32.mrb[0].mxu0
      %v4969 = vadd.f32 %v4800, %v4968
      %v4970 = vpop.f32.mrb[0].mxu0
      %v4971 = vadd.f32 %v4796, %v4970
      %v4972 = vpop.f32.mrb[0].mxu0
      %v4973 = vadd.f32 %v4800, %v4972
      %4974 = vmatprep.mubr.bf16.mxu0 0
      %4975 = vmatmul.mubr.bf16.gmra.mrb[0].mxu0 %v4879
      %v4976 = vpop.f32.mrb[0].mxu0
      %v4977 = vadd.f32 %v4796, %v4976
      %v4978 = vpop.f32.mrb[0].mxu0
      %v4979 = vadd.f32 %v4800, %v4978
      %v4980 = vpop.f32.mrb[0].mxu0
      %v4981 = vpop.f32.mrb[0].mxu0
      %4982 = vdwg.mxu0
      %4983 = vmatprep.subr.bf16.mxu0 %v4856
      %4984 = vmatpush1.bf16.msra.mxu0 %v4855
      %4985 = vmatprep.subr.bf16.mxu0 %v4862
      %4986 = vmatpush1.bf16.msra.mxu0 %v4861
      %4987 = vmatprep.subr.bf16.mxu0 0
      %4988 = vmatpush1.bf16.msra.mxu0 0
      %4989 = vmatprep.subr.bf16.mxu0 0
      %4990 = vmatpush1.bf16.msra.mxu0 0
      %4991 = vmatprep.subr.bf16.mxu0 0
      %4992 = vmatpush1.bf16.msra.mxu0 0
      %4993 = vmatprep.subr.bf16.mxu0 0
      %4994 = vmatpush1.bf16.msra.mxu0 0
      %4995 = vmatprep.subr.bf16.mxu0 0
      %4996 = vmatpush1.bf16.msra.mxu0 0
      %4997 = vmatprep.subr.bf16.mxu0 0
      %4998 = vmatpush1.bf16.msra.mxu0 0
      %4999 = vmatprep.subr.bf16.mxu0 0
      %5000 = vmatpush1.bf16.msra.mxu0 0
      %5001 = vmatprep.subr.bf16.mxu0 0
      %5002 = vmatpush1.bf16.msra.mxu0 0
      %5003 = vmatprep.subr.bf16.mxu0 0
      %5004 = vmatpush1.bf16.msra.mxu0 0
      %5005 = vmatprep.subr.bf16.mxu0 0
      %5006 = vmatpush1.bf16.msra.mxu0 0
      %5007 = vmatprep.subr.bf16.mxu0 0
      %5008 = vmatpush1.bf16.msra.mxu0 0
      %5009 = vmatprep.subr.bf16.mxu0 0
      %5010 = vmatpush1.bf16.msra.mxu0 0
      %5011 = vmatprep.subr.bf16.mxu0 0
      %5012 = vmatpush1.bf16.msra.mxu0 0
      %5013 = vmatprep.subr.bf16.mxu0 0
      %5014 = vmatpush1.bf16.msra.mxu0 0
      %5015 = vmatprep.mubr.bf16.mxu0 0
      %5016 = vmatmul.mubr.bf16.gmra.mrb[0].mxu0 %v4876
      %v5017 = vpop.f32.mrb[0].mxu0
      %v5018 = vadd.f32 %v4804, %v5017
      %v5019 = vpop.f32.mrb[0].mxu0
      %v5020 = vadd.f32 %v4808, %v5019
      %v5021 = vpop.f32.mrb[0].mxu0
      %v5022 = vadd.f32 %v4804, %v5021
      %v5023 = vpop.f32.mrb[0].mxu0
      %v5024 = vadd.f32 %v4808, %v5023
      %5025 = vmatprep.mubr.bf16.mxu0 0
      %5026 = vmatmul.mubr.bf16.gmra.mrb[0].mxu0 %v4879
      %v5027 = vpop.f32.mrb[0].mxu0
      %v5028 = vadd.f32 %v4804, %v5027
      %v5029 = vpop.f32.mrb[0].mxu0
      %v5030 = vadd.f32 %v4808, %v5029
      %v5031 = vpop.f32.mrb[0].mxu0
      %v5032 = vpop.f32.mrb[0].mxu0
      %5033 = vdwg.mxu0
      %5034 = vxpose.xlu0.b32.start [1/16] %v4967, 128
      %5035 = vxpose.xlu0.b32.cont [2/16] %v4971, 128
      %5036 = vxpose.xlu0.b32.cont [3/16] %v4977, 128
      %5037 = vxpose.xlu0.b32.cont [4/16] 0.0, 128
      %5038 = vxpose.xlu0.b32.cont [5/16] 0.0, 128
      %5039 = vxpose.xlu0.b32.cont [6/16] 0.0, 128
      %5040 = vxpose.xlu0.b32.cont [7/16] 0.0, 128
      %5041 = vxpose.xlu0.b32.cont [8/16] 0.0, 128
      %5042 = vxpose.xlu0.b32.cont [9/16] 0.0, 128
      %5043 = vxpose.xlu0.b32.cont [10/16] 0.0, 128
      %5044 = vxpose.xlu0.b32.cont [11/16] 0.0, 128
      %5045 = vxpose.xlu0.b32.cont [12/16] 0.0, 128
      %5046 = vxpose.xlu0.b32.cont [13/16] 0.0, 128
      %5047 = vxpose.xlu0.b32.cont [14/16] 0.0, 128
      %5048 = vxpose.xlu0.b32.cont [15/16] 0.0, 128
      %5049 = vxpose.xlu0.b32.end [16/16] 0.0, 128
      %v5050 = vpop.trf.xlu0
      %v5051 = vpop.trf.xlu0
      %v5052 = vpop.trf.xlu0
      %v5053 = vpop.trf.xlu0
      %v5054 = vpop.trf.xlu0
      %v5055 = vpop.trf.xlu0
      %v5056 = vpop.trf.xlu0
      %v5057 = vpop.trf.xlu0
      %v5058 = vpop.trf.xlu0
      %v5059 = vpop.trf.xlu0
      %v5060 = vpop.trf.xlu0
      %v5061 = vpop.trf.xlu0
      %v5062 = vpop.trf.xlu0
      %v5063 = vpop.trf.xlu0
      %v5064 = vpop.trf.xlu0
      %v5065 = vpop.trf.xlu0
      %v5066 = vpack.c.bf16 %v4920, %v4916
      %v5067 = vpack.c.bf16 %v4926, %v4926
      %v5068 = vpack.c.bf16 %v5051, %v5050
      %v5069 = vpack.c.bf16 %v5053, %v5052
      %v5070 = vpack.c.bf16 %v5055, %v5054
      %v5071 = vpack.c.bf16 %v5057, %v5056
      %v5072 = vpack.c.bf16 %v5059, %v5058
      %v5073 = vpack.c.bf16 %v5061, %v5060
      %v5074 = vpack.c.bf16 %v5063, %v5062
      %v5075 = vpack.c.bf16 %v5065, %v5064
      %5076 = vmatprep.subr.bf16.mxu0 0
      %5077 = vmatpush1.bf16.msra.mxu0 %v5068
      %5078 = vmatprep.subr.bf16.mxu0 0
      %5079 = vmatpush1.bf16.msra.mxu0 %v5069
      %5080 = vmatprep.subr.bf16.mxu0 0
      %5081 = vmatpush1.bf16.msra.mxu0 %v5070
      %5082 = vmatprep.subr.bf16.mxu0 0
      %5083 = vmatpush1.bf16.msra.mxu0 %v5071
      %5084 = vmatprep.subr.bf16.mxu0 0
      %5085 = vmatpush1.bf16.msra.mxu0 %v5072
      %5086 = vmatprep.subr.bf16.mxu0 0
      %5087 = vmatpush1.bf16.msra.mxu0 %v5073
      %5088 = vmatprep.subr.bf16.mxu0 0
      %5089 = vmatpush1.bf16.msra.mxu0 %v5074
      %5090 = vmatprep.subr.bf16.mxu0 0
      %5091 = vmatpush1.bf16.msra.mxu0 %v5075
      %5092 = vmatprep.subr.bf16.mxu0 0
      %5093 = vmatpush1.bf16.msra.mxu0 0
      %5094 = vmatprep.subr.bf16.mxu0 0
      %5095 = vmatpush1.bf16.msra.mxu0 0
      %5096 = vmatprep.subr.bf16.mxu0 0
      %5097 = vmatpush1.bf16.msra.mxu0 0
      %5098 = vmatprep.subr.bf16.mxu0 0
      %5099 = vmatpush1.bf16.msra.mxu0 0
      %5100 = vmatprep.subr.bf16.mxu0 0
      %5101 = vmatpush1.bf16.msra.mxu0 0
      %5102 = vmatprep.subr.bf16.mxu0 0
      %5103 = vmatpush1.bf16.msra.mxu0 0
      %5104 = vmatprep.subr.bf16.mxu0 0
      %5105 = vmatpush1.bf16.msra.mxu0 0
      %5106 = vmatprep.subr.bf16.mxu0 0
      %5107 = vmatpush1.bf16.msra.mxu0 0
      %5108 = vmatprep.mubr.bf16.mxu0 0
      %5109 = vmatmul.mubr.bf16.gmra.mrb[0].mxu0 %v5066
      %v5110 = vpop.f32.mrb[0].mxu0
      %v5111 = vadd.f32 0.0, %v5110
      %v5112 = vpop.f32.mrb[0].mxu0
      %v5113 = vpop.f32.mrb[0].mxu0
      %v5114 = vadd.f32 0.0, %v5113
      %v5115 = vpop.f32.mrb[0].mxu0
      %5116 = vmatprep.mubr.bf16.mxu0 0
      %5117 = vmatmul.mubr.bf16.gmra.mrb[0].mxu0 %v5067
      %v5118 = vpop.f32.mrb[0].mxu0
      %v5119 = vadd.f32 0.0, %v5118
      %v5120 = vpop.f32.mrb[0].mxu0
      %v5121 = vpop.f32.mrb[0].mxu0
      %v5122 = vpop.f32.mrb[0].mxu0
      %5123 = vdwg.mxu0
      %v5124 = vmul.f32 %v5111, 0.25
      %v5125 = vmul.f32 %v5114, 0.25
      %v5126 = vmul.f32 %v5119, 0.25
      %v5127 = vadd.f32 %v5124, %v3683
      %v5128 = vadd.f32 %v5125, %v3683
      %v5129 = vadd.f32 %v5126, %v3683
      %v5130 = vsel %vm3687, %v5127, -inf
      %5131 = vmax.xlane.f32.xlu0 %v5130
      %v5132 = vpop.xlane.xlu0 %5131
      %v5133 = vsel %vm3687, %v5128, -inf
      %5134 = vmax.xlane.f32.xlu0 %v5133
      %v5135 = vpop.xlane.xlu0 %5134
      %v5136 = vsel %vm3687, %v5129, -inf
      %5137 = vmax.xlane.f32.xlu0 %v5136
      %v5138 = vpop.xlane.xlu0 %5137
      %v5139 = vsub.f32 %v5127, %v5132
      %v5140 = vsub.f32 %v5128, %v5135
      %v5141 = vsub.f32 %v5129, %v5138
      %v5142 = vmul.f32 %v5139, 1.442695
      %v5143 = vpow.pop %v5142
      %v5144 = vmul.f32 %v5140, 1.442695
      %v5145 = vpow.pop %v5144
      %v5146 = vmul.f32 %v5141, 1.442695
      %v5147 = vpow.pop %v5146
      %v5148 = vsel %vm3687, %v5143, 0.0
      %5149 = vadd.xlane.f32.xlu0 %v5148
      %v5150 = vpop.xlane.xlu0 %5149
      %v5151 = vsel %vm3687, %v5145, 0.0
      %5152 = vadd.xlane.f32.xlu0 %v5151
      %v5153 = vpop.xlane.xlu0 %5152
      %v5154 = vsel %vm3687, %v5147, 0.0
      %5155 = vadd.xlane.f32.xlu0 %v5154
      %v5156 = vpop.xlane.xlu0 %5155
      %v5157 = vrcp.pop %v5150
      %v5158 = vrcp.pop %v5153
      %v5159 = vrcp.pop %v5156
      %v5160 = vmul.f32 %v5143, %v5157
      %v5161 = vmul.f32 %v5145, %v5158
      %v5162 = vmul.f32 %v5147, %v5159
      %v5163 = vpack.c.bf16 %v5161, %v5160
      %v5164 = vpack.c.bf16 %v5162, %v5162
      %v5165 = vpack.c.bf16 %v5022, %v5018
      %v5166 = vpack.c.bf16 %v5028, %v5028
      %v5168 = vsel %vm3687, %v5163, 0
      %v5171 = vsel %vm3687, %v5164, 0
      %v5174 = vsel %vm535, %v5166, 0
      %5176 = vmatprep.subr.bf16.mxu0 0
      %5177 = vmatpush1.bf16.msra.mxu0 %v5165
      %5178 = vmatprep.subr.bf16.mxu0 0
      %5179 = vmatpush1.bf16.msra.mxu0 %v5174
      %5180 = vmatprep.subr.bf16.mxu0 0
      %5181 = vmatpush1.bf16.msra.mxu0 0
      %5182 = vmatprep.subr.bf16.mxu0 0
      %5183 = vmatpush1.bf16.msra.mxu0 0
      %5184 = vmatprep.subr.bf16.mxu0 0
      %5185 = vmatpush1.bf16.msra.mxu0 0
      %5186 = vmatprep.subr.bf16.mxu0 0
      %5187 = vmatpush1.bf16.msra.mxu0 0
      %5188 = vmatprep.subr.bf16.mxu0 0
      %5189 = vmatpush1.bf16.msra.mxu0 0
      %5190 = vmatprep.subr.bf16.mxu0 0
      %5191 = vmatpush1.bf16.msra.mxu0 0
      %5192 = vmatprep.subr.bf16.mxu0 0
      %5193 = vmatpush1.bf16.msra.mxu0 0
      %5194 = vmatprep.subr.bf16.mxu0 0
      %5195 = vmatpush1.bf16.msra.mxu0 0
      %5196 = vmatprep.subr.bf16.mxu0 0
      %5197 = vmatpush1.bf16.msra.mxu0 0
      %5198 = vmatprep.subr.bf16.mxu0 0
      %5199 = vmatpush1.bf16.msra.mxu0 0
      %5200 = vmatprep.subr.bf16.mxu0 0
      %5201 = vmatpush1.bf16.msra.mxu0 0
      %5202 = vmatprep.subr.bf16.mxu0 0
      %5203 = vmatpush1.bf16.msra.mxu0 0
      %5204 = vmatprep.subr.bf16.mxu0 0
      %5205 = vmatpush1.bf16.msra.mxu0 0
      %5206 = vmatprep.subr.bf16.mxu0 0
      %5207 = vmatpush1.bf16.msra.mxu0 0
      %5208 = vmatprep.mubr.bf16.mxu0 0
      %5209 = vmatmul.mubr.bf16.gmra.mrb[0].mxu0 %v5168
      %v5210 = vpop.f32.mrb[0].mxu0
      %v5211 = vadd.f32 0.0, %v5210
      %v5212 = vpop.f32.mrb[0].mxu0
      %v5213 = vpop.f32.mrb[0].mxu0
      %v5214 = vadd.f32 0.0, %v5213
      %v5215 = vpop.f32.mrb[0].mxu0
      %5216 = vmatprep.mubr.bf16.mxu0 0
      %5217 = vmatmul.mubr.bf16.gmra.mrb[0].mxu0 %v5171
      %v5218 = vpop.f32.mrb[0].mxu0
      %v5219 = vadd.f32 0.0, %v5218
      %v5220 = vpop.f32.mrb[0].mxu0
      %v5221 = vpop.f32.mrb[0].mxu0
      %v5222 = vpop.f32.mrb[0].mxu0
      %5223 = vdwg.mxu0
      %5224 = vxpose.xlu0.b32.start [1/16] %v4969, 128
      %5225 = vxpose.xlu0.b32.cont [2/16] %v4973, 128
      %5226 = vxpose.xlu0.b32.cont [3/16] %v4979, 128
      %5227 = vxpose.xlu0.b32.cont [4/16] 0.0, 128
      %5228 = vxpose.xlu0.b32.cont [5/16] 0.0, 128
      %5229 = vxpose.xlu0.b32.cont [6/16] 0.0, 128
      %5230 = vxpose.xlu0.b32.cont [7/16] 0.0, 128
      %5231 = vxpose.xlu0.b32.cont [8/16] 0.0, 128
      %5232 = vxpose.xlu0.b32.cont [9/16] 0.0, 128
      %5233 = vxpose.xlu0.b32.cont [10/16] 0.0, 128
      %5234 = vxpose.xlu0.b32.cont [11/16] 0.0, 128
      %5235 = vxpose.xlu0.b32.cont [12/16] 0.0, 128
      %5236 = vxpose.xlu0.b32.cont [13/16] 0.0, 128
      %5237 = vxpose.xlu0.b32.cont [14/16] 0.0, 128
      %5238 = vxpose.xlu0.b32.cont [15/16] 0.0, 128
      %5239 = vxpose.xlu0.b32.end [16/16] 0.0, 128
      %v5240 = vpop.trf.xlu0
      %v5241 = vpop.trf.xlu0
      %v5242 = vpop.trf.xlu0
      %v5243 = vpop.trf.xlu0
      %v5244 = vpop.trf.xlu0
      %v5245 = vpop.trf.xlu0
      %v5246 = vpop.trf.xlu0
      %v5247 = vpop.trf.xlu0
      %v5248 = vpop.trf.xlu0
      %v5249 = vpop.trf.xlu0
      %v5250 = vpop.trf.xlu0
      %v5251 = vpop.trf.xlu0
      %v5252 = vpop.trf.xlu0
      %v5253 = vpop.trf.xlu0
      %v5254 = vpop.trf.xlu0
      %v5255 = vpop.trf.xlu0
      %v5256 = vpack.c.bf16 %v4922, %v4918
      %v5257 = vpack.c.bf16 %v4928, %v4928
      %v5258 = vpack.c.bf16 %v5241, %v5240
      %v5259 = vpack.c.bf16 %v5243, %v5242
      %v5260 = vpack.c.bf16 %v5245, %v5244
      %v5261 = vpack.c.bf16 %v5247, %v5246
      %v5262 = vpack.c.bf16 %v5249, %v5248
      %v5263 = vpack.c.bf16 %v5251, %v5250
      %v5264 = vpack.c.bf16 %v5253, %v5252
      %v5265 = vpack.c.bf16 %v5255, %v5254
      %5266 = vmatprep.subr.bf16.mxu0 0
      %5267 = vmatpush1.bf16.msra.mxu0 %v5258
      %5268 = vmatprep.subr.bf16.mxu0 0
      %5269 = vmatpush1.bf16.msra.mxu0 %v5259
      %5270 = vmatprep.subr.bf16.mxu0 0
      %5271 = vmatpush1.bf16.msra.mxu0 %v5260
      %5272 = vmatprep.subr.bf16.mxu0 0
      %5273 = vmatpush1.bf16.msra.mxu0 %v5261
      %5274 = vmatprep.subr.bf16.mxu0 0
      %5275 = vmatpush1.bf16.msra.mxu0 %v5262
      %5276 = vmatprep.subr.bf16.mxu0 0
      %5277 = vmatpush1.bf16.msra.mxu0 %v5263
      %5278 = vmatprep.subr.bf16.mxu0 0
      %5279 = vmatpush1.bf16.msra.mxu0 %v5264
      %5280 = vmatprep.subr.bf16.mxu0 0
      %5281 = vmatpush1.bf16.msra.mxu0 %v5265
      %5282 = vmatprep.subr.bf16.mxu0 0
      %5283 = vmatpush1.bf16.msra.mxu0 0
      %5284 = vmatprep.subr.bf16.mxu0 0
      %5285 = vmatpush1.bf16.msra.mxu0 0
      %5286 = vmatprep.subr.bf16.mxu0 0
      %5287 = vmatpush1.bf16.msra.mxu0 0
      %5288 = vmatprep.subr.bf16.mxu0 0
      %5289 = vmatpush1.bf16.msra.mxu0 0
      %5290 = vmatprep.subr.bf16.mxu0 0
      %5291 = vmatpush1.bf16.msra.mxu0 0
      %5292 = vmatprep.subr.bf16.mxu0 0
      %5293 = vmatpush1.bf16.msra.mxu0 0
      %5294 = vmatprep.subr.bf16.mxu0 0
      %5295 = vmatpush1.bf16.msra.mxu0 0
      %5296 = vmatprep.subr.bf16.mxu0 0
      %5297 = vmatpush1.bf16.msra.mxu0 0
      %5298 = vmatprep.mubr.bf16.mxu0 0
      %5299 = vmatmul.mubr.bf16.gmra.mrb[0].mxu0 %v5256
      %v5300 = vpop.f32.mrb[0].mxu0
      %v5301 = vadd.f32 0.0, %v5300
      %v5302 = vpop.f32.mrb[0].mxu0
      %v5303 = vpop.f32.mrb[0].mxu0
      %v5304 = vadd.f32 0.0, %v5303
      %v5305 = vpop.f32.mrb[0].mxu0
      %5306 = vmatprep.mubr.bf16.mxu0 0
      %5307 = vmatmul.mubr.bf16.gmra.mrb[0].mxu0 %v5257
      %v5308 = vpop.f32.mrb[0].mxu0
      %v5309 = vadd.f32 0.0, %v5308
      %v5310 = vpop.f32.mrb[0].mxu0
      %v5311 = vpop.f32.mrb[0].mxu0
      %v5312 = vpop.f32.mrb[0].mxu0
      %5313 = vdwg.mxu0
      %v5314 = vmul.f32 %v5301, 0.25
      %v5315 = vmul.f32 %v5304, 0.25
      %v5316 = vmul.f32 %v5309, 0.25
      %v5317 = vadd.f32 %v5314, %v3683
      %v5318 = vadd.f32 %v5315, %v3683
      %v5319 = vadd.f32 %v5316, %v3683
      %v5320 = vsel %vm3687, %v5317, -inf
      %5321 = vmax.xlane.f32.xlu0 %v5320
      %v5322 = vpop.xlane.xlu0 %5321
      %v5323 = vsel %vm3687, %v5318, -inf
      %5324 = vmax.xlane.f32.xlu0 %v5323
      %v5325 = vpop.xlane.xlu0 %5324
      %v5326 = vsel %vm3687, %v5319, -inf
      %5327 = vmax.xlane.f32.xlu0 %v5326
      %v5328 = vpop.xlane.xlu0 %5327
      %v5329 = vsub.f32 %v5317, %v5322
      %v5330 = vsub.f32 %v5318, %v5325
      %v5331 = vsub.f32 %v5319, %v5328
      %v5332 = vmul.f32 %v5329, 1.442695
      %v5333 = vpow.pop %v5332
      %v5334 = vmul.f32 %v5330, 1.442695
      %v5335 = vpow.pop %v5334
      %v5336 = vmul.f32 %v5331, 1.442695
      %v5337 = vpow.pop %v5336
      %v5338 = vsel %vm3687, %v5333, 0.0
      %5339 = vadd.xlane.f32.xlu0 %v5338
      %v5340 = vpop.xlane.xlu0 %5339
      %v5341 = vsel %vm3687, %v5335, 0.0
      %5342 = vadd.xlane.f32.xlu0 %v5341
      %v5343 = vpop.xlane.xlu0 %5342
      %v5344 = vsel %vm3687, %v5337, 0.0
      %5345 = vadd.xlane.f32.xlu0 %v5344
      %v5346 = vpop.xlane.xlu0 %5345
      %v5347 = vrcp.pop %v5340
      %v5348 = vrcp.pop %v5343
      %v5349 = vrcp.pop %v5346
      %v5350 = vmul.f32 %v5333, %v5347
      %v5351 = vmul.f32 %v5335, %v5348
      %v5352 = vmul.f32 %v5337, %v5349
      %v5353 = vpack.c.bf16 %v5351, %v5350
      %v5354 = vpack.c.bf16 %v5352, %v5352
      %v5355 = vpack.c.bf16 %v5024, %v5020
      %v5356 = vpack.c.bf16 %v5030, %v5030
      %v5358 = vsel %vm3687, %v5353, 0
      %v5361 = vsel %vm3687, %v5354, 0
      %v5364 = vsel %vm535, %v5356, 0
      %5366 = vmatprep.subr.bf16.mxu0 0
      %5367 = vmatpush1.bf16.msra.mxu0 %v5355
      %5368 = vmatprep.subr.bf16.mxu0 0
      %5369 = vmatpush1.bf16.msra.mxu0 %v5364
      %5370 = vmatprep.subr.bf16.mxu0 0
      %5371 = vmatpush1.bf16.msra.mxu0 0
      %5372 = vmatprep.subr.bf16.mxu0 0
      %5373 = vmatpush1.bf16.msra.mxu0 0
      %5374 = vmatprep.subr.bf16.mxu0 0
      %5375 = vmatpush1.bf16.msra.mxu0 0
      %5376 = vmatprep.subr.bf16.mxu0 0
      %5377 = vmatpush1.bf16.msra.mxu0 0
      %5378 = vmatprep.subr.bf16.mxu0 0
      %5379 = vmatpush1.bf16.msra.mxu0 0
      %5380 = vmatprep.subr.bf16.mxu0 0
      %5381 = vmatpush1.bf16.msra.mxu0 0
      %5382 = vmatprep.subr.bf16.mxu0 0
      %5383 = vmatpush1.bf16.msra.mxu0 0
      %5384 = vmatprep.subr.bf16.mxu0 0
      %5385 = vmatpush1.bf16.msra.mxu0 0
      %5386 = vmatprep.subr.bf16.mxu0 0
      %5387 = vmatpush1.bf16.msra.mxu0 0
      %5388 = vmatprep.subr.bf16.mxu0 0
      %5389 = vmatpush1.bf16.msra.mxu0 0
      %5390 = vmatprep.subr.bf16.mxu0 0
      %5391 = vmatpush1.bf16.msra.mxu0 0
      %5392 = vmatprep.subr.bf16.mxu0 0
      %5393 = vmatpush1.bf16.msra.mxu0 0
      %5394 = vmatprep.subr.bf16.mxu0 0
      %5395 = vmatpush1.bf16.msra.mxu0 0
      %5396 = vmatprep.subr.bf16.mxu0 0
      %5397 = vmatpush1.bf16.msra.mxu0 0
      %5398 = vmatprep.mubr.bf16.mxu0 0
      %5399 = vmatmul.mubr.bf16.gmra.mrb[0].mxu0 %v5358
      %v5400 = vpop.f32.mrb[0].mxu0
      %v5401 = vadd.f32 0.0, %v5400
      %v5402 = vpop.f32.mrb[0].mxu0
      %v5403 = vpop.f32.mrb[0].mxu0
      %v5404 = vadd.f32 0.0, %v5403
      %v5405 = vpop.f32.mrb[0].mxu0
      %5406 = vmatprep.mubr.bf16.mxu0 0
      %5407 = vmatmul.mubr.bf16.gmra.mrb[0].mxu0 %v5361
      %v5408 = vpop.f32.mrb[0].mxu0
      %v5409 = vadd.f32 0.0, %v5408
      %v5410 = vpop.f32.mrb[0].mxu0
      %v5411 = vpop.f32.mrb[0].mxu0
      %v5412 = vpop.f32.mrb[0].mxu0
      %5413 = vdwg.mxu0
      %s5414 = scalar_lea.vmem %s8, 384
      %v5415 = vld [vmem:[%s5414] sm:$0xf]
      %v5416 = vld [vmem:[%s5414 + $0x4] sm:$0xf]
      %v5417 = vld [vmem:[%s5414 + $0x8] sm:$0xf]
      %v5418 = vld [vmem:[%s5414 + $0xc] sm:$0xf]
      %v5419 = vld [vmem:[%s5414 + $0x10] sm:$0xf]
      %v5420 = vld [vmem:[%s5414 + $0x14] sm:$0xf]
      %v5421 = vld [vmem:[%s5414 + $0x18] sm:$0xf]
      %v5422 = vld [vmem:[%s5414 + $0x1c] sm:$0xf]
      %v5423 = vld [vmem:[%s5414 + $0x20] sm:$0xf]
      %v5424 = vld [vmem:[%s5414 + $0x24] sm:$0xf]
      %v5425 = vld [vmem:[%s5414 + $0x28] sm:$0xf]
      %v5426 = vld [vmem:[%s5414 + $0x2c] sm:$0xf]
      %v5427 = vld [vmem:[%s5414 + $0x30] sm:$0xf]
      %v5428 = vld [vmem:[%s5414 + $0x34] sm:$0xf]
      %v5429 = vld [vmem:[%s5414 + $0x38] sm:$0xf]
      %v5430 = vld [vmem:[%s5414 + $0x3c] sm:$0xf]
      %v5431 = vld [vmem:[%s5414 + $0x40] sm:$0xf]
      %v5432 = vld [vmem:[%s5414 + $0x44] sm:$0xf]
      %v5433 = vld [vmem:[%s5414 + $0x48] sm:$0xf]
      %v5434 = vld [vmem:[%s5414 + $0x4c] sm:$0xf]
      %v5435 = vld [vmem:[%s5414 + $0x50] sm:$0xf]
      %v5436 = vld [vmem:[%s5414 + $0x54] sm:$0xf]
      %v5437 = vld [vmem:[%s5414 + $0x58] sm:$0xf]
      %v5438 = vld [vmem:[%s5414 + $0x5c] sm:$0xf]
      %v5439 = vld [vmem:[%s5414 + $0x60] sm:$0xf]
      %v5440 = vld [vmem:[%s5414 + $0x64] sm:$0xf]
      %v5441 = vld [vmem:[%s5414 + $0x68] sm:$0xf]
      %v5442 = vld [vmem:[%s5414 + $0x6c] sm:$0xf]
      %v5443 = vld [vmem:[%s5414 + $0x70] sm:$0xf]
      %v5444 = vld [vmem:[%s5414 + $0x74] sm:$0xf]
      %v5445 = vld [vmem:[%s5414 + $0x78] sm:$0xf]
      %v5446 = vld [vmem:[%s5414 + $0x7c] sm:$0xf]
      %v5447 = vpack.c.bf16 %v5214, %v5211
      %v5448 = vpack.c.bf16 %v5404, %v5401
      %v5449 = vpack.c.bf16 %v5219, %v5219
      %v5450 = vpack.c.bf16 %v5409, %v5409
      %v5451 = vlaneseq
      %v5452 = vshrl.u32 %v5451, 7
      %v5453 = vsub.s32 0, %v5452
      %v5454 = vrot.slane %v4766, %v5453
      %v5487 = vunpack.c.l.b16 %v5415
      %v5488 = vunpack.c.l.b16 %v5416
      %v5489 = vunpack.c.l.b16 %v5417
      %v5490 = vunpack.c.l.b16 %v5418
      %v5491 = vunpack.c.l.b16 %v5419
      %v5492 = vunpack.c.l.b16 %v5420
      %v5493 = vunpack.c.l.b16 %v5421
      %v5494 = vunpack.c.l.b16 %v5422
      %v5495 = vunpack.c.l.b16 %v5423
      %v5496 = vunpack.c.l.b16 %v5424
      %v5497 = vunpack.c.l.b16 %v5425
      %v5498 = vunpack.c.l.b16 %v5426
      %v5499 = vunpack.c.l.b16 %v5427
      %v5500 = vunpack.c.l.b16 %v5428
      %v5501 = vunpack.c.l.b16 %v5429
      %v5502 = vunpack.c.l.b16 %v5430
      %v5503 = vunpack.c.l.b16 %v5431
      %v5504 = vunpack.c.l.b16 %v5432
      %v5505 = vunpack.c.l.b16 %v5433
      %v5506 = vunpack.c.l.b16 %v5434
      %v5507 = vunpack.c.l.b16 %v5435
      %v5508 = vunpack.c.l.b16 %v5436
      %v5509 = vunpack.c.l.b16 %v5437
      %v5510 = vunpack.c.l.b16 %v5438
      %v5511 = vunpack.c.l.b16 %v5439
      %v5512 = vunpack.c.l.b16 %v5440
      %v5513 = vunpack.c.l.b16 %v5441
      %v5514 = vunpack.c.l.b16 %v5442
      %v5515 = vunpack.c.l.b16 %v5443
      %v5516 = vunpack.c.l.b16 %v5444
      %v5517 = vunpack.c.l.b16 %v5445
      %v5518 = vunpack.c.l.b16 %v5446
      %v5519 = vpack.c.b16 %v5488, %v5487
      %v5520 = vpack.c.b16 %v5490, %v5489
      %v5521 = vpack.c.b16 %v5492, %v5491
      %v5522 = vpack.c.b16 %v5494, %v5493
      %v5523 = vpack.c.b16 %v5496, %v5495
      %v5524 = vpack.c.b16 %v5498, %v5497
      %v5525 = vpack.c.b16 %v5500, %v5499
      %v5526 = vpack.c.b16 %v5502, %v5501
      %v5527 = vpack.c.b16 %v5504, %v5503
      %v5528 = vpack.c.b16 %v5506, %v5505
      %v5529 = vpack.c.b16 %v5508, %v5507
      %v5530 = vpack.c.b16 %v5510, %v5509
      %v5531 = vpack.c.b16 %v5512, %v5511
      %v5532 = vpack.c.b16 %v5514, %v5513
      %v5533 = vpack.c.b16 %v5516, %v5515
      %v5534 = vpack.c.b16 %v5518, %v5517
      %5551 = vmatprep.subr.bf16.mxu0 0
      %5552 = vmatpush1.bf16.msra.mxu0 %v5519
      %5553 = vmatprep.subr.bf16.mxu0 0
      %5554 = vmatpush1.bf16.msra.mxu0 %v5520
      %5555 = vmatprep.subr.bf16.mxu0 0
      %5556 = vmatpush1.bf16.msra.mxu0 %v5521
      %5557 = vmatprep.subr.bf16.mxu0 0
      %5558 = vmatpush1.bf16.msra.mxu0 %v5522
      %5559 = vmatprep.subr.bf16.mxu0 0
      %5560 = vmatpush1.bf16.msra.mxu0 %v5523
      %5561 = vmatprep.subr.bf16.mxu0 0
      %5562 = vmatpush1.bf16.msra.mxu0 %v5524
      %5563 = vmatprep.subr.bf16.mxu0 0
      %5564 = vmatpush1.bf16.msra.mxu0 %v5525
      %5565 = vmatprep.subr.bf16.mxu0 0
      %5566 = vmatpush1.bf16.msra.mxu0 %v5526
      %5567 = vmatprep.subr.bf16.mxu0 0
      %5568 = vmatpush1.bf16.msra.mxu0 %v5527
      %5569 = vmatprep.subr.bf16.mxu0 0
      %5570 = vmatpush1.bf16.msra.mxu0 %v5528
      %5571 = vmatprep.subr.bf16.mxu0 0
      %5572 = vmatpush1.bf16.msra.mxu0 %v5529
      %5573 = vmatprep.subr.bf16.mxu0 0
      %5574 = vmatpush1.bf16.msra.mxu0 %v5530
      %5575 = vmatprep.subr.bf16.mxu0 0
      %5576 = vmatpush1.bf16.msra.mxu0 %v5531
      %5577 = vmatprep.subr.bf16.mxu0 0
      %5578 = vmatpush1.bf16.msra.mxu0 %v5532
      %5579 = vmatprep.subr.bf16.mxu0 0
      %5580 = vmatpush1.bf16.msra.mxu0 %v5533
      %5581 = vmatprep.subr.bf16.mxu0 0
      %5582 = vmatpush1.bf16.msra.mxu0 %v5534
      %5583 = vmatprep.mubr.bf16.mxu0 %v5448
      %5584 = vmatmul.mubr.bf16.gmra.mrb[0].mxu0 %v5447
      %v5585 = vpop.f32.mrb[0].mxu0
      %v5586 = vadd.f32 %v5454, %v5585
      %v5587 = vpop.f32.mrb[0].mxu0
      %v5588 = vpop.f32.mrb[0].mxu0
      %v5589 = vadd.f32 %v5454, %v5588
      %v5590 = vpop.f32.mrb[0].mxu0
      %5591 = vmatprep.mubr.bf16.mxu0 %v5450
      %5592 = vmatmul.mubr.bf16.gmra.mrb[0].mxu0 %v5449
      %v5593 = vpop.f32.mrb[0].mxu0
      %v5594 = vadd.f32 %v5454, %v5593
      %v5595 = vpop.f32.mrb[0].mxu0
      %v5596 = vpop.f32.mrb[0].mxu0
      %v5597 = vpop.f32.mrb[0].mxu0
      %5598 = vdwg.mxu0
      %v5599 = vadd.f32 %v5586, %v4762
      %v5600 = vadd.f32 %v5589, %v4763
      %v5601 = vadd.f32 %v5594, %v4764
      %v5602 = vsel %vm422, %v5599, 0.0
      %5603 = vadd.xlane.f32.xlu0 %v5602
      %v5604 = vpop.xlane.xlu0 %5603
      %v5605 = vsel %vm422, %v5600, 0.0
      %5606 = vadd.xlane.f32.xlu0 %v5605
      %v5607 = vpop.xlane.xlu0 %5606
      %v5608 = vsel %vm422, %v5601, 0.0
      %5609 = vadd.xlane.f32.xlu0 %v5608
      %v5610 = vpop.xlane.xlu0 %5609
      %v5611 = vmul.f32 %v5604, %v1427
      %v5612 = vmul.f32 %v5607, %v1427
      %v5613 = vmul.f32 %v5610, %v1427
      %v5614 = vsub.f32 %v5599, %v5611
      %v5615 = vsub.f32 %v5600, %v5612
      %v5616 = vsub.f32 %v5601, %v5613
      %v5617 = vmul.f32 %v5614, %v5614
      %v5618 = vmul.f32 %v5615, %v5615
      %v5619 = vmul.f32 %v5616, %v5616
      %v5620 = vsel %vm422, %v5617, 0.0
      %5621 = vadd.xlane.f32.xlu0 %v5620
      %v5622 = vpop.xlane.xlu0 %5621
      %v5623 = vsel %vm422, %v5618, 0.0
      %5624 = vadd.xlane.f32.xlu0 %v5623
      %v5625 = vpop.xlane.xlu0 %5624
      %v5626 = vsel %vm422, %v5619, 0.0
      %5627 = vadd.xlane.f32.xlu0 %v5626
      %v5628 = vpop.xlane.xlu0 %5627
      %v5629 = vmul.f32 %v5622, %v1427
      %v5630 = vmul.f32 %v5625, %v1427
      %v5631 = vmul.f32 %v5628, %v1427
      %v5632 = vadd.f32 %v5629, 1e-05
      %v5633 = vadd.f32 %v5630, 1e-05
      %v5634 = vadd.f32 %v5631, 1e-05
      %v5635 = vrsqrt.pop %v5632
      %v5636 = vrsqrt.pop %v5633
      %v5637 = vrsqrt.pop %v5634
      %v5638 = vmul.f32 %v5614, %v5635
      %v5639 = vmul.f32 %v5615, %v5636
      %v5640 = vmul.f32 %v5616, %v5637
      %v5641 = vlaneseq
      %v5642 = vshrl.u32 %v5641, 7
      %v5643 = vsub.s32 1, %v5642
      %v5644 = vrot.slane %v4766, %v5643
      %v5645 = vmul.f32 %v5638, %v5644
      %v5646 = vmul.f32 %v5639, %v5644
      %v5647 = vmul.f32 %v5640, %v5644
      %v5648 = vlaneseq
      %v5649 = vshrl.u32 %v5648, 7
      %v5650 = vsub.s32 2, %v5649
      %v5651 = vrot.slane %v4766, %v5650
      %v5652 = vadd.f32 %v5645, %v5651
      %v5653 = vadd.f32 %v5646, %v5651
      %v5654 = vadd.f32 %v5647, %v5651
      %v5655 = vmul.f32 %v5652, %v4216
      %v5656 = vmul.f32 %v5653, %v4221
      %v5657 = vmul.f32 %v5654, %v4226
      %s5658 = scalar_lea.vmem %s9, 432
      %v5659 = vld [vmem:[%s5658] sm:$0xf]
      %v5660 = vld [vmem:[%s5658 + $0x4] sm:$0xf]
      %v5661 = vld [vmem:[%s5658 + $0x8] sm:$0xf]
      %v5662 = vld [vmem:[%s5658 + $0xc] sm:$0xf]
      %v5663 = vld [vmem:[%s5658 + $0x10] sm:$0xf]
      %v5664 = vld [vmem:[%s5658 + $0x14] sm:$0xf]
      %v5665 = vld [vmem:[%s5658 + $0x18] sm:$0xf]
      %v5666 = vld [vmem:[%s5658 + $0x1c] sm:$0xf]
      %v5667 = vld [vmem:[%s5658 + $0x20] sm:$0xf]
      %v5668 = vld [vmem:[%s5658 + $0x24] sm:$0xf]
      %v5669 = vld [vmem:[%s5658 + $0x28] sm:$0xf]
      %v5670 = vld [vmem:[%s5658 + $0x2c] sm:$0xf]
      %v5671 = vld [vmem:[%s5658 + $0x30] sm:$0xf]
      %v5672 = vld [vmem:[%s5658 + $0x34] sm:$0xf]
      %v5673 = vld [vmem:[%s5658 + $0x38] sm:$0xf]
      %v5674 = vld [vmem:[%s5658 + $0x3c] sm:$0xf]
      %v5675 = vld [vmem:[%s5658 + $0x40] sm:$0xf]
      %v5676 = vld [vmem:[%s5658 + $0x44] sm:$0xf]
      %v5677 = vld [vmem:[%s5658 + $0x48] sm:$0xf]
      %v5678 = vld [vmem:[%s5658 + $0x4c] sm:$0xf]
      %v5679 = vld [vmem:[%s5658 + $0x50] sm:$0xf]
      %v5680 = vld [vmem:[%s5658 + $0x54] sm:$0xf]
      %v5681 = vld [vmem:[%s5658 + $0x58] sm:$0xf]
      %v5682 = vld [vmem:[%s5658 + $0x5c] sm:$0xf]
      %v5683 = vld [vmem:[%s5658 + $0x60] sm:$0xf]
      %v5684 = vld [vmem:[%s5658 + $0x64] sm:$0xf]
      %v5685 = vld [vmem:[%s5658 + $0x68] sm:$0xf]
      %v5686 = vld [vmem:[%s5658 + $0x6c] sm:$0xf]
      %v5687 = vld [vmem:[%s5658 + $0x70] sm:$0xf]
      %v5688 = vld [vmem:[%s5658 + $0x74] sm:$0xf]
      %v5689 = vld [vmem:[%s5658 + $0x78] sm:$0xf]
      %v5690 = vld [vmem:[%s5658 + $0x7c] sm:$0xf]
      %v5691 = vld [vmem:[%s5658 + $0x80] sm:$0xf]
      %v5692 = vld [vmem:[%s5658 + $0x84] sm:$0xf]
      %v5693 = vld [vmem:[%s5658 + $0x88] sm:$0xf]
      %v5694 = vld [vmem:[%s5658 + $0x8c] sm:$0xf]
      %s5695 = scalar_lea.vmem %s10, 3
      %v5696 = vld [vmem:[%s5695] sm:$0x1]
      %5697 = vst.msk [vmem:[#allocation2 + $0x8] sm:$0xff] %vm422, %v5655
      %5698 = vst.msk [vmem:[#allocation2 + $0x10] sm:$0xff] %vm422, %v5656
      %5699 = vst.msk [vmem:[#allocation2 + $0x18] sm:$0xff] %vm422, %v5657
      %v5700 = vld [vmem:[#allocation2 + $0x4] sm:$0xff]
      %v5701 = vld [vmem:[#allocation2 + $0xc] sm:$0xff]
      %v5702 = vld [vmem:[#allocation2 + $0x14] sm:$0xff]
      %v5703 = vld [vmem:[#allocation2 + $0x5] sm:$0xff]
      %v5704 = vld [vmem:[#allocation2 + $0xd] sm:$0xff]
      %v5705 = vld [vmem:[#allocation2 + $0x15] sm:$0xff]
      %v5706 = vld [vmem:[#allocation2 + $0x6] sm:$0xff]
      %v5707 = vld [vmem:[#allocation2 + $0xe] sm:$0xff]
      %v5708 = vld [vmem:[#allocation2 + $0x16] sm:$0xff]
      %v5709 = vld [vmem:[#allocation2 + $0x7] sm:$0xff]
      %v5710 = vld [vmem:[#allocation2 + $0xf] sm:$0xff]
      %v5711 = vld [vmem:[#allocation2 + $0x17] sm:$0xff]
      %v5712 = vld [vmem:[#allocation2 + $0x8] sm:$0xff]
      %v5713 = vld [vmem:[#allocation2 + $0x10] sm:$0xff]
      %v5714 = vld [vmem:[#allocation2 + $0x18] sm:$0xff]
      %v5715 = vld [vmem:[#allocation2 + $0x9] sm:$0xff]
      %v5716 = vld [vmem:[#allocation2 + $0x11] sm:$0xff]
      %v5717 = vld [vmem:[#allocation2 + $0x19] sm:$0xff]
      %v5718 = vld [vmem:[#allocation2 + $0xa] sm:$0xff]
      %v5719 = vld [vmem:[#allocation2 + $0x12] sm:$0xff]
      %v5720 = vld [vmem:[#allocation2 + $0x1a] sm:$0xff]
      %v5721 = vld [vmem:[#allocation2 + $0xb] sm:$0xff]
      %v5722 = vld [vmem:[#allocation2 + $0x13] sm:$0xff]
      %v5723 = vld [vmem:[#allocation2 + $0x1b] sm:$0xff]
      %v5724 = vld [vmem:[#allocation2 + $0x1c] sm:$0xff]
      %5728 = vrot.lane.b32.xlu0 %v5703, 32
      %v5729 = vpop.permute.xlu0 %5728
      %5730 = vrot.lane.b32.xlu0 %v5704, 32
      %v5731 = vpop.permute.xlu0 %5730
      %5732 = vrot.lane.b32.xlu0 %v5705, 32
      %v5733 = vpop.permute.xlu0 %5732
      %5740 = vrot.lane.b32.xlu0 %v5706, 64
      %v5741 = vpop.permute.xlu0 %5740
      %5742 = vrot.lane.b32.xlu0 %v5707, 64
      %v5743 = vpop.permute.xlu0 %5742
      %5744 = vrot.lane.b32.xlu0 %v5708, 64
      %v5745 = vpop.permute.xlu0 %5744
      %5752 = vrot.lane.b32.xlu0 %v5709, 96
      %v5753 = vpop.permute.xlu0 %5752
      %5754 = vrot.lane.b32.xlu0 %v5710, 96
      %v5755 = vpop.permute.xlu0 %5754
      %5756 = vrot.lane.b32.xlu0 %v5711, 96
      %v5757 = vpop.permute.xlu0 %5756
      %5764 = vrot.lane.b32.xlu0 %v5715, 32
      %v5765 = vpop.permute.xlu0 %5764
      %5766 = vrot.lane.b32.xlu0 %v5716, 32
      %v5767 = vpop.permute.xlu0 %5766
      %5768 = vrot.lane.b32.xlu0 %v5717, 32
      %v5769 = vpop.permute.xlu0 %5768
      %5776 = vrot.lane.b32.xlu0 %v5718, 64
      %v5777 = vpop.permute.xlu0 %5776
      %5778 = vrot.lane.b32.xlu0 %v5719, 64
      %v5779 = vpop.permute.xlu0 %5778
      %5780 = vrot.lane.b32.xlu0 %v5720, 64
      %v5781 = vpop.permute.xlu0 %5780
      %5788 = vrot.lane.b32.xlu0 %v5721, 96
      %v5789 = vpop.permute.xlu0 %5788
      %5790 = vrot.lane.b32.xlu0 %v5722, 96
      %v5791 = vpop.permute.xlu0 %5790
      %5792 = vrot.lane.b32.xlu0 %v5723, 96
      %v5793 = vpop.permute.xlu0 %5792
      %v5797 = vsel %vm422, %v5700, %v5729
      %v5798 = vsel %vm422, %v5701, %v5731
      %v5799 = vsel %vm422, %v5702, %v5733
      %v5800 = vsel %vm1526, %v5797, %v5741
      %v5801 = vsel %vm1526, %v5798, %v5743
      %v5802 = vsel %vm1526, %v5799, %v5745
      %v5803 = vsel %vm1528, %v5800, %v5753
      %v5804 = vsel %vm1528, %v5801, %v5755
      %v5805 = vsel %vm1528, %v5802, %v5757
      %v5806 = vsel %vm422, %v5712, %v5765
      %v5807 = vsel %vm422, %v5713, %v5767
      %v5808 = vsel %vm422, %v5714, %v5769
      %v5809 = vsel %vm1526, %v5806, %v5777
      %v5810 = vsel %vm1526, %v5807, %v5779
      %v5811 = vsel %vm1526, %v5808, %v5781
      %v5812 = vsel %vm1528, %v5809, %v5789
      %v5813 = vsel %vm1528, %v5810, %v5791
      %v5814 = vsel %vm1528, %v5811, %v5793
      %v5815 = vpack.c.bf16 %v5804, %v5803
      %v5816 = vpack.c.bf16 %v5813, %v5812
      %v5817 = vpack.c.bf16 %v5702, %v5701
      %v5818 = vpack.c.bf16 %v5805, %v5805
      %v5819 = vpack.c.bf16 %v5814, %v5814
      %v5820 = vpack.c.bf16 %v5724, %v5724
      %v5822 = vlaneseq
      %v5823 = vshrl.u32 %v5822, 7
      %v5824 = vsub.s32 0, %v5823
      %v5825 = vrot.slane %v5696, %v5824
      %v5863 = vunpack.c.l.b16 %v5659
      %v5864 = vunpack.c.l.b16 %v5660
      %v5865 = vunpack.c.l.b16 %v5661
      %v5866 = vunpack.c.l.b16 %v5662
      %v5867 = vunpack.c.l.b16 %v5663
      %v5868 = vunpack.c.l.b16 %v5664
      %v5869 = vunpack.c.l.b16 %v5665
      %v5870 = vunpack.c.l.b16 %v5666
      %v5871 = vunpack.c.l.b16 %v5667
      %v5872 = vunpack.c.l.b16 %v5668
      %v5873 = vunpack.c.l.b16 %v5669
      %v5874 = vunpack.c.l.b16 %v5670
      %v5875 = vunpack.c.l.b16 %v5671
      %v5876 = vunpack.c.l.b16 %v5672
      %v5877 = vunpack.c.l.b16 %v5673
      %v5878 = vunpack.c.l.b16 %v5674
      %v5879 = vunpack.c.l.b16 %v5675
      %v5880 = vunpack.c.l.b16 %v5676
      %v5881 = vunpack.c.l.b16 %v5677
      %v5882 = vunpack.c.l.b16 %v5678
      %v5883 = vunpack.c.l.b16 %v5679
      %v5884 = vunpack.c.l.b16 %v5680
      %v5885 = vunpack.c.l.b16 %v5681
      %v5886 = vunpack.c.l.b16 %v5682
      %v5887 = vunpack.c.l.b16 %v5683
      %v5888 = vunpack.c.l.b16 %v5684
      %v5889 = vunpack.c.l.b16 %v5685
      %v5890 = vunpack.c.l.b16 %v5686
      %v5891 = vunpack.c.l.b16 %v5687
      %v5892 = vunpack.c.l.b16 %v5688
      %v5893 = vunpack.c.l.b16 %v5689
      %v5894 = vunpack.c.l.b16 %v5690
      %v5895 = vunpack.c.l.b16 %v5691
      %v5896 = vunpack.c.l.b16 %v5692
      %v5897 = vunpack.c.l.b16 %v5693
      %v5898 = vunpack.c.l.b16 %v5694
      %v5899 = vpack.c.b16 %v5864, %v5863
      %v5900 = vpack.c.b16 %v5866, %v5865
      %v5901 = vpack.c.b16 %v5868, %v5867
      %v5902 = vpack.c.b16 %v5870, %v5869
      %v5903 = vpack.c.b16 %v5872, %v5871
      %v5904 = vpack.c.b16 %v5874, %v5873
      %v5905 = vpack.c.b16 %v5876, %v5875
      %v5906 = vpack.c.b16 %v5878, %v5877
      %v5907 = vpack.c.b16 %v5880, %v5879
      %v5908 = vpack.c.b16 %v5882, %v5881
      %v5909 = vpack.c.b16 %v5884, %v5883
      %v5910 = vpack.c.b16 %v5886, %v5885
      %v5911 = vpack.c.b16 %v5888, %v5887
      %v5912 = vpack.c.b16 %v5890, %v5889
      %v5913 = vpack.c.b16 %v5892, %v5891
      %v5914 = vpack.c.b16 %v5894, %v5893
      %v5915 = vpack.c.b16 %v5896, %v5895
      %v5916 = vpack.c.b16 %v5898, %v5897
      %v5936 = vsel %vm422, %v5817, 0
      %v5939 = vsel %vm422, %v5820, 0
      %5941 = vmatprep.subr.bf16.mxu0 0
      %5942 = vmatpush1.bf16.msra.mxu0 %v5899
      %5943 = vmatprep.subr.bf16.mxu0 0
      %5944 = vmatpush1.bf16.msra.mxu0 %v5900
      %5945 = vmatprep.subr.bf16.mxu0 0
      %5946 = vmatpush1.bf16.msra.mxu0 %v5901
      %5947 = vmatprep.subr.bf16.mxu0 0
      %5948 = vmatpush1.bf16.msra.mxu0 %v5902
      %5949 = vmatprep.subr.bf16.mxu0 0
      %5950 = vmatpush1.bf16.msra.mxu0 %v5903
      %5951 = vmatprep.subr.bf16.mxu0 0
      %5952 = vmatpush1.bf16.msra.mxu0 %v5904
      %5953 = vmatprep.subr.bf16.mxu0 0
      %5954 = vmatpush1.bf16.msra.mxu0 %v5905
      %5955 = vmatprep.subr.bf16.mxu0 0
      %5956 = vmatpush1.bf16.msra.mxu0 %v5906
      %5957 = vmatprep.subr.bf16.mxu0 0
      %5958 = vmatpush1.bf16.msra.mxu0 %v5907
      %5959 = vmatprep.subr.bf16.mxu0 0
      %5960 = vmatpush1.bf16.msra.mxu0 %v5908
      %5961 = vmatprep.subr.bf16.mxu0 0
      %5962 = vmatpush1.bf16.msra.mxu0 %v5909
      %5963 = vmatprep.subr.bf16.mxu0 0
      %5964 = vmatpush1.bf16.msra.mxu0 %v5910
      %5965 = vmatprep.subr.bf16.mxu0 0
      %5966 = vmatpush1.bf16.msra.mxu0 %v5911
      %5967 = vmatprep.subr.bf16.mxu0 0
      %5968 = vmatpush1.bf16.msra.mxu0 %v5912
      %5969 = vmatprep.subr.bf16.mxu0 0
      %5970 = vmatpush1.bf16.msra.mxu0 %v5913
      %5971 = vmatprep.subr.bf16.mxu0 0
      %5972 = vmatpush1.bf16.msra.mxu0 %v5914
      %5973 = vmatprep.mubr.bf16.mxu0 %v5816
      %5974 = vmatmul.mubr.bf16.gmra.mrb[0].mxu0 %v5815
      %v5975 = vpop.f32.mrb[0].mxu0
      %v5976 = vadd.f32 %v5825, %v5975
      %v5977 = vpop.f32.mrb[0].mxu0
      %v5978 = vpop.f32.mrb[0].mxu0
      %v5979 = vadd.f32 %v5825, %v5978
      %v5980 = vpop.f32.mrb[0].mxu0
      %5981 = vmatprep.mubr.bf16.mxu0 %v5819
      %5982 = vmatmul.mubr.bf16.gmra.mrb[0].mxu0 %v5818
      %v5983 = vpop.f32.mrb[0].mxu0
      %v5984 = vadd.f32 %v5825, %v5983
      %v5985 = vpop.f32.mrb[0].mxu0
      %v5986 = vpop.f32.mrb[0].mxu0
      %v5987 = vpop.f32.mrb[0].mxu0
      %5988 = vdwg.mxu0
      %5989 = vmatprep.subr.bf16.mxu0 0
      %5990 = vmatpush1.bf16.msra.mxu0 %v5915
      %5991 = vmatprep.subr.bf16.mxu0 0
      %5992 = vmatpush1.bf16.msra.mxu0 %v5916
      %5993 = vmatprep.subr.bf16.mxu0 0
      %5994 = vmatpush1.bf16.msra.mxu0 0
      %5995 = vmatprep.subr.bf16.mxu0 0
      %5996 = vmatpush1.bf16.msra.mxu0 0
      %5997 = vmatprep.subr.bf16.mxu0 0
      %5998 = vmatpush1.bf16.msra.mxu0 0
      %5999 = vmatprep.subr.bf16.mxu0 0
      %6000 = vmatpush1.bf16.msra.mxu0 0
      %6001 = vmatprep.subr.bf16.mxu0 0
      %6002 = vmatpush1.bf16.msra.mxu0 0
      %6003 = vmatprep.subr.bf16.mxu0 0
      %6004 = vmatpush1.bf16.msra.mxu0 0
      %6005 = vmatprep.subr.bf16.mxu0 0
      %6006 = vmatpush1.bf16.msra.mxu0 0
      %6007 = vmatprep.subr.bf16.mxu0 0
      %6008 = vmatpush1.bf16.msra.mxu0 0
      %6009 = vmatprep.subr.bf16.mxu0 0
      %6010 = vmatpush1.bf16.msra.mxu0 0
      %6011 = vmatprep.subr.bf16.mxu0 0
      %6012 = vmatpush1.bf16.msra.mxu0 0
      %6013 = vmatprep.subr.bf16.mxu0 0
      %6014 = vmatpush1.bf16.msra.mxu0 0
      %6015 = vmatprep.subr.bf16.mxu0 0
      %6016 = vmatpush1.bf16.msra.mxu0 0
      %6017 = vmatprep.subr.bf16.mxu0 0
      %6018 = vmatpush1.bf16.msra.mxu0 0
      %6019 = vmatprep.subr.bf16.mxu0 0
      %6020 = vmatpush1.bf16.msra.mxu0 0
      %6021 = vmatprep.mubr.bf16.mxu0 0
      %6022 = vmatmul.mubr.bf16.gmra.mrb[0].mxu0 %v5936
      %v6023 = vpop.f32.mrb[0].mxu0
      %v6024 = vadd.f32 %v5976, %v6023
      %v6025 = vpop.f32.mrb[0].mxu0
      %v6026 = vpop.f32.mrb[0].mxu0
      %v6027 = vadd.f32 %v5979, %v6026
      %v6028 = vpop.f32.mrb[0].mxu0
      %6029 = vmatprep.mubr.bf16.mxu0 0
      %6030 = vmatmul.mubr.bf16.gmra.mrb[0].mxu0 %v5939
      %v6031 = vpop.f32.mrb[0].mxu0
      %v6032 = vadd.f32 %v5984, %v6031
      %v6033 = vpop.f32.mrb[0].mxu0
      %v6034 = vpop.f32.mrb[0].mxu0
      %v6035 = vpop.f32.mrb[0].mxu0
      %6036 = vdwg.mxu0
      %v6037 = vmax.f32 %v6024, 0.0
      %v6038 = vmax.f32 %v6027, 0.0
      %v6039 = vmax.f32 %v6032, 0.0
      %s6040 = scalar_lea.vmem %s11, 96
      %v6041 = vld [vmem:[%s6040] sm:$0xf]
      %v6042 = vld [vmem:[%s6040 + $0x4] sm:$0xf]
      %v6043 = vld [vmem:[%s6040 + $0x8] sm:$0xf]
      %v6044 = vld [vmem:[%s6040 + $0xc] sm:$0xf]
      %v6045 = vld [vmem:[%s6040 + $0x10] sm:$0xf]
      %v6046 = vld [vmem:[%s6040 + $0x14] sm:$0xf]
      %v6047 = vld [vmem:[%s6040 + $0x18] sm:$0xf]
      %v6048 = vld [vmem:[%s6040 + $0x1c] sm:$0xf]
      %v6049 = vpack.c.bf16 %v6038, %v6037
      %v6050 = vpack.c.bf16 %v6039, %v6039
      %v6051 = vlaneseq
      %v6052 = vshrl.u32 %v6051, 7
      %v6053 = vsub.s32 3, %v6052
      %v6054 = vrot.slane %v4766, %v6053
      %v6063 = vunpack.c.l.b16 %v6041
      %v6064 = vunpack.c.l.b16 %v6042
      %v6065 = vunpack.c.l.b16 %v6043
      %v6066 = vunpack.c.l.b16 %v6044
      %v6067 = vunpack.c.l.b16 %v6045
      %v6068 = vunpack.c.l.b16 %v6046
      %v6069 = vunpack.c.l.b16 %v6047
      %v6070 = vunpack.c.l.b16 %v6048
      %v6071 = vpack.c.b16 %v6064, %v6063
      %v6072 = vpack.c.b16 %v6066, %v6065
      %v6073 = vpack.c.b16 %v6068, %v6067
      %v6074 = vpack.c.b16 %v6070, %v6069
      %v6080 = vsel %vm1526, %v6049, 0
      %v6083 = vsel %vm1526, %v6050, 0
      %6085 = vmatprep.subr.bf16.mxu0 0
      %6086 = vmatpush1.bf16.msra.mxu0 %v6071
      %6087 = vmatprep.subr.bf16.mxu0 0
      %6088 = vmatpush1.bf16.msra.mxu0 %v6072
      %6089 = vmatprep.subr.bf16.mxu0 0
      %6090 = vmatpush1.bf16.msra.mxu0 %v6073
      %6091 = vmatprep.subr.bf16.mxu0 0
      %6092 = vmatpush1.bf16.msra.mxu0 %v6074
      %6093 = vmatprep.subr.bf16.mxu0 0
      %6094 = vmatpush1.bf16.msra.mxu0 0
      %6095 = vmatprep.subr.bf16.mxu0 0
      %6096 = vmatpush1.bf16.msra.mxu0 0
      %6097 = vmatprep.subr.bf16.mxu0 0
      %6098 = vmatpush1.bf16.msra.mxu0 0
      %6099 = vmatprep.subr.bf16.mxu0 0
      %6100 = vmatpush1.bf16.msra.mxu0 0
      %6101 = vmatprep.subr.bf16.mxu0 0
      %6102 = vmatpush1.bf16.msra.mxu0 0
      %6103 = vmatprep.subr.bf16.mxu0 0
      %6104 = vmatpush1.bf16.msra.mxu0 0
      %6105 = vmatprep.subr.bf16.mxu0 0
      %6106 = vmatpush1.bf16.msra.mxu0 0
      %6107 = vmatprep.subr.bf16.mxu0 0
      %6108 = vmatpush1.bf16.msra.mxu0 0
      %6109 = vmatprep.subr.bf16.mxu0 0
      %6110 = vmatpush1.bf16.msra.mxu0 0
      %6111 = vmatprep.subr.bf16.mxu0 0
      %6112 = vmatpush1.bf16.msra.mxu0 0
      %6113 = vmatprep.subr.bf16.mxu0 0
      %6114 = vmatpush1.bf16.msra.mxu0 0
      %6115 = vmatprep.subr.bf16.mxu0 0
      %6116 = vmatpush1.bf16.msra.mxu0 0
      %6117 = vmatprep.mubr.bf16.mxu0 0
      %6118 = vmatmul.mubr.bf16.gmra.mrb[0].mxu0 %v6080
      %v6119 = vpop.f32.mrb[0].mxu0
      %v6120 = vadd.f32 %v6054, %v6119
      %v6121 = vpop.f32.mrb[0].mxu0
      %v6122 = vpop.f32.mrb[0].mxu0
      %v6123 = vadd.f32 %v6054, %v6122
      %v6124 = vpop.f32.mrb[0].mxu0
      %6125 = vmatprep.mubr.bf16.mxu0 0
      %6126 = vmatmul.mubr.bf16.gmra.mrb[0].mxu0 %v6083
      %v6127 = vpop.f32.mrb[0].mxu0
      %v6128 = vadd.f32 %v6054, %v6127
      %v6129 = vpop.f32.mrb[0].mxu0
      %v6130 = vpop.f32.mrb[0].mxu0
      %v6131 = vpop.f32.mrb[0].mxu0
      %6132 = vdwg.mxu0
      %v6133 = vadd.f32 %v6120, %v5655
      %v6134 = vadd.f32 %v6123, %v5656
      %v6135 = vadd.f32 %v6128, %v5657
      %v6136 = vsel %vm422, %v6133, 0.0
      %6137 = vadd.xlane.f32.xlu0 %v6136
      %v6138 = vpop.xlane.xlu0 %6137
      %v6139 = vsel %vm422, %v6134, 0.0
      %6140 = vadd.xlane.f32.xlu0 %v6139
      %v6141 = vpop.xlane.xlu0 %6140
      %v6142 = vsel %vm422, %v6135, 0.0
      %6143 = vadd.xlane.f32.xlu0 %v6142
      %v6144 = vpop.xlane.xlu0 %6143
      %v6145 = vmul.f32 %v6138, %v1427
      %v6146 = vmul.f32 %v6141, %v1427
      %v6147 = vmul.f32 %v6144, %v1427
      %v6148 = vsub.f32 %v6133, %v6145
      %v6149 = vsub.f32 %v6134, %v6146
      %v6150 = vsub.f32 %v6135, %v6147
      %v6151 = vmul.f32 %v6148, %v6148
      %v6152 = vmul.f32 %v6149, %v6149
      %v6153 = vmul.f32 %v6150, %v6150
      %v6154 = vsel %vm422, %v6151, 0.0
      %6155 = vadd.xlane.f32.xlu0 %v6154
      %v6156 = vpop.xlane.xlu0 %6155
      %v6157 = vsel %vm422, %v6152, 0.0
      %6158 = vadd.xlane.f32.xlu0 %v6157
      %v6159 = vpop.xlane.xlu0 %6158
      %v6160 = vsel %vm422, %v6153, 0.0
      %6161 = vadd.xlane.f32.xlu0 %v6160
      %v6162 = vpop.xlane.xlu0 %6161
      %v6163 = vmul.f32 %v6156, %v1427
      %v6164 = vmul.f32 %v6159, %v1427
      %v6165 = vmul.f32 %v6162, %v1427
      %v6166 = vadd.f32 %v6163, 1e-05
      %v6167 = vadd.f32 %v6164, 1e-05
      %v6168 = vadd.f32 %v6165, 1e-05
      %v6169 = vrsqrt.pop %v6166
      %v6170 = vrsqrt.pop %v6167
      %v6171 = vrsqrt.pop %v6168
      %v6172 = vmul.f32 %v6148, %v6169
      %v6173 = vmul.f32 %v6149, %v6170
      %v6174 = vmul.f32 %v6150, %v6171
      %v6175 = vlaneseq
      %v6176 = vshrl.u32 %v6175, 7
      %v6177 = vsub.s32 4, %v6176
      %v6178 = vrot.slane %v4766, %v6177
      %v6179 = vmul.f32 %v6172, %v6178
      %v6180 = vmul.f32 %v6173, %v6178
      %v6181 = vmul.f32 %v6174, %v6178
      %v6182 = vlaneseq
      %v6183 = vshrl.u32 %v6182, 7
      %v6184 = vsub.s32 5, %v6183
      %v6185 = vrot.slane %v4766, %v6184
      %v6186 = vadd.f32 %v6179, %v6185
      %v6187 = vadd.f32 %v6180, %v6185
      %v6188 = vadd.f32 %v6181, %v6185
      %v6189 = vmul.f32 %v6186, %v4216
      %v6190 = vmul.f32 %v6187, %v4221
      %v6191 = vmul.f32 %v6188, %v4226
      %v6192 = vld [vmem:[%s13] sm:$0xf]
      %v6193 = vld [vmem:[%s13 + $0x4] sm:$0xf]
      %v6194 = vld [vmem:[%s13 + $0x8] sm:$0xf]
      %v6195 = vld [vmem:[%s13 + $0xc] sm:$0xf]
      %v6196 = vpack.c.bf16 %v6190, %v6189
      %v6197 = vpack.c.bf16 %v6191, %v6191
      %v6198 = vld [vmem:[%s14] sm:$0x1]
      %v6200 = vlaneseq
      %v6201 = vshrl.u32 %v6200, 7
      %v6202 = vsub.s32 0, %v6201
      %v6203 = vrot.slane %v6198, %v6202
      %v6209 = vunpack.c.l.b16 %v6192
      %v6210 = vunpack.c.l.b16 %v6193
      %v6211 = vunpack.c.l.b16 %v6194
      %v6212 = vunpack.c.l.b16 %v6195
      %v6213 = vpack.c.b16 %v6210, %v6209
      %v6214 = vpack.c.b16 %v6212, %v6211
      %v6218 = vsel %vm422, %v6196, 0
      %v6221 = vsel %vm422, %v6197, 0
      %6223 = vmatprep.subr.bf16.mxu0 0
      %6224 = vmatpush1.bf16.msra.mxu0 %v6213
      %6225 = vmatprep.subr.bf16.mxu0 0
      %6226 = vmatpush1.bf16.msra.mxu0 %v6214
      %6227 = vmatprep.subr.bf16.mxu0 0
      %6228 = vmatpush1.bf16.msra.mxu0 0
      %6229 = vmatprep.subr.bf16.mxu0 0
      %6230 = vmatpush1.bf16.msra.mxu0 0
      %6231 = vmatprep.subr.bf16.mxu0 0
      %6232 = vmatpush1.bf16.msra.mxu0 0
      %6233 = vmatprep.subr.bf16.mxu0 0
      %6234 = vmatpush1.bf16.msra.mxu0 0
      %6235 = vmatprep.subr.bf16.mxu0 0
      %6236 = vmatpush1.bf16.msra.mxu0 0
      %6237 = vmatprep.subr.bf16.mxu0 0
      %6238 = vmatpush1.bf16.msra.mxu0 0
      %6239 = vmatprep.subr.bf16.mxu0 0
      %6240 = vmatpush1.bf16.msra.mxu0 0
      %6241 = vmatprep.subr.bf16.mxu0 0
      %6242 = vmatpush1.bf16.msra.mxu0 0
      %6243 = vmatprep.subr.bf16.mxu0 0
      %6244 = vmatpush1.bf16.msra.mxu0 0
      %6245 = vmatprep.subr.bf16.mxu0 0
      %6246 = vmatpush1.bf16.msra.mxu0 0
      %6247 = vmatprep.subr.bf16.mxu0 0
      %6248 = vmatpush1.bf16.msra.mxu0 0
      %6249 = vmatprep.subr.bf16.mxu0 0
      %6250 = vmatpush1.bf16.msra.mxu0 0
      %6251 = vmatprep.subr.bf16.mxu0 0
      %6252 = vmatpush1.bf16.msra.mxu0 0
      %6253 = vmatprep.subr.bf16.mxu0 0
      %6254 = vmatpush1.bf16.msra.mxu0 0
      %6255 = vmatprep.mubr.bf16.mxu0 0
      %6256 = vmatmul.mubr.bf16.gmra.mrb[0].mxu0 %v6218
      %v6257 = vpop.f32.mrb[0].mxu0
      %v6258 = vadd.f32 %v6203, %v6257
      %v6259 = vpop.f32.mrb[0].mxu0
      %v6260 = vpop.f32.mrb[0].mxu0
      %v6261 = vadd.f32 %v6203, %v6260
      %v6262 = vpop.f32.mrb[0].mxu0
      %6263 = vmatprep.mubr.bf16.mxu0 0
      %6264 = vmatmul.mubr.bf16.gmra.mrb[0].mxu0 %v6221
      %v6265 = vpop.f32.mrb[0].mxu0
      %v6266 = vadd.f32 %v6203, %v6265
      %v6267 = vpop.f32.mrb[0].mxu0
      %v6268 = vpop.f32.mrb[0].mxu0
      %v6269 = vpop.f32.mrb[0].mxu0
      %6270 = vdwg.mxu0
      %v6271 = vld [vmem:[%s15] sm:$0xf]
      %v6272 = vld [vmem:[%s15 + $0x4] sm:$0xf]
      %v6273 = vld [vmem:[%s15 + $0x8] sm:$0xf]
      %v6274 = vld [vmem:[%s15 + $0xc] sm:$0xf]
      %v6275 = vld [vmem:[%s15 + $0x10] sm:$0xf]
      %v6276 = vld [vmem:[%s15 + $0x14] sm:$0xf]
      %v6277 = vld [vmem:[%s15 + $0x18] sm:$0xf]
      %v6278 = vld [vmem:[%s15 + $0x1c] sm:$0xf]
      %v6279 = vld [vmem:[%s15 + $0x20] sm:$0xf]
      %v6280 = vld [vmem:[%s15 + $0x24] sm:$0xf]
      %v6281 = vld [vmem:[%s16] sm:$0x1]
      %6282 = vst.msk [vmem:[#allocation2 + $0x8] sm:$0xff] %vm3069, %v6258
      %6283 = vst.msk [vmem:[#allocation2 + $0x10] sm:$0xff] %vm3069, %v6261
      %6284 = vst.msk [vmem:[#allocation2 + $0x18] sm:$0xff] %vm3069, %v6266
      %v6285 = vld [vmem:[#allocation2 + $0x6] sm:$0xff]
      %v6286 = vld [vmem:[#allocation2 + $0xe] sm:$0xff]
      %v6287 = vld [vmem:[#allocation2 + $0x16] sm:$0xff]
      %v6288 = vld [vmem:[#allocation2 + $0x7] sm:$0xff]
      %v6289 = vld [vmem:[#allocation2 + $0xf] sm:$0xff]
      %v6290 = vld [vmem:[#allocation2 + $0x17] sm:$0xff]
      %v6291 = vld [vmem:[#allocation2 + $0x8] sm:$0xff]
      %v6292 = vld [vmem:[#allocation2 + $0x10] sm:$0xff]
      %v6293 = vld [vmem:[#allocation2 + $0x18] sm:$0xff]
      %v6294 = vld [vmem:[#allocation2 + $0x9] sm:$0xff]
      %v6295 = vld [vmem:[#allocation2 + $0x11] sm:$0xff]
      %v6296 = vld [vmem:[#allocation2 + $0x19] sm:$0xff]
      %v6297 = vld [vmem:[#allocation2 + $0xa] sm:$0xff]
      %v6298 = vld [vmem:[#allocation2 + $0x12] sm:$0xff]
      %v6299 = vld [vmem:[#allocation2 + $0x1a] sm:$0xff]
      %6303 = vrot.lane.b32.xlu0 %v6288, 16
      %v6304 = vpop.permute.xlu0 %6303
      %6305 = vrot.lane.b32.xlu0 %v6289, 16
      %v6306 = vpop.permute.xlu0 %6305
      %6307 = vrot.lane.b32.xlu0 %v6290, 16
      %v6308 = vpop.permute.xlu0 %6307
      %6315 = vrot.lane.b32.xlu0 %v6291, 32
      %v6316 = vpop.permute.xlu0 %6315
      %6317 = vrot.lane.b32.xlu0 %v6292, 32
      %v6318 = vpop.permute.xlu0 %6317
      %6319 = vrot.lane.b32.xlu0 %v6293, 32
      %v6320 = vpop.permute.xlu0 %6319
      %6327 = vrot.lane.b32.xlu0 %v6294, 48
      %v6328 = vpop.permute.xlu0 %6327
      %6329 = vrot.lane.b32.xlu0 %v6295, 48
      %v6330 = vpop.permute.xlu0 %6329
      %6331 = vrot.lane.b32.xlu0 %v6296, 48
      %v6332 = vpop.permute.xlu0 %6331
      %6339 = vrot.lane.b32.xlu0 %v6297, 64
      %v6340 = vpop.permute.xlu0 %6339
      %6341 = vrot.lane.b32.xlu0 %v6298, 64
      %v6342 = vpop.permute.xlu0 %6341
      %6343 = vrot.lane.b32.xlu0 %v6299, 64
      %v6344 = vpop.permute.xlu0 %6343
      %v6348 = vsel %vm3069, %v6285, %v6304
      %v6349 = vsel %vm3069, %v6286, %v6306
      %v6350 = vsel %vm3069, %v6287, %v6308
      %v6351 = vsel %vm422, %v6348, %v6316
      %v6352 = vsel %vm422, %v6349, %v6318
      %v6353 = vsel %vm422, %v6350, %v6320
      %vm6354 = vcmask 392192
      %v6355 = vsel %vm6354, %v6351, %v6328
      %v6356 = vsel %vm6354, %v6352, %v6330
      %v6357 = vsel %vm6354, %v6353, %v6332
      %v6358 = vsel %vm1526, %v6355, %v6340
      %v6359 = vsel %vm1526, %v6356, %v6342
      %v6360 = vsel %vm1526, %v6357, %v6344
      %v6361 = vpack.c.bf16 %v6359, %v6358
      %v6362 = vpack.c.bf16 %v6360, %v6360
      %v6364 = vlaneseq
      %v6365 = vshrl.u32 %v6364, 7
      %v6366 = vsub.s32 0, %v6365
      %v6367 = vrot.slane %v6281, %v6366
      %v6379 = vunpack.c.l.b16 %v6271
      %v6380 = vunpack.c.l.b16 %v6272
      %v6381 = vunpack.c.l.b16 %v6273
      %v6382 = vunpack.c.l.b16 %v6274
      %v6383 = vunpack.c.l.b16 %v6275
      %v6384 = vunpack.c.l.b16 %v6276
      %v6385 = vunpack.c.l.b16 %v6277
      %v6386 = vunpack.c.l.b16 %v6278
      %v6387 = vunpack.c.l.b16 %v6279
      %v6388 = vunpack.c.l.b16 %v6280
      %v6389 = vpack.c.b16 %v6380, %v6379
      %v6390 = vpack.c.b16 %v6382, %v6381
      %v6391 = vpack.c.b16 %v6384, %v6383
      %v6392 = vpack.c.b16 %v6386, %v6385
      %v6393 = vpack.c.b16 %v6388, %v6387
      %vm6399 = vcmask 654336
      %v6401 = vsel %vm6399, %v6361, 0
      %v6404 = vsel %vm6399, %v6362, 0
      %6406 = vmatprep.subr.bf16.mxu0 0
      %6407 = vmatpush1.bf16.msra.mxu0 %v6389
      %6408 = vmatprep.subr.bf16.mxu0 0
      %6409 = vmatpush1.bf16.msra.mxu0 %v6390
      %6410 = vmatprep.subr.bf16.mxu0 0
      %6411 = vmatpush1.bf16.msra.mxu0 %v6391
      %6412 = vmatprep.subr.bf16.mxu0 0
      %6413 = vmatpush1.bf16.msra.mxu0 %v6392
      %6414 = vmatprep.subr.bf16.mxu0 0
      %6415 = vmatpush1.bf16.msra.mxu0 %v6393
      %6416 = vmatprep.subr.bf16.mxu0 0
      %6417 = vmatpush1.bf16.msra.mxu0 0
      %6418 = vmatprep.subr.bf16.mxu0 0
      %6419 = vmatpush1.bf16.msra.mxu0 0
      %6420 = vmatprep.subr.bf16.mxu0 0
      %6421 = vmatpush1.bf16.msra.mxu0 0
      %6422 = vmatprep.subr.bf16.mxu0 0
      %6423 = vmatpush1.bf16.msra.mxu0 0
      %6424 = vmatprep.subr.bf16.mxu0 0
      %6425 = vmatpush1.bf16.msra.mxu0 0
      %6426 = vmatprep.subr.bf16.mxu0 0
      %6427 = vmatpush1.bf16.msra.mxu0 0
      %6428 = vmatprep.subr.bf16.mxu0 0
      %6429 = vmatpush1.bf16.msra.mxu0 0
      %6430 = vmatprep.subr.bf16.mxu0 0
      %6431 = vmatpush1.bf16.msra.mxu0 0
      %6432 = vmatprep.subr.bf16.mxu0 0
      %6433 = vmatpush1.bf16.msra.mxu0 0
      %6434 = vmatprep.subr.bf16.mxu0 0
      %6435 = vmatpush1.bf16.msra.mxu0 0
      %6436 = vmatprep.subr.bf16.mxu0 0
      %6437 = vmatpush1.bf16.msra.mxu0 0
      %6438 = vmatprep.mubr.bf16.mxu0 0
      %6439 = vmatmul.mubr.bf16.gmra.mrb[0].mxu0 %v6401
      %v6440 = vpop.f32.mrb[0].mxu0
      %v6441 = vadd.f32 %v6367, %v6440
      %v6442 = vpop.f32.mrb[0].mxu0
      %v6443 = vpop.f32.mrb[0].mxu0
      %v6444 = vadd.f32 %v6367, %v6443
      %v6445 = vpop.f32.mrb[0].mxu0
      %6446 = vmatprep.mubr.bf16.mxu0 0
      %6447 = vmatmul.mubr.bf16.gmra.mrb[0].mxu0 %v6404
      %v6448 = vpop.f32.mrb[0].mxu0
      %v6449 = vadd.f32 %v6367, %v6448
      %v6450 = vpop.f32.mrb[0].mxu0
      %v6451 = vpop.f32.mrb[0].mxu0
      %v6452 = vpop.f32.mrb[0].mxu0
      %6453 = vdwg.mxu0
      %v6454 = vtanh.pop %v6441
      %v6455 = vtanh.pop %v6444
      %v6456 = vtanh.pop %v6449
      %s6457 = scalar_lea.vmem %s15, 80
      %v6458 = vld [vmem:[%s6457] sm:$0xf]
      %v6459 = vld [vmem:[%s6457 + $0x4] sm:$0xf]
      %v6460 = vld [vmem:[%s6457 + $0x8] sm:$0xf]
      %v6461 = vld [vmem:[%s6457 + $0xc] sm:$0xf]
      %v6462 = vld [vmem:[%s6457 + $0x10] sm:$0xf]
      %v6463 = vld [vmem:[%s6457 + $0x14] sm:$0xf]
      %v6464 = vld [vmem:[%s6457 + $0x18] sm:$0xf]
      %v6465 = vld [vmem:[%s6457 + $0x1c] sm:$0xf]
      %v6466 = vld [vmem:[%s6457 + $0x20] sm:$0xf]
      %v6467 = vld [vmem:[%s6457 + $0x24] sm:$0xf]
      %v6468 = vld [vmem:[%s6457 + $0x28] sm:$0xf]
      %v6469 = vld [vmem:[%s6457 + $0x2c] sm:$0xf]
      %v6470 = vld [vmem:[%s6457 + $0x30] sm:$0xf]
      %v6471 = vld [vmem:[%s6457 + $0x34] sm:$0xf]
      %v6472 = vld [vmem:[%s6457 + $0x38] sm:$0xf]
      %v6473 = vld [vmem:[%s6457 + $0x3c] sm:$0xf]
      %v6474 = vld [vmem:[%s6457 + $0x40] sm:$0xf]
      %v6475 = vld [vmem:[%s6457 + $0x44] sm:$0xf]
      %v6476 = vld [vmem:[%s6457 + $0x48] sm:$0xf]
      %v6477 = vld [vmem:[%s6457 + $0x4c] sm:$0xf]
      %s6478 = scalar_lea.vmem %s16, 1
      %v6479 = vld [vmem:[%s6478] sm:$0x1]
      %6480 = vst.msk [vmem:[#allocation2 + $0x8] sm:$0xff] %vm422, %v6454
      %6481 = vst.msk [vmem:[#allocation2 + $0x10] sm:$0xff] %vm422, %v6455
      %6482 = vst.msk [vmem:[#allocation2 + $0x18] sm:$0xff] %vm422, %v6456
      %v6483 = vld [vmem:[#allocation2 + $0x6] sm:$0xff]
      %v6484 = vld [vmem:[#allocation2 + $0xe] sm:$0xff]
      %v6485 = vld [vmem:[#allocation2 + $0x16] sm:$0xff]
      %v6486 = vld [vmem:[#allocation2 + $0x7] sm:$0xff]
      %v6487 = vld [vmem:[#allocation2 + $0xf] sm:$0xff]
      %v6488 = vld [vmem:[#allocation2 + $0x17] sm:$0xff]
      %v6489 = vld [vmem:[#allocation2 + $0x8] sm:$0xff]
      %v6490 = vld [vmem:[#allocation2 + $0x10] sm:$0xff]
      %v6491 = vld [vmem:[#allocation2 + $0x18] sm:$0xff]
      %v6492 = vld [vmem:[#allocation2 + $0x9] sm:$0xff]
      %v6493 = vld [vmem:[#allocation2 + $0x11] sm:$0xff]
      %v6494 = vld [vmem:[#allocation2 + $0x19] sm:$0xff]
      %v6495 = vld [vmem:[#allocation2 + $0xa] sm:$0xff]
      %v6496 = vld [vmem:[#allocation2 + $0x12] sm:$0xff]
      %v6497 = vld [vmem:[#allocation2 + $0x1a] sm:$0xff]
      %6501 = vrot.lane.b32.xlu0 %v6486, 32
      %v6502 = vpop.permute.xlu0 %6501
      %6503 = vrot.lane.b32.xlu0 %v6487, 32
      %v6504 = vpop.permute.xlu0 %6503
      %6505 = vrot.lane.b32.xlu0 %v6488, 32
      %v6506 = vpop.permute.xlu0 %6505
      %6513 = vrot.lane.b32.xlu0 %v6489, 64
      %v6514 = vpop.permute.xlu0 %6513
      %6515 = vrot.lane.b32.xlu0 %v6490, 64
      %v6516 = vpop.permute.xlu0 %6515
      %6517 = vrot.lane.b32.xlu0 %v6491, 64
      %v6518 = vpop.permute.xlu0 %6517
      %6525 = vrot.lane.b32.xlu0 %v6492, 96
      %v6526 = vpop.permute.xlu0 %6525
      %6527 = vrot.lane.b32.xlu0 %v6493, 96
      %v6528 = vpop.permute.xlu0 %6527
      %6529 = vrot.lane.b32.xlu0 %v6494, 96
      %v6530 = vpop.permute.xlu0 %6529
      %v6534 = vsel %vm422, %v6483, %v6502
      %v6535 = vsel %vm422, %v6484, %v6504
      %v6536 = vsel %vm422, %v6485, %v6506
      %v6537 = vsel %vm1526, %v6534, %v6514
      %v6538 = vsel %vm1526, %v6535, %v6516
      %v6539 = vsel %vm1526, %v6536, %v6518
      %v6540 = vsel %vm1528, %v6537, %v6526
      %v6541 = vsel %vm1528, %v6538, %v6528
      %v6542 = vsel %vm1528, %v6539, %v6530
      %v6543 = vpack.c.bf16 %v6541, %v6540
      %v6544 = vpack.c.bf16 %v6496, %v6495
      %v6545 = vpack.c.bf16 %v6542, %v6542
      %v6546 = vpack.c.bf16 %v6497, %v6497
      %v6548 = vlaneseq
      %v6549 = vshrl.u32 %v6548, 7
      %v6550 = vsub.s32 0, %v6549
      %v6551 = vrot.slane %v6479, %v6550
      %v6573 = vunpack.c.l.b16 %v6458
      %v6574 = vunpack.c.l.b16 %v6459
      %v6575 = vunpack.c.l.b16 %v6460
      %v6576 = vunpack.c.l.b16 %v6461
      %v6577 = vunpack.c.l.b16 %v6462
      %v6578 = vunpack.c.l.b16 %v6463
      %v6579 = vunpack.c.l.b16 %v6464
      %v6580 = vunpack.c.l.b16 %v6465
      %v6581 = vunpack.c.l.b16 %v6466
      %v6582 = vunpack.c.l.b16 %v6467
      %v6583 = vunpack.c.l.b16 %v6468
      %v6584 = vunpack.c.l.b16 %v6469
      %v6585 = vunpack.c.l.b16 %v6470
      %v6586 = vunpack.c.l.b16 %v6471
      %v6587 = vunpack.c.l.b16 %v6472
      %v6588 = vunpack.c.l.b16 %v6473
      %v6589 = vunpack.c.l.b16 %v6474
      %v6590 = vunpack.c.l.b16 %v6475
      %v6591 = vunpack.c.l.b16 %v6476
      %v6592 = vunpack.c.l.b16 %v6477
      %v6593 = vpack.c.b16 %v6574, %v6573
      %v6594 = vpack.c.b16 %v6576, %v6575
      %v6595 = vpack.c.b16 %v6578, %v6577
      %v6596 = vpack.c.b16 %v6580, %v6579
      %v6597 = vpack.c.b16 %v6582, %v6581
      %v6598 = vpack.c.b16 %v6584, %v6583
      %v6599 = vpack.c.b16 %v6586, %v6585
      %v6600 = vpack.c.b16 %v6588, %v6587
      %v6601 = vpack.c.b16 %v6590, %v6589
      %v6602 = vpack.c.b16 %v6592, %v6591
      %v6614 = vsel %vm422, %v6544, 0
      %v6617 = vsel %vm422, %v6546, 0
      %6619 = vmatprep.subr.bf16.mxu0 0
      %6620 = vmatpush1.bf16.msra.mxu0 %v6593
      %6621 = vmatprep.subr.bf16.mxu0 0
      %6622 = vmatpush1.bf16.msra.mxu0 %v6594
      %6623 = vmatprep.subr.bf16.mxu0 0
      %6624 = vmatpush1.bf16.msra.mxu0 %v6595
      %6625 = vmatprep.subr.bf16.mxu0 0
      %6626 = vmatpush1.bf16.msra.mxu0 %v6596
      %6627 = vmatprep.subr.bf16.mxu0 0
      %6628 = vmatpush1.bf16.msra.mxu0 %v6597
      %6629 = vmatprep.subr.bf16.mxu0 0
      %6630 = vmatpush1.bf16.msra.mxu0 %v6598
      %6631 = vmatprep.subr.bf16.mxu0 0
      %6632 = vmatpush1.bf16.msra.mxu0 %v6599
      %6633 = vmatprep.subr.bf16.mxu0 0
      %6634 = vmatpush1.bf16.msra.mxu0 %v6600
      %6635 = vmatprep.subr.bf16.mxu0 0
      %6636 = vmatpush1.bf16.msra.mxu0 %v6601
      %6637 = vmatprep.subr.bf16.mxu0 0
      %6638 = vmatpush1.bf16.msra.mxu0 %v6602
      %6639 = vmatprep.subr.bf16.mxu0 0
      %6640 = vmatpush1.bf16.msra.mxu0 0
      %6641 = vmatprep.subr.bf16.mxu0 0
      %6642 = vmatpush1.bf16.msra.mxu0 0
      %6643 = vmatprep.subr.bf16.mxu0 0
      %6644 = vmatpush1.bf16.msra.mxu0 0
      %6645 = vmatprep.subr.bf16.mxu0 0
      %6646 = vmatpush1.bf16.msra.mxu0 0
      %6647 = vmatprep.subr.bf16.mxu0 0
      %6648 = vmatpush1.bf16.msra.mxu0 0
      %6649 = vmatprep.subr.bf16.mxu0 0
      %6650 = vmatpush1.bf16.msra.mxu0 0
      %6651 = vmatprep.mubr.bf16.mxu0 %v6614
      %6652 = vmatmul.mubr.bf16.gmra.mrb[0].mxu0 %v6543
      %v6653 = vpop.f32.mrb[0].mxu0
      %v6654 = vadd.f32 %v6551, %v6653
      %v6655 = vpop.f32.mrb[0].mxu0
      %v6656 = vpop.f32.mrb[0].mxu0
      %v6657 = vadd.f32 %v6551, %v6656
      %v6658 = vpop.f32.mrb[0].mxu0
      %6659 = vmatprep.mubr.bf16.mxu0 %v6617
      %6660 = vmatmul.mubr.bf16.gmra.mrb[0].mxu0 %v6545
      %v6661 = vpop.f32.mrb[0].mxu0
      %v6662 = vadd.f32 %v6551, %v6661
      %v6663 = vpop.f32.mrb[0].mxu0
      %v6664 = vpop.f32.mrb[0].mxu0
      %v6665 = vpop.f32.mrb[0].mxu0
      %6666 = vdwg.mxu0
      %v6667 = vtanh.pop %v6654
      %v6668 = vtanh.pop %v6657
      %v6669 = vtanh.pop %v6662
      %s6670 = scalar_lea.vmem %s15, 160
      %v6671 = vld [vmem:[%s6670] sm:$0xf]
      %v6672 = vld [vmem:[%s6670 + $0x4] sm:$0xf]
      %v6673 = vld [vmem:[%s6670 + $0x8] sm:$0xf]
      %v6674 = vld [vmem:[%s6670 + $0xc] sm:$0xf]
      %v6675 = vld [vmem:[%s6670 + $0x10] sm:$0xf]
      %v6676 = vld [vmem:[%s6670 + $0x14] sm:$0xf]
      %v6677 = vld [vmem:[%s6670 + $0x18] sm:$0xf]
      %v6678 = vld [vmem:[%s6670 + $0x1c] sm:$0xf]
      %v6679 = vld [vmem:[%s6670 + $0x20] sm:$0xf]
      %v6680 = vld [vmem:[%s6670 + $0x24] sm:$0xf]
      %v6681 = vld [vmem:[%s6670 + $0x28] sm:$0xf]
      %v6682 = vld [vmem:[%s6670 + $0x2c] sm:$0xf]
      %v6683 = vld [vmem:[%s6670 + $0x30] sm:$0xf]
      %v6684 = vld [vmem:[%s6670 + $0x34] sm:$0xf]
      %v6685 = vld [vmem:[%s6670 + $0x38] sm:$0xf]
      %v6686 = vld [vmem:[%s6670 + $0x3c] sm:$0xf]
      %v6687 = vld [vmem:[%s6670 + $0x40] sm:$0xf]
      %v6688 = vld [vmem:[%s6670 + $0x44] sm:$0xf]
      %v6689 = vld [vmem:[%s6670 + $0x48] sm:$0xf]
      %v6690 = vld [vmem:[%s6670 + $0x4c] sm:$0xf]
      %s6691 = scalar_lea.vmem %s16, 2
      %v6692 = vld [vmem:[%s6691] sm:$0x1]
      %6693 = vst.msk [vmem:[#allocation2 + $0x8] sm:$0xff] %vm422, %v6667
      %6694 = vst.msk [vmem:[#allocation2 + $0x10] sm:$0xff] %vm422, %v6668
      %6695 = vst.msk [vmem:[#allocation2 + $0x18] sm:$0xff] %vm422, %v6669
      %v6696 = vld [vmem:[#allocation2 + $0x6] sm:$0xff]
      %v6697 = vld [vmem:[#allocation2 + $0xe] sm:$0xff]
      %v6698 = vld [vmem:[#allocation2 + $0x16] sm:$0xff]
      %v6699 = vld [vmem:[#allocation2 + $0x7] sm:$0xff]
      %v6700 = vld [vmem:[#allocation2 + $0xf] sm:$0xff]
      %v6701 = vld [vmem:[#allocation2 + $0x17] sm:$0xff]
      %v6702 = vld [vmem:[#allocation2 + $0x8] sm:$0xff]
      %v6703 = vld [vmem:[#allocation2 + $0x10] sm:$0xff]
      %v6704 = vld [vmem:[#allocation2 + $0x18] sm:$0xff]
      %v6705 = vld [vmem:[#allocation2 + $0x9] sm:$0xff]
      %v6706 = vld [vmem:[#allocation2 + $0x11] sm:$0xff]
      %v6707 = vld [vmem:[#allocation2 + $0x19] sm:$0xff]
      %v6708 = vld [vmem:[#allocation2 + $0xa] sm:$0xff]
      %v6709 = vld [vmem:[#allocation2 + $0x12] sm:$0xff]
      %v6710 = vld [vmem:[#allocation2 + $0x1a] sm:$0xff]
      %6714 = vrot.lane.b32.xlu0 %v6699, 32
      %v6715 = vpop.permute.xlu0 %6714
      %6716 = vrot.lane.b32.xlu0 %v6700, 32
      %v6717 = vpop.permute.xlu0 %6716
      %6718 = vrot.lane.b32.xlu0 %v6701, 32
      %v6719 = vpop.permute.xlu0 %6718
      %6726 = vrot.lane.b32.xlu0 %v6702, 64
      %v6727 = vpop.permute.xlu0 %6726
      %6728 = vrot.lane.b32.xlu0 %v6703, 64
      %v6729 = vpop.permute.xlu0 %6728
      %6730 = vrot.lane.b32.xlu0 %v6704, 64
      %v6731 = vpop.permute.xlu0 %6730
      %6738 = vrot.lane.b32.xlu0 %v6705, 96
      %v6739 = vpop.permute.xlu0 %6738
      %6740 = vrot.lane.b32.xlu0 %v6706, 96
      %v6741 = vpop.permute.xlu0 %6740
      %6742 = vrot.lane.b32.xlu0 %v6707, 96
      %v6743 = vpop.permute.xlu0 %6742
      %v6747 = vsel %vm422, %v6696, %v6715
      %v6748 = vsel %vm422, %v6697, %v6717
      %v6749 = vsel %vm422, %v6698, %v6719
      %v6750 = vsel %vm1526, %v6747, %v6727
      %v6751 = vsel %vm1526, %v6748, %v6729
      %v6752 = vsel %vm1526, %v6749, %v6731
      %v6753 = vsel %vm1528, %v6750, %v6739
      %v6754 = vsel %vm1528, %v6751, %v6741
      %v6755 = vsel %vm1528, %v6752, %v6743
      %v6756 = vpack.c.bf16 %v6754, %v6753
      %v6757 = vpack.c.bf16 %v6709, %v6708
      %v6758 = vpack.c.bf16 %v6755, %v6755
      %v6759 = vpack.c.bf16 %v6710, %v6710
      %v6761 = vlaneseq
      %v6762 = vshrl.u32 %v6761, 7
      %v6763 = vsub.s32 0, %v6762
      %v6764 = vrot.slane %v6692, %v6763
      %v6786 = vunpack.c.l.b16 %v6671
      %v6787 = vunpack.c.l.b16 %v6672
      %v6788 = vunpack.c.l.b16 %v6673
      %v6789 = vunpack.c.l.b16 %v6674
      %v6790 = vunpack.c.l.b16 %v6675
      %v6791 = vunpack.c.l.b16 %v6676
      %v6792 = vunpack.c.l.b16 %v6677
      %v6793 = vunpack.c.l.b16 %v6678
      %v6794 = vunpack.c.l.b16 %v6679
      %v6795 = vunpack.c.l.b16 %v6680
      %v6796 = vunpack.c.l.b16 %v6681
      %v6797 = vunpack.c.l.b16 %v6682
      %v6798 = vunpack.c.l.b16 %v6683
      %v6799 = vunpack.c.l.b16 %v6684
      %v6800 = vunpack.c.l.b16 %v6685
      %v6801 = vunpack.c.l.b16 %v6686
      %v6802 = vunpack.c.l.b16 %v6687
      %v6803 = vunpack.c.l.b16 %v6688
      %v6804 = vunpack.c.l.b16 %v6689
      %v6805 = vunpack.c.l.b16 %v6690
      %v6806 = vpack.c.b16 %v6787, %v6786
      %v6807 = vpack.c.b16 %v6789, %v6788
      %v6808 = vpack.c.b16 %v6791, %v6790
      %v6809 = vpack.c.b16 %v6793, %v6792
      %v6810 = vpack.c.b16 %v6795, %v6794
      %v6811 = vpack.c.b16 %v6797, %v6796
      %v6812 = vpack.c.b16 %v6799, %v6798
      %v6813 = vpack.c.b16 %v6801, %v6800
      %v6814 = vpack.c.b16 %v6803, %v6802
      %v6815 = vpack.c.b16 %v6805, %v6804
      %v6827 = vsel %vm422, %v6757, 0
      %v6830 = vsel %vm422, %v6759, 0
      %6832 = vmatprep.subr.bf16.mxu0 0
      %6833 = vmatpush1.bf16.msra.mxu0 %v6806
      %6834 = vmatprep.subr.bf16.mxu0 0
      %6835 = vmatpush1.bf16.msra.mxu0 %v6807
      %6836 = vmatprep.subr.bf16.mxu0 0
      %6837 = vmatpush1.bf16.msra.mxu0 %v6808
      %6838 = vmatprep.subr.bf16.mxu0 0
      %6839 = vmatpush1.bf16.msra.mxu0 %v6809
      %6840 = vmatprep.subr.bf16.mxu0 0
      %6841 = vmatpush1.bf16.msra.mxu0 %v6810
      %6842 = vmatprep.subr.bf16.mxu0 0
      %6843 = vmatpush1.bf16.msra.mxu0 %v6811
      %6844 = vmatprep.subr.bf16.mxu0 0
      %6845 = vmatpush1.bf16.msra.mxu0 %v6812
      %6846 = vmatprep.subr.bf16.mxu0 0
      %6847 = vmatpush1.bf16.msra.mxu0 %v6813
      %6848 = vmatprep.subr.bf16.mxu0 0
      %6849 = vmatpush1.bf16.msra.mxu0 %v6814
      %6850 = vmatprep.subr.bf16.mxu0 0
      %6851 = vmatpush1.bf16.msra.mxu0 %v6815
      %6852 = vmatprep.subr.bf16.mxu0 0
      %6853 = vmatpush1.bf16.msra.mxu0 0
      %6854 = vmatprep.subr.bf16.mxu0 0
      %6855 = vmatpush1.bf16.msra.mxu0 0
      %6856 = vmatprep.subr.bf16.mxu0 0
      %6857 = vmatpush1.bf16.msra.mxu0 0
      %6858 = vmatprep.subr.bf16.mxu0 0
      %6859 = vmatpush1.bf16.msra.mxu0 0
      %6860 = vmatprep.subr.bf16.mxu0 0
      %6861 = vmatpush1.bf16.msra.mxu0 0
      %6862 = vmatprep.subr.bf16.mxu0 0
      %6863 = vmatpush1.bf16.msra.mxu0 0
      %6864 = vmatprep.mubr.bf16.mxu0 %v6827
      %6865 = vmatmul.mubr.bf16.gmra.mrb[0].mxu0 %v6756
      %v6866 = vpop.f32.mrb[0].mxu0
      %v6867 = vadd.f32 %v6764, %v6866
      %v6868 = vpop.f32.mrb[0].mxu0
      %v6869 = vpop.f32.mrb[0].mxu0
      %v6870 = vadd.f32 %v6764, %v6869
      %v6871 = vpop.f32.mrb[0].mxu0
      %6872 = vmatprep.mubr.bf16.mxu0 %v6830
      %6873 = vmatmul.mubr.bf16.gmra.mrb[0].mxu0 %v6758
      %v6874 = vpop.f32.mrb[0].mxu0
      %v6875 = vadd.f32 %v6764, %v6874
      %v6876 = vpop.f32.mrb[0].mxu0
      %v6877 = vpop.f32.mrb[0].mxu0
      %v6878 = vpop.f32.mrb[0].mxu0
      %6879 = vdwg.mxu0
      %v6880 = vtanh.pop %v6867
      %v6881 = vtanh.pop %v6870
      %v6882 = vtanh.pop %v6875
      %s6883 = scalar_lea.vmem %s15, 240
      %v6884 = vld [vmem:[%s6883] sm:$0xf]
      %v6885 = vld [vmem:[%s6883 + $0x4] sm:$0xf]
      %v6886 = vld [vmem:[%s6883 + $0x8] sm:$0xf]
      %v6887 = vld [vmem:[%s6883 + $0xc] sm:$0xf]
      %v6888 = vld [vmem:[%s6883 + $0x10] sm:$0xf]
      %v6889 = vld [vmem:[%s6883 + $0x14] sm:$0xf]
      %v6890 = vld [vmem:[%s6883 + $0x18] sm:$0xf]
      %v6891 = vld [vmem:[%s6883 + $0x1c] sm:$0xf]
      %v6892 = vld [vmem:[%s6883 + $0x20] sm:$0xf]
      %v6893 = vld [vmem:[%s6883 + $0x24] sm:$0xf]
      %v6894 = vld [vmem:[%s6883 + $0x28] sm:$0xf]
      %v6895 = vld [vmem:[%s6883 + $0x2c] sm:$0xf]
      %v6896 = vld [vmem:[%s6883 + $0x30] sm:$0xf]
      %v6897 = vld [vmem:[%s6883 + $0x34] sm:$0xf]
      %v6898 = vld [vmem:[%s6883 + $0x38] sm:$0xf]
      %v6899 = vld [vmem:[%s6883 + $0x3c] sm:$0xf]
      %v6900 = vld [vmem:[%s6883 + $0x40] sm:$0xf]
      %v6901 = vld [vmem:[%s6883 + $0x44] sm:$0xf]
      %v6902 = vld [vmem:[%s6883 + $0x48] sm:$0xf]
      %v6903 = vld [vmem:[%s6883 + $0x4c] sm:$0xf]
      %s6904 = scalar_lea.vmem %s16, 3
      %v6905 = vld [vmem:[%s6904] sm:$0x1]
      %6906 = vst.msk [vmem:[#allocation2 + $0x8] sm:$0xff] %vm422, %v6880
      %6907 = vst.msk [vmem:[#allocation2 + $0x10] sm:$0xff] %vm422, %v6881
      %6908 = vst.msk [vmem:[#allocation2 + $0x18] sm:$0xff] %vm422, %v6882
      %v6909 = vld [vmem:[#allocation2 + $0x6] sm:$0xff]
      %v6910 = vld [vmem:[#allocation2 + $0xe] sm:$0xff]
      %v6911 = vld [vmem:[#allocation2 + $0x16] sm:$0xff]
      %v6912 = vld [vmem:[#allocation2 + $0x7] sm:$0xff]
      %v6913 = vld [vmem:[#allocation2 + $0xf] sm:$0xff]
      %v6914 = vld [vmem:[#allocation2 + $0x17] sm:$0xff]
      %v6915 = vld [vmem:[#allocation2 + $0x8] sm:$0xff]
      %v6916 = vld [vmem:[#allocation2 + $0x10] sm:$0xff]
      %v6917 = vld [vmem:[#allocation2 + $0x18] sm:$0xff]
      %v6918 = vld [vmem:[#allocation2 + $0x9] sm:$0xff]
      %v6919 = vld [vmem:[#allocation2 + $0x11] sm:$0xff]
      %v6920 = vld [vmem:[#allocation2 + $0x19] sm:$0xff]
      %v6921 = vld [vmem:[#allocation2 + $0xa] sm:$0xff]
      %v6922 = vld [vmem:[#allocation2 + $0x12] sm:$0xff]
      %v6923 = vld [vmem:[#allocation2 + $0x1a] sm:$0xff]
      %6927 = vrot.lane.b32.xlu0 %v6912, 32
      %v6928 = vpop.permute.xlu0 %6927
      %6929 = vrot.lane.b32.xlu0 %v6913, 32
      %v6930 = vpop.permute.xlu0 %6929
      %6931 = vrot.lane.b32.xlu0 %v6914, 32
      %v6932 = vpop.permute.xlu0 %6931
      %6939 = vrot.lane.b32.xlu0 %v6915, 64
      %v6940 = vpop.permute.xlu0 %6939
      %6941 = vrot.lane.b32.xlu0 %v6916, 64
      %v6942 = vpop.permute.xlu0 %6941
      %6943 = vrot.lane.b32.xlu0 %v6917, 64
      %v6944 = vpop.permute.xlu0 %6943
      %6951 = vrot.lane.b32.xlu0 %v6918, 96
      %v6952 = vpop.permute.xlu0 %6951
      %6953 = vrot.lane.b32.xlu0 %v6919, 96
      %v6954 = vpop.permute.xlu0 %6953
      %6955 = vrot.lane.b32.xlu0 %v6920, 96
      %v6956 = vpop.permute.xlu0 %6955
      %v6960 = vsel %vm422, %v6909, %v6928
      %v6961 = vsel %vm422, %v6910, %v6930
      %v6962 = vsel %vm422, %v6911, %v6932
      %v6963 = vsel %vm1526, %v6960, %v6940
      %v6964 = vsel %vm1526, %v6961, %v6942
      %v6965 = vsel %vm1526, %v6962, %v6944
      %v6966 = vsel %vm1528, %v6963, %v6952
      %v6967 = vsel %vm1528, %v6964, %v6954
      %v6968 = vsel %vm1528, %v6965, %v6956
      %v6969 = vpack.c.bf16 %v6967, %v6966
      %v6970 = vpack.c.bf16 %v6922, %v6921
      %v6971 = vpack.c.bf16 %v6968, %v6968
      %v6972 = vpack.c.bf16 %v6923, %v6923
      %v6974 = vlaneseq
      %v6975 = vshrl.u32 %v6974, 7
      %v6976 = vsub.s32 0, %v6975
      %v6977 = vrot.slane %v6905, %v6976
      %v6999 = vunpack.c.l.b16 %v6884
      %v7000 = vunpack.c.l.b16 %v6885
      %v7001 = vunpack.c.l.b16 %v6886
      %v7002 = vunpack.c.l.b16 %v6887
      %v7003 = vunpack.c.l.b16 %v6888
      %v7004 = vunpack.c.l.b16 %v6889
      %v7005 = vunpack.c.l.b16 %v6890
      %v7006 = vunpack.c.l.b16 %v6891
      %v7007 = vunpack.c.l.b16 %v6892
      %v7008 = vunpack.c.l.b16 %v6893
      %v7009 = vunpack.c.l.b16 %v6894
      %v7010 = vunpack.c.l.b16 %v6895
      %v7011 = vunpack.c.l.b16 %v6896
      %v7012 = vunpack.c.l.b16 %v6897
      %v7013 = vunpack.c.l.b16 %v6898
      %v7014 = vunpack.c.l.b16 %v6899
      %v7015 = vunpack.c.l.b16 %v6900
      %v7016 = vunpack.c.l.b16 %v6901
      %v7017 = vunpack.c.l.b16 %v6902
      %v7018 = vunpack.c.l.b16 %v6903
      %v7019 = vpack.c.b16 %v7000, %v6999
      %v7020 = vpack.c.b16 %v7002, %v7001
      %v7021 = vpack.c.b16 %v7004, %v7003
      %v7022 = vpack.c.b16 %v7006, %v7005
      %v7023 = vpack.c.b16 %v7008, %v7007
      %v7024 = vpack.c.b16 %v7010, %v7009
      %v7025 = vpack.c.b16 %v7012, %v7011
      %v7026 = vpack.c.b16 %v7014, %v7013
      %v7027 = vpack.c.b16 %v7016, %v7015
      %v7028 = vpack.c.b16 %v7018, %v7017
      %v7040 = vsel %vm422, %v6970, 0
      %v7043 = vsel %vm422, %v6972, 0
      %7045 = vmatprep.subr.bf16.mxu0 0
      %7046 = vmatpush1.bf16.msra.mxu0 %v7019
      %7047 = vmatprep.subr.bf16.mxu0 0
      %7048 = vmatpush1.bf16.msra.mxu0 %v7020
      %7049 = vmatprep.subr.bf16.mxu0 0
      %7050 = vmatpush1.bf16.msra.mxu0 %v7021
      %7051 = vmatprep.subr.bf16.mxu0 0
      %7052 = vmatpush1.bf16.msra.mxu0 %v7022
      %7053 = vmatprep.subr.bf16.mxu0 0
      %7054 = vmatpush1.bf16.msra.mxu0 %v7023
      %7055 = vmatprep.subr.bf16.mxu0 0
      %7056 = vmatpush1.bf16.msra.mxu0 %v7024
      %7057 = vmatprep.subr.bf16.mxu0 0
      %7058 = vmatpush1.bf16.msra.mxu0 %v7025
      %7059 = vmatprep.subr.bf16.mxu0 0
      %7060 = vmatpush1.bf16.msra.mxu0 %v7026
      %7061 = vmatprep.subr.bf16.mxu0 0
      %7062 = vmatpush1.bf16.msra.mxu0 %v7027
      %7063 = vmatprep.subr.bf16.mxu0 0
      %7064 = vmatpush1.bf16.msra.mxu0 %v7028
      %7065 = vmatprep.subr.bf16.mxu0 0
      %7066 = vmatpush1.bf16.msra.mxu0 0
      %7067 = vmatprep.subr.bf16.mxu0 0
      %7068 = vmatpush1.bf16.msra.mxu0 0
      %7069 = vmatprep.subr.bf16.mxu0 0
      %7070 = vmatpush1.bf16.msra.mxu0 0
      %7071 = vmatprep.subr.bf16.mxu0 0
      %7072 = vmatpush1.bf16.msra.mxu0 0
      %7073 = vmatprep.subr.bf16.mxu0 0
      %7074 = vmatpush1.bf16.msra.mxu0 0
      %7075 = vmatprep.subr.bf16.mxu0 0
      %7076 = vmatpush1.bf16.msra.mxu0 0
      %7077 = vmatprep.mubr.bf16.mxu0 %v7040
      %7078 = vmatmul.mubr.bf16.gmra.mrb[0].mxu0 %v6969
      %v7079 = vpop.f32.mrb[0].mxu0
      %v7080 = vadd.f32 %v6977, %v7079
      %v7081 = vpop.f32.mrb[0].mxu0
      %v7082 = vpop.f32.mrb[0].mxu0
      %v7083 = vadd.f32 %v6977, %v7082
      %v7084 = vpop.f32.mrb[0].mxu0
      %7085 = vmatprep.mubr.bf16.mxu0 %v7043
      %7086 = vmatmul.mubr.bf16.gmra.mrb[0].mxu0 %v6971
      %v7087 = vpop.f32.mrb[0].mxu0
      %v7088 = vadd.f32 %v6977, %v7087
      %v7089 = vpop.f32.mrb[0].mxu0
      %v7090 = vpop.f32.mrb[0].mxu0
      %v7091 = vpop.f32.mrb[0].mxu0
      %7092 = vdwg.mxu0
      %v7093 = vtanh.pop %v7080
      %v7094 = vtanh.pop %v7083
      %v7095 = vtanh.pop %v7088
      %s7096 = scalar_lea.vmem %s15, 320
      %v7097 = vld [vmem:[%s7096] sm:$0xf]
      %v7098 = vld [vmem:[%s7096 + $0x4] sm:$0xf]
      %v7099 = vld [vmem:[%s7096 + $0x8] sm:$0xf]
      %v7100 = vld [vmem:[%s7096 + $0xc] sm:$0xf]
      %v7101 = vld [vmem:[%s7096 + $0x10] sm:$0xf]
      %v7102 = vld [vmem:[%s7096 + $0x14] sm:$0xf]
      %v7103 = vld [vmem:[%s7096 + $0x18] sm:$0xf]
      %v7104 = vld [vmem:[%s7096 + $0x1c] sm:$0xf]
      %v7105 = vld [vmem:[%s7096 + $0x20] sm:$0xf]
      %v7106 = vld [vmem:[%s7096 + $0x24] sm:$0xf]
      %v7107 = vld [vmem:[%s7096 + $0x28] sm:$0xf]
      %v7108 = vld [vmem:[%s7096 + $0x2c] sm:$0xf]
      %v7109 = vld [vmem:[%s7096 + $0x30] sm:$0xf]
      %v7110 = vld [vmem:[%s7096 + $0x34] sm:$0xf]
      %v7111 = vld [vmem:[%s7096 + $0x38] sm:$0xf]
      %v7112 = vld [vmem:[%s7096 + $0x3c] sm:$0xf]
      %v7113 = vld [vmem:[%s7096 + $0x40] sm:$0xf]
      %v7114 = vld [vmem:[%s7096 + $0x44] sm:$0xf]
      %v7115 = vld [vmem:[%s7096 + $0x48] sm:$0xf]
      %v7116 = vld [vmem:[%s7096 + $0x4c] sm:$0xf]
      %s7117 = scalar_lea.vmem %s16, 4
      %v7118 = vld [vmem:[%s7117] sm:$0x1]
      %7119 = vst.msk [vmem:[#allocation2 + $0x8] sm:$0xff] %vm422, %v7093
      %7120 = vst.msk [vmem:[#allocation2 + $0x10] sm:$0xff] %vm422, %v7094
      %7121 = vst.msk [vmem:[#allocation2 + $0x18] sm:$0xff] %vm422, %v7095
      %v7122 = vld [vmem:[#allocation2 + $0x6] sm:$0xff]
      %v7123 = vld [vmem:[#allocation2 + $0xe] sm:$0xff]
      %v7124 = vld [vmem:[#allocation2 + $0x16] sm:$0xff]
      %v7125 = vld [vmem:[#allocation2 + $0x7] sm:$0xff]
      %v7126 = vld [vmem:[#allocation2 + $0xf] sm:$0xff]
      %v7127 = vld [vmem:[#allocation2 + $0x17] sm:$0xff]
      %v7128 = vld [vmem:[#allocation2 + $0x8] sm:$0xff]
      %v7129 = vld [vmem:[#allocation2 + $0x10] sm:$0xff]
      %v7130 = vld [vmem:[#allocation2 + $0x18] sm:$0xff]
      %v7131 = vld [vmem:[#allocation2 + $0x9] sm:$0xff]
      %v7132 = vld [vmem:[#allocation2 + $0x11] sm:$0xff]
      %v7133 = vld [vmem:[#allocation2 + $0x19] sm:$0xff]
      %v7134 = vld [vmem:[#allocation2 + $0xa] sm:$0xff]
      %v7135 = vld [vmem:[#allocation2 + $0x12] sm:$0xff]
      %v7136 = vld [vmem:[#allocation2 + $0x1a] sm:$0xff]
      %7140 = vrot.lane.b32.xlu0 %v7125, 32
      %v7141 = vpop.permute.xlu0 %7140
      %7142 = vrot.lane.b32.xlu0 %v7126, 32
      %v7143 = vpop.permute.xlu0 %7142
      %7144 = vrot.lane.b32.xlu0 %v7127, 32
      %v7145 = vpop.permute.xlu0 %7144
      %7152 = vrot.lane.b32.xlu0 %v7128, 64
      %v7153 = vpop.permute.xlu0 %7152
      %7154 = vrot.lane.b32.xlu0 %v7129, 64
      %v7155 = vpop.permute.xlu0 %7154
      %7156 = vrot.lane.b32.xlu0 %v7130, 64
      %v7157 = vpop.permute.xlu0 %7156
      %7164 = vrot.lane.b32.xlu0 %v7131, 96
      %v7165 = vpop.permute.xlu0 %7164
      %7166 = vrot.lane.b32.xlu0 %v7132, 96
      %v7167 = vpop.permute.xlu0 %7166
      %7168 = vrot.lane.b32.xlu0 %v7133, 96
      %v7169 = vpop.permute.xlu0 %7168
      %v7173 = vsel %vm422, %v7122, %v7141
      %v7174 = vsel %vm422, %v7123, %v7143
      %v7175 = vsel %vm422, %v7124, %v7145
      %v7176 = vsel %vm1526, %v7173, %v7153
      %v7177 = vsel %vm1526, %v7174, %v7155
      %v7178 = vsel %vm1526, %v7175, %v7157
      %v7179 = vsel %vm1528, %v7176, %v7165
      %v7180 = vsel %vm1528, %v7177, %v7167
      %v7181 = vsel %vm1528, %v7178, %v7169
      %v7182 = vpack.c.bf16 %v7180, %v7179
      %v7183 = vpack.c.bf16 %v7135, %v7134
      %v7184 = vpack.c.bf16 %v7181, %v7181
      %v7185 = vpack.c.bf16 %v7136, %v7136
      %v7187 = vlaneseq
      %v7188 = vshrl.u32 %v7187, 7
      %v7189 = vsub.s32 0, %v7188
      %v7190 = vrot.slane %v7118, %v7189
      %v7212 = vunpack.c.l.b16 %v7097
      %v7213 = vunpack.c.l.b16 %v7098
      %v7214 = vunpack.c.l.b16 %v7099
      %v7215 = vunpack.c.l.b16 %v7100
      %v7216 = vunpack.c.l.b16 %v7101
      %v7217 = vunpack.c.l.b16 %v7102
      %v7218 = vunpack.c.l.b16 %v7103
      %v7219 = vunpack.c.l.b16 %v7104
      %v7220 = vunpack.c.l.b16 %v7105
      %v7221 = vunpack.c.l.b16 %v7106
      %v7222 = vunpack.c.l.b16 %v7107
      %v7223 = vunpack.c.l.b16 %v7108
      %v7224 = vunpack.c.l.b16 %v7109
      %v7225 = vunpack.c.l.b16 %v7110
      %v7226 = vunpack.c.l.b16 %v7111
      %v7227 = vunpack.c.l.b16 %v7112
      %v7228 = vunpack.c.l.b16 %v7113
      %v7229 = vunpack.c.l.b16 %v7114
      %v7230 = vunpack.c.l.b16 %v7115
      %v7231 = vunpack.c.l.b16 %v7116
      %v7232 = vpack.c.b16 %v7213, %v7212
      %v7233 = vpack.c.b16 %v7215, %v7214
      %v7234 = vpack.c.b16 %v7217, %v7216
      %v7235 = vpack.c.b16 %v7219, %v7218
      %v7236 = vpack.c.b16 %v7221, %v7220
      %v7237 = vpack.c.b16 %v7223, %v7222
      %v7238 = vpack.c.b16 %v7225, %v7224
      %v7239 = vpack.c.b16 %v7227, %v7226
      %v7240 = vpack.c.b16 %v7229, %v7228
      %v7241 = vpack.c.b16 %v7231, %v7230
      %v7253 = vsel %vm422, %v7183, 0
      %v7256 = vsel %vm422, %v7185, 0
      %7258 = vmatprep.subr.bf16.mxu0 0
      %7259 = vmatpush1.bf16.msra.mxu0 %v7232
      %7260 = vmatprep.subr.bf16.mxu0 0
      %7261 = vmatpush1.bf16.msra.mxu0 %v7233
      %7262 = vmatprep.subr.bf16.mxu0 0
      %7263 = vmatpush1.bf16.msra.mxu0 %v7234
      %7264 = vmatprep.subr.bf16.mxu0 0
      %7265 = vmatpush1.bf16.msra.mxu0 %v7235
      %7266 = vmatprep.subr.bf16.mxu0 0
      %7267 = vmatpush1.bf16.msra.mxu0 %v7236
      %7268 = vmatprep.subr.bf16.mxu0 0
      %7269 = vmatpush1.bf16.msra.mxu0 %v7237
      %7270 = vmatprep.subr.bf16.mxu0 0
      %7271 = vmatpush1.bf16.msra.mxu0 %v7238
      %7272 = vmatprep.subr.bf16.mxu0 0
      %7273 = vmatpush1.bf16.msra.mxu0 %v7239
      %7274 = vmatprep.subr.bf16.mxu0 0
      %7275 = vmatpush1.bf16.msra.mxu0 %v7240
      %7276 = vmatprep.subr.bf16.mxu0 0
      %7277 = vmatpush1.bf16.msra.mxu0 %v7241
      %7278 = vmatprep.subr.bf16.mxu0 0
      %7279 = vmatpush1.bf16.msra.mxu0 0
      %7280 = vmatprep.subr.bf16.mxu0 0
      %7281 = vmatpush1.bf16.msra.mxu0 0
      %7282 = vmatprep.subr.bf16.mxu0 0
      %7283 = vmatpush1.bf16.msra.mxu0 0
      %7284 = vmatprep.subr.bf16.mxu0 0
      %7285 = vmatpush1.bf16.msra.mxu0 0
      %7286 = vmatprep.subr.bf16.mxu0 0
      %7287 = vmatpush1.bf16.msra.mxu0 0
      %7288 = vmatprep.subr.bf16.mxu0 0
      %7289 = vmatpush1.bf16.msra.mxu0 0
      %7290 = vmatprep.mubr.bf16.mxu0 %v7253
      %7291 = vmatmul.mubr.bf16.gmra.mrb[0].mxu0 %v7182
      %v7292 = vpop.f32.mrb[0].mxu0
      %v7293 = vadd.f32 %v7190, %v7292
      %v7294 = vpop.f32.mrb[0].mxu0
      %v7295 = vpop.f32.mrb[0].mxu0
      %v7296 = vadd.f32 %v7190, %v7295
      %v7297 = vpop.f32.mrb[0].mxu0
      %7298 = vmatprep.mubr.bf16.mxu0 %v7256
      %7299 = vmatmul.mubr.bf16.gmra.mrb[0].mxu0 %v7184
      %v7300 = vpop.f32.mrb[0].mxu0
      %v7301 = vadd.f32 %v7190, %v7300
      %v7302 = vpop.f32.mrb[0].mxu0
      %v7303 = vpop.f32.mrb[0].mxu0
      %v7304 = vpop.f32.mrb[0].mxu0
      %7305 = vdwg.mxu0
      %v7306 = vadd.f32 %v7293, %v6258
      %v7307 = vadd.f32 %v7296, %v6261
      %v7308 = vadd.f32 %v7301, %v6266
      %7312 = vrot.lane.b32.xlu0 %v7306, 16
      %v7313 = vpop.permute.xlu0 %7312
      %7314 = vrot.lane.b32.xlu0 %v7307, 16
      %v7315 = vpop.permute.xlu0 %7314
      %7316 = vrot.lane.b32.xlu0 %v7308, 16
      %v7317 = vpop.permute.xlu0 %7316
      %v7321 = vsel %vm3069, %v6258, %v7313
      %v7322 = vsel %vm3069, %v6261, %v7315
      %v7323 = vsel %vm3069, %v6266, %v7317
      %v7324 = vsel %vm422, %v7321, 0.0
      %v7325 = vsel %vm422, %v7322, 0.0
      %v7326 = vsel %vm422, %v7323, 0.0
      %7327 = vst [vmem:[%s420] sm:$0xff] %v7324
      %7328 = vst [vmem:[%s420 + $0x8] sm:$0xff] %v7325
      %7329 = vst [vmem:[%s420 + $0x10] sm:$0xff] %v7326
      %p7330 = scmp.lt.s32.totalorder %s50, 1
      %s7331 = scalar_select %p7330, %s50, 1
      %s7332 = smul.addr %s7331, 3
      %s7333 = smul.addr %s7332, 8
      %s7334 = scalar_lea.vmem %s17, %s7333
      // Predicated region
      $region69: #{fastspeech_forward.1} parent=67 // pred_check
        %p7335 = pneg %p320
      $region70: #{fastspeech_forward.1} parent=67 // pred_check_branch
        %7337 = sbr.rel (%p7335) target = $region72
      $region71: #{fastspeech_forward.1} parent=67 // pred_region
        _
      $region72: #{fastspeech_forward.1} parent=67 // pred_fallthru
        _
    $region68: #{fastspeech_forward.1} parent=5 // pred_fallthru
      _
    %p7338 = scmp.le.s32.totalorder 2, %s45
    // Predicated region
    $region73: #{fastspeech_forward.1} parent=5 // pred_check
      %p7339 = pneg %p7338
    $region74: #{fastspeech_forward.1} parent=5 // pred_check_branch
      %7341 = sbr.rel (%p7339) target = $region76
    $region75: #{fastspeech_forward.1} parent=5 // pred_region
      %s7342 = ssub.s32 %s45, 2
      // Predicated region
      $region77: #{fastspeech_forward.1} parent=75 // pred_check
        %p7343 = pneg %p326
      $region78: #{fastspeech_forward.1} parent=75 // pred_check_branch
        %7345 = sbr.rel (%p7343) target = $region80
      $region79: #{fastspeech_forward.1} parent=75 // pred_region
        %p7346 = scmp.lt.s32.totalorder %s51, 1
        %s7347 = scalar_select %p7346, %s51, 1
        %s7348 = smul.addr %s7347, 3
        %s7349 = smul.addr %s7348, 8
        %s7350 = scalar_lea.vmem %s17, %s7349
      $region80: #{fastspeech_forward.1} parent=75 // pred_fallthru
        _
    $region76: #{fastspeech_forward.1} parent=5 // pred_fallthru
      _
  $region6: #{fastspeech_forward.1} parent=0 // loop_footer
    %s49 = sadd.s32 1, %s45
  $region7: #{fastspeech_forward.1} parent=0 // loop_footer_branch
    %44 = sbr.rel target = $region3
  $region8: #{fastspeech_forward.1} parent=0 // loop_exit
    _

</llo_original>
